<compile_context>
chip_gen: v7x
topology: tpu7x:2x2x1
jax: 0.10.0
libtpu: 0.0.40
codegen_flags: <defaults>
</compile_context>

<pallas_src>
import functools

import numpy as np

import jax
import jax.numpy as jnp
from jax.experimental import pallas as pl
from jax.experimental.pallas import tpu as pltpu

_BIG = 1e30            # Python float -> jaxpr literal, never a captured const
_IMAX = 2147483647     # int32 max, used for the index tie-break


def _row_tile(r, max_tile):
    """Largest row tile <= max_tile that is a multiple of 8 (or the full r)."""
    if r <= 8:
        return r
    return min(max_tile, (r // 8) * 8)


def _mosaic_params(dims):
    # Conservative scoped-VMEM cap so the kernels also fit v7x (64 MiB phys).
    # TODO(synk): raise to 64-96 MiB (and deepen buffering) on v5e/v6e parts.
    return pltpu.CompilerParams(dimension_semantics=dims,
                                vmem_limit_bytes=32 << 20)


# ----------------------------------------------------------------------------
# k-NN graph construction kernel
# ----------------------------------------------------------------------------
def _merge_top2(v, idx, rv1, ri1, rv2, ri2):
    b1 = v < rv1
    b2 = jnp.logical_and(jnp.logical_not(b1), v < rv2)
    nrv2 = jnp.where(b1, rv1, jnp.where(b2, v, rv2))
    nri2 = jnp.where(b1, ri1, jnp.where(b2, idx, ri2))
    nrv1 = jnp.where(b1, v, rv1)
    nri1 = jnp.where(b1, idx, ri1)
    return nrv1, nri1, nrv2, nri2


def _make_knn_kernel(dim, include_self, sub, nsub):
    """Fused pairwise-distance + 2-nearest-neighbor selection.

    Grid = (row tiles, column tiles); the column axis is the reduction.  The
    running top-2 distances live in VMEM scratch and the top-2 indices are
    accumulated directly in the (resident) output blocks, so the (N, N)
    distance matrix never exists.  Each column tile is processed as `nsub`
    128-lane sub-tiles to amortize the fixed per-grid-step overhead without
    blowing up vreg pressure.
    """

    def kernel(xr_ref, xt_ref, bidr_ref, bidc_ref, o1_ref, o2_ref,
               v1_ref, v2_ref):
        i = pl.program_id(0)
        j = pl.program_id(1)

        @pl.when(j == 0)
        def _():
            v1_ref[...] = jnp.full(v1_ref.shape, _BIG, jnp.float32)
            v2_ref[...] = jnp.full(v2_ref.shape, _BIG, jnp.float32)
            o1_ref[...] = jnp.zeros(o1_ref.shape, jnp.int32)
            o2_ref[...] = jnp.zeros(o2_ref.shape, jnp.int32)

        tr = xr_ref.shape[0]
        xr = xr_ref[...]                      # (tr, dim) f32
        bidr = bidr_ref[...]                  # (tr, 1)  int32

        rv1, ri1 = v1_ref[...], o1_ref[...]
        rv2, ri2 = v2_ref[...], o2_ref[...]

        if not include_self:
            row = jax.lax.broadcasted_iota(jnp.int32, (tr, sub), 0) + i * tr

        col_base = j * (nsub * sub)
        for t in range(nsub):                 # static unroll, 128-lane sub-tiles
            xt = xt_ref[:, t * sub:(t + 1) * sub]          # (dim, sub)
            bidc = bidc_ref[:, t * sub:(t + 1) * sub]      # (1, sub)

            # squared distances from per-dim differences (no Gram cancellation,
            # no in-kernel transpose)
            d2 = jnp.zeros((tr, sub), jnp.float32)
            for d in range(dim):
                diff = xr[:, d:d + 1] - xt[d:d + 1, :]
                d2 = d2 + diff * diff
            d2 = jnp.where(bidr == bidc, d2, _BIG)         # batch + padding mask

            col = (jax.lax.broadcasted_iota(jnp.int32, (tr, sub), 1)
                   + (col_base + t * sub))
            if not include_self:
                d2 = jnp.where(col == row, _BIG, d2)

            # sub-tile-local best two; ties break toward the lowest column index
            tv1 = jnp.min(d2, axis=-1, keepdims=True)
            ti1 = jnp.min(jnp.where(d2 <= tv1, col, _IMAX),
                          axis=-1, keepdims=True)
            d2b = jnp.where(col == ti1, _BIG, d2)
            tv2 = jnp.min(d2b, axis=-1, keepdims=True)
            ti2 = jnp.min(jnp.where(d2b <= tv2, col, _IMAX),
                          axis=-1, keepdims=True)

            rv1, ri1, rv2, ri2 = _merge_top2(tv1, ti1, rv1, ri1, rv2, ri2)
            rv1, ri1, rv2, ri2 = _merge_top2(tv2, ti2, rv1, ri1, rv2, ri2)

        v1_ref[...], o1_ref[...] = rv1, ri1
        v2_ref[...], o2_ref[...] = rv2, ri2

    return kernel


def pallas_knn(pos, batch_ids, k=2, add_self_edges=True,
               row_tile=128, col_tile=512):
    """2 nearest neighbors (within the same batch example) per particle.

    Returns (n, 2) int32 neighbor indices, nearest first.
    TODO(synk): a batch example with < 2 candidate neighbors leaves the second
    index at 0; examples are assumed to contain >= 2 particles.
    """
    assert k == 2, "kernel keeps a running 2-smallest state (GNS uses k=2)"
    n, dim = pos.shape
    tr = _row_tile(n, row_tile)
    cp = pl.cdiv(n, col_tile) * col_tile
    sub = min(col_tile, 128)
    nsub = col_tile // sub

    posf = pos.astype(jnp.float32)
    post = jnp.pad(posf.T, ((0, 0), (0, cp - n)))                    # (dim, cp)
    bid = batch_ids.astype(jnp.int32)
    bidr = bid[:, None]                                              # (n, 1)
    bidc = jnp.pad(bid[None, :], ((0, 0), (0, cp - n)),
                   constant_values=-1)                               # (1, cp)

    i1, i2 = pl.pallas_call(
        _make_knn_kernel(dim, add_self_edges, sub, nsub),
        grid=(pl.cdiv(n, tr), cp // col_tile),
        out_shape=(jax.ShapeDtypeStruct((n, 1), jnp.int32),
                   jax.ShapeDtypeStruct((n, 1), jnp.int32)),
        in_specs=[pl.BlockSpec((tr, dim), lambda i, j: (i, 0)),
                  pl.BlockSpec((dim, col_tile), lambda i, j: (0, j)),
                  pl.BlockSpec((tr, 1), lambda i, j: (i, 0)),
                  pl.BlockSpec((1, col_tile), lambda i, j: (0, j))],
        out_specs=(pl.BlockSpec((tr, 1), lambda i, j: (i, 0)),
                   pl.BlockSpec((tr, 1), lambda i, j: (i, 0))),
        scratch_shapes=[pltpu.VMEM((tr, 1), jnp.float32),
                        pltpu.VMEM((tr, 1), jnp.float32)],
        compiler_params=_mosaic_params(("parallel", "arbitrary")),
    )(posf, post, bidr, bidc)
    return jnp.concatenate([i1, i2], axis=1)


# ----------------------------------------------------------------------------
# Fused MLP / processor-step kernels
# ----------------------------------------------------------------------------
def _mlp_from_refs(parts, sizes, prefs, nlin, use_ln):
    """Shared MLP body: first layer is a sum of per-chunk matmuls (the input
    concat is never materialized), ReLU between layers, optional LayerNorm.
    Matmuls are bf16 x bf16 with f32 MXU accumulation."""
    w0_ref = prefs[0]
    h = prefs[1][...]                                     # (1, d1) f32 bias
    off = 0
    for part, sz in zip(parts, sizes):
        h = h + jnp.dot(part, w0_ref[off:off + sz, :],
                        preferred_element_type=jnp.float32)
        off += sz
    for layer in range(1, nlin):
        h = jnp.maximum(h, 0.0).astype(jnp.bfloat16)
        h = (jnp.dot(h, prefs[2 * layer][...],
                     preferred_element_type=jnp.float32)
             + prefs[2 * layer + 1][...])
    if use_ln:
        gamma = prefs[2 * nlin][...]
        beta = prefs[2 * nlin + 1][...]
        mean = jnp.mean(h, axis=-1, keepdims=True)
        diff = h - mean
        var = jnp.mean(diff * diff, axis=-1, keepdims=True)
        h = diff * jax.lax.rsqrt(var + 1e-5) * gamma + beta
    return h


def _make_mlp_kernel(nlin, use_ln):
    def kernel(*refs):
        x_ref = refs[0]
        o_ref = refs[-1]
        prefs = refs[1:-1]
        x = x_ref[...].astype(jnp.bfloat16)
        o_ref[...] = _mlp_from_refs([x], [x_ref.shape[1]], prefs, nlin, use_ln)
    return kernel


def pallas_mlp(x, p, use_ln, row_tile=512):
    """Row-gridded fused MLP (+ LayerNorm).  No lane padding: activations,
    weights and the output keep their true feature widths; f32 activations
    stream through VMEM and are cast to bf16 in-kernel for the MXU."""
    r, c = x.shape
    nlin = len(p["w"])
    out_dim = p["w"][-1].shape[1]
    tr = _row_tile(r, row_tile)

    args = [x]
    in_specs = [pl.BlockSpec((tr, c), lambda i: (i, 0))]
    for w, b in zip(p["w"], p["b"]):
        args += [w, b]
        in_specs += [pl.BlockSpec(w.shape, lambda i: (0, 0)),
                     pl.BlockSpec(b.shape, lambda i: (0, 0))]
    if use_ln:
        args += [p["ln_gamma"], p["ln_beta"]]
        in_specs += [pl.BlockSpec(p["ln_gamma"].shape, lambda i: (0, 0)),
                     pl.BlockSpec(p["ln_beta"].shape, lambda i: (0, 0))]

    return pl.pallas_call(
        _make_mlp_kernel(nlin, use_ln),
        grid=(pl.cdiv(r, tr),),
        out_shape=jax.ShapeDtypeStruct((r, out_dim), jnp.float32),
        in_specs=in_specs,
        out_specs=pl.BlockSpec((tr, out_dim), lambda i: (i, 0)),
        compiler_params=_mosaic_params(("parallel",)),
    )(*args)


def _make_processor_kernel(nlin, latent):
    nparam = 2 * nlin + 2   # per-MLP: nlin (w, b) pairs + LN gamma/beta

    def kernel(*refs):
        x_ref, xs1_ref, xs2_ref, e1_ref, e2_ref = refs[:5]
        ep = refs[5:5 + nparam]
        npp = refs[5 + nparam:5 + 2 * nparam]
        xo_ref, e1o_ref, e2o_ref = refs[5 + 2 * nparam:]

        x_f = x_ref[...]                    # (tr, L) f32, kept for the residual
        xc = x_f.astype(jnp.bfloat16)
        xs1 = xs1_ref[...].astype(jnp.bfloat16)
        xs2 = xs2_ref[...].astype(jnp.bfloat16)
        e1_f = e1_ref[...]
        e2_f = e2_ref[...]

        chunks3 = [latent, latent, latent]
        # edge MLP on both incoming edges of every node in the tile
        r1 = _mlp_from_refs([xc, xs1, e1_f.astype(jnp.bfloat16)],
                            chunks3, ep, nlin, True)
        r2 = _mlp_from_refs([xc, xs2, e2_f.astype(jnp.bfloat16)],
                            chunks3, ep, nlin, True)
        e1o_ref[...] = r1 + e1_f            # fused edge residuals
        e2o_ref[...] = r2 + e2_f

        # k=2 receiver aggregation == elementwise add of the pre-residual
        # messages (matches torch_geometric aggr='add')
        agg = (r1 + r2).astype(jnp.bfloat16)
        rn = _mlp_from_refs([agg, xc], [latent, latent], npp, nlin, True)
        xo_ref[...] = rn + x_f              # fused node residual

    return kernel


def pallas_processor_step(x, xs1, xs2, e1, e2, edge_p, node_p, row_tile=512):
    """One fused InteractionNetwork step: edge MLP on both incoming edges,
    k=2 receiver aggregation, node MLP and both residual adds in one kernel.
    The (E, 3*latent) concat / scatter-add / x-repeat never touch HBM."""
    n, latent = x.shape
    nlin = len(edge_p["w"])
    tr = _row_tile(n, row_tile)
    act_spec = pl.BlockSpec((tr, latent), lambda i: (i, 0))

    def param_args(p):
        a, sp = [], []
        for w, b in zip(p["w"], p["b"]):
            a += [w, b]
            sp += [pl.BlockSpec(w.shape, lambda i: (0, 0)),
                   pl.BlockSpec(b.shape, lambda i: (0, 0))]
        a += [p["ln_gamma"], p["ln_beta"]]
        sp += [pl.BlockSpec(p["ln_gamma"].shape, lambda i: (0, 0)),
               pl.BlockSpec(p["ln_beta"].shape, lambda i: (0, 0))]
        return a, sp

    ea, es = param_args(edge_p)
    na, ns = param_args(node_p)

    x_new, e1_new, e2_new = pl.pallas_call(
        _make_processor_kernel(nlin, latent),
        grid=(pl.cdiv(n, tr),),
        out_shape=tuple(jax.ShapeDtypeStruct((n, latent), jnp.float32)
                        for _ in range(3)),
        in_specs=[act_spec] * 5 + es + ns,
        out_specs=(act_spec,) * 3,
        compiler_params=_mosaic_params(("parallel",)),
    )(x, xs1, xs2, e1, e2, *ea, *na)
    return x_new, e1_new, e2_new


# ----------------------------------------------------------------------------
# Parameter initialization (deterministic, synthetic, true shapes)
# ----------------------------------------------------------------------------
def _init_mlp(key, in_dim, hidden, out_dim, nmlp_layers, use_ln):
    sizes = [in_dim] + [hidden] * nmlp_layers + [out_dim]
    ws, bs = [], []
    for i in range(len(sizes) - 1):
        key, k = jax.random.split(key)
        scale = 1.0 / np.sqrt(sizes[i])
        w = jax.random.normal(k, (sizes[i], sizes[i + 1]), jnp.float32) * scale
        ws.append(w.astype(jnp.bfloat16))          # bf16 MXU weights
        bs.append(jnp.zeros((1, sizes[i + 1]), jnp.float32))
    p = {"w": ws, "b": bs}
    if use_ln:
        p["ln_gamma"] = jnp.ones((1, out_dim), jnp.float32)
        p["ln_beta"] = jnp.zeros((1, out_dim), jnp.float32)
    return p


def init_params(key, cfg):
    keys = jax.random.split(key, 6 + 2 * cfg["nmessage_passing_steps"])
    params = {
        "particle_type_embedding": jax.random.normal(
            keys[0], (cfg["nparticle_types"], cfg["particle_type_embedding_size"]),
            jnp.float32),
        "universe_number_embedding": jax.random.normal(
            keys[1], (cfg["nuniverse_types"], cfg["universe_number_embedding_size"]),
            jnp.float32),
        "node_encoder": _init_mlp(keys[2], cfg["nnode_in"], cfg["mlp_hidden_dim"],
                                  cfg["latent_dim"], cfg["nmlp_layers"], True),
        "edge_encoder": _init_mlp(keys[3], cfg["nedge_in"], cfg["mlp_hidden_dim"],
                                  cfg["latent_dim"], cfg["nmlp_layers"], True),
        "decoder": _init_mlp(keys[4], cfg["latent_dim"], cfg["mlp_hidden_dim"],
                             cfg["particle_dimensions"], cfg["nmlp_layers"], False),
        "processor": [],
    }
    for s in range(cfg["nmessage_passing_steps"]):
        params["processor"].append({
            "edge_fn": _init_mlp(keys[5 + 2 * s], 3 * cfg["latent_dim"],
                                 cfg["mlp_hidden_dim"], cfg["latent_dim"],
                                 cfg["nmlp_layers"], True),
            "node_fn": _init_mlp(keys[6 + 2 * s], 2 * cfg["latent_dim"],
                                 cfg["mlp_hidden_dim"], cfg["latent_dim"],
                                 cfg["nmlp_layers"], True),
        })
    return params


# ----------------------------------------------------------------------------
# LearnedSimulator forward path (predict_positions)
# ----------------------------------------------------------------------------
def compute_graph_connectivity(most_recent_position, batch_ids, k=2,
                               add_self_edges=True):
    # TODO(synk): torch_geometric.knn_graph's exact tie-breaking / edge-ordering
    # convention is not reproduced bit-exactly; semantics (k nearest within the
    # same batch example, optional self-loops) are.  Edges are implicitly
    # (neighbor -> particle): receivers == arange(n), repeated per neighbor.
    return pallas_knn(most_recent_position, batch_ids, k=k,
                      add_self_edges=add_self_edges)      # (n, k)


def encoder_preprocessor(params, cfg, position_sequence, batch_ids,
                         particle_types, universe_numbers, material_property=None):
    nparticles = position_sequence.shape[0]
    most_recent_position = position_sequence[:, -1]
    velocity_sequence = position_sequence[:, 1:] - position_sequence[:, :-1]

    nbr = compute_graph_connectivity(most_recent_position, batch_ids,
                                     k=2, add_self_edges=True)

    vstats = cfg["normalization_stats"]["velocity"]
    normalized_velocity = (velocity_sequence - vstats["mean"]) / vstats["std"]
    node_features = [normalized_velocity.reshape(nparticles, -1)]

    boundaries = jnp.asarray(cfg["boundaries"], jnp.float32)     # (dim, 2)
    dist_lower = most_recent_position - boundaries[:, 0][None]
    dist_upper = boundaries[:, 1][None] - most_recent_position
    node_features.append(jnp.concatenate([dist_lower, dist_upper], axis=1))

    if cfg["nparticle_types"] > 1:
        node_features.append(jnp.take(params["particle_type_embedding"],
                                      particle_types, axis=0))
    if cfg["nuniverse_types"] > 1:
        node_features.append(jnp.take(params["universe_number_embedding"],
                                      universe_numbers, axis=0))
    if material_property is not None:
        node_features.append(material_property)

    # per-neighbor edge features: relative displacement + distance.
    # TODO(synk): these gathers (and x[nbr] in the processor loop) stay in XLA;
    # they could be moved in-kernel via scalar-prefetched DMA gathers.
    rel1 = most_recent_position[nbr[:, 0]] - most_recent_position
    rel2 = most_recent_position[nbr[:, 1]] - most_recent_position
    ef1 = jnp.concatenate(
        [rel1, jnp.linalg.norm(rel1, axis=-1, keepdims=True)], axis=-1)
    ef2 = jnp.concatenate(
        [rel2, jnp.linalg.norm(rel2, axis=-1, keepdims=True)], axis=-1)

    return jnp.concatenate(node_features, axis=-1), nbr, (ef1, ef2)


def encode_process_decode(params, cfg, node_features, nbr, edge_features):
    ef1, ef2 = edge_features
    x = pallas_mlp(node_features, params["node_encoder"], True)
    e1 = pallas_mlp(ef1, params["edge_encoder"], True)
    e2 = pallas_mlp(ef2, params["edge_encoder"], True)

    for step in params["processor"]:
        xs1 = x[nbr[:, 0]]            # sender (neighbor) features
        xs2 = x[nbr[:, 1]]
        x, e1, e2 = pallas_processor_step(x, xs1, xs2, e1, e2,
                                          step["edge_fn"], step["node_fn"])

    return pallas_mlp(x, params["decoder"], False)


def decoder_postprocessor(cfg, normalized_acceleration, position_sequence):
    astats = cfg["normalization_stats"]["acceleration"]
    acceleration = normalized_acceleration * astats["std"] + astats["mean"]
    most_recent_position = position_sequence[:, -1]
    most_recent_velocity = most_recent_position - position_sequence[:, -2]
    new_velocity = most_recent_velocity + acceleration
    return most_recent_position + new_velocity


def predict_positions(params, cfg, current_positions, batch_ids,
                      particle_types, universe_numbers, material_property=None):
    node_features, nbr, edge_features = encoder_preprocessor(
        params, cfg, current_positions, batch_ids, particle_types,
        universe_numbers, material_property)
    normalized_acceleration = encode_process_decode(
        params, cfg, node_features, nbr, edge_features)
    return decoder_postprocessor(cfg, normalized_acceleration, current_positions)


# ----------------------------------------------------------------------------
if __name__ == "__main__":
    dim = 2
    cfg = {
        "particle_dimensions": dim,
        "latent_dim": 32,
        "nmessage_passing_steps": 2,
        "nmlp_layers": 2,
        "mlp_hidden_dim": 32,
        "nparticle_types": 3,
        "particle_type_embedding_size": 4,
        "nuniverse_types": 2,
        "universe_number_embedding_size": 4,
        "boundaries": np.array([[0.0, 1.0], [0.0, 1.0]], dtype=np.float32),
        "normalization_stats": {
            "velocity": {"mean": jnp.zeros((dim,), jnp.float32),
                         "std": jnp.ones((dim,), jnp.float32)},
            "acceleration": {"mean": jnp.zeros((dim,), jnp.float32),
                             "std": jnp.ones((dim,), jnp.float32)},
        },
    }
    # nnode_in = flat velocity (1 step * dim) + 2*dim boundary dists + embeddings
    cfg["nnode_in"] = dim + 2 * dim + cfg["particle_type_embedding_size"] \
        + cfg["universe_number_embedding_size"]
    cfg["nedge_in"] = dim + 1

    nparticles_per_example = [16, 16]
    nparticles = int(sum(nparticles_per_example))
    batch_ids = jnp.asarray(
        np.concatenate([np.full(n, i, np.int32)
                        for i, n in enumerate(nparticles_per_example)]))

    key = jax.random.PRNGKey(0)
    k_pos, k_pt, k_un, k_param = jax.random.split(key, 4)
    position_sequence = jax.random.uniform(k_pos, (nparticles, 2, dim), jnp.float32)
    particle_types = jax.random.randint(k_pt, (nparticles,), 0, cfg["nparticle_types"])
    universe_numbers = jax.random.randint(k_un, (nparticles,), 0, cfg["nuniverse_types"])

    params = init_params(k_param, cfg)

    fwd = jax.jit(functools.partial(predict_positions, params, cfg))
    next_positions = fwd(position_sequence, batch_ids, particle_types,
                         universe_numbers)
    next_positions = jax.block_until_ready(next_positions)

    # sanity checks on the fused k-NN kernel: self edge present, neighbors
    # stay inside the same batch example, the two neighbors are distinct.
    nbr = np.asarray(jax.block_until_ready(
        compute_graph_connectivity(position_sequence[:, -1], batch_ids,
                                   k=2, add_self_edges=True)))
    bid_np = np.asarray(batch_ids)
    assert np.all(np.any(nbr == np.arange(nparticles)[:, None], axis=1))
    assert np.all(bid_np[nbr] == bid_np[:, None])
    assert np.all(nbr[:, 0] != nbr[:, 1])

    assert next_positions.shape == (nparticles, dim)
    assert bool(jnp.all(jnp.isfinite(next_positions)))
    print("KERNEL_OK")
</pallas_src>

<mosaic_0001>
module attributes {stable_mosaic.version = 11 : i64} {
  func.func @kernel(%arg0: i32, %arg1: i32, %arg2: memref<32x2xf32, #tpu.memory_space<vmem>>, %arg3: memref<2x512xf32, #tpu.memory_space<vmem>>, %arg4: memref<32x1xi32, #tpu.memory_space<vmem>>, %arg5: memref<1x512xi32, #tpu.memory_space<vmem>>, %arg6: memref<32x1xi32, #tpu.memory_space<vmem>>, %arg7: memref<32x1xi32, #tpu.memory_space<vmem>>, %arg8: memref<32x1xf32, #tpu.memory_space<vmem>>, %arg9: memref<32x1xf32, #tpu.memory_space<vmem>>) attributes {dimension_semantics = [#tpu.dimension_semantics<parallel>, #tpu.dimension_semantics<arbitrary>], iteration_bounds = array<i64: 1, 1>, scalar_prefetch = 0 : i64, scratch_operands = 2 : i64, tpu.core_type = #tpu.core_type<tc>, window_params = [{transform_indices = @transform_0, window_bounds = array<i64: 32, 2>}, {transform_indices = @transform_1, window_bounds = array<i64: 2, 512>}, {transform_indices = @transform_2, window_bounds = array<i64: 32, 1>}, {transform_indices = @transform_3, window_bounds = array<i64: 1, 512>}, {transform_indices = @transform_4, window_bounds = array<i64: 32, 1>}, {transform_indices = @transform_5, window_bounds = array<i64: 32, 1>}]} {
    %c0_i32 = arith.constant 0 : i32
    %0 = arith.cmpi eq, %arg1, %c0_i32 : i32
    %1 = arith.extui %0 : i1 to i32
    %c0_i32_0 = arith.constant 0 : i32
    %2 = arith.cmpi ne, %1, %c0_i32_0 : i32
    scf.if %2 {
      %cst_76 = arith.constant 1.000000e+30 : f32
      %278 = vector.broadcast %cst_76 : f32 to vector<32x1xf32>
      %c0_77 = arith.constant 0 : index
      %c0_78 = arith.constant 0 : index
      %279 = vector.load %arg8[%c0_77, %c0_78] : memref<32x1xf32, #tpu.memory_space<vmem>>, vector<32x1xf32>
      tpu.vector_store %arg8[%c0_77, %c0_78], %278 {strides = array<i32>} : memref<32x1xf32, #tpu.memory_space<vmem>>, vector<32x1xf32>,
      %cst_79 = arith.constant 1.000000e+30 : f32
      %280 = vector.broadcast %cst_79 : f32 to vector<32x1xf32>
      %c0_80 = arith.constant 0 : index
      %c0_81 = arith.constant 0 : index
      %281 = vector.load %arg9[%c0_80, %c0_81] : memref<32x1xf32, #tpu.memory_space<vmem>>, vector<32x1xf32>
      tpu.vector_store %arg9[%c0_80, %c0_81], %280 {strides = array<i32>} : memref<32x1xf32, #tpu.memory_space<vmem>>, vector<32x1xf32>,
      %c0_i32_82 = arith.constant 0 : i32
      %282 = vector.broadcast %c0_i32_82 : i32 to vector<32x1xi32>
      %c0_83 = arith.constant 0 : index
      %c0_84 = arith.constant 0 : index
      %283 = vector.load %arg6[%c0_83, %c0_84] : memref<32x1xi32, #tpu.memory_space<vmem>>, vector<32x1xi32>
      tpu.vector_store %arg6[%c0_83, %c0_84], %282 {strides = array<i32>} : memref<32x1xi32, #tpu.memory_space<vmem>>, vector<32x1xi32>,
      %c0_i32_85 = arith.constant 0 : i32
      %284 = vector.broadcast %c0_i32_85 : i32 to vector<32x1xi32>
      %c0_86 = arith.constant 0 : index
      %c0_87 = arith.constant 0 : index
      %285 = vector.load %arg7[%c0_86, %c0_87] : memref<32x1xi32, #tpu.memory_space<vmem>>, vector<32x1xi32>
      tpu.vector_store %arg7[%c0_86, %c0_87], %284 {strides = array<i32>} : memref<32x1xi32, #tpu.memory_space<vmem>>, vector<32x1xi32>,
    } else {
    }
    %c0 = arith.constant 0 : index
    %c0_1 = arith.constant 0 : index
    %3 = vector.load %arg2[%c0, %c0_1] : memref<32x2xf32, #tpu.memory_space<vmem>>, vector<32x2xf32>
    %c0_2 = arith.constant 0 : index
    %c0_3 = arith.constant 0 : index
    %4 = vector.load %arg4[%c0_2, %c0_3] : memref<32x1xi32, #tpu.memory_space<vmem>>, vector<32x1xi32>
    %c0_4 = arith.constant 0 : index
    %c0_5 = arith.constant 0 : index
    %5 = vector.load %arg8[%c0_4, %c0_5] : memref<32x1xf32, #tpu.memory_space<vmem>>, vector<32x1xf32>
    %c0_6 = arith.constant 0 : index
    %c0_7 = arith.constant 0 : index
    %6 = vector.load %arg6[%c0_6, %c0_7] : memref<32x1xi32, #tpu.memory_space<vmem>>, vector<32x1xi32>
    %c0_8 = arith.constant 0 : index
    %c0_9 = arith.constant 0 : index
    %7 = vector.load %arg9[%c0_8, %c0_9] : memref<32x1xf32, #tpu.memory_space<vmem>>, vector<32x1xf32>
    %c0_10 = arith.constant 0 : index
    %c0_11 = arith.constant 0 : index
    %8 = vector.load %arg7[%c0_10, %c0_11] : memref<32x1xi32, #tpu.memory_space<vmem>>, vector<32x1xi32>
    %c512_i32 = arith.constant 512 : i32
    %9 = arith.muli %arg1, %c512_i32 : i32
    %c0_12 = arith.constant 0 : index
    %c0_13 = arith.constant 0 : index
    %10 = vector.load %arg3[%c0_12, %c0_13] : memref<2x512xf32, #tpu.memory_space<vmem>>, vector<2x128xf32>
    %c0_14 = arith.constant 0 : index
    %c0_15 = arith.constant 0 : index
    %11 = vector.load %arg5[%c0_14, %c0_15] : memref<1x512xi32, #tpu.memory_space<vmem>>, vector<1x128xi32>
    %cst = arith.constant 0.000000e+00 : f32
    %12 = vector.broadcast %cst : f32 to vector<32x128xf32>
    %13 = vector.extract_strided_slice %3 {offsets = [0, 0], sizes = [32, 1], strides = [1, 1]} : vector<32x2xf32> to vector<32x1xf32>
    %14 = vector.extract_strided_slice %10 {offsets = [0, 0], sizes = [1, 128], strides = [1, 1]} : vector<2x128xf32> to vector<1x128xf32>
    %15 = vector.broadcast %13 : vector<32x1xf32> to vector<32x128xf32>
    %16 = vector.broadcast %14 : vector<1x128xf32> to vector<32x128xf32>
    %17 = arith.subf %15, %16 : vector<32x128xf32>
    %18 = arith.mulf %17, %17 : vector<32x128xf32>
    %19 = arith.addf %12, %18 : vector<32x128xf32>
    %20 = vector.extract_strided_slice %3 {offsets = [0, 1], sizes = [32, 1], strides = [1, 1]} : vector<32x2xf32> to vector<32x1xf32>
    %21 = vector.extract_strided_slice %10 {offsets = [1, 0], sizes = [1, 128], strides = [1, 1]} : vector<2x128xf32> to vector<1x128xf32>
    %22 = vector.broadcast %20 : vector<32x1xf32> to vector<32x128xf32>
    %23 = vector.broadcast %21 : vector<1x128xf32> to vector<32x128xf32>
    %24 = arith.subf %22, %23 : vector<32x128xf32>
    %25 = arith.mulf %24, %24 : vector<32x128xf32>
    %26 = arith.addf %19, %25 : vector<32x128xf32>
    %27 = vector.broadcast %4 : vector<32x1xi32> to vector<32x128xi32>
    %28 = vector.broadcast %11 : vector<1x128xi32> to vector<32x128xi32>
    %29 = arith.cmpi eq, %27, %28 : vector<32x128xi32>
    %cst_16 = arith.constant 1.000000e+30 : f32
    %30 = vector.broadcast %cst_16 : f32 to vector<32x128xf32>
    %31 = arith.select %29, %26, %30 : vector<32x128xi1>, vector<32x128xf32>
    %32 = tpu.iota {dimensions = array<i32: 1>} : vector<32x128xi32>
    %c0_i32_17 = arith.constant 0 : i32
    %33 = arith.addi %9, %c0_i32_17 : i32
    %34 = vector.broadcast %33 : i32 to vector<32x128xi32>
    %35 = arith.addi %32, %34 : vector<32x128xi32>
    %cst_18 = arith.constant dense<0x7F800000> : vector<32xf32>
    %36 = vector.multi_reduction <minimumf>, %31, %cst_18 [1] : vector<32x128xf32> to vector<32xf32>
    %37 = vector.shape_cast %36 : vector<32xf32> to vector<32x1xf32>
    %38 = vector.broadcast %37 : vector<32x1xf32> to vector<32x128xf32>
    %39 = arith.cmpf ole, %31, %38 : vector<32x128xf32>
    %c2147483647_i32 = arith.constant 2147483647 : i32
    %40 = vector.broadcast %c2147483647_i32 : i32 to vector<32x128xi32>
    %41 = arith.select %39, %35, %40 : vector<32x128xi1>, vector<32x128xi32>
    %cst_19 = arith.constant dense<2147483647> : vector<32xi32>
    %42 = vector.multi_reduction <minsi>, %41, %cst_19 [1] : vector<32x128xi32> to vector<32xi32>
    %43 = vector.shape_cast %42 : vector<32xi32> to vector<32x1xi32>
    %44 = vector.broadcast %43 : vector<32x1xi32> to vector<32x128xi32>
    %45 = arith.cmpi eq, %35, %44 : vector<32x128xi32>
    %cst_20 = arith.constant 1.000000e+30 : f32
    %46 = vector.broadcast %cst_20 : f32 to vector<32x128xf32>
    %47 = arith.select %45, %46, %31 : vector<32x128xi1>, vector<32x128xf32>
    %cst_21 = arith.constant dense<0x7F800000> : vector<32xf32>
    %48 = vector.multi_reduction <minimumf>, %47, %cst_21 [1] : vector<32x128xf32> to vector<32xf32>
    %49 = vector.shape_cast %48 : vector<32xf32> to vector<32x1xf32>
    %50 = vector.broadcast %49 : vector<32x1xf32> to vector<32x128xf32>
    %51 = arith.cmpf ole, %47, %50 : vector<32x128xf32>
    %c2147483647_i32_22 = arith.constant 2147483647 : i32
    %52 = vector.broadcast %c2147483647_i32_22 : i32 to vector<32x128xi32>
    %53 = arith.select %51, %35, %52 : vector<32x128xi1>, vector<32x128xi32>
    %cst_23 = arith.constant dense<2147483647> : vector<32xi32>
    %54 = vector.multi_reduction <minsi>, %53, %cst_23 [1] : vector<32x128xi32> to vector<32xi32>
    %55 = vector.shape_cast %54 : vector<32xi32> to vector<32x1xi32>
    %56 = arith.cmpf olt, %37, %5 : vector<32x1xf32>
    %cst_24 = arith.constant dense<true> : vector<32x1xi1>
    %57 = arith.xori %56, %cst_24 : vector<32x1xi1>
    %58 = arith.cmpf olt, %37, %7 : vector<32x1xf32>
    %59 = arith.andi %57, %58 : vector<32x1xi1>
    %60 = arith.select %59, %37, %7 : vector<32x1xi1>, vector<32x1xf32>
    %61 = arith.select %56, %5, %60 : vector<32x1xi1>, vector<32x1xf32>
    %62 = arith.select %59, %43, %8 : vector<32x1xi1>, vector<32x1xi32>
    %63 = arith.select %56, %6, %62 : vector<32x1xi1>, vector<32x1xi32>
    %64 = arith.select %56, %37, %5 : vector<32x1xi1>, vector<32x1xf32>
    %65 = arith.select %56, %43, %6 : vector<32x1xi1>, vector<32x1xi32>
    %66 = arith.cmpf olt, %49, %64 : vector<32x1xf32>
    %cst_25 = arith.constant dense<true> : vector<32x1xi1>
    %67 = arith.xori %66, %cst_25 : vector<32x1xi1>
    %68 = arith.cmpf olt, %49, %61 : vector<32x1xf32>
    %69 = arith.andi %67, %68 : vector<32x1xi1>
    %70 = arith.select %69, %49, %61 : vector<32x1xi1>, vector<32x1xf32>
    %71 = arith.select %66, %64, %70 : vector<32x1xi1>, vector<32x1xf32>
    %72 = arith.select %69, %55, %63 : vector<32x1xi1>, vector<32x1xi32>
    %73 = arith.select %66, %65, %72 : vector<32x1xi1>, vector<32x1xi32>
    %74 = arith.select %66, %49, %64 : vector<32x1xi1>, vector<32x1xf32>
    %75 = arith.select %66, %55, %65 : vector<32x1xi1>, vector<32x1xi32>
    %c0_26 = arith.constant 0 : index
    %c128 = arith.constant 128 : index
    %76 = vector.load %arg3[%c0_26, %c128] : memref<2x512xf32, #tpu.memory_space<vmem>>, vector<2x128xf32>
    %c0_27 = arith.constant 0 : index
    %c128_28 = arith.constant 128 : index
    %77 = vector.load %arg5[%c0_27, %c128_28] : memref<1x512xi32, #tpu.memory_space<vmem>>, vector<1x128xi32>
    %cst_29 = arith.constant 0.000000e+00 : f32
    %78 = vector.broadcast %cst_29 : f32 to vector<32x128xf32>
    %79 = vector.extract_strided_slice %3 {offsets = [0, 0], sizes = [32, 1], strides = [1, 1]} : vector<32x2xf32> to vector<32x1xf32>
    %80 = vector.extract_strided_slice %76 {offsets = [0, 0], sizes = [1, 128], strides = [1, 1]} : vector<2x128xf32> to vector<1x128xf32>
    %81 = vector.broadcast %79 : vector<32x1xf32> to vector<32x128xf32>
    %82 = vector.broadcast %80 : vector<1x128xf32> to vector<32x128xf32>
    %83 = arith.subf %81, %82 : vector<32x128xf32>
    %84 = arith.mulf %83, %83 : vector<32x128xf32>
    %85 = arith.addf %78, %84 : vector<32x128xf32>
    %86 = vector.extract_strided_slice %3 {offsets = [0, 1], sizes = [32, 1], strides = [1, 1]} : vector<32x2xf32> to vector<32x1xf32>
    %87 = vector.extract_strided_slice %76 {offsets = [1, 0], sizes = [1, 128], strides = [1, 1]} : vector<2x128xf32> to vector<1x128xf32>
    %88 = vector.broadcast %86 : vector<32x1xf32> to vector<32x128xf32>
    %89 = vector.broadcast %87 : vector<1x128xf32> to vector<32x128xf32>
    %90 = arith.subf %88, %89 : vector<32x128xf32>
    %91 = arith.mulf %90, %90 : vector<32x128xf32>
    %92 = arith.addf %85, %91 : vector<32x128xf32>
    %93 = vector.broadcast %4 : vector<32x1xi32> to vector<32x128xi32>
    %94 = vector.broadcast %77 : vector<1x128xi32> to vector<32x128xi32>
    %95 = arith.cmpi eq, %93, %94 : vector<32x128xi32>
    %cst_30 = arith.constant 1.000000e+30 : f32
    %96 = vector.broadcast %cst_30 : f32 to vector<32x128xf32>
    %97 = arith.select %95, %92, %96 : vector<32x128xi1>, vector<32x128xf32>
    %98 = tpu.iota {dimensions = array<i32: 1>} : vector<32x128xi32>
    %c128_i32 = arith.constant 128 : i32
    %99 = arith.addi %9, %c128_i32 : i32
    %100 = vector.broadcast %99 : i32 to vector<32x128xi32>
    %101 = arith.addi %98, %100 : vector<32x128xi32>
    %cst_31 = arith.constant dense<0x7F800000> : vector<32xf32>
    %102 = vector.multi_reduction <minimumf>, %97, %cst_31 [1] : vector<32x128xf32> to vector<32xf32>
    %103 = vector.shape_cast %102 : vector<32xf32> to vector<32x1xf32>
    %104 = vector.broadcast %103 : vector<32x1xf32> to vector<32x128xf32>
    %105 = arith.cmpf ole, %97, %104 : vector<32x128xf32>
    %c2147483647_i32_32 = arith.constant 2147483647 : i32
    %106 = vector.broadcast %c2147483647_i32_32 : i32 to vector<32x128xi32>
    %107 = arith.select %105, %101, %106 : vector<32x128xi1>, vector<32x128xi32>
    %cst_33 = arith.constant dense<2147483647> : vector<32xi32>
    %108 = vector.multi_reduction <minsi>, %107, %cst_33 [1] : vector<32x128xi32> to vector<32xi32>
    %109 = vector.shape_cast %108 : vector<32xi32> to vector<32x1xi32>
    %110 = vector.broadcast %109 : vector<32x1xi32> to vector<32x128xi32>
    %111 = arith.cmpi eq, %101, %110 : vector<32x128xi32>
    %cst_34 = arith.constant 1.000000e+30 : f32
    %112 = vector.broadcast %cst_34 : f32 to vector<32x128xf32>
    %113 = arith.select %111, %112, %97 : vector<32x128xi1>, vector<32x128xf32>
    %cst_35 = arith.constant dense<0x7F800000> : vector<32xf32>
    %114 = vector.multi_reduction <minimumf>, %113, %cst_35 [1] : vector<32x128xf32> to vector<32xf32>
    %115 = vector.shape_cast %114 : vector<32xf32> to vector<32x1xf32>
    %116 = vector.broadcast %115 : vector<32x1xf32> to vector<32x128xf32>
    %117 = arith.cmpf ole, %113, %116 : vector<32x128xf32>
    %c2147483647_i32_36 = arith.constant 2147483647 : i32
    %118 = vector.broadcast %c2147483647_i32_36 : i32 to vector<32x128xi32>
    %119 = arith.select %117, %101, %118 : vector<32x128xi1>, vector<32x128xi32>
    %cst_37 = arith.constant dense<2147483647> : vector<32xi32>
    %120 = vector.multi_reduction <minsi>, %119, %cst_37 [1] : vector<32x128xi32> to vector<32xi32>
    %121 = vector.shape_cast %120 : vector<32xi32> to vector<32x1xi32>
    %122 = arith.cmpf olt, %103, %74 : vector<32x1xf32>
    %cst_38 = arith.constant dense<true> : vector<32x1xi1>
    %123 = arith.xori %122, %cst_38 : vector<32x1xi1>
    %124 = arith.cmpf olt, %103, %71 : vector<32x1xf32>
    %125 = arith.andi %123, %124 : vector<32x1xi1>
    %126 = arith.select %125, %103, %71 : vector<32x1xi1>, vector<32x1xf32>
    %127 = arith.select %122, %74, %126 : vector<32x1xi1>, vector<32x1xf32>
    %128 = arith.select %125, %109, %73 : vector<32x1xi1>, vector<32x1xi32>
    %129 = arith.select %122, %75, %128 : vector<32x1xi1>, vector<32x1xi32>
    %130 = arith.select %122, %103, %74 : vector<32x1xi1>, vector<32x1xf32>
    %131 = arith.select %122, %109, %75 : vector<32x1xi1>, vector<32x1xi32>
    %132 = arith.cmpf olt, %115, %130 : vector<32x1xf32>
    %cst_39 = arith.constant dense<true> : vector<32x1xi1>
    %133 = arith.xori %132, %cst_39 : vector<32x1xi1>
    %134 = arith.cmpf olt, %115, %127 : vector<32x1xf32>
    %135 = arith.andi %133, %134 : vector<32x1xi1>
    %136 = arith.select %135, %115, %127 : vector<32x1xi1>, vector<32x1xf32>
    %137 = arith.select %132, %130, %136 : vector<32x1xi1>, vector<32x1xf32>
    %138 = arith.select %135, %121, %129 : vector<32x1xi1>, vector<32x1xi32>
    %139 = arith.select %132, %131, %138 : vector<32x1xi1>, vector<32x1xi32>
    %140 = arith.select %132, %115, %130 : vector<32x1xi1>, vector<32x1xf32>
    %141 = arith.select %132, %121, %131 : vector<32x1xi1>, vector<32x1xi32>
    %c0_40 = arith.constant 0 : index
    %c256 = arith.constant 256 : index
    %142 = vector.load %arg3[%c0_40, %c256] : memref<2x512xf32, #tpu.memory_space<vmem>>, vector<2x128xf32>
    %c0_41 = arith.constant 0 : index
    %c256_42 = arith.constant 256 : index
    %143 = vector.load %arg5[%c0_41, %c256_42] : memref<1x512xi32, #tpu.memory_space<vmem>>, vector<1x128xi32>
    %cst_43 = arith.constant 0.000000e+00 : f32
    %144 = vector.broadcast %cst_43 : f32 to vector<32x128xf32>
    %145 = vector.extract_strided_slice %3 {offsets = [0, 0], sizes = [32, 1], strides = [1, 1]} : vector<32x2xf32> to vector<32x1xf32>
    %146 = vector.extract_strided_slice %142 {offsets = [0, 0], sizes = [1, 128], strides = [1, 1]} : vector<2x128xf32> to vector<1x128xf32>
    %147 = vector.broadcast %145 : vector<32x1xf32> to vector<32x128xf32>
    %148 = vector.broadcast %146 : vector<1x128xf32> to vector<32x128xf32>
    %149 = arith.subf %147, %148 : vector<32x128xf32>
    %150 = arith.mulf %149, %149 : vector<32x128xf32>
    %151 = arith.addf %144, %150 : vector<32x128xf32>
    %152 = vector.extract_strided_slice %3 {offsets = [0, 1], sizes = [32, 1], strides = [1, 1]} : vector<32x2xf32> to vector<32x1xf32>
    %153 = vector.extract_strided_slice %142 {offsets = [1, 0], sizes = [1, 128], strides = [1, 1]} : vector<2x128xf32> to vector<1x128xf32>
    %154 = vector.broadcast %152 : vector<32x1xf32> to vector<32x128xf32>
    %155 = vector.broadcast %153 : vector<1x128xf32> to vector<32x128xf32>
    %156 = arith.subf %154, %155 : vector<32x128xf32>
    %157 = arith.mulf %156, %156 : vector<32x128xf32>
    %158 = arith.addf %151, %157 : vector<32x128xf32>
    %159 = vector.broadcast %4 : vector<32x1xi32> to vector<32x128xi32>
    %160 = vector.broadcast %143 : vector<1x128xi32> to vector<32x128xi32>
    %161 = arith.cmpi eq, %159, %160 : vector<32x128xi32>
    %cst_44 = arith.constant 1.000000e+30 : f32
    %162 = vector.broadcast %cst_44 : f32 to vector<32x128xf32>
    %163 = arith.select %161, %158, %162 : vector<32x128xi1>, vector<32x128xf32>
    %164 = tpu.iota {dimensions = array<i32: 1>} : vector<32x128xi32>
    %c256_i32 = arith.constant 256 : i32
    %165 = arith.addi %9, %c256_i32 : i32
    %166 = vector.broadcast %165 : i32 to vector<32x128xi32>
    %167 = arith.addi %164, %166 : vector<32x128xi32>
    %cst_45 = arith.constant dense<0x7F800000> : vector<32xf32>
    %168 = vector.multi_reduction <minimumf>, %163, %cst_45 [1] : vector<32x128xf32> to vector<32xf32>
    %169 = vector.shape_cast %168 : vector<32xf32> to vector<32x1xf32>
    %170 = vector.broadcast %169 : vector<32x1xf32> to vector<32x128xf32>
    %171 = arith.cmpf ole, %163, %170 : vector<32x128xf32>
    %c2147483647_i32_46 = arith.constant 2147483647 : i32
    %172 = vector.broadcast %c2147483647_i32_46 : i32 to vector<32x128xi32>
    %173 = arith.select %171, %167, %172 : vector<32x128xi1>, vector<32x128xi32>
    %cst_47 = arith.constant dense<2147483647> : vector<32xi32>
    %174 = vector.multi_reduction <minsi>, %173, %cst_47 [1] : vector<32x128xi32> to vector<32xi32>
    %175 = vector.shape_cast %174 : vector<32xi32> to vector<32x1xi32>
    %176 = vector.broadcast %175 : vector<32x1xi32> to vector<32x128xi32>
    %177 = arith.cmpi eq, %167, %176 : vector<32x128xi32>
    %cst_48 = arith.constant 1.000000e+30 : f32
    %178 = vector.broadcast %cst_48 : f32 to vector<32x128xf32>
    %179 = arith.select %177, %178, %163 : vector<32x128xi1>, vector<32x128xf32>
    %cst_49 = arith.constant dense<0x7F800000> : vector<32xf32>
    %180 = vector.multi_reduction <minimumf>, %179, %cst_49 [1] : vector<32x128xf32> to vector<32xf32>
    %181 = vector.shape_cast %180 : vector<32xf32> to vector<32x1xf32>
    %182 = vector.broadcast %181 : vector<32x1xf32> to vector<32x128xf32>
    %183 = arith.cmpf ole, %179, %182 : vector<32x128xf32>
    %c2147483647_i32_50 = arith.constant 2147483647 : i32
    %184 = vector.broadcast %c2147483647_i32_50 : i32 to vector<32x128xi32>
    %185 = arith.select %183, %167, %184 : vector<32x128xi1>, vector<32x128xi32>
    %cst_51 = arith.constant dense<2147483647> : vector<32xi32>
    %186 = vector.multi_reduction <minsi>, %185, %cst_51 [1] : vector<32x128xi32> to vector<32xi32>
    %187 = vector.shape_cast %186 : vector<32xi32> to vector<32x1xi32>
    %188 = arith.cmpf olt, %169, %140 : vector<32x1xf32>
    %cst_52 = arith.constant dense<true> : vector<32x1xi1>
    %189 = arith.xori %188, %cst_52 : vector<32x1xi1>
    %190 = arith.cmpf olt, %169, %137 : vector<32x1xf32>
    %191 = arith.andi %189, %190 : vector<32x1xi1>
    %192 = arith.select %191, %169, %137 : vector<32x1xi1>, vector<32x1xf32>
    %193 = arith.select %188, %140, %192 : vector<32x1xi1>, vector<32x1xf32>
    %194 = arith.select %191, %175, %139 : vector<32x1xi1>, vector<32x1xi32>
    %195 = arith.select %188, %141, %194 : vector<32x1xi1>, vector<32x1xi32>
    %196 = arith.select %188, %169, %140 : vector<32x1xi1>, vector<32x1xf32>
    %197 = arith.select %188, %175, %141 : vector<32x1xi1>, vector<32x1xi32>
    %198 = arith.cmpf olt, %181, %196 : vector<32x1xf32>
    %cst_53 = arith.constant dense<true> : vector<32x1xi1>
    %199 = arith.xori %198, %cst_53 : vector<32x1xi1>
    %200 = arith.cmpf olt, %181, %193 : vector<32x1xf32>
    %201 = arith.andi %199, %200 : vector<32x1xi1>
    %202 = arith.select %201, %181, %193 : vector<32x1xi1>, vector<32x1xf32>
    %203 = arith.select %198, %196, %202 : vector<32x1xi1>, vector<32x1xf32>
    %204 = arith.select %201, %187, %195 : vector<32x1xi1>, vector<32x1xi32>
    %205 = arith.select %198, %197, %204 : vector<32x1xi1>, vector<32x1xi32>
    %206 = arith.select %198, %181, %196 : vector<32x1xi1>, vector<32x1xf32>
    %207 = arith.select %198, %187, %197 : vector<32x1xi1>, vector<32x1xi32>
    %c0_54 = arith.constant 0 : index
    %c384 = arith.constant 384 : index
    %208 = vector.load %arg3[%c0_54, %c384] : memref<2x512xf32, #tpu.memory_space<vmem>>, vector<2x128xf32>
    %c0_55 = arith.constant 0 : index
    %c384_56 = arith.constant 384 : index
    %209 = vector.load %arg5[%c0_55, %c384_56] : memref<1x512xi32, #tpu.memory_space<vmem>>, vector<1x128xi32>
    %cst_57 = arith.constant 0.000000e+00 : f32
    %210 = vector.broadcast %cst_57 : f32 to vector<32x128xf32>
    %211 = vector.extract_strided_slice %3 {offsets = [0, 0], sizes = [32, 1], strides = [1, 1]} : vector<32x2xf32> to vector<32x1xf32>
    %212 = vector.extract_strided_slice %208 {offsets = [0, 0], sizes = [1, 128], strides = [1, 1]} : vector<2x128xf32> to vector<1x128xf32>
    %213 = vector.broadcast %211 : vector<32x1xf32> to vector<32x128xf32>
    %214 = vector.broadcast %212 : vector<1x128xf32> to vector<32x128xf32>
    %215 = arith.subf %213, %214 : vector<32x128xf32>
    %216 = arith.mulf %215, %215 : vector<32x128xf32>
    %217 = arith.addf %210, %216 : vector<32x128xf32>
    %218 = vector.extract_strided_slice %3 {offsets = [0, 1], sizes = [32, 1], strides = [1, 1]} : vector<32x2xf32> to vector<32x1xf32>
    %219 = vector.extract_strided_slice %208 {offsets = [1, 0], sizes = [1, 128], strides = [1, 1]} : vector<2x128xf32> to vector<1x128xf32>
    %220 = vector.broadcast %218 : vector<32x1xf32> to vector<32x128xf32>
    %221 = vector.broadcast %219 : vector<1x128xf32> to vector<32x128xf32>
    %222 = arith.subf %220, %221 : vector<32x128xf32>
    %223 = arith.mulf %222, %222 : vector<32x128xf32>
    %224 = arith.addf %217, %223 : vector<32x128xf32>
    %225 = vector.broadcast %4 : vector<32x1xi32> to vector<32x128xi32>
    %226 = vector.broadcast %209 : vector<1x128xi32> to vector<32x128xi32>
    %227 = arith.cmpi eq, %225, %226 : vector<32x128xi32>
    %cst_58 = arith.constant 1.000000e+30 : f32
    %228 = vector.broadcast %cst_58 : f32 to vector<32x128xf32>
    %229 = arith.select %227, %224, %228 : vector<32x128xi1>, vector<32x128xf32>
    %230 = tpu.iota {dimensions = array<i32: 1>} : vector<32x128xi32>
    %c384_i32 = arith.constant 384 : i32
    %231 = arith.addi %9, %c384_i32 : i32
    %232 = vector.broadcast %231 : i32 to vector<32x128xi32>
    %233 = arith.addi %230, %232 : vector<32x128xi32>
    %cst_59 = arith.constant dense<0x7F800000> : vector<32xf32>
    %234 = vector.multi_reduction <minimumf>, %229, %cst_59 [1] : vector<32x128xf32> to vector<32xf32>
    %235 = vector.shape_cast %234 : vector<32xf32> to vector<32x1xf32>
    %236 = vector.broadcast %235 : vector<32x1xf32> to vector<32x128xf32>
    %237 = arith.cmpf ole, %229, %236 : vector<32x128xf32>
    %c2147483647_i32_60 = arith.constant 2147483647 : i32
    %238 = vector.broadcast %c2147483647_i32_60 : i32 to vector<32x128xi32>
    %239 = arith.select %237, %233, %238 : vector<32x128xi1>, vector<32x128xi32>
    %cst_61 = arith.constant dense<2147483647> : vector<32xi32>
    %240 = vector.multi_reduction <minsi>, %239, %cst_61 [1] : vector<32x128xi32> to vector<32xi32>
    %241 = vector.shape_cast %240 : vector<32xi32> to vector<32x1xi32>
    %242 = vector.broadcast %241 : vector<32x1xi32> to vector<32x128xi32>
    %243 = arith.cmpi eq, %233, %242 : vector<32x128xi32>
    %cst_62 = arith.constant 1.000000e+30 : f32
    %244 = vector.broadcast %cst_62 : f32 to vector<32x128xf32>
    %245 = arith.select %243, %244, %229 : vector<32x128xi1>, vector<32x128xf32>
    %cst_63 = arith.constant dense<0x7F800000> : vector<32xf32>
    %246 = vector.multi_reduction <minimumf>, %245, %cst_63 [1] : vector<32x128xf32> to vector<32xf32>
    %247 = vector.shape_cast %246 : vector<32xf32> to vector<32x1xf32>
    %248 = vector.broadcast %247 : vector<32x1xf32> to vector<32x128xf32>
    %249 = arith.cmpf ole, %245, %248 : vector<32x128xf32>
    %c2147483647_i32_64 = arith.constant 2147483647 : i32
    %250 = vector.broadcast %c2147483647_i32_64 : i32 to vector<32x128xi32>
    %251 = arith.select %249, %233, %250 : vector<32x128xi1>, vector<32x128xi32>
    %cst_65 = arith.constant dense<2147483647> : vector<32xi32>
    %252 = vector.multi_reduction <minsi>, %251, %cst_65 [1] : vector<32x128xi32> to vector<32xi32>
    %253 = vector.shape_cast %252 : vector<32xi32> to vector<32x1xi32>
    %254 = arith.cmpf olt, %235, %206 : vector<32x1xf32>
    %cst_66 = arith.constant dense<true> : vector<32x1xi1>
    %255 = arith.xori %254, %cst_66 : vector<32x1xi1>
    %256 = arith.cmpf olt, %235, %203 : vector<32x1xf32>
    %257 = arith.andi %255, %256 : vector<32x1xi1>
    %258 = arith.select %257, %235, %203 : vector<32x1xi1>, vector<32x1xf32>
    %259 = arith.select %254, %206, %258 : vector<32x1xi1>, vector<32x1xf32>
    %260 = arith.select %257, %241, %205 : vector<32x1xi1>, vector<32x1xi32>
    %261 = arith.select %254, %207, %260 : vector<32x1xi1>, vector<32x1xi32>
    %262 = arith.select %254, %235, %206 : vector<32x1xi1>, vector<32x1xf32>
    %263 = arith.select %254, %241, %207 : vector<32x1xi1>, vector<32x1xi32>
    %264 = arith.cmpf olt, %247, %262 : vector<32x1xf32>
    %cst_67 = arith.constant dense<true> : vector<32x1xi1>
    %265 = arith.xori %264, %cst_67 : vector<32x1xi1>
    %266 = arith.cmpf olt, %247, %259 : vector<32x1xf32>
    %267 = arith.andi %265, %266 : vector<32x1xi1>
    %268 = arith.select %267, %247, %259 : vector<32x1xi1>, vector<32x1xf32>
    %269 = arith.select %264, %262, %268 : vector<32x1xi1>, vector<32x1xf32>
    %270 = arith.select %267, %253, %261 : vector<32x1xi1>, vector<32x1xi32>
    %271 = arith.select %264, %263, %270 : vector<32x1xi1>, vector<32x1xi32>
    %272 = arith.select %264, %247, %262 : vector<32x1xi1>, vector<32x1xf32>
    %273 = arith.select %264, %253, %263 : vector<32x1xi1>, vector<32x1xi32>
    %c0_68 = arith.constant 0 : index
    %c0_69 = arith.constant 0 : index
    %274 = vector.load %arg8[%c0_68, %c0_69] : memref<32x1xf32, #tpu.memory_space<vmem>>, vector<32x1xf32>
    tpu.vector_store %arg8[%c0_68, %c0_69], %272 {strides = array<i32>} : memref<32x1xf32, #tpu.memory_space<vmem>>, vector<32x1xf32>,
    %c0_70 = arith.constant 0 : index
    %c0_71 = arith.constant 0 : index
    %275 = vector.load %arg6[%c0_70, %c0_71] : memref<32x1xi32, #tpu.memory_space<vmem>>, vector<32x1xi32>
    tpu.vector_store %arg6[%c0_70, %c0_71], %273 {strides = array<i32>} : memref<32x1xi32, #tpu.memory_space<vmem>>, vector<32x1xi32>,
    %c0_72 = arith.constant 0 : index
    %c0_73 = arith.constant 0 : index
    %276 = vector.load %arg9[%c0_72, %c0_73] : memref<32x1xf32, #tpu.memory_space<vmem>>, vector<32x1xf32>
    tpu.vector_store %arg9[%c0_72, %c0_73], %269 {strides = array<i32>} : memref<32x1xf32, #tpu.memory_space<vmem>>, vector<32x1xf32>,
    %c0_74 = arith.constant 0 : index
    %c0_75 = arith.constant 0 : index
    %277 = vector.load %arg7[%c0_74, %c0_75] : memref<32x1xi32, #tpu.memory_space<vmem>>, vector<32x1xi32>
    tpu.vector_store %arg7[%c0_74, %c0_75], %271 {strides = array<i32>} : memref<32x1xi32, #tpu.memory_space<vmem>>, vector<32x1xi32>,
    return
  }
  func.func @transform_0(%arg0: i32, %arg1: i32) -> (i32, i32) {
    %c0_i32 = arith.constant 0 : i32
    %c0_i32_0 = arith.constant 0 : i32
    return %arg0, %c0_i32 : i32, i32
  }
  func.func @transform_1(%arg0: i32, %arg1: i32) -> (i32, i32) {
    %c0_i32 = arith.constant 0 : i32
    %c0_i32_0 = arith.constant 0 : i32
    return %c0_i32, %arg1 : i32, i32
  }
  func.func @transform_2(%arg0: i32, %arg1: i32) -> (i32, i32) {
    %c0_i32 = arith.constant 0 : i32
    %c0_i32_0 = arith.constant 0 : i32
    return %arg0, %c0_i32 : i32, i32
  }
  func.func @transform_3(%arg0: i32, %arg1: i32) -> (i32, i32) {
    %c0_i32 = arith.constant 0 : i32
    %c0_i32_0 = arith.constant 0 : i32
    return %c0_i32, %arg1 : i32, i32
  }
  func.func @transform_4(%arg0: i32, %arg1: i32) -> (i32, i32) {
    %c0_i32 = arith.constant 0 : i32
    %c0_i32_0 = arith.constant 0 : i32
    return %arg0, %c0_i32 : i32, i32
  }
  func.func @transform_5(%arg0: i32, %arg1: i32) -> (i32, i32) {
    %c0_i32 = arith.constant 0 : i32
    %c0_i32_0 = arith.constant 0 : i32
    return %arg0, %c0_i32 : i32, i32
  }
}

module attributes {stable_mosaic.version = 11 : i64} {
  func.func @kernel(%arg0: i32, %arg1: memref<32x3xf32, #tpu.memory_space<vmem>>, %arg2: memref<3x32xbf16, #tpu.memory_space<vmem>>, %arg3: memref<1x32xf32, #tpu.memory_space<vmem>>, %arg4: memref<32x32xbf16, #tpu.memory_space<vmem>>, %arg5: memref<1x32xf32, #tpu.memory_space<vmem>>, %arg6: memref<32x32xbf16, #tpu.memory_space<vmem>>, %arg7: memref<1x32xf32, #tpu.memory_space<vmem>>, %arg8: memref<1x32xf32, #tpu.memory_space<vmem>>, %arg9: memref<1x32xf32, #tpu.memory_space<vmem>>, %arg10: memref<32x32xf32, #tpu.memory_space<vmem>>) attributes {dimension_semantics = [#tpu.dimension_semantics<parallel>], iteration_bounds = array<i64: 1>, scalar_prefetch = 0 : i64, scratch_operands = 0 : i64, tpu.core_type = #tpu.core_type<tc>, window_params = [{transform_indices = @transform_0, window_bounds = array<i64: 32, 3>}, {pipeline_mode = #tpu.pipeline_mode<synchronous>, transform_indices = @transform_1, window_bounds = array<i64: 3, 32>}, {pipeline_mode = #tpu.pipeline_mode<synchronous>, transform_indices = @transform_2, window_bounds = array<i64: 1, 32>}, {pipeline_mode = #tpu.pipeline_mode<synchronous>, transform_indices = @transform_3, window_bounds = array<i64: 32, 32>}, {pipeline_mode = #tpu.pipeline_mode<synchronous>, transform_indices = @transform_4, window_bounds = array<i64: 1, 32>}, {pipeline_mode = #tpu.pipeline_mode<synchronous>, transform_indices = @transform_5, window_bounds = array<i64: 32, 32>}, {pipeline_mode = #tpu.pipeline_mode<synchronous>, transform_indices = @transform_6, window_bounds = array<i64: 1, 32>}, {pipeline_mode = #tpu.pipeline_mode<synchronous>, transform_indices = @transform_7, window_bounds = array<i64: 1, 32>}, {pipeline_mode = #tpu.pipeline_mode<synchronous>, transform_indices = @transform_8, window_bounds = array<i64: 1, 32>}, {transform_indices = @transform_9, window_bounds = array<i64: 32, 32>}]} {
    %c0 = arith.constant 0 : index
    %c0_0 = arith.constant 0 : index
    %0 = vector.load %arg1[%c0, %c0_0] : memref<32x3xf32, #tpu.memory_space<vmem>>, vector<32x3xf32>
    %1 = arith.truncf %0 : vector<32x3xf32> to vector<32x3xbf16>
    %c0_1 = arith.constant 0 : index
    %c0_2 = arith.constant 0 : index
    %2 = vector.load %arg3[%c0_1, %c0_2] : memref<1x32xf32, #tpu.memory_space<vmem>>, vector<1x32xf32>
    %c0_3 = arith.constant 0 : index
    %c0_4 = arith.constant 0 : index
    %3 = vector.load %arg2[%c0_3, %c0_4] : memref<3x32xbf16, #tpu.memory_space<vmem>>, vector<3x32xbf16>
    %cst = arith.constant dense<0.000000e+00> : vector<32x32xf32>
    %4 = tpu.matmul %1, %3, %cst {dimension_numbers = #tpu.dot_dimension_numbers<[1], [0], [0], [1], [0, 0, 1, 1], [], []>} : vector<32x3xbf16>, vector<3x32xbf16>, vector<32x32xf32> -> vector<32x32xf32>
    %5 = vector.broadcast %2 : vector<1x32xf32> to vector<32x32xf32>
    %6 = arith.addf %5, %4 : vector<32x32xf32>
    %cst_5 = arith.constant 0.000000e+00 : f32
    %7 = vector.broadcast %cst_5 : f32 to vector<32x32xf32>
    %8 = arith.maximumf %6, %7 : vector<32x32xf32>
    %9 = arith.truncf %8 : vector<32x32xf32> to vector<32x32xbf16>
    %c0_6 = arith.constant 0 : index
    %c0_7 = arith.constant 0 : index
    %10 = vector.load %arg4[%c0_6, %c0_7] : memref<32x32xbf16, #tpu.memory_space<vmem>>, vector<32x32xbf16>
    %cst_8 = arith.constant dense<0.000000e+00> : vector<32x32xf32>
    %11 = tpu.matmul %9, %10, %cst_8 {dimension_numbers = #tpu.dot_dimension_numbers<[1], [0], [0], [1], [0, 0, 1, 1], [], []>} : vector<32x32xbf16>, vector<32x32xbf16>, vector<32x32xf32> -> vector<32x32xf32>
    %c0_9 = arith.constant 0 : index
    %c0_10 = arith.constant 0 : index
    %12 = vector.load %arg5[%c0_9, %c0_10] : memref<1x32xf32, #tpu.memory_space<vmem>>, vector<1x32xf32>
    %13 = vector.broadcast %12 : vector<1x32xf32> to vector<32x32xf32>
    %14 = arith.addf %11, %13 : vector<32x32xf32>
    %cst_11 = arith.constant 0.000000e+00 : f32
    %15 = vector.broadcast %cst_11 : f32 to vector<32x32xf32>
    %16 = arith.maximumf %14, %15 : vector<32x32xf32>
    %17 = arith.truncf %16 : vector<32x32xf32> to vector<32x32xbf16>
    %c0_12 = arith.constant 0 : index
    %c0_13 = arith.constant 0 : index
    %18 = vector.load %arg6[%c0_12, %c0_13] : memref<32x32xbf16, #tpu.memory_space<vmem>>, vector<32x32xbf16>
    %cst_14 = arith.constant dense<0.000000e+00> : vector<32x32xf32>
    %19 = tpu.matmul %17, %18, %cst_14 {dimension_numbers = #tpu.dot_dimension_numbers<[1], [0], [0], [1], [0, 0, 1, 1], [], []>} : vector<32x32xbf16>, vector<32x32xbf16>, vector<32x32xf32> -> vector<32x32xf32>
    %c0_15 = arith.constant 0 : index
    %c0_16 = arith.constant 0 : index
    %20 = vector.load %arg7[%c0_15, %c0_16] : memref<1x32xf32, #tpu.memory_space<vmem>>, vector<1x32xf32>
    %21 = vector.broadcast %20 : vector<1x32xf32> to vector<32x32xf32>
    %22 = arith.addf %19, %21 : vector<32x32xf32>
    %c0_17 = arith.constant 0 : index
    %c0_18 = arith.constant 0 : index
    %23 = vector.load %arg8[%c0_17, %c0_18] : memref<1x32xf32, #tpu.memory_space<vmem>>, vector<1x32xf32>
    %c0_19 = arith.constant 0 : index
    %c0_20 = arith.constant 0 : index
    %24 = vector.load %arg9[%c0_19, %c0_20] : memref<1x32xf32, #tpu.memory_space<vmem>>, vector<1x32xf32>
    %cst_21 = arith.constant dense<0.000000e+00> : vector<32xf32>
    %25 = vector.multi_reduction <add>, %22, %cst_21 [1] : vector<32x32xf32> to vector<32xf32>
    %26 = vector.shape_cast %25 : vector<32xf32> to vector<32x1xf32>
    %cst_22 = arith.constant 3.200000e+01 : f32
    %27 = vector.broadcast %cst_22 : f32 to vector<32x1xf32>
    %28 = arith.divf %26, %27 : vector<32x1xf32>
    %29 = vector.broadcast %28 : vector<32x1xf32> to vector<32x32xf32>
    %30 = arith.subf %22, %29 : vector<32x32xf32>
    %31 = arith.mulf %30, %30 : vector<32x32xf32>
    %cst_23 = arith.constant dense<0.000000e+00> : vector<32xf32>
    %32 = vector.multi_reduction <add>, %31, %cst_23 [1] : vector<32x32xf32> to vector<32xf32>
    %33 = vector.shape_cast %32 : vector<32xf32> to vector<32x1xf32>
    %cst_24 = arith.constant 3.200000e+01 : f32
    %34 = vector.broadcast %cst_24 : f32 to vector<32x1xf32>
    %35 = arith.divf %33, %34 : vector<32x1xf32>
    %cst_25 = arith.constant 9.99999974E-6 : f32
    %36 = vector.broadcast %cst_25 : f32 to vector<32x1xf32>
    %37 = arith.addf %35, %36 : vector<32x1xf32>
    %38 = math.rsqrt %37 : vector<32x1xf32>
    %39 = vector.broadcast %38 : vector<32x1xf32> to vector<32x32xf32>
    %40 = arith.mulf %30, %39 : vector<32x32xf32>
    %41 = vector.broadcast %23 : vector<1x32xf32> to vector<32x32xf32>
    %42 = arith.mulf %40, %41 : vector<32x32xf32>
    %43 = vector.broadcast %24 : vector<1x32xf32> to vector<32x32xf32>
    %44 = arith.addf %42, %43 : vector<32x32xf32>
    %c0_26 = arith.constant 0 : index
    %c0_27 = arith.constant 0 : index
    %45 = vector.load %arg10[%c0_26, %c0_27] : memref<32x32xf32, #tpu.memory_space<vmem>>, vector<32x32xf32>
    tpu.vector_store %arg10[%c0_26, %c0_27], %44 {strides = array<i32>} : memref<32x32xf32, #tpu.memory_space<vmem>>, vector<32x32xf32>,
    return
  }
  func.func @transform_0(%arg0: i32) -> (i32, i32) {
    %c0_i32 = arith.constant 0 : i32
    %c0_i32_0 = arith.constant 0 : i32
    return %arg0, %c0_i32 : i32, i32
  }
  func.func @transform_1(%arg0: i32) -> (i32, i32) {
    %c0_i32 = arith.constant 0 : i32
    %c0_i32_0 = arith.constant 0 : i32
    %c0_i32_1 = arith.constant 0 : i32
    return %c0_i32, %c0_i32_0 : i32, i32
  }
  func.func @transform_2(%arg0: i32) -> (i32, i32) {
    %c0_i32 = arith.constant 0 : i32
    %c0_i32_0 = arith.constant 0 : i32
    %c0_i32_1 = arith.constant 0 : i32
    return %c0_i32, %c0_i32_0 : i32, i32
  }
  func.func @transform_3(%arg0: i32) -> (i32, i32) {
    %c0_i32 = arith.constant 0 : i32
    %c0_i32_0 = arith.constant 0 : i32
    %c0_i32_1 = arith.constant 0 : i32
    return %c0_i32, %c0_i32_0 : i32, i32
  }
  func.func @transform_4(%arg0: i32) -> (i32, i32) {
    %c0_i32 = arith.constant 0 : i32
    %c0_i32_0 = arith.constant 0 : i32
    %c0_i32_1 = arith.constant 0 : i32
    return %c0_i32, %c0_i32_0 : i32, i32
  }
  func.func @transform_5(%arg0: i32) -> (i32, i32) {
    %c0_i32 = arith.constant 0 : i32
    %c0_i32_0 = arith.constant 0 : i32
    %c0_i32_1 = arith.constant 0 : i32
    return %c0_i32, %c0_i32_0 : i32, i32
  }
  func.func @transform_6(%arg0: i32) -> (i32, i32) {
    %c0_i32 = arith.constant 0 : i32
    %c0_i32_0 = arith.constant 0 : i32
    %c0_i32_1 = arith.constant 0 : i32
    return %c0_i32, %c0_i32_0 : i32, i32
  }
  func.func @transform_7(%arg0: i32) -> (i32, i32) {
    %c0_i32 = arith.constant 0 : i32
    %c0_i32_0 = arith.constant 0 : i32
    %c0_i32_1 = arith.constant 0 : i32
    return %c0_i32, %c0_i32_0 : i32, i32
  }
  func.func @transform_8(%arg0: i32) -> (i32, i32) {
    %c0_i32 = arith.constant 0 : i32
    %c0_i32_0 = arith.constant 0 : i32
    %c0_i32_1 = arith.constant 0 : i32
    return %c0_i32, %c0_i32_0 : i32, i32
  }
  func.func @transform_9(%arg0: i32) -> (i32, i32) {
    %c0_i32 = arith.constant 0 : i32
    %c0_i32_0 = arith.constant 0 : i32
    return %arg0, %c0_i32 : i32, i32
  }
}

module attributes {stable_mosaic.version = 11 : i64} {
  func.func @kernel(%arg0: i32, %arg1: memref<32x14xf32, #tpu.memory_space<vmem>>, %arg2: memref<14x32xbf16, #tpu.memory_space<vmem>>, %arg3: memref<1x32xf32, #tpu.memory_space<vmem>>, %arg4: memref<32x32xbf16, #tpu.memory_space<vmem>>, %arg5: memref<1x32xf32, #tpu.memory_space<vmem>>, %arg6: memref<32x32xbf16, #tpu.memory_space<vmem>>, %arg7: memref<1x32xf32, #tpu.memory_space<vmem>>, %arg8: memref<1x32xf32, #tpu.memory_space<vmem>>, %arg9: memref<1x32xf32, #tpu.memory_space<vmem>>, %arg10: memref<32x32xf32, #tpu.memory_space<vmem>>) attributes {dimension_semantics = [#tpu.dimension_semantics<parallel>], iteration_bounds = array<i64: 1>, scalar_prefetch = 0 : i64, scratch_operands = 0 : i64, tpu.core_type = #tpu.core_type<tc>, window_params = [{transform_indices = @transform_0, window_bounds = array<i64: 32, 14>}, {pipeline_mode = #tpu.pipeline_mode<synchronous>, transform_indices = @transform_1, window_bounds = array<i64: 14, 32>}, {pipeline_mode = #tpu.pipeline_mode<synchronous>, transform_indices = @transform_2, window_bounds = array<i64: 1, 32>}, {pipeline_mode = #tpu.pipeline_mode<synchronous>, transform_indices = @transform_3, window_bounds = array<i64: 32, 32>}, {pipeline_mode = #tpu.pipeline_mode<synchronous>, transform_indices = @transform_4, window_bounds = array<i64: 1, 32>}, {pipeline_mode = #tpu.pipeline_mode<synchronous>, transform_indices = @transform_5, window_bounds = array<i64: 32, 32>}, {pipeline_mode = #tpu.pipeline_mode<synchronous>, transform_indices = @transform_6, window_bounds = array<i64: 1, 32>}, {pipeline_mode = #tpu.pipeline_mode<synchronous>, transform_indices = @transform_7, window_bounds = array<i64: 1, 32>}, {pipeline_mode = #tpu.pipeline_mode<synchronous>, transform_indices = @transform_8, window_bounds = array<i64: 1, 32>}, {transform_indices = @transform_9, window_bounds = array<i64: 32, 32>}]} {
    %c0 = arith.constant 0 : index
    %c0_0 = arith.constant 0 : index
    %0 = vector.load %arg1[%c0, %c0_0] : memref<32x14xf32, #tpu.memory_space<vmem>>, vector<32x14xf32>
    %1 = arith.truncf %0 : vector<32x14xf32> to vector<32x14xbf16>
    %c0_1 = arith.constant 0 : index
    %c0_2 = arith.constant 0 : index
    %2 = vector.load %arg3[%c0_1, %c0_2] : memref<1x32xf32, #tpu.memory_space<vmem>>, vector<1x32xf32>
    %c0_3 = arith.constant 0 : index
    %c0_4 = arith.constant 0 : index
    %3 = vector.load %arg2[%c0_3, %c0_4] : memref<14x32xbf16, #tpu.memory_space<vmem>>, vector<14x32xbf16>
    %cst = arith.constant dense<0.000000e+00> : vector<32x32xf32>
    %4 = tpu.matmul %1, %3, %cst {dimension_numbers = #tpu.dot_dimension_numbers<[1], [0], [0], [1], [0, 0, 1, 1], [], []>} : vector<32x14xbf16>, vector<14x32xbf16>, vector<32x32xf32> -> vector<32x32xf32>
    %5 = vector.broadcast %2 : vector<1x32xf32> to vector<32x32xf32>
    %6 = arith.addf %5, %4 : vector<32x32xf32>
    %cst_5 = arith.constant 0.000000e+00 : f32
    %7 = vector.broadcast %cst_5 : f32 to vector<32x32xf32>
    %8 = arith.maximumf %6, %7 : vector<32x32xf32>
    %9 = arith.truncf %8 : vector<32x32xf32> to vector<32x32xbf16>
    %c0_6 = arith.constant 0 : index
    %c0_7 = arith.constant 0 : index
    %10 = vector.load %arg4[%c0_6, %c0_7] : memref<32x32xbf16, #tpu.memory_space<vmem>>, vector<32x32xbf16>
    %cst_8 = arith.constant dense<0.000000e+00> : vector<32x32xf32>
    %11 = tpu.matmul %9, %10, %cst_8 {dimension_numbers = #tpu.dot_dimension_numbers<[1], [0], [0], [1], [0, 0, 1, 1], [], []>} : vector<32x32xbf16>, vector<32x32xbf16>, vector<32x32xf32> -> vector<32x32xf32>
    %c0_9 = arith.constant 0 : index
    %c0_10 = arith.constant 0 : index
    %12 = vector.load %arg5[%c0_9, %c0_10] : memref<1x32xf32, #tpu.memory_space<vmem>>, vector<1x32xf32>
    %13 = vector.broadcast %12 : vector<1x32xf32> to vector<32x32xf32>
    %14 = arith.addf %11, %13 : vector<32x32xf32>
    %cst_11 = arith.constant 0.000000e+00 : f32
    %15 = vector.broadcast %cst_11 : f32 to vector<32x32xf32>
    %16 = arith.maximumf %14, %15 : vector<32x32xf32>
    %17 = arith.truncf %16 : vector<32x32xf32> to vector<32x32xbf16>
    %c0_12 = arith.constant 0 : index
    %c0_13 = arith.constant 0 : index
    %18 = vector.load %arg6[%c0_12, %c0_13] : memref<32x32xbf16, #tpu.memory_space<vmem>>, vector<32x32xbf16>
    %cst_14 = arith.constant dense<0.000000e+00> : vector<32x32xf32>
    %19 = tpu.matmul %17, %18, %cst_14 {dimension_numbers = #tpu.dot_dimension_numbers<[1], [0], [0], [1], [0, 0, 1, 1], [], []>} : vector<32x32xbf16>, vector<32x32xbf16>, vector<32x32xf32> -> vector<32x32xf32>
    %c0_15 = arith.constant 0 : index
    %c0_16 = arith.constant 0 : index
    %20 = vector.load %arg7[%c0_15, %c0_16] : memref<1x32xf32, #tpu.memory_space<vmem>>, vector<1x32xf32>
    %21 = vector.broadcast %20 : vector<1x32xf32> to vector<32x32xf32>
    %22 = arith.addf %19, %21 : vector<32x32xf32>
    %c0_17 = arith.constant 0 : index
    %c0_18 = arith.constant 0 : index
    %23 = vector.load %arg8[%c0_17, %c0_18] : memref<1x32xf32, #tpu.memory_space<vmem>>, vector<1x32xf32>
    %c0_19 = arith.constant 0 : index
    %c0_20 = arith.constant 0 : index
    %24 = vector.load %arg9[%c0_19, %c0_20] : memref<1x32xf32, #tpu.memory_space<vmem>>, vector<1x32xf32>
    %cst_21 = arith.constant dense<0.000000e+00> : vector<32xf32>
    %25 = vector.multi_reduction <add>, %22, %cst_21 [1] : vector<32x32xf32> to vector<32xf32>
    %26 = vector.shape_cast %25 : vector<32xf32> to vector<32x1xf32>
    %cst_22 = arith.constant 3.200000e+01 : f32
    %27 = vector.broadcast %cst_22 : f32 to vector<32x1xf32>
    %28 = arith.divf %26, %27 : vector<32x1xf32>
    %29 = vector.broadcast %28 : vector<32x1xf32> to vector<32x32xf32>
    %30 = arith.subf %22, %29 : vector<32x32xf32>
    %31 = arith.mulf %30, %30 : vector<32x32xf32>
    %cst_23 = arith.constant dense<0.000000e+00> : vector<32xf32>
    %32 = vector.multi_reduction <add>, %31, %cst_23 [1] : vector<32x32xf32> to vector<32xf32>
    %33 = vector.shape_cast %32 : vector<32xf32> to vector<32x1xf32>
    %cst_24 = arith.constant 3.200000e+01 : f32
    %34 = vector.broadcast %cst_24 : f32 to vector<32x1xf32>
    %35 = arith.divf %33, %34 : vector<32x1xf32>
    %cst_25 = arith.constant 9.99999974E-6 : f32
    %36 = vector.broadcast %cst_25 : f32 to vector<32x1xf32>
    %37 = arith.addf %35, %36 : vector<32x1xf32>
    %38 = math.rsqrt %37 : vector<32x1xf32>
    %39 = vector.broadcast %38 : vector<32x1xf32> to vector<32x32xf32>
    %40 = arith.mulf %30, %39 : vector<32x32xf32>
    %41 = vector.broadcast %23 : vector<1x32xf32> to vector<32x32xf32>
    %42 = arith.mulf %40, %41 : vector<32x32xf32>
    %43 = vector.broadcast %24 : vector<1x32xf32> to vector<32x32xf32>
    %44 = arith.addf %42, %43 : vector<32x32xf32>
    %c0_26 = arith.constant 0 : index
    %c0_27 = arith.constant 0 : index
    %45 = vector.load %arg10[%c0_26, %c0_27] : memref<32x32xf32, #tpu.memory_space<vmem>>, vector<32x32xf32>
    tpu.vector_store %arg10[%c0_26, %c0_27], %44 {strides = array<i32>} : memref<32x32xf32, #tpu.memory_space<vmem>>, vector<32x32xf32>,
    return
  }
  func.func @transform_0(%arg0: i32) -> (i32, i32) {
    %c0_i32 = arith.constant 0 : i32
    %c0_i32_0 = arith.constant 0 : i32
    return %arg0, %c0_i32 : i32, i32
  }
  func.func @transform_1(%arg0: i32) -> (i32, i32) {
    %c0_i32 = arith.constant 0 : i32
    %c0_i32_0 = arith.constant 0 : i32
    %c0_i32_1 = arith.constant 0 : i32
    return %c0_i32, %c0_i32_0 : i32, i32
  }
  func.func @transform_2(%arg0: i32) -> (i32, i32) {
    %c0_i32 = arith.constant 0 : i32
    %c0_i32_0 = arith.constant 0 : i32
    %c0_i32_1 = arith.constant 0 : i32
    return %c0_i32, %c0_i32_0 : i32, i32
  }
  func.func @transform_3(%arg0: i32) -> (i32, i32) {
    %c0_i32 = arith.constant 0 : i32
    %c0_i32_0 = arith.constant 0 : i32
    %c0_i32_1 = arith.constant 0 : i32
    return %c0_i32, %c0_i32_0 : i32, i32
  }
  func.func @transform_4(%arg0: i32) -> (i32, i32) {
    %c0_i32 = arith.constant 0 : i32
    %c0_i32_0 = arith.constant 0 : i32
    %c0_i32_1 = arith.constant 0 : i32
    return %c0_i32, %c0_i32_0 : i32, i32
  }
  func.func @transform_5(%arg0: i32) -> (i32, i32) {
    %c0_i32 = arith.constant 0 : i32
    %c0_i32_0 = arith.constant 0 : i32
    %c0_i32_1 = arith.constant 0 : i32
    return %c0_i32, %c0_i32_0 : i32, i32
  }
  func.func @transform_6(%arg0: i32) -> (i32, i32) {
    %c0_i32 = arith.constant 0 : i32
    %c0_i32_0 = arith.constant 0 : i32
    %c0_i32_1 = arith.constant 0 : i32
    return %c0_i32, %c0_i32_0 : i32, i32
  }
  func.func @transform_7(%arg0: i32) -> (i32, i32) {
    %c0_i32 = arith.constant 0 : i32
    %c0_i32_0 = arith.constant 0 : i32
    %c0_i32_1 = arith.constant 0 : i32
    return %c0_i32, %c0_i32_0 : i32, i32
  }
  func.func @transform_8(%arg0: i32) -> (i32, i32) {
    %c0_i32 = arith.constant 0 : i32
    %c0_i32_0 = arith.constant 0 : i32
    %c0_i32_1 = arith.constant 0 : i32
    return %c0_i32, %c0_i32_0 : i32, i32
  }
  func.func @transform_9(%arg0: i32) -> (i32, i32) {
    %c0_i32 = arith.constant 0 : i32
    %c0_i32_0 = arith.constant 0 : i32
    return %arg0, %c0_i32 : i32, i32
  }
}

module attributes {stable_mosaic.version = 11 : i64} {
  func.func @kernel(%arg0: i32, %arg1: memref<32x32xf32, #tpu.memory_space<vmem>>, %arg2: memref<32x32xf32, #tpu.memory_space<vmem>>, %arg3: memref<32x32xf32, #tpu.memory_space<vmem>>, %arg4: memref<32x32xf32, #tpu.memory_space<vmem>>, %arg5: memref<32x32xf32, #tpu.memory_space<vmem>>, %arg6: memref<96x32xbf16, #tpu.memory_space<vmem>>, %arg7: memref<1x32xf32, #tpu.memory_space<vmem>>, %arg8: memref<32x32xbf16, #tpu.memory_space<vmem>>, %arg9: memref<1x32xf32, #tpu.memory_space<vmem>>, %arg10: memref<32x32xbf16, #tpu.memory_space<vmem>>, %arg11: memref<1x32xf32, #tpu.memory_space<vmem>>, %arg12: memref<1x32xf32, #tpu.memory_space<vmem>>, %arg13: memref<1x32xf32, #tpu.memory_space<vmem>>, %arg14: memref<64x32xbf16, #tpu.memory_space<vmem>>, %arg15: memref<1x32xf32, #tpu.memory_space<vmem>>, %arg16: memref<32x32xbf16, #tpu.memory_space<vmem>>, %arg17: memref<1x32xf32, #tpu.memory_space<vmem>>, %arg18: memref<32x32xbf16, #tpu.memory_space<vmem>>, %arg19: memref<1x32xf32, #tpu.memory_space<vmem>>, %arg20: memref<1x32xf32, #tpu.memory_space<vmem>>, %arg21: memref<1x32xf32, #tpu.memory_space<vmem>>, %arg22: memref<32x32xf32, #tpu.memory_space<vmem>>, %arg23: memref<32x32xf32, #tpu.memory_space<vmem>>, %arg24: memref<32x32xf32, #tpu.memory_space<vmem>>) attributes {dimension_semantics = [#tpu.dimension_semantics<parallel>], iteration_bounds = array<i64: 1>, scalar_prefetch = 0 : i64, scratch_operands = 0 : i64, tpu.core_type = #tpu.core_type<tc>, window_params = [{transform_indices = @transform_0, window_bounds = array<i64: 32, 32>}, {transform_indices = @transform_1, window_bounds = array<i64: 32, 32>}, {transform_indices = @transform_2, window_bounds = array<i64: 32, 32>}, {transform_indices = @transform_3, window_bounds = array<i64: 32, 32>}, {transform_indices = @transform_4, window_bounds = array<i64: 32, 32>}, {pipeline_mode = #tpu.pipeline_mode<synchronous>, transform_indices = @transform_5, window_bounds = array<i64: 96, 32>}, {pipeline_mode = #tpu.pipeline_mode<synchronous>, transform_indices = @transform_6, window_bounds = array<i64: 1, 32>}, {pipeline_mode = #tpu.pipeline_mode<synchronous>, transform_indices = @transform_7, window_bounds = array<i64: 32, 32>}, {pipeline_mode = #tpu.pipeline_mode<synchronous>, transform_indices = @transform_8, window_bounds = array<i64: 1, 32>}, {pipeline_mode = #tpu.pipeline_mode<synchronous>, transform_indices = @transform_9, window_bounds = array<i64: 32, 32>}, {pipeline_mode = #tpu.pipeline_mode<synchronous>, transform_indices = @transform_10, window_bounds = array<i64: 1, 32>}, {pipeline_mode = #tpu.pipeline_mode<synchronous>, transform_indices = @transform_11, window_bounds = array<i64: 1, 32>}, {pipeline_mode = #tpu.pipeline_mode<synchronous>, transform_indices = @transform_12, window_bounds = array<i64: 1, 32>}, {pipeline_mode = #tpu.pipeline_mode<synchronous>, transform_indices = @transform_13, window_bounds = array<i64: 64, 32>}, {pipeline_mode = #tpu.pipeline_mode<synchronous>, transform_indices = @transform_14, window_bounds = array<i64: 1, 32>}, {pipeline_mode = #tpu.pipeline_mode<synchronous>, transform_indices = @transform_15, window_bounds = array<i64: 32, 32>}, {pipeline_mode = #tpu.pipeline_mode<synchronous>, transform_indices = @transform_16, window_bounds = array<i64: 1, 32>}, {pipeline_mode = #tpu.pipeline_mode<synchronous>, transform_indices = @transform_17, window_bounds = array<i64: 32, 32>}, {pipeline_mode = #tpu.pipeline_mode<synchronous>, transform_indices = @transform_18, window_bounds = array<i64: 1, 32>}, {pipeline_mode = #tpu.pipeline_mode<synchronous>, transform_indices = @transform_19, window_bounds = array<i64: 1, 32>}, {pipeline_mode = #tpu.pipeline_mode<synchronous>, transform_indices = @transform_20, window_bounds = array<i64: 1, 32>}, {transform_indices = @transform_21, window_bounds = array<i64: 32, 32>}, {transform_indices = @transform_22, window_bounds = array<i64: 32, 32>}, {transform_indices = @transform_23, window_bounds = array<i64: 32, 32>}]} {
    %c0 = arith.constant 0 : index
    %c0_0 = arith.constant 0 : index
    %0 = vector.load %arg1[%c0, %c0_0] : memref<32x32xf32, #tpu.memory_space<vmem>>, vector<32x32xf32>
    %1 = arith.truncf %0 : vector<32x32xf32> to vector<32x32xbf16>
    %c0_1 = arith.constant 0 : index
    %c0_2 = arith.constant 0 : index
    %2 = vector.load %arg2[%c0_1, %c0_2] : memref<32x32xf32, #tpu.memory_space<vmem>>, vector<32x32xf32>
    %3 = arith.truncf %2 : vector<32x32xf32> to vector<32x32xbf16>
    %c0_3 = arith.constant 0 : index
    %c0_4 = arith.constant 0 : index
    %4 = vector.load %arg3[%c0_3, %c0_4] : memref<32x32xf32, #tpu.memory_space<vmem>>, vector<32x32xf32>
    %5 = arith.truncf %4 : vector<32x32xf32> to vector<32x32xbf16>
    %c0_5 = arith.constant 0 : index
    %c0_6 = arith.constant 0 : index
    %6 = vector.load %arg4[%c0_5, %c0_6] : memref<32x32xf32, #tpu.memory_space<vmem>>, vector<32x32xf32>
    %c0_7 = arith.constant 0 : index
    %c0_8 = arith.constant 0 : index
    %7 = vector.load %arg5[%c0_7, %c0_8] : memref<32x32xf32, #tpu.memory_space<vmem>>, vector<32x32xf32>
    %8 = arith.truncf %6 : vector<32x32xf32> to vector<32x32xbf16>
    %c0_9 = arith.constant 0 : index
    %c0_10 = arith.constant 0 : index
    %9 = vector.load %arg7[%c0_9, %c0_10] : memref<1x32xf32, #tpu.memory_space<vmem>>, vector<1x32xf32>
    %c0_11 = arith.constant 0 : index
    %c0_12 = arith.constant 0 : index
    %10 = vector.load %arg6[%c0_11, %c0_12] : memref<96x32xbf16, #tpu.memory_space<vmem>>, vector<32x32xbf16>
    %cst = arith.constant dense<0.000000e+00> : vector<32x32xf32>
    %11 = tpu.matmul %1, %10, %cst {dimension_numbers = #tpu.dot_dimension_numbers<[1], [0], [0], [1], [0, 0, 1, 1], [], []>} : vector<32x32xbf16>, vector<32x32xbf16>, vector<32x32xf32> -> vector<32x32xf32>
    %12 = vector.broadcast %9 : vector<1x32xf32> to vector<32x32xf32>
    %13 = arith.addf %12, %11 : vector<32x32xf32>
    %c32 = arith.constant 32 : index
    %c0_13 = arith.constant 0 : index
    %14 = vector.load %arg6[%c32, %c0_13] : memref<96x32xbf16, #tpu.memory_space<vmem>>, vector<32x32xbf16>
    %cst_14 = arith.constant dense<0.000000e+00> : vector<32x32xf32>
    %15 = tpu.matmul %3, %14, %cst_14 {dimension_numbers = #tpu.dot_dimension_numbers<[1], [0], [0], [1], [0, 0, 1, 1], [], []>} : vector<32x32xbf16>, vector<32x32xbf16>, vector<32x32xf32> -> vector<32x32xf32>
    %16 = arith.addf %13, %15 : vector<32x32xf32>
    %c64 = arith.constant 64 : index
    %c0_15 = arith.constant 0 : index
    %17 = vector.load %arg6[%c64, %c0_15] : memref<96x32xbf16, #tpu.memory_space<vmem>>, vector<32x32xbf16>
    %cst_16 = arith.constant dense<0.000000e+00> : vector<32x32xf32>
    %18 = tpu.matmul %8, %17, %cst_16 {dimension_numbers = #tpu.dot_dimension_numbers<[1], [0], [0], [1], [0, 0, 1, 1], [], []>} : vector<32x32xbf16>, vector<32x32xbf16>, vector<32x32xf32> -> vector<32x32xf32>
    %19 = arith.addf %16, %18 : vector<32x32xf32>
    %cst_17 = arith.constant 0.000000e+00 : f32
    %20 = vector.broadcast %cst_17 : f32 to vector<32x32xf32>
    %21 = arith.maximumf %19, %20 : vector<32x32xf32>
    %22 = arith.truncf %21 : vector<32x32xf32> to vector<32x32xbf16>
    %c0_18 = arith.constant 0 : index
    %c0_19 = arith.constant 0 : index
    %23 = vector.load %arg8[%c0_18, %c0_19] : memref<32x32xbf16, #tpu.memory_space<vmem>>, vector<32x32xbf16>
    %cst_20 = arith.constant dense<0.000000e+00> : vector<32x32xf32>
    %24 = tpu.matmul %22, %23, %cst_20 {dimension_numbers = #tpu.dot_dimension_numbers<[1], [0], [0], [1], [0, 0, 1, 1], [], []>} : vector<32x32xbf16>, vector<32x32xbf16>, vector<32x32xf32> -> vector<32x32xf32>
    %c0_21 = arith.constant 0 : index
    %c0_22 = arith.constant 0 : index
    %25 = vector.load %arg9[%c0_21, %c0_22] : memref<1x32xf32, #tpu.memory_space<vmem>>, vector<1x32xf32>
    %26 = vector.broadcast %25 : vector<1x32xf32> to vector<32x32xf32>
    %27 = arith.addf %24, %26 : vector<32x32xf32>
    %cst_23 = arith.constant 0.000000e+00 : f32
    %28 = vector.broadcast %cst_23 : f32 to vector<32x32xf32>
    %29 = arith.maximumf %27, %28 : vector<32x32xf32>
    %30 = arith.truncf %29 : vector<32x32xf32> to vector<32x32xbf16>
    %c0_24 = arith.constant 0 : index
    %c0_25 = arith.constant 0 : index
    %31 = vector.load %arg10[%c0_24, %c0_25] : memref<32x32xbf16, #tpu.memory_space<vmem>>, vector<32x32xbf16>
    %cst_26 = arith.constant dense<0.000000e+00> : vector<32x32xf32>
    %32 = tpu.matmul %30, %31, %cst_26 {dimension_numbers = #tpu.dot_dimension_numbers<[1], [0], [0], [1], [0, 0, 1, 1], [], []>} : vector<32x32xbf16>, vector<32x32xbf16>, vector<32x32xf32> -> vector<32x32xf32>
    %c0_27 = arith.constant 0 : index
    %c0_28 = arith.constant 0 : index
    %33 = vector.load %arg11[%c0_27, %c0_28] : memref<1x32xf32, #tpu.memory_space<vmem>>, vector<1x32xf32>
    %34 = vector.broadcast %33 : vector<1x32xf32> to vector<32x32xf32>
    %35 = arith.addf %32, %34 : vector<32x32xf32>
    %c0_29 = arith.constant 0 : index
    %c0_30 = arith.constant 0 : index
    %36 = vector.load %arg12[%c0_29, %c0_30] : memref<1x32xf32, #tpu.memory_space<vmem>>, vector<1x32xf32>
    %c0_31 = arith.constant 0 : index
    %c0_32 = arith.constant 0 : index
    %37 = vector.load %arg13[%c0_31, %c0_32] : memref<1x32xf32, #tpu.memory_space<vmem>>, vector<1x32xf32>
    %cst_33 = arith.constant dense<0.000000e+00> : vector<32xf32>
    %38 = vector.multi_reduction <add>, %35, %cst_33 [1] : vector<32x32xf32> to vector<32xf32>
    %39 = vector.shape_cast %38 : vector<32xf32> to vector<32x1xf32>
    %cst_34 = arith.constant 3.200000e+01 : f32
    %40 = vector.broadcast %cst_34 : f32 to vector<32x1xf32>
    %41 = arith.divf %39, %40 : vector<32x1xf32>
    %42 = vector.broadcast %41 : vector<32x1xf32> to vector<32x32xf32>
    %43 = arith.subf %35, %42 : vector<32x32xf32>
    %44 = arith.mulf %43, %43 : vector<32x32xf32>
    %cst_35 = arith.constant dense<0.000000e+00> : vector<32xf32>
    %45 = vector.multi_reduction <add>, %44, %cst_35 [1] : vector<32x32xf32> to vector<32xf32>
    %46 = vector.shape_cast %45 : vector<32xf32> to vector<32x1xf32>
    %cst_36 = arith.constant 3.200000e+01 : f32
    %47 = vector.broadcast %cst_36 : f32 to vector<32x1xf32>
    %48 = arith.divf %46, %47 : vector<32x1xf32>
    %cst_37 = arith.constant 9.99999974E-6 : f32
    %49 = vector.broadcast %cst_37 : f32 to vector<32x1xf32>
    %50 = arith.addf %48, %49 : vector<32x1xf32>
    %51 = math.rsqrt %50 : vector<32x1xf32>
    %52 = vector.broadcast %51 : vector<32x1xf32> to vector<32x32xf32>
    %53 = arith.mulf %43, %52 : vector<32x32xf32>
    %54 = vector.broadcast %36 : vector<1x32xf32> to vector<32x32xf32>
    %55 = arith.mulf %53, %54 : vector<32x32xf32>
    %56 = vector.broadcast %37 : vector<1x32xf32> to vector<32x32xf32>
    %57 = arith.addf %55, %56 : vector<32x32xf32>
    %58 = arith.truncf %7 : vector<32x32xf32> to vector<32x32xbf16>
    %c0_38 = arith.constant 0 : index
    %c0_39 = arith.constant 0 : index
    %59 = vector.load %arg7[%c0_38, %c0_39] : memref<1x32xf32, #tpu.memory_space<vmem>>, vector<1x32xf32>
    %c0_40 = arith.constant 0 : index
    %c0_41 = arith.constant 0 : index
    %60 = vector.load %arg6[%c0_40, %c0_41] : memref<96x32xbf16, #tpu.memory_space<vmem>>, vector<32x32xbf16>
    %cst_42 = arith.constant dense<0.000000e+00> : vector<32x32xf32>
    %61 = tpu.matmul %1, %60, %cst_42 {dimension_numbers = #tpu.dot_dimension_numbers<[1], [0], [0], [1], [0, 0, 1, 1], [], []>} : vector<32x32xbf16>, vector<32x32xbf16>, vector<32x32xf32> -> vector<32x32xf32>
    %62 = vector.broadcast %59 : vector<1x32xf32> to vector<32x32xf32>
    %63 = arith.addf %62, %61 : vector<32x32xf32>
    %c32_43 = arith.constant 32 : index
    %c0_44 = arith.constant 0 : index
    %64 = vector.load %arg6[%c32_43, %c0_44] : memref<96x32xbf16, #tpu.memory_space<vmem>>, vector<32x32xbf16>
    %cst_45 = arith.constant dense<0.000000e+00> : vector<32x32xf32>
    %65 = tpu.matmul %5, %64, %cst_45 {dimension_numbers = #tpu.dot_dimension_numbers<[1], [0], [0], [1], [0, 0, 1, 1], [], []>} : vector<32x32xbf16>, vector<32x32xbf16>, vector<32x32xf32> -> vector<32x32xf32>
    %66 = arith.addf %63, %65 : vector<32x32xf32>
    %c64_46 = arith.constant 64 : index
    %c0_47 = arith.constant 0 : index
    %67 = vector.load %arg6[%c64_46, %c0_47] : memref<96x32xbf16, #tpu.memory_space<vmem>>, vector<32x32xbf16>
    %cst_48 = arith.constant dense<0.000000e+00> : vector<32x32xf32>
    %68 = tpu.matmul %58, %67, %cst_48 {dimension_numbers = #tpu.dot_dimension_numbers<[1], [0], [0], [1], [0, 0, 1, 1], [], []>} : vector<32x32xbf16>, vector<32x32xbf16>, vector<32x32xf32> -> vector<32x32xf32>
    %69 = arith.addf %66, %68 : vector<32x32xf32>
    %cst_49 = arith.constant 0.000000e+00 : f32
    %70 = vector.broadcast %cst_49 : f32 to vector<32x32xf32>
    %71 = arith.maximumf %69, %70 : vector<32x32xf32>
    %72 = arith.truncf %71 : vector<32x32xf32> to vector<32x32xbf16>
    %c0_50 = arith.constant 0 : index
    %c0_51 = arith.constant 0 : index
    %73 = vector.load %arg8[%c0_50, %c0_51] : memref<32x32xbf16, #tpu.memory_space<vmem>>, vector<32x32xbf16>
    %cst_52 = arith.constant dense<0.000000e+00> : vector<32x32xf32>
    %74 = tpu.matmul %72, %73, %cst_52 {dimension_numbers = #tpu.dot_dimension_numbers<[1], [0], [0], [1], [0, 0, 1, 1], [], []>} : vector<32x32xbf16>, vector<32x32xbf16>, vector<32x32xf32> -> vector<32x32xf32>
    %c0_53 = arith.constant 0 : index
    %c0_54 = arith.constant 0 : index
    %75 = vector.load %arg9[%c0_53, %c0_54] : memref<1x32xf32, #tpu.memory_space<vmem>>, vector<1x32xf32>
    %76 = vector.broadcast %75 : vector<1x32xf32> to vector<32x32xf32>
    %77 = arith.addf %74, %76 : vector<32x32xf32>
    %cst_55 = arith.constant 0.000000e+00 : f32
    %78 = vector.broadcast %cst_55 : f32 to vector<32x32xf32>
    %79 = arith.maximumf %77, %78 : vector<32x32xf32>
    %80 = arith.truncf %79 : vector<32x32xf32> to vector<32x32xbf16>
    %c0_56 = arith.constant 0 : index
    %c0_57 = arith.constant 0 : index
    %81 = vector.load %arg10[%c0_56, %c0_57] : memref<32x32xbf16, #tpu.memory_space<vmem>>, vector<32x32xbf16>
    %cst_58 = arith.constant dense<0.000000e+00> : vector<32x32xf32>
    %82 = tpu.matmul %80, %81, %cst_58 {dimension_numbers = #tpu.dot_dimension_numbers<[1], [0], [0], [1], [0, 0, 1, 1], [], []>} : vector<32x32xbf16>, vector<32x32xbf16>, vector<32x32xf32> -> vector<32x32xf32>
    %c0_59 = arith.constant 0 : index
    %c0_60 = arith.constant 0 : index
    %83 = vector.load %arg11[%c0_59, %c0_60] : memref<1x32xf32, #tpu.memory_space<vmem>>, vector<1x32xf32>
    %84 = vector.broadcast %83 : vector<1x32xf32> to vector<32x32xf32>
    %85 = arith.addf %82, %84 : vector<32x32xf32>
    %c0_61 = arith.constant 0 : index
    %c0_62 = arith.constant 0 : index
    %86 = vector.load %arg12[%c0_61, %c0_62] : memref<1x32xf32, #tpu.memory_space<vmem>>, vector<1x32xf32>
    %c0_63 = arith.constant 0 : index
    %c0_64 = arith.constant 0 : index
    %87 = vector.load %arg13[%c0_63, %c0_64] : memref<1x32xf32, #tpu.memory_space<vmem>>, vector<1x32xf32>
    %cst_65 = arith.constant dense<0.000000e+00> : vector<32xf32>
    %88 = vector.multi_reduction <add>, %85, %cst_65 [1] : vector<32x32xf32> to vector<32xf32>
    %89 = vector.shape_cast %88 : vector<32xf32> to vector<32x1xf32>
    %cst_66 = arith.constant 3.200000e+01 : f32
    %90 = vector.broadcast %cst_66 : f32 to vector<32x1xf32>
    %91 = arith.divf %89, %90 : vector<32x1xf32>
    %92 = vector.broadcast %91 : vector<32x1xf32> to vector<32x32xf32>
    %93 = arith.subf %85, %92 : vector<32x32xf32>
    %94 = arith.mulf %93, %93 : vector<32x32xf32>
    %cst_67 = arith.constant dense<0.000000e+00> : vector<32xf32>
    %95 = vector.multi_reduction <add>, %94, %cst_67 [1] : vector<32x32xf32> to vector<32xf32>
    %96 = vector.shape_cast %95 : vector<32xf32> to vector<32x1xf32>
    %cst_68 = arith.constant 3.200000e+01 : f32
    %97 = vector.broadcast %cst_68 : f32 to vector<32x1xf32>
    %98 = arith.divf %96, %97 : vector<32x1xf32>
    %cst_69 = arith.constant 9.99999974E-6 : f32
    %99 = vector.broadcast %cst_69 : f32 to vector<32x1xf32>
    %100 = arith.addf %98, %99 : vector<32x1xf32>
    %101 = math.rsqrt %100 : vector<32x1xf32>
    %102 = vector.broadcast %101 : vector<32x1xf32> to vector<32x32xf32>
    %103 = arith.mulf %93, %102 : vector<32x32xf32>
    %104 = vector.broadcast %86 : vector<1x32xf32> to vector<32x32xf32>
    %105 = arith.mulf %103, %104 : vector<32x32xf32>
    %106 = vector.broadcast %87 : vector<1x32xf32> to vector<32x32xf32>
    %107 = arith.addf %105, %106 : vector<32x32xf32>
    %108 = arith.addf %57, %6 : vector<32x32xf32>
    %c0_70 = arith.constant 0 : index
    %c0_71 = arith.constant 0 : index
    %109 = vector.load %arg23[%c0_70, %c0_71] : memref<32x32xf32, #tpu.memory_space<vmem>>, vector<32x32xf32>
    tpu.vector_store %arg23[%c0_70, %c0_71], %108 {strides = array<i32>} : memref<32x32xf32, #tpu.memory_space<vmem>>, vector<32x32xf32>,
    %110 = arith.addf %107, %7 : vector<32x32xf32>
    %c0_72 = arith.constant 0 : index
    %c0_73 = arith.constant 0 : index
    %111 = vector.load %arg24[%c0_72, %c0_73] : memref<32x32xf32, #tpu.memory_space<vmem>>, vector<32x32xf32>
    tpu.vector_store %arg24[%c0_72, %c0_73], %110 {strides = array<i32>} : memref<32x32xf32, #tpu.memory_space<vmem>>, vector<32x32xf32>,
    %112 = arith.addf %57, %107 : vector<32x32xf32>
    %113 = arith.truncf %112 : vector<32x32xf32> to vector<32x32xbf16>
    %c0_74 = arith.constant 0 : index
    %c0_75 = arith.constant 0 : index
    %114 = vector.load %arg15[%c0_74, %c0_75] : memref<1x32xf32, #tpu.memory_space<vmem>>, vector<1x32xf32>
    %c0_76 = arith.constant 0 : index
    %c0_77 = arith.constant 0 : index
    %115 = vector.load %arg14[%c0_76, %c0_77] : memref<64x32xbf16, #tpu.memory_space<vmem>>, vector<32x32xbf16>
    %cst_78 = arith.constant dense<0.000000e+00> : vector<32x32xf32>
    %116 = tpu.matmul %113, %115, %cst_78 {dimension_numbers = #tpu.dot_dimension_numbers<[1], [0], [0], [1], [0, 0, 1, 1], [], []>} : vector<32x32xbf16>, vector<32x32xbf16>, vector<32x32xf32> -> vector<32x32xf32>
    %117 = vector.broadcast %114 : vector<1x32xf32> to vector<32x32xf32>
    %118 = arith.addf %117, %116 : vector<32x32xf32>
    %c32_79 = arith.constant 32 : index
    %c0_80 = arith.constant 0 : index
    %119 = vector.load %arg14[%c32_79, %c0_80] : memref<64x32xbf16, #tpu.memory_space<vmem>>, vector<32x32xbf16>
    %cst_81 = arith.constant dense<0.000000e+00> : vector<32x32xf32>
    %120 = tpu.matmul %1, %119, %cst_81 {dimension_numbers = #tpu.dot_dimension_numbers<[1], [0], [0], [1], [0, 0, 1, 1], [], []>} : vector<32x32xbf16>, vector<32x32xbf16>, vector<32x32xf32> -> vector<32x32xf32>
    %121 = arith.addf %118, %120 : vector<32x32xf32>
    %cst_82 = arith.constant 0.000000e+00 : f32
    %122 = vector.broadcast %cst_82 : f32 to vector<32x32xf32>
    %123 = arith.maximumf %121, %122 : vector<32x32xf32>
    %124 = arith.truncf %123 : vector<32x32xf32> to vector<32x32xbf16>
    %c0_83 = arith.constant 0 : index
    %c0_84 = arith.constant 0 : index
    %125 = vector.load %arg16[%c0_83, %c0_84] : memref<32x32xbf16, #tpu.memory_space<vmem>>, vector<32x32xbf16>
    %cst_85 = arith.constant dense<0.000000e+00> : vector<32x32xf32>
    %126 = tpu.matmul %124, %125, %cst_85 {dimension_numbers = #tpu.dot_dimension_numbers<[1], [0], [0], [1], [0, 0, 1, 1], [], []>} : vector<32x32xbf16>, vector<32x32xbf16>, vector<32x32xf32> -> vector<32x32xf32>
    %c0_86 = arith.constant 0 : index
    %c0_87 = arith.constant 0 : index
    %127 = vector.load %arg17[%c0_86, %c0_87] : memref<1x32xf32, #tpu.memory_space<vmem>>, vector<1x32xf32>
    %128 = vector.broadcast %127 : vector<1x32xf32> to vector<32x32xf32>
    %129 = arith.addf %126, %128 : vector<32x32xf32>
    %cst_88 = arith.constant 0.000000e+00 : f32
    %130 = vector.broadcast %cst_88 : f32 to vector<32x32xf32>
    %131 = arith.maximumf %129, %130 : vector<32x32xf32>
    %132 = arith.truncf %131 : vector<32x32xf32> to vector<32x32xbf16>
    %c0_89 = arith.constant 0 : index
    %c0_90 = arith.constant 0 : index
    %133 = vector.load %arg18[%c0_89, %c0_90] : memref<32x32xbf16, #tpu.memory_space<vmem>>, vector<32x32xbf16>
    %cst_91 = arith.constant dense<0.000000e+00> : vector<32x32xf32>
    %134 = tpu.matmul %132, %133, %cst_91 {dimension_numbers = #tpu.dot_dimension_numbers<[1], [0], [0], [1], [0, 0, 1, 1], [], []>} : vector<32x32xbf16>, vector<32x32xbf16>, vector<32x32xf32> -> vector<32x32xf32>
    %c0_92 = arith.constant 0 : index
    %c0_93 = arith.constant 0 : index
    %135 = vector.load %arg19[%c0_92, %c0_93] : memref<1x32xf32, #tpu.memory_space<vmem>>, vector<1x32xf32>
    %136 = vector.broadcast %135 : vector<1x32xf32> to vector<32x32xf32>
    %137 = arith.addf %134, %136 : vector<32x32xf32>
    %c0_94 = arith.constant 0 : index
    %c0_95 = arith.constant 0 : index
    %138 = vector.load %arg20[%c0_94, %c0_95] : memref<1x32xf32, #tpu.memory_space<vmem>>, vector<1x32xf32>
    %c0_96 = arith.constant 0 : index
    %c0_97 = arith.constant 0 : index
    %139 = vector.load %arg21[%c0_96, %c0_97] : memref<1x32xf32, #tpu.memory_space<vmem>>, vector<1x32xf32>
    %cst_98 = arith.constant dense<0.000000e+00> : vector<32xf32>
    %140 = vector.multi_reduction <add>, %137, %cst_98 [1] : vector<32x32xf32> to vector<32xf32>
    %141 = vector.shape_cast %140 : vector<32xf32> to vector<32x1xf32>
    %cst_99 = arith.constant 3.200000e+01 : f32
    %142 = vector.broadcast %cst_99 : f32 to vector<32x1xf32>
    %143 = arith.divf %141, %142 : vector<32x1xf32>
    %144 = vector.broadcast %143 : vector<32x1xf32> to vector<32x32xf32>
    %145 = arith.subf %137, %144 : vector<32x32xf32>
    %146 = arith.mulf %145, %145 : vector<32x32xf32>
    %cst_100 = arith.constant dense<0.000000e+00> : vector<32xf32>
    %147 = vector.multi_reduction <add>, %146, %cst_100 [1] : vector<32x32xf32> to vector<32xf32>
    %148 = vector.shape_cast %147 : vector<32xf32> to vector<32x1xf32>
    %cst_101 = arith.constant 3.200000e+01 : f32
    %149 = vector.broadcast %cst_101 : f32 to vector<32x1xf32>
    %150 = arith.divf %148, %149 : vector<32x1xf32>
    %cst_102 = arith.constant 9.99999974E-6 : f32
    %151 = vector.broadcast %cst_102 : f32 to vector<32x1xf32>
    %152 = arith.addf %150, %151 : vector<32x1xf32>
    %153 = math.rsqrt %152 : vector<32x1xf32>
    %154 = vector.broadcast %153 : vector<32x1xf32> to vector<32x32xf32>
    %155 = arith.mulf %145, %154 : vector<32x32xf32>
    %156 = vector.broadcast %138 : vector<1x32xf32> to vector<32x32xf32>
    %157 = arith.mulf %155, %156 : vector<32x32xf32>
    %158 = vector.broadcast %139 : vector<1x32xf32> to vector<32x32xf32>
    %159 = arith.addf %157, %158 : vector<32x32xf32>
    %160 = arith.addf %159, %0 : vector<32x32xf32>
    %c0_103 = arith.constant 0 : index
    %c0_104 = arith.constant 0 : index
    %161 = vector.load %arg22[%c0_103, %c0_104] : memref<32x32xf32, #tpu.memory_space<vmem>>, vector<32x32xf32>
    tpu.vector_store %arg22[%c0_103, %c0_104], %160 {strides = array<i32>} : memref<32x32xf32, #tpu.memory_space<vmem>>, vector<32x32xf32>,
    return
  }
  func.func @transform_0(%arg0: i32) -> (i32, i32) {
    %c0_i32 = arith.constant 0 : i32
    %c0_i32_0 = arith.constant 0 : i32
    return %arg0, %c0_i32 : i32, i32
  }
  func.func @transform_1(%arg0: i32) -> (i32, i32) {
    %c0_i32 = arith.constant 0 : i32
    %c0_i32_0 = arith.constant 0 : i32
    return %arg0, %c0_i32 : i32, i32
  }
  func.func @transform_2(%arg0: i32) -> (i32, i32) {
    %c0_i32 = arith.constant 0 : i32
    %c0_i32_0 = arith.constant 0 : i32
    return %arg0, %c0_i32 : i32, i32
  }
  func.func @transform_3(%arg0: i32) -> (i32, i32) {
    %c0_i32 = arith.constant 0 : i32
    %c0_i32_0 = arith.constant 0 : i32
    return %arg0, %c0_i32 : i32, i32
  }
  func.func @transform_4(%arg0: i32) -> (i32, i32) {
    %c0_i32 = arith.constant 0 : i32
    %c0_i32_0 = arith.constant 0 : i32
    return %arg0, %c0_i32 : i32, i32
  }
  func.func @transform_5(%arg0: i32) -> (i32, i32) {
    %c0_i32 = arith.constant 0 : i32
    %c0_i32_0 = arith.constant 0 : i32
    %c0_i32_1 = arith.constant 0 : i32
    return %c0_i32, %c0_i32_0 : i32, i32
  }
  func.func @transform_6(%arg0: i32) -> (i32, i32) {
    %c0_i32 = arith.constant 0 : i32
    %c0_i32_0 = arith.constant 0 : i32
    %c0_i32_1 = arith.constant 0 : i32
    return %c0_i32, %c0_i32_0 : i32, i32
  }
  func.func @transform_7(%arg0: i32) -> (i32, i32) {
    %c0_i32 = arith.constant 0 : i32
    %c0_i32_0 = arith.constant 0 : i32
    %c0_i32_1 = arith.constant 0 : i32
    return %c0_i32, %c0_i32_0 : i32, i32
  }
  func.func @transform_8(%arg0: i32) -> (i32, i32) {
    %c0_i32 = arith.constant 0 : i32
    %c0_i32_0 = arith.constant 0 : i32
    %c0_i32_1 = arith.constant 0 : i32
    return %c0_i32, %c0_i32_0 : i32, i32
  }
  func.func @transform_9(%arg0: i32) -> (i32, i32) {
    %c0_i32 = arith.constant 0 : i32
    %c0_i32_0 = arith.constant 0 : i32
    %c0_i32_1 = arith.constant 0 : i32
    return %c0_i32, %c0_i32_0 : i32, i32
  }
  func.func @transform_10(%arg0: i32) -> (i32, i32) {
    %c0_i32 = arith.constant 0 : i32
    %c0_i32_0 = arith.constant 0 : i32
    %c0_i32_1 = arith.constant 0 : i32
    return %c0_i32, %c0_i32_0 : i32, i32
  }
  func.func @transform_11(%arg0: i32) -> (i32, i32) {
    %c0_i32 = arith.constant 0 : i32
    %c0_i32_0 = arith.constant 0 : i32
    %c0_i32_1 = arith.constant 0 : i32
    return %c0_i32, %c0_i32_0 : i32, i32
  }
  func.func @transform_12(%arg0: i32) -> (i32, i32) {
    %c0_i32 = arith.constant 0 : i32
    %c0_i32_0 = arith.constant 0 : i32
    %c0_i32_1 = arith.constant 0 : i32
    return %c0_i32, %c0_i32_0 : i32, i32
  }
  func.func @transform_13(%arg0: i32) -> (i32, i32) {
    %c0_i32 = arith.constant 0 : i32
    %c0_i32_0 = arith.constant 0 : i32
    %c0_i32_1 = arith.constant 0 : i32
    return %c0_i32, %c0_i32_0 : i32, i32
  }
  func.func @transform_14(%arg0: i32) -> (i32, i32) {
    %c0_i32 = arith.constant 0 : i32
    %c0_i32_0 = arith.constant 0 : i32
    %c0_i32_1 = arith.constant 0 : i32
    return %c0_i32, %c0_i32_0 : i32, i32
  }
  func.func @transform_15(%arg0: i32) -> (i32, i32) {
    %c0_i32 = arith.constant 0 : i32
    %c0_i32_0 = arith.constant 0 : i32
    %c0_i32_1 = arith.constant 0 : i32
    return %c0_i32, %c0_i32_0 : i32, i32
  }
  func.func @transform_16(%arg0: i32) -> (i32, i32) {
    %c0_i32 = arith.constant 0 : i32
    %c0_i32_0 = arith.constant 0 : i32
    %c0_i32_1 = arith.constant 0 : i32
    return %c0_i32, %c0_i32_0 : i32, i32
  }
  func.func @transform_17(%arg0: i32) -> (i32, i32) {
    %c0_i32 = arith.constant 0 : i32
    %c0_i32_0 = arith.constant 0 : i32
    %c0_i32_1 = arith.constant 0 : i32
    return %c0_i32, %c0_i32_0 : i32, i32
  }
  func.func @transform_18(%arg0: i32) -> (i32, i32) {
    %c0_i32 = arith.constant 0 : i32
    %c0_i32_0 = arith.constant 0 : i32
    %c0_i32_1 = arith.constant 0 : i32
    return %c0_i32, %c0_i32_0 : i32, i32
  }
  func.func @transform_19(%arg0: i32) -> (i32, i32) {
    %c0_i32 = arith.constant 0 : i32
    %c0_i32_0 = arith.constant 0 : i32
    %c0_i32_1 = arith.constant 0 : i32
    return %c0_i32, %c0_i32_0 : i32, i32
  }
  func.func @transform_20(%arg0: i32) -> (i32, i32) {
    %c0_i32 = arith.constant 0 : i32
    %c0_i32_0 = arith.constant 0 : i32
    %c0_i32_1 = arith.constant 0 : i32
    return %c0_i32, %c0_i32_0 : i32, i32
  }
  func.func @transform_21(%arg0: i32) -> (i32, i32) {
    %c0_i32 = arith.constant 0 : i32
    %c0_i32_0 = arith.constant 0 : i32
    return %arg0, %c0_i32 : i32, i32
  }
  func.func @transform_22(%arg0: i32) -> (i32, i32) {
    %c0_i32 = arith.constant 0 : i32
    %c0_i32_0 = arith.constant 0 : i32
    return %arg0, %c0_i32 : i32, i32
  }
  func.func @transform_23(%arg0: i32) -> (i32, i32) {
    %c0_i32 = arith.constant 0 : i32
    %c0_i32_0 = arith.constant 0 : i32
    return %arg0, %c0_i32 : i32, i32
  }
}

module attributes {stable_mosaic.version = 11 : i64} {
  func.func @kernel(%arg0: i32, %arg1: memref<32x32xf32, #tpu.memory_space<vmem>>, %arg2: memref<32x32xf32, #tpu.memory_space<vmem>>, %arg3: memref<32x32xf32, #tpu.memory_space<vmem>>, %arg4: memref<32x32xf32, #tpu.memory_space<vmem>>, %arg5: memref<32x32xf32, #tpu.memory_space<vmem>>, %arg6: memref<96x32xbf16, #tpu.memory_space<vmem>>, %arg7: memref<1x32xf32, #tpu.memory_space<vmem>>, %arg8: memref<32x32xbf16, #tpu.memory_space<vmem>>, %arg9: memref<1x32xf32, #tpu.memory_space<vmem>>, %arg10: memref<32x32xbf16, #tpu.memory_space<vmem>>, %arg11: memref<1x32xf32, #tpu.memory_space<vmem>>, %arg12: memref<1x32xf32, #tpu.memory_space<vmem>>, %arg13: memref<1x32xf32, #tpu.memory_space<vmem>>, %arg14: memref<64x32xbf16, #tpu.memory_space<vmem>>, %arg15: memref<1x32xf32, #tpu.memory_space<vmem>>, %arg16: memref<32x32xbf16, #tpu.memory_space<vmem>>, %arg17: memref<1x32xf32, #tpu.memory_space<vmem>>, %arg18: memref<32x32xbf16, #tpu.memory_space<vmem>>, %arg19: memref<1x32xf32, #tpu.memory_space<vmem>>, %arg20: memref<1x32xf32, #tpu.memory_space<vmem>>, %arg21: memref<1x32xf32, #tpu.memory_space<vmem>>, %arg22: memref<32x32xf32, #tpu.memory_space<vmem>>, %arg23: memref<32x32xf32, #tpu.memory_space<vmem>>, %arg24: memref<32x32xf32, #tpu.memory_space<vmem>>) attributes {dimension_semantics = [#tpu.dimension_semantics<parallel>], iteration_bounds = array<i64: 1>, scalar_prefetch = 0 : i64, scratch_operands = 0 : i64, tpu.core_type = #tpu.core_type<tc>, window_params = [{transform_indices = @transform_0, window_bounds = array<i64: 32, 32>}, {transform_indices = @transform_1, window_bounds = array<i64: 32, 32>}, {transform_indices = @transform_2, window_bounds = array<i64: 32, 32>}, {transform_indices = @transform_3, window_bounds = array<i64: 32, 32>}, {transform_indices = @transform_4, window_bounds = array<i64: 32, 32>}, {pipeline_mode = #tpu.pipeline_mode<synchronous>, transform_indices = @transform_5, window_bounds = array<i64: 96, 32>}, {pipeline_mode = #tpu.pipeline_mode<synchronous>, transform_indices = @transform_6, window_bounds = array<i64: 1, 32>}, {pipeline_mode = #tpu.pipeline_mode<synchronous>, transform_indices = @transform_7, window_bounds = array<i64: 32, 32>}, {pipeline_mode = #tpu.pipeline_mode<synchronous>, transform_indices = @transform_8, window_bounds = array<i64: 1, 32>}, {pipeline_mode = #tpu.pipeline_mode<synchronous>, transform_indices = @transform_9, window_bounds = array<i64: 32, 32>}, {pipeline_mode = #tpu.pipeline_mode<synchronous>, transform_indices = @transform_10, window_bounds = array<i64: 1, 32>}, {pipeline_mode = #tpu.pipeline_mode<synchronous>, transform_indices = @transform_11, window_bounds = array<i64: 1, 32>}, {pipeline_mode = #tpu.pipeline_mode<synchronous>, transform_indices = @transform_12, window_bounds = array<i64: 1, 32>}, {pipeline_mode = #tpu.pipeline_mode<synchronous>, transform_indices = @transform_13, window_bounds = array<i64: 64, 32>}, {pipeline_mode = #tpu.pipeline_mode<synchronous>, transform_indices = @transform_14, window_bounds = array<i64: 1, 32>}, {pipeline_mode = #tpu.pipeline_mode<synchronous>, transform_indices = @transform_15, window_bounds = array<i64: 32, 32>}, {pipeline_mode = #tpu.pipeline_mode<synchronous>, transform_indices = @transform_16, window_bounds = array<i64: 1, 32>}, {pipeline_mode = #tpu.pipeline_mode<synchronous>, transform_indices = @transform_17, window_bounds = array<i64: 32, 32>}, {pipeline_mode = #tpu.pipeline_mode<synchronous>, transform_indices = @transform_18, window_bounds = array<i64: 1, 32>}, {pipeline_mode = #tpu.pipeline_mode<synchronous>, transform_indices = @transform_19, window_bounds = array<i64: 1, 32>}, {pipeline_mode = #tpu.pipeline_mode<synchronous>, transform_indices = @transform_20, window_bounds = array<i64: 1, 32>}, {transform_indices = @transform_21, window_bounds = array<i64: 32, 32>}, {transform_indices = @transform_22, window_bounds = array<i64: 32, 32>}, {transform_indices = @transform_23, window_bounds = array<i64: 32, 32>}]} {
    %c0 = arith.constant 0 : index
    %c0_0 = arith.constant 0 : index
    %0 = vector.load %arg1[%c0, %c0_0] : memref<32x32xf32, #tpu.memory_space<vmem>>, vector<32x32xf32>
    %1 = arith.truncf %0 : vector<32x32xf32> to vector<32x32xbf16>
    %c0_1 = arith.constant 0 : index
    %c0_2 = arith.constant 0 : index
    %2 = vector.load %arg2[%c0_1, %c0_2] : memref<32x32xf32, #tpu.memory_space<vmem>>, vector<32x32xf32>
    %3 = arith.truncf %2 : vector<32x32xf32> to vector<32x32xbf16>
    %c0_3 = arith.constant 0 : index
    %c0_4 = arith.constant 0 : index
    %4 = vector.load %arg3[%c0_3, %c0_4] : memref<32x32xf32, #tpu.memory_space<vmem>>, vector<32x32xf32>
    %5 = arith.truncf %4 : vector<32x32xf32> to vector<32x32xbf16>
    %c0_5 = arith.constant 0 : index
    %c0_6 = arith.constant 0 : index
    %6 = vector.load %arg4[%c0_5, %c0_6] : memref<32x32xf32, #tpu.memory_space<vmem>>, vector<32x32xf32>
    %c0_7 = arith.constant 0 : index
    %c0_8 = arith.constant 0 : index
    %7 = vector.load %arg5[%c0_7, %c0_8] : memref<32x32xf32, #tpu.memory_space<vmem>>, vector<32x32xf32>
    %8 = arith.truncf %6 : vector<32x32xf32> to vector<32x32xbf16>
    %c0_9 = arith.constant 0 : index
    %c0_10 = arith.constant 0 : index
    %9 = vector.load %arg7[%c0_9, %c0_10] : memref<1x32xf32, #tpu.memory_space<vmem>>, vector<1x32xf32>
    %c0_11 = arith.constant 0 : index
    %c0_12 = arith.constant 0 : index
    %10 = vector.load %arg6[%c0_11, %c0_12] : memref<96x32xbf16, #tpu.memory_space<vmem>>, vector<32x32xbf16>
    %cst = arith.constant dense<0.000000e+00> : vector<32x32xf32>
    %11 = tpu.matmul %1, %10, %cst {dimension_numbers = #tpu.dot_dimension_numbers<[1], [0], [0], [1], [0, 0, 1, 1], [], []>} : vector<32x32xbf16>, vector<32x32xbf16>, vector<32x32xf32> -> vector<32x32xf32>
    %12 = vector.broadcast %9 : vector<1x32xf32> to vector<32x32xf32>
    %13 = arith.addf %12, %11 : vector<32x32xf32>
    %c32 = arith.constant 32 : index
    %c0_13 = arith.constant 0 : index
    %14 = vector.load %arg6[%c32, %c0_13] : memref<96x32xbf16, #tpu.memory_space<vmem>>, vector<32x32xbf16>
    %cst_14 = arith.constant dense<0.000000e+00> : vector<32x32xf32>
    %15 = tpu.matmul %3, %14, %cst_14 {dimension_numbers = #tpu.dot_dimension_numbers<[1], [0], [0], [1], [0, 0, 1, 1], [], []>} : vector<32x32xbf16>, vector<32x32xbf16>, vector<32x32xf32> -> vector<32x32xf32>
    %16 = arith.addf %13, %15 : vector<32x32xf32>
    %c64 = arith.constant 64 : index
    %c0_15 = arith.constant 0 : index
    %17 = vector.load %arg6[%c64, %c0_15] : memref<96x32xbf16, #tpu.memory_space<vmem>>, vector<32x32xbf16>
    %cst_16 = arith.constant dense<0.000000e+00> : vector<32x32xf32>
    %18 = tpu.matmul %8, %17, %cst_16 {dimension_numbers = #tpu.dot_dimension_numbers<[1], [0], [0], [1], [0, 0, 1, 1], [], []>} : vector<32x32xbf16>, vector<32x32xbf16>, vector<32x32xf32> -> vector<32x32xf32>
    %19 = arith.addf %16, %18 : vector<32x32xf32>
    %cst_17 = arith.constant 0.000000e+00 : f32
    %20 = vector.broadcast %cst_17 : f32 to vector<32x32xf32>
    %21 = arith.maximumf %19, %20 : vector<32x32xf32>
    %22 = arith.truncf %21 : vector<32x32xf32> to vector<32x32xbf16>
    %c0_18 = arith.constant 0 : index
    %c0_19 = arith.constant 0 : index
    %23 = vector.load %arg8[%c0_18, %c0_19] : memref<32x32xbf16, #tpu.memory_space<vmem>>, vector<32x32xbf16>
    %cst_20 = arith.constant dense<0.000000e+00> : vector<32x32xf32>
    %24 = tpu.matmul %22, %23, %cst_20 {dimension_numbers = #tpu.dot_dimension_numbers<[1], [0], [0], [1], [0, 0, 1, 1], [], []>} : vector<32x32xbf16>, vector<32x32xbf16>, vector<32x32xf32> -> vector<32x32xf32>
    %c0_21 = arith.constant 0 : index
    %c0_22 = arith.constant 0 : index
    %25 = vector.load %arg9[%c0_21, %c0_22] : memref<1x32xf32, #tpu.memory_space<vmem>>, vector<1x32xf32>
    %26 = vector.broadcast %25 : vector<1x32xf32> to vector<32x32xf32>
    %27 = arith.addf %24, %26 : vector<32x32xf32>
    %cst_23 = arith.constant 0.000000e+00 : f32
    %28 = vector.broadcast %cst_23 : f32 to vector<32x32xf32>
    %29 = arith.maximumf %27, %28 : vector<32x32xf32>
    %30 = arith.truncf %29 : vector<32x32xf32> to vector<32x32xbf16>
    %c0_24 = arith.constant 0 : index
    %c0_25 = arith.constant 0 : index
    %31 = vector.load %arg10[%c0_24, %c0_25] : memref<32x32xbf16, #tpu.memory_space<vmem>>, vector<32x32xbf16>
    %cst_26 = arith.constant dense<0.000000e+00> : vector<32x32xf32>
    %32 = tpu.matmul %30, %31, %cst_26 {dimension_numbers = #tpu.dot_dimension_numbers<[1], [0], [0], [1], [0, 0, 1, 1], [], []>} : vector<32x32xbf16>, vector<32x32xbf16>, vector<32x32xf32> -> vector<32x32xf32>
    %c0_27 = arith.constant 0 : index
    %c0_28 = arith.constant 0 : index
    %33 = vector.load %arg11[%c0_27, %c0_28] : memref<1x32xf32, #tpu.memory_space<vmem>>, vector<1x32xf32>
    %34 = vector.broadcast %33 : vector<1x32xf32> to vector<32x32xf32>
    %35 = arith.addf %32, %34 : vector<32x32xf32>
    %c0_29 = arith.constant 0 : index
    %c0_30 = arith.constant 0 : index
    %36 = vector.load %arg12[%c0_29, %c0_30] : memref<1x32xf32, #tpu.memory_space<vmem>>, vector<1x32xf32>
    %c0_31 = arith.constant 0 : index
    %c0_32 = arith.constant 0 : index
    %37 = vector.load %arg13[%c0_31, %c0_32] : memref<1x32xf32, #tpu.memory_space<vmem>>, vector<1x32xf32>
    %cst_33 = arith.constant dense<0.000000e+00> : vector<32xf32>
    %38 = vector.multi_reduction <add>, %35, %cst_33 [1] : vector<32x32xf32> to vector<32xf32>
    %39 = vector.shape_cast %38 : vector<32xf32> to vector<32x1xf32>
    %cst_34 = arith.constant 3.200000e+01 : f32
    %40 = vector.broadcast %cst_34 : f32 to vector<32x1xf32>
    %41 = arith.divf %39, %40 : vector<32x1xf32>
    %42 = vector.broadcast %41 : vector<32x1xf32> to vector<32x32xf32>
    %43 = arith.subf %35, %42 : vector<32x32xf32>
    %44 = arith.mulf %43, %43 : vector<32x32xf32>
    %cst_35 = arith.constant dense<0.000000e+00> : vector<32xf32>
    %45 = vector.multi_reduction <add>, %44, %cst_35 [1] : vector<32x32xf32> to vector<32xf32>
    %46 = vector.shape_cast %45 : vector<32xf32> to vector<32x1xf32>
    %cst_36 = arith.constant 3.200000e+01 : f32
    %47 = vector.broadcast %cst_36 : f32 to vector<32x1xf32>
    %48 = arith.divf %46, %47 : vector<32x1xf32>
    %cst_37 = arith.constant 9.99999974E-6 : f32
    %49 = vector.broadcast %cst_37 : f32 to vector<32x1xf32>
    %50 = arith.addf %48, %49 : vector<32x1xf32>
    %51 = math.rsqrt %50 : vector<32x1xf32>
    %52 = vector.broadcast %51 : vector<32x1xf32> to vector<32x32xf32>
    %53 = arith.mulf %43, %52 : vector<32x32xf32>
    %54 = vector.broadcast %36 : vector<1x32xf32> to vector<32x32xf32>
    %55 = arith.mulf %53, %54 : vector<32x32xf32>
    %56 = vector.broadcast %37 : vector<1x32xf32> to vector<32x32xf32>
    %57 = arith.addf %55, %56 : vector<32x32xf32>
    %58 = arith.truncf %7 : vector<32x32xf32> to vector<32x32xbf16>
    %c0_38 = arith.constant 0 : index
    %c0_39 = arith.constant 0 : index
    %59 = vector.load %arg7[%c0_38, %c0_39] : memref<1x32xf32, #tpu.memory_space<vmem>>, vector<1x32xf32>
    %c0_40 = arith.constant 0 : index
    %c0_41 = arith.constant 0 : index
    %60 = vector.load %arg6[%c0_40, %c0_41] : memref<96x32xbf16, #tpu.memory_space<vmem>>, vector<32x32xbf16>
    %cst_42 = arith.constant dense<0.000000e+00> : vector<32x32xf32>
    %61 = tpu.matmul %1, %60, %cst_42 {dimension_numbers = #tpu.dot_dimension_numbers<[1], [0], [0], [1], [0, 0, 1, 1], [], []>} : vector<32x32xbf16>, vector<32x32xbf16>, vector<32x32xf32> -> vector<32x32xf32>
    %62 = vector.broadcast %59 : vector<1x32xf32> to vector<32x32xf32>
    %63 = arith.addf %62, %61 : vector<32x32xf32>
    %c32_43 = arith.constant 32 : index
    %c0_44 = arith.constant 0 : index
    %64 = vector.load %arg6[%c32_43, %c0_44] : memref<96x32xbf16, #tpu.memory_space<vmem>>, vector<32x32xbf16>
    %cst_45 = arith.constant dense<0.000000e+00> : vector<32x32xf32>
    %65 = tpu.matmul %5, %64, %cst_45 {dimension_numbers = #tpu.dot_dimension_numbers<[1], [0], [0], [1], [0, 0, 1, 1], [], []>} : vector<32x32xbf16>, vector<32x32xbf16>, vector<32x32xf32> -> vector<32x32xf32>
    %66 = arith.addf %63, %65 : vector<32x32xf32>
    %c64_46 = arith.constant 64 : index
    %c0_47 = arith.constant 0 : index
    %67 = vector.load %arg6[%c64_46, %c0_47] : memref<96x32xbf16, #tpu.memory_space<vmem>>, vector<32x32xbf16>
    %cst_48 = arith.constant dense<0.000000e+00> : vector<32x32xf32>
    %68 = tpu.matmul %58, %67, %cst_48 {dimension_numbers = #tpu.dot_dimension_numbers<[1], [0], [0], [1], [0, 0, 1, 1], [], []>} : vector<32x32xbf16>, vector<32x32xbf16>, vector<32x32xf32> -> vector<32x32xf32>
    %69 = arith.addf %66, %68 : vector<32x32xf32>
    %cst_49 = arith.constant 0.000000e+00 : f32
    %70 = vector.broadcast %cst_49 : f32 to vector<32x32xf32>
    %71 = arith.maximumf %69, %70 : vector<32x32xf32>
    %72 = arith.truncf %71 : vector<32x32xf32> to vector<32x32xbf16>
    %c0_50 = arith.constant 0 : index
    %c0_51 = arith.constant 0 : index
    %73 = vector.load %arg8[%c0_50, %c0_51] : memref<32x32xbf16, #tpu.memory_space<vmem>>, vector<32x32xbf16>
    %cst_52 = arith.constant dense<0.000000e+00> : vector<32x32xf32>
    %74 = tpu.matmul %72, %73, %cst_52 {dimension_numbers = #tpu.dot_dimension_numbers<[1], [0], [0], [1], [0, 0, 1, 1], [], []>} : vector<32x32xbf16>, vector<32x32xbf16>, vector<32x32xf32> -> vector<32x32xf32>
    %c0_53 = arith.constant 0 : index
    %c0_54 = arith.constant 0 : index
    %75 = vector.load %arg9[%c0_53, %c0_54] : memref<1x32xf32, #tpu.memory_space<vmem>>, vector<1x32xf32>
    %76 = vector.broadcast %75 : vector<1x32xf32> to vector<32x32xf32>
    %77 = arith.addf %74, %76 : vector<32x32xf32>
    %cst_55 = arith.constant 0.000000e+00 : f32
    %78 = vector.broadcast %cst_55 : f32 to vector<32x32xf32>
    %79 = arith.maximumf %77, %78 : vector<32x32xf32>
    %80 = arith.truncf %79 : vector<32x32xf32> to vector<32x32xbf16>
    %c0_56 = arith.constant 0 : index
    %c0_57 = arith.constant 0 : index
    %81 = vector.load %arg10[%c0_56, %c0_57] : memref<32x32xbf16, #tpu.memory_space<vmem>>, vector<32x32xbf16>
    %cst_58 = arith.constant dense<0.000000e+00> : vector<32x32xf32>
    %82 = tpu.matmul %80, %81, %cst_58 {dimension_numbers = #tpu.dot_dimension_numbers<[1], [0], [0], [1], [0, 0, 1, 1], [], []>} : vector<32x32xbf16>, vector<32x32xbf16>, vector<32x32xf32> -> vector<32x32xf32>
    %c0_59 = arith.constant 0 : index
    %c0_60 = arith.constant 0 : index
    %83 = vector.load %arg11[%c0_59, %c0_60] : memref<1x32xf32, #tpu.memory_space<vmem>>, vector<1x32xf32>
    %84 = vector.broadcast %83 : vector<1x32xf32> to vector<32x32xf32>
    %85 = arith.addf %82, %84 : vector<32x32xf32>
    %c0_61 = arith.constant 0 : index
    %c0_62 = arith.constant 0 : index
    %86 = vector.load %arg12[%c0_61, %c0_62] : memref<1x32xf32, #tpu.memory_space<vmem>>, vector<1x32xf32>
    %c0_63 = arith.constant 0 : index
    %c0_64 = arith.constant 0 : index
    %87 = vector.load %arg13[%c0_63, %c0_64] : memref<1x32xf32, #tpu.memory_space<vmem>>, vector<1x32xf32>
    %cst_65 = arith.constant dense<0.000000e+00> : vector<32xf32>
    %88 = vector.multi_reduction <add>, %85, %cst_65 [1] : vector<32x32xf32> to vector<32xf32>
    %89 = vector.shape_cast %88 : vector<32xf32> to vector<32x1xf32>
    %cst_66 = arith.constant 3.200000e+01 : f32
    %90 = vector.broadcast %cst_66 : f32 to vector<32x1xf32>
    %91 = arith.divf %89, %90 : vector<32x1xf32>
    %92 = vector.broadcast %91 : vector<32x1xf32> to vector<32x32xf32>
    %93 = arith.subf %85, %92 : vector<32x32xf32>
    %94 = arith.mulf %93, %93 : vector<32x32xf32>
    %cst_67 = arith.constant dense<0.000000e+00> : vector<32xf32>
    %95 = vector.multi_reduction <add>, %94, %cst_67 [1] : vector<32x32xf32> to vector<32xf32>
    %96 = vector.shape_cast %95 : vector<32xf32> to vector<32x1xf32>
    %cst_68 = arith.constant 3.200000e+01 : f32
    %97 = vector.broadcast %cst_68 : f32 to vector<32x1xf32>
    %98 = arith.divf %96, %97 : vector<32x1xf32>
    %cst_69 = arith.constant 9.99999974E-6 : f32
    %99 = vector.broadcast %cst_69 : f32 to vector<32x1xf32>
    %100 = arith.addf %98, %99 : vector<32x1xf32>
    %101 = math.rsqrt %100 : vector<32x1xf32>
    %102 = vector.broadcast %101 : vector<32x1xf32> to vector<32x32xf32>
    %103 = arith.mulf %93, %102 : vector<32x32xf32>
    %104 = vector.broadcast %86 : vector<1x32xf32> to vector<32x32xf32>
    %105 = arith.mulf %103, %104 : vector<32x32xf32>
    %106 = vector.broadcast %87 : vector<1x32xf32> to vector<32x32xf32>
    %107 = arith.addf %105, %106 : vector<32x32xf32>
    %108 = arith.addf %57, %6 : vector<32x32xf32>
    %c0_70 = arith.constant 0 : index
    %c0_71 = arith.constant 0 : index
    %109 = vector.load %arg23[%c0_70, %c0_71] : memref<32x32xf32, #tpu.memory_space<vmem>>, vector<32x32xf32>
    tpu.vector_store %arg23[%c0_70, %c0_71], %108 {strides = array<i32>} : memref<32x32xf32, #tpu.memory_space<vmem>>, vector<32x32xf32>,
    %110 = arith.addf %107, %7 : vector<32x32xf32>
    %c0_72 = arith.constant 0 : index
    %c0_73 = arith.constant 0 : index
    %111 = vector.load %arg24[%c0_72, %c0_73] : memref<32x32xf32, #tpu.memory_space<vmem>>, vector<32x32xf32>
    tpu.vector_store %arg24[%c0_72, %c0_73], %110 {strides = array<i32>} : memref<32x32xf32, #tpu.memory_space<vmem>>, vector<32x32xf32>,
    %112 = arith.addf %57, %107 : vector<32x32xf32>
    %113 = arith.truncf %112 : vector<32x32xf32> to vector<32x32xbf16>
    %c0_74 = arith.constant 0 : index
    %c0_75 = arith.constant 0 : index
    %114 = vector.load %arg15[%c0_74, %c0_75] : memref<1x32xf32, #tpu.memory_space<vmem>>, vector<1x32xf32>
    %c0_76 = arith.constant 0 : index
    %c0_77 = arith.constant 0 : index
    %115 = vector.load %arg14[%c0_76, %c0_77] : memref<64x32xbf16, #tpu.memory_space<vmem>>, vector<32x32xbf16>
    %cst_78 = arith.constant dense<0.000000e+00> : vector<32x32xf32>
    %116 = tpu.matmul %113, %115, %cst_78 {dimension_numbers = #tpu.dot_dimension_numbers<[1], [0], [0], [1], [0, 0, 1, 1], [], []>} : vector<32x32xbf16>, vector<32x32xbf16>, vector<32x32xf32> -> vector<32x32xf32>
    %117 = vector.broadcast %114 : vector<1x32xf32> to vector<32x32xf32>
    %118 = arith.addf %117, %116 : vector<32x32xf32>
    %c32_79 = arith.constant 32 : index
    %c0_80 = arith.constant 0 : index
    %119 = vector.load %arg14[%c32_79, %c0_80] : memref<64x32xbf16, #tpu.memory_space<vmem>>, vector<32x32xbf16>
    %cst_81 = arith.constant dense<0.000000e+00> : vector<32x32xf32>
    %120 = tpu.matmul %1, %119, %cst_81 {dimension_numbers = #tpu.dot_dimension_numbers<[1], [0], [0], [1], [0, 0, 1, 1], [], []>} : vector<32x32xbf16>, vector<32x32xbf16>, vector<32x32xf32> -> vector<32x32xf32>
    %121 = arith.addf %118, %120 : vector<32x32xf32>
    %cst_82 = arith.constant 0.000000e+00 : f32
    %122 = vector.broadcast %cst_82 : f32 to vector<32x32xf32>
    %123 = arith.maximumf %121, %122 : vector<32x32xf32>
    %124 = arith.truncf %123 : vector<32x32xf32> to vector<32x32xbf16>
    %c0_83 = arith.constant 0 : index
    %c0_84 = arith.constant 0 : index
    %125 = vector.load %arg16[%c0_83, %c0_84] : memref<32x32xbf16, #tpu.memory_space<vmem>>, vector<32x32xbf16>
    %cst_85 = arith.constant dense<0.000000e+00> : vector<32x32xf32>
    %126 = tpu.matmul %124, %125, %cst_85 {dimension_numbers = #tpu.dot_dimension_numbers<[1], [0], [0], [1], [0, 0, 1, 1], [], []>} : vector<32x32xbf16>, vector<32x32xbf16>, vector<32x32xf32> -> vector<32x32xf32>
    %c0_86 = arith.constant 0 : index
    %c0_87 = arith.constant 0 : index
    %127 = vector.load %arg17[%c0_86, %c0_87] : memref<1x32xf32, #tpu.memory_space<vmem>>, vector<1x32xf32>
    %128 = vector.broadcast %127 : vector<1x32xf32> to vector<32x32xf32>
    %129 = arith.addf %126, %128 : vector<32x32xf32>
    %cst_88 = arith.constant 0.000000e+00 : f32
    %130 = vector.broadcast %cst_88 : f32 to vector<32x32xf32>
    %131 = arith.maximumf %129, %130 : vector<32x32xf32>
    %132 = arith.truncf %131 : vector<32x32xf32> to vector<32x32xbf16>
    %c0_89 = arith.constant 0 : index
    %c0_90 = arith.constant 0 : index
    %133 = vector.load %arg18[%c0_89, %c0_90] : memref<32x32xbf16, #tpu.memory_space<vmem>>, vector<32x32xbf16>
    %cst_91 = arith.constant dense<0.000000e+00> : vector<32x32xf32>
    %134 = tpu.matmul %132, %133, %cst_91 {dimension_numbers = #tpu.dot_dimension_numbers<[1], [0], [0], [1], [0, 0, 1, 1], [], []>} : vector<32x32xbf16>, vector<32x32xbf16>, vector<32x32xf32> -> vector<32x32xf32>
    %c0_92 = arith.constant 0 : index
    %c0_93 = arith.constant 0 : index
    %135 = vector.load %arg19[%c0_92, %c0_93] : memref<1x32xf32, #tpu.memory_space<vmem>>, vector<1x32xf32>
    %136 = vector.broadcast %135 : vector<1x32xf32> to vector<32x32xf32>
    %137 = arith.addf %134, %136 : vector<32x32xf32>
    %c0_94 = arith.constant 0 : index
    %c0_95 = arith.constant 0 : index
    %138 = vector.load %arg20[%c0_94, %c0_95] : memref<1x32xf32, #tpu.memory_space<vmem>>, vector<1x32xf32>
    %c0_96 = arith.constant 0 : index
    %c0_97 = arith.constant 0 : index
    %139 = vector.load %arg21[%c0_96, %c0_97] : memref<1x32xf32, #tpu.memory_space<vmem>>, vector<1x32xf32>
    %cst_98 = arith.constant dense<0.000000e+00> : vector<32xf32>
    %140 = vector.multi_reduction <add>, %137, %cst_98 [1] : vector<32x32xf32> to vector<32xf32>
    %141 = vector.shape_cast %140 : vector<32xf32> to vector<32x1xf32>
    %cst_99 = arith.constant 3.200000e+01 : f32
    %142 = vector.broadcast %cst_99 : f32 to vector<32x1xf32>
    %143 = arith.divf %141, %142 : vector<32x1xf32>
    %144 = vector.broadcast %143 : vector<32x1xf32> to vector<32x32xf32>
    %145 = arith.subf %137, %144 : vector<32x32xf32>
    %146 = arith.mulf %145, %145 : vector<32x32xf32>
    %cst_100 = arith.constant dense<0.000000e+00> : vector<32xf32>
    %147 = vector.multi_reduction <add>, %146, %cst_100 [1] : vector<32x32xf32> to vector<32xf32>
    %148 = vector.shape_cast %147 : vector<32xf32> to vector<32x1xf32>
    %cst_101 = arith.constant 3.200000e+01 : f32
    %149 = vector.broadcast %cst_101 : f32 to vector<32x1xf32>
    %150 = arith.divf %148, %149 : vector<32x1xf32>
    %cst_102 = arith.constant 9.99999974E-6 : f32
    %151 = vector.broadcast %cst_102 : f32 to vector<32x1xf32>
    %152 = arith.addf %150, %151 : vector<32x1xf32>
    %153 = math.rsqrt %152 : vector<32x1xf32>
    %154 = vector.broadcast %153 : vector<32x1xf32> to vector<32x32xf32>
    %155 = arith.mulf %145, %154 : vector<32x32xf32>
    %156 = vector.broadcast %138 : vector<1x32xf32> to vector<32x32xf32>
    %157 = arith.mulf %155, %156 : vector<32x32xf32>
    %158 = vector.broadcast %139 : vector<1x32xf32> to vector<32x32xf32>
    %159 = arith.addf %157, %158 : vector<32x32xf32>
    %160 = arith.addf %159, %0 : vector<32x32xf32>
    %c0_103 = arith.constant 0 : index
    %c0_104 = arith.constant 0 : index
    %161 = vector.load %arg22[%c0_103, %c0_104] : memref<32x32xf32, #tpu.memory_space<vmem>>, vector<32x32xf32>
    tpu.vector_store %arg22[%c0_103, %c0_104], %160 {strides = array<i32>} : memref<32x32xf32, #tpu.memory_space<vmem>>, vector<32x32xf32>,
    return
  }
  func.func @transform_0(%arg0: i32) -> (i32, i32) {
    %c0_i32 = arith.constant 0 : i32
    %c0_i32_0 = arith.constant 0 : i32
    return %arg0, %c0_i32 : i32, i32
  }
  func.func @transform_1(%arg0: i32) -> (i32, i32) {
    %c0_i32 = arith.constant 0 : i32
    %c0_i32_0 = arith.constant 0 : i32
    return %arg0, %c0_i32 : i32, i32
  }
  func.func @transform_2(%arg0: i32) -> (i32, i32) {
    %c0_i32 = arith.constant 0 : i32
    %c0_i32_0 = arith.constant 0 : i32
    return %arg0, %c0_i32 : i32, i32
  }
  func.func @transform_3(%arg0: i32) -> (i32, i32) {
    %c0_i32 = arith.constant 0 : i32
    %c0_i32_0 = arith.constant 0 : i32
    return %arg0, %c0_i32 : i32, i32
  }
  func.func @transform_4(%arg0: i32) -> (i32, i32) {
    %c0_i32 = arith.constant 0 : i32
    %c0_i32_0 = arith.constant 0 : i32
    return %arg0, %c0_i32 : i32, i32
  }
  func.func @transform_5(%arg0: i32) -> (i32, i32) {
    %c0_i32 = arith.constant 0 : i32
    %c0_i32_0 = arith.constant 0 : i32
    %c0_i32_1 = arith.constant 0 : i32
    return %c0_i32, %c0_i32_0 : i32, i32
  }
  func.func @transform_6(%arg0: i32) -> (i32, i32) {
    %c0_i32 = arith.constant 0 : i32
    %c0_i32_0 = arith.constant 0 : i32
    %c0_i32_1 = arith.constant 0 : i32
    return %c0_i32, %c0_i32_0 : i32, i32
  }
  func.func @transform_7(%arg0: i32) -> (i32, i32) {
    %c0_i32 = arith.constant 0 : i32
    %c0_i32_0 = arith.constant 0 : i32
    %c0_i32_1 = arith.constant 0 : i32
    return %c0_i32, %c0_i32_0 : i32, i32
  }
  func.func @transform_8(%arg0: i32) -> (i32, i32) {
    %c0_i32 = arith.constant 0 : i32
    %c0_i32_0 = arith.constant 0 : i32
    %c0_i32_1 = arith.constant 0 : i32
    return %c0_i32, %c0_i32_0 : i32, i32
  }
  func.func @transform_9(%arg0: i32) -> (i32, i32) {
    %c0_i32 = arith.constant 0 : i32
    %c0_i32_0 = arith.constant 0 : i32
    %c0_i32_1 = arith.constant 0 : i32
    return %c0_i32, %c0_i32_0 : i32, i32
  }
  func.func @transform_10(%arg0: i32) -> (i32, i32) {
    %c0_i32 = arith.constant 0 : i32
    %c0_i32_0 = arith.constant 0 : i32
    %c0_i32_1 = arith.constant 0 : i32
    return %c0_i32, %c0_i32_0 : i32, i32
  }
  func.func @transform_11(%arg0: i32) -> (i32, i32) {
    %c0_i32 = arith.constant 0 : i32
    %c0_i32_0 = arith.constant 0 : i32
    %c0_i32_1 = arith.constant 0 : i32
    return %c0_i32, %c0_i32_0 : i32, i32
  }
  func.func @transform_12(%arg0: i32) -> (i32, i32) {
    %c0_i32 = arith.constant 0 : i32
    %c0_i32_0 = arith.constant 0 : i32
    %c0_i32_1 = arith.constant 0 : i32
    return %c0_i32, %c0_i32_0 : i32, i32
  }
  func.func @transform_13(%arg0: i32) -> (i32, i32) {
    %c0_i32 = arith.constant 0 : i32
    %c0_i32_0 = arith.constant 0 : i32
    %c0_i32_1 = arith.constant 0 : i32
    return %c0_i32, %c0_i32_0 : i32, i32
  }
  func.func @transform_14(%arg0: i32) -> (i32, i32) {
    %c0_i32 = arith.constant 0 : i32
    %c0_i32_0 = arith.constant 0 : i32
    %c0_i32_1 = arith.constant 0 : i32
    return %c0_i32, %c0_i32_0 : i32, i32
  }
  func.func @transform_15(%arg0: i32) -> (i32, i32) {
    %c0_i32 = arith.constant 0 : i32
    %c0_i32_0 = arith.constant 0 : i32
    %c0_i32_1 = arith.constant 0 : i32
    return %c0_i32, %c0_i32_0 : i32, i32
  }
  func.func @transform_16(%arg0: i32) -> (i32, i32) {
    %c0_i32 = arith.constant 0 : i32
    %c0_i32_0 = arith.constant 0 : i32
    %c0_i32_1 = arith.constant 0 : i32
    return %c0_i32, %c0_i32_0 : i32, i32
  }
  func.func @transform_17(%arg0: i32) -> (i32, i32) {
    %c0_i32 = arith.constant 0 : i32
    %c0_i32_0 = arith.constant 0 : i32
    %c0_i32_1 = arith.constant 0 : i32
    return %c0_i32, %c0_i32_0 : i32, i32
  }
  func.func @transform_18(%arg0: i32) -> (i32, i32) {
    %c0_i32 = arith.constant 0 : i32
    %c0_i32_0 = arith.constant 0 : i32
    %c0_i32_1 = arith.constant 0 : i32
    return %c0_i32, %c0_i32_0 : i32, i32
  }
  func.func @transform_19(%arg0: i32) -> (i32, i32) {
    %c0_i32 = arith.constant 0 : i32
    %c0_i32_0 = arith.constant 0 : i32
    %c0_i32_1 = arith.constant 0 : i32
    return %c0_i32, %c0_i32_0 : i32, i32
  }
  func.func @transform_20(%arg0: i32) -> (i32, i32) {
    %c0_i32 = arith.constant 0 : i32
    %c0_i32_0 = arith.constant 0 : i32
    %c0_i32_1 = arith.constant 0 : i32
    return %c0_i32, %c0_i32_0 : i32, i32
  }
  func.func @transform_21(%arg0: i32) -> (i32, i32) {
    %c0_i32 = arith.constant 0 : i32
    %c0_i32_0 = arith.constant 0 : i32
    return %arg0, %c0_i32 : i32, i32
  }
  func.func @transform_22(%arg0: i32) -> (i32, i32) {
    %c0_i32 = arith.constant 0 : i32
    %c0_i32_0 = arith.constant 0 : i32
    return %arg0, %c0_i32 : i32, i32
  }
  func.func @transform_23(%arg0: i32) -> (i32, i32) {
    %c0_i32 = arith.constant 0 : i32
    %c0_i32_0 = arith.constant 0 : i32
    return %arg0, %c0_i32 : i32, i32
  }
}

module attributes {stable_mosaic.version = 11 : i64} {
  func.func @kernel(%arg0: i32, %arg1: memref<32x32xf32, #tpu.memory_space<vmem>>, %arg2: memref<32x32xbf16, #tpu.memory_space<vmem>>, %arg3: memref<1x32xf32, #tpu.memory_space<vmem>>, %arg4: memref<32x32xbf16, #tpu.memory_space<vmem>>, %arg5: memref<1x32xf32, #tpu.memory_space<vmem>>, %arg6: memref<32x2xbf16, #tpu.memory_space<vmem>>, %arg7: memref<1x2xf32, #tpu.memory_space<vmem>>, %arg8: memref<32x2xf32, #tpu.memory_space<vmem>>) attributes {dimension_semantics = [#tpu.dimension_semantics<parallel>], iteration_bounds = array<i64: 1>, scalar_prefetch = 0 : i64, scratch_operands = 0 : i64, tpu.core_type = #tpu.core_type<tc>, window_params = [{transform_indices = @transform_0, window_bounds = array<i64: 32, 32>}, {pipeline_mode = #tpu.pipeline_mode<synchronous>, transform_indices = @transform_1, window_bounds = array<i64: 32, 32>}, {pipeline_mode = #tpu.pipeline_mode<synchronous>, transform_indices = @transform_2, window_bounds = array<i64: 1, 32>}, {pipeline_mode = #tpu.pipeline_mode<synchronous>, transform_indices = @transform_3, window_bounds = array<i64: 32, 32>}, {pipeline_mode = #tpu.pipeline_mode<synchronous>, transform_indices = @transform_4, window_bounds = array<i64: 1, 32>}, {pipeline_mode = #tpu.pipeline_mode<synchronous>, transform_indices = @transform_5, window_bounds = array<i64: 32, 2>}, {pipeline_mode = #tpu.pipeline_mode<synchronous>, transform_indices = @transform_6, window_bounds = array<i64: 1, 2>}, {transform_indices = @transform_7, window_bounds = array<i64: 32, 2>}]} {
    %c0 = arith.constant 0 : index
    %c0_0 = arith.constant 0 : index
    %0 = vector.load %arg1[%c0, %c0_0] : memref<32x32xf32, #tpu.memory_space<vmem>>, vector<32x32xf32>
    %1 = arith.truncf %0 : vector<32x32xf32> to vector<32x32xbf16>
    %c0_1 = arith.constant 0 : index
    %c0_2 = arith.constant 0 : index
    %2 = vector.load %arg3[%c0_1, %c0_2] : memref<1x32xf32, #tpu.memory_space<vmem>>, vector<1x32xf32>
    %c0_3 = arith.constant 0 : index
    %c0_4 = arith.constant 0 : index
    %3 = vector.load %arg2[%c0_3, %c0_4] : memref<32x32xbf16, #tpu.memory_space<vmem>>, vector<32x32xbf16>
    %cst = arith.constant dense<0.000000e+00> : vector<32x32xf32>
    %4 = tpu.matmul %1, %3, %cst {dimension_numbers = #tpu.dot_dimension_numbers<[1], [0], [0], [1], [0, 0, 1, 1], [], []>} : vector<32x32xbf16>, vector<32x32xbf16>, vector<32x32xf32> -> vector<32x32xf32>
    %5 = vector.broadcast %2 : vector<1x32xf32> to vector<32x32xf32>
    %6 = arith.addf %5, %4 : vector<32x32xf32>
    %cst_5 = arith.constant 0.000000e+00 : f32
    %7 = vector.broadcast %cst_5 : f32 to vector<32x32xf32>
    %8 = arith.maximumf %6, %7 : vector<32x32xf32>
    %9 = arith.truncf %8 : vector<32x32xf32> to vector<32x32xbf16>
    %c0_6 = arith.constant 0 : index
    %c0_7 = arith.constant 0 : index
    %10 = vector.load %arg4[%c0_6, %c0_7] : memref<32x32xbf16, #tpu.memory_space<vmem>>, vector<32x32xbf16>
    %cst_8 = arith.constant dense<0.000000e+00> : vector<32x32xf32>
    %11 = tpu.matmul %9, %10, %cst_8 {dimension_numbers = #tpu.dot_dimension_numbers<[1], [0], [0], [1], [0, 0, 1, 1], [], []>} : vector<32x32xbf16>, vector<32x32xbf16>, vector<32x32xf32> -> vector<32x32xf32>
    %c0_9 = arith.constant 0 : index
    %c0_10 = arith.constant 0 : index
    %12 = vector.load %arg5[%c0_9, %c0_10] : memref<1x32xf32, #tpu.memory_space<vmem>>, vector<1x32xf32>
    %13 = vector.broadcast %12 : vector<1x32xf32> to vector<32x32xf32>
    %14 = arith.addf %11, %13 : vector<32x32xf32>
    %cst_11 = arith.constant 0.000000e+00 : f32
    %15 = vector.broadcast %cst_11 : f32 to vector<32x32xf32>
    %16 = arith.maximumf %14, %15 : vector<32x32xf32>
    %17 = arith.truncf %16 : vector<32x32xf32> to vector<32x32xbf16>
    %c0_12 = arith.constant 0 : index
    %c0_13 = arith.constant 0 : index
    %18 = vector.load %arg6[%c0_12, %c0_13] : memref<32x2xbf16, #tpu.memory_space<vmem>>, vector<32x2xbf16>
    %cst_14 = arith.constant dense<0.000000e+00> : vector<32x2xf32>
    %19 = tpu.matmul %17, %18, %cst_14 {dimension_numbers = #tpu.dot_dimension_numbers<[1], [0], [0], [1], [0, 0, 1, 1], [], []>} : vector<32x32xbf16>, vector<32x2xbf16>, vector<32x2xf32> -> vector<32x2xf32>
    %c0_15 = arith.constant 0 : index
    %c0_16 = arith.constant 0 : index
    %20 = vector.load %arg7[%c0_15, %c0_16] : memref<1x2xf32, #tpu.memory_space<vmem>>, vector<1x2xf32>
    %21 = vector.broadcast %20 : vector<1x2xf32> to vector<32x2xf32>
    %22 = arith.addf %19, %21 : vector<32x2xf32>
    %c0_17 = arith.constant 0 : index
    %c0_18 = arith.constant 0 : index
    %23 = vector.load %arg8[%c0_17, %c0_18] : memref<32x2xf32, #tpu.memory_space<vmem>>, vector<32x2xf32>
    tpu.vector_store %arg8[%c0_17, %c0_18], %22 {strides = array<i32>} : memref<32x2xf32, #tpu.memory_space<vmem>>, vector<32x2xf32>,
    return
  }
  func.func @transform_0(%arg0: i32) -> (i32, i32) {
    %c0_i32 = arith.constant 0 : i32
    %c0_i32_0 = arith.constant 0 : i32
    return %arg0, %c0_i32 : i32, i32
  }
  func.func @transform_1(%arg0: i32) -> (i32, i32) {
    %c0_i32 = arith.constant 0 : i32
    %c0_i32_0 = arith.constant 0 : i32
    %c0_i32_1 = arith.constant 0 : i32
    return %c0_i32, %c0_i32_0 : i32, i32
  }
  func.func @transform_2(%arg0: i32) -> (i32, i32) {
    %c0_i32 = arith.constant 0 : i32
    %c0_i32_0 = arith.constant 0 : i32
    %c0_i32_1 = arith.constant 0 : i32
    return %c0_i32, %c0_i32_0 : i32, i32
  }
  func.func @transform_3(%arg0: i32) -> (i32, i32) {
    %c0_i32 = arith.constant 0 : i32
    %c0_i32_0 = arith.constant 0 : i32
    %c0_i32_1 = arith.constant 0 : i32
    return %c0_i32, %c0_i32_0 : i32, i32
  }
  func.func @transform_4(%arg0: i32) -> (i32, i32) {
    %c0_i32 = arith.constant 0 : i32
    %c0_i32_0 = arith.constant 0 : i32
    %c0_i32_1 = arith.constant 0 : i32
    return %c0_i32, %c0_i32_0 : i32, i32
  }
  func.func @transform_5(%arg0: i32) -> (i32, i32) {
    %c0_i32 = arith.constant 0 : i32
    %c0_i32_0 = arith.constant 0 : i32
    %c0_i32_1 = arith.constant 0 : i32
    return %c0_i32, %c0_i32_0 : i32, i32
  }
  func.func @transform_6(%arg0: i32) -> (i32, i32) {
    %c0_i32 = arith.constant 0 : i32
    %c0_i32_0 = arith.constant 0 : i32
    %c0_i32_1 = arith.constant 0 : i32
    return %c0_i32, %c0_i32_0 : i32, i32
  }
  func.func @transform_7(%arg0: i32) -> (i32, i32) {
    %c0_i32 = arith.constant 0 : i32
    %c0_i32_0 = arith.constant 0 : i32
    return %arg0, %c0_i32 : i32, i32
  }
}

</mosaic_0001>

<llo_original>
// kernel: predict_positions.10
$region0: #{predict_positions.10}
  #allocation0 [shape = 'u32[]', space=smem, size = 0x4, offset = 0x4, fixed_abs, tag = 'smem constant byte address 0x4 - core index']
  #allocation1 [shape = 'u32[144,128]{1,0:T(1,128)}', space=vmem, size = 0x12000, scoped, tag = 'internal scratch']
  %s0 = inlined_call_operand.vmem [shape: f32[32,3], index: 0, kind: input, shape index: {}]
  %s1 = inlined_call_operand.vmem [shape: bf16[3,32], index: 1, kind: input, shape index: {}]
  %s2 = inlined_call_operand.vmem [shape: f32[1,32], index: 2, kind: input, shape index: {}, may-alias: {2,4,6,8}]
  %s3 = inlined_call_operand.vmem [shape: bf16[32,32], index: 3, kind: input, shape index: {}]
  %s4 = inlined_call_operand.vmem [shape: f32[1,32], index: 4, kind: input, shape index: {}, may-alias: {2,4,6,8}]
  %s5 = inlined_call_operand.vmem [shape: bf16[32,32], index: 5, kind: input, shape index: {}]
  %s6 = inlined_call_operand.vmem [shape: f32[1,32], index: 6, kind: input, shape index: {}, may-alias: {2,4,6,8}]
  %s7 = inlined_call_operand.vmem [shape: f32[1,32], index: 7, kind: input, shape index: {}]
  %s8 = inlined_call_operand.vmem [shape: f32[1,32], index: 8, kind: input, shape index: {}, may-alias: {2,4,6,8}]
  %s9 = inlined_call_operand.vmem [shape: f32[32,32], index: 9, kind: output, shape index: {}]
  %s10 = sld [smem:[#allocation0]]
  $region46: #{predict_positions.10} parent=0
    _
  %s12 = ssub.s32 1, %s10
  %s13 = scalar_select 0, %s12, %s10
  // Predicated region
  $region2: #{predict_positions.10} parent=0 // pred_check
    _
  $region3: #{predict_positions.10} parent=0 // pred_check_branch
    %15 = sbr.rel (0) target = $region5
  $region4: #{predict_positions.10} parent=0 // pred_region
    _
  $region5: #{predict_positions.10} parent=0 // pred_fallthru
    _
  // Predicated region
  $region6: #{predict_positions.10} parent=0 // pred_check
    _
  $region7: #{predict_positions.10} parent=0 // pred_check_branch
    %17 = sbr.rel (0) target = $region9
  $region8: #{predict_positions.10} parent=0 // pred_region
    _
  $region9: #{predict_positions.10} parent=0 // pred_fallthru
    _
  // Predicated region
  $region10: #{predict_positions.10} parent=0 // pred_check
    _
  $region11: #{predict_positions.10} parent=0 // pred_check_branch
    %19 = sbr.rel (0) target = $region13
  $region12: #{predict_positions.10} parent=0 // pred_region
    _
  $region13: #{predict_positions.10} parent=0 // pred_fallthru
    _
  // Predicated region
  $region14: #{predict_positions.10} parent=0 // pred_check
    _
  $region15: #{predict_positions.10} parent=0 // pred_check_branch
    %21 = sbr.rel (0) target = $region17
  $region16: #{predict_positions.10} parent=0 // pred_region
    _
  $region17: #{predict_positions.10} parent=0 // pred_fallthru
    _
  // Predicated region
  $region18: #{predict_positions.10} parent=0 // pred_check
    _
  $region19: #{predict_positions.10} parent=0 // pred_check_branch
    %23 = sbr.rel (0) target = $region21
  $region20: #{predict_positions.10} parent=0 // pred_region
    _
  $region21: #{predict_positions.10} parent=0 // pred_fallthru
    _
  // Predicated region
  $region22: #{predict_positions.10} parent=0 // pred_check
    _
  $region23: #{predict_positions.10} parent=0 // pred_check_branch
    %25 = sbr.rel (0) target = $region25
  $region24: #{predict_positions.10} parent=0 // pred_region
    _
  $region25: #{predict_positions.10} parent=0 // pred_fallthru
    _
  // Predicated region
  $region26: #{predict_positions.10} parent=0 // pred_check
    _
  $region27: #{predict_positions.10} parent=0 // pred_check_branch
    %27 = sbr.rel (0) target = $region29
  $region28: #{predict_positions.10} parent=0 // pred_region
    _
  $region29: #{predict_positions.10} parent=0 // pred_fallthru
    _
  // Predicated region
  $region30: #{predict_positions.10} parent=0 // pred_check
    _
  $region31: #{predict_positions.10} parent=0 // pred_check_branch
    %29 = sbr.rel (0) target = $region33
  $region32: #{predict_positions.10} parent=0 // pred_region
    _
  $region33: #{predict_positions.10} parent=0 // pred_fallthru
    _
  // Predicated region
  $region34: #{predict_positions.10} parent=0 // pred_check
    _
  $region35: #{predict_positions.10} parent=0 // pred_check_branch
    %31 = sbr.rel (0) target = $region37
  $region36: #{predict_positions.10} parent=0 // pred_region
    _
  $region37: #{predict_positions.10} parent=0 // pred_fallthru
    _
  %v33 = vld [vmem:[%s0] sm:$0xff]
  %v34 = vld [vmem:[%s0 + $0x8] sm:$0xff]
  %v35 = vld [vmem:[%s0 + $0x10] sm:$0xff]
  %v36 = vld [vmem:[%s0 + $0x18] sm:$0xff]
  %v37 = vpack.c.bf16 %v34, %v33
  %v38 = vpack.c.bf16 %v36, %v35
  %v39 = vld [vmem:[%s2] sm:$0x1]
  %v40 = vld [vmem:[%s1] sm:$0x3]
  %vm41 = vcmask 23552
  %v43 = vsel %vm41, %v37, 0
  %v46 = vsel %vm41, %v38, 0
  %vm48 = vcmask 1040384
  %vm49 = vcmask 1041408
  %v50 = vsel %vm48, 4294967295, 65535
  %v51 = vsel %vm49, %v50, 0
  %v53 = vand.u32 %v40, %v51
  %55 = vmatprep.subr.bf16.mxu0 0
  %56 = vmatpush1.bf16.msra.mxu0 %v53
  %57 = vmatprep.subr.bf16.mxu0 0
  %58 = vmatpush1.bf16.msra.mxu0 0
  %59 = vmatprep.subr.bf16.mxu0 0
  %60 = vmatpush1.bf16.msra.mxu0 0
  %61 = vmatprep.subr.bf16.mxu0 0
  %62 = vmatpush1.bf16.msra.mxu0 0
  %63 = vmatprep.subr.bf16.mxu0 0
  %64 = vmatpush1.bf16.msra.mxu0 0
  %65 = vmatprep.subr.bf16.mxu0 0
  %66 = vmatpush1.bf16.msra.mxu0 0
  %67 = vmatprep.subr.bf16.mxu0 0
  %68 = vmatpush1.bf16.msra.mxu0 0
  %69 = vmatprep.subr.bf16.mxu0 0
  %70 = vmatpush1.bf16.msra.mxu0 0
  %71 = vmatprep.subr.bf16.mxu0 0
  %72 = vmatpush1.bf16.msra.mxu0 0
  %73 = vmatprep.subr.bf16.mxu0 0
  %74 = vmatpush1.bf16.msra.mxu0 0
  %75 = vmatprep.subr.bf16.mxu0 0
  %76 = vmatpush1.bf16.msra.mxu0 0
  %77 = vmatprep.subr.bf16.mxu0 0
  %78 = vmatpush1.bf16.msra.mxu0 0
  %79 = vmatprep.subr.bf16.mxu0 0
  %80 = vmatpush1.bf16.msra.mxu0 0
  %81 = vmatprep.subr.bf16.mxu0 0
  %82 = vmatpush1.bf16.msra.mxu0 0
  %83 = vmatprep.subr.bf16.mxu0 0
  %84 = vmatpush1.bf16.msra.mxu0 0
  %85 = vmatprep.subr.bf16.mxu0 0
  %86 = vmatpush1.bf16.msra.mxu0 0
  %87 = vmatprep.mubr.bf16.mxu0 0
  %88 = vmatmul.mubr.bf16.gmra.mrb[0].mxu0 %v43
  %v89 = vpop.f32.mrb[0].mxu0
  %v90 = vadd.f32 0.0, %v89
  %v91 = vpop.f32.mrb[0].mxu0
  %v92 = vpop.f32.mrb[0].mxu0
  %v93 = vadd.f32 0.0, %v92
  %v94 = vpop.f32.mrb[0].mxu0
  %95 = vmatprep.mubr.bf16.mxu0 0
  %96 = vmatmul.mubr.bf16.gmra.mrb[0].mxu0 %v46
  %v97 = vpop.f32.mrb[0].mxu0
  %v98 = vadd.f32 0.0, %v97
  %v99 = vpop.f32.mrb[0].mxu0
  %v100 = vpop.f32.mrb[0].mxu0
  %v101 = vadd.f32 0.0, %v100
  %v102 = vpop.f32.mrb[0].mxu0
  %103 = vdwg.mxu0
  %v105 = vlaneseq
  %v106 = vshrl.u32 %v105, 7
  %v107 = vsub.s32 0, %v106
  %v108 = vrot.slane %v39, %v107
  %v110 = vadd.f32 %v108, %v90
  %v111 = vadd.f32 %v108, %v93
  %v112 = vadd.f32 %v108, %v98
  %v113 = vadd.f32 %v108, %v101
  %v114 = vmax.f32 %v110, 0.0
  %v115 = vmax.f32 %v111, 0.0
  %v116 = vmax.f32 %v112, 0.0
  %v117 = vmax.f32 %v113, 0.0
  %v118 = vpack.c.bf16 %v115, %v114
  %v119 = vpack.c.bf16 %v117, %v116
  %v120 = vld [vmem:[%s3] sm:$0xf]
  %v121 = vld [vmem:[%s3 + $0x4] sm:$0xf]
  %v122 = vld [vmem:[%s3 + $0x8] sm:$0xf]
  %v123 = vld [vmem:[%s3 + $0xc] sm:$0xf]
  %v124 = vld [vmem:[%s4] sm:$0x1]
  %v126 = vlaneseq
  %v127 = vshrl.u32 %v126, 7
  %v128 = vsub.s32 0, %v127
  %v129 = vrot.slane %v124, %v128
  %v135 = vunpack.c.l.b16 %v120
  %v136 = vunpack.c.l.b16 %v121
  %v137 = vunpack.c.l.b16 %v122
  %v138 = vunpack.c.l.b16 %v123
  %v139 = vpack.c.b16 %v136, %v135
  %v140 = vpack.c.b16 %v138, %v137
  %vm143 = vcmask 261120
  %v145 = vsel %vm143, %v118, 0
  %v148 = vsel %vm143, %v119, 0
  %150 = vmatprep.subr.bf16.mxu0 0
  %151 = vmatpush1.bf16.msra.mxu0 %v139
  %152 = vmatprep.subr.bf16.mxu0 0
  %153 = vmatpush1.bf16.msra.mxu0 %v140
  %154 = vmatprep.subr.bf16.mxu0 0
  %155 = vmatpush1.bf16.msra.mxu0 0
  %156 = vmatprep.subr.bf16.mxu0 0
  %157 = vmatpush1.bf16.msra.mxu0 0
  %158 = vmatprep.subr.bf16.mxu0 0
  %159 = vmatpush1.bf16.msra.mxu0 0
  %160 = vmatprep.subr.bf16.mxu0 0
  %161 = vmatpush1.bf16.msra.mxu0 0
  %162 = vmatprep.subr.bf16.mxu0 0
  %163 = vmatpush1.bf16.msra.mxu0 0
  %164 = vmatprep.subr.bf16.mxu0 0
  %165 = vmatpush1.bf16.msra.mxu0 0
  %166 = vmatprep.subr.bf16.mxu0 0
  %167 = vmatpush1.bf16.msra.mxu0 0
  %168 = vmatprep.subr.bf16.mxu0 0
  %169 = vmatpush1.bf16.msra.mxu0 0
  %170 = vmatprep.subr.bf16.mxu0 0
  %171 = vmatpush1.bf16.msra.mxu0 0
  %172 = vmatprep.subr.bf16.mxu0 0
  %173 = vmatpush1.bf16.msra.mxu0 0
  %174 = vmatprep.subr.bf16.mxu0 0
  %175 = vmatpush1.bf16.msra.mxu0 0
  %176 = vmatprep.subr.bf16.mxu0 0
  %177 = vmatpush1.bf16.msra.mxu0 0
  %178 = vmatprep.subr.bf16.mxu0 0
  %179 = vmatpush1.bf16.msra.mxu0 0
  %180 = vmatprep.subr.bf16.mxu0 0
  %181 = vmatpush1.bf16.msra.mxu0 0
  %182 = vmatprep.mubr.bf16.mxu0 0
  %183 = vmatmul.mubr.bf16.gmra.mrb[0].mxu0 %v145
  %v184 = vpop.f32.mrb[0].mxu0
  %v185 = vadd.f32 %v129, %v184
  %v186 = vpop.f32.mrb[0].mxu0
  %v187 = vpop.f32.mrb[0].mxu0
  %v188 = vadd.f32 %v129, %v187
  %v189 = vpop.f32.mrb[0].mxu0
  %190 = vmatprep.mubr.bf16.mxu0 0
  %191 = vmatmul.mubr.bf16.gmra.mrb[0].mxu0 %v148
  %v192 = vpop.f32.mrb[0].mxu0
  %v193 = vadd.f32 %v129, %v192
  %v194 = vpop.f32.mrb[0].mxu0
  %v195 = vpop.f32.mrb[0].mxu0
  %v196 = vadd.f32 %v129, %v195
  %v197 = vpop.f32.mrb[0].mxu0
  %198 = vdwg.mxu0
  %v199 = vmax.f32 %v185, 0.0
  %v200 = vmax.f32 %v188, 0.0
  %v201 = vmax.f32 %v193, 0.0
  %v202 = vmax.f32 %v196, 0.0
  %v203 = vpack.c.bf16 %v200, %v199
  %v204 = vpack.c.bf16 %v202, %v201
  %v205 = vld [vmem:[%s5] sm:$0xf]
  %v206 = vld [vmem:[%s5 + $0x4] sm:$0xf]
  %v207 = vld [vmem:[%s5 + $0x8] sm:$0xf]
  %v208 = vld [vmem:[%s5 + $0xc] sm:$0xf]
  %v209 = vld [vmem:[%s6] sm:$0x1]
  %v211 = vlaneseq
  %v212 = vshrl.u32 %v211, 7
  %v213 = vsub.s32 0, %v212
  %v214 = vrot.slane %v209, %v213
  %v220 = vunpack.c.l.b16 %v205
  %v221 = vunpack.c.l.b16 %v206
  %v222 = vunpack.c.l.b16 %v207
  %v223 = vunpack.c.l.b16 %v208
  %v224 = vpack.c.b16 %v221, %v220
  %v225 = vpack.c.b16 %v223, %v222
  %v229 = vsel %vm143, %v203, 0
  %v232 = vsel %vm143, %v204, 0
  %234 = vmatprep.subr.bf16.mxu0 0
  %235 = vmatpush1.bf16.msra.mxu0 %v224
  %236 = vmatprep.subr.bf16.mxu0 0
  %237 = vmatpush1.bf16.msra.mxu0 %v225
  %238 = vmatprep.subr.bf16.mxu0 0
  %239 = vmatpush1.bf16.msra.mxu0 0
  %240 = vmatprep.subr.bf16.mxu0 0
  %241 = vmatpush1.bf16.msra.mxu0 0
  %242 = vmatprep.subr.bf16.mxu0 0
  %243 = vmatpush1.bf16.msra.mxu0 0
  %244 = vmatprep.subr.bf16.mxu0 0
  %245 = vmatpush1.bf16.msra.mxu0 0
  %246 = vmatprep.subr.bf16.mxu0 0
  %247 = vmatpush1.bf16.msra.mxu0 0
  %248 = vmatprep.subr.bf16.mxu0 0
  %249 = vmatpush1.bf16.msra.mxu0 0
  %250 = vmatprep.subr.bf16.mxu0 0
  %251 = vmatpush1.bf16.msra.mxu0 0
  %252 = vmatprep.subr.bf16.mxu0 0
  %253 = vmatpush1.bf16.msra.mxu0 0
  %254 = vmatprep.subr.bf16.mxu0 0
  %255 = vmatpush1.bf16.msra.mxu0 0
  %256 = vmatprep.subr.bf16.mxu0 0
  %257 = vmatpush1.bf16.msra.mxu0 0
  %258 = vmatprep.subr.bf16.mxu0 0
  %259 = vmatpush1.bf16.msra.mxu0 0
  %260 = vmatprep.subr.bf16.mxu0 0
  %261 = vmatpush1.bf16.msra.mxu0 0
  %262 = vmatprep.subr.bf16.mxu0 0
  %263 = vmatpush1.bf16.msra.mxu0 0
  %264 = vmatprep.subr.bf16.mxu0 0
  %265 = vmatpush1.bf16.msra.mxu0 0
  %266 = vmatprep.mubr.bf16.mxu0 0
  %267 = vmatmul.mubr.bf16.gmra.mrb[0].mxu0 %v229
  %v268 = vpop.f32.mrb[0].mxu0
  %v269 = vadd.f32 %v214, %v268
  %v270 = vpop.f32.mrb[0].mxu0
  %v271 = vpop.f32.mrb[0].mxu0
  %v272 = vadd.f32 %v214, %v271
  %v273 = vpop.f32.mrb[0].mxu0
  %274 = vmatprep.mubr.bf16.mxu0 0
  %275 = vmatmul.mubr.bf16.gmra.mrb[0].mxu0 %v232
  %v276 = vpop.f32.mrb[0].mxu0
  %v277 = vadd.f32 %v214, %v276
  %v278 = vpop.f32.mrb[0].mxu0
  %v279 = vpop.f32.mrb[0].mxu0
  %v280 = vadd.f32 %v214, %v279
  %v281 = vpop.f32.mrb[0].mxu0
  %282 = vdwg.mxu0
  %v283 = vld [vmem:[%s7] sm:$0x1]
  %v284 = vld [vmem:[%s8] sm:$0x1]
  %v285 = vsel %vm143, %v269, 0.0
  %286 = vadd.xlane.f32.xlu0 %v285
  %v287 = vpop.xlane.xlu0 %286
  %v288 = vsel %vm143, %v272, 0.0
  %289 = vadd.xlane.f32.xlu0 %v288
  %v290 = vpop.xlane.xlu0 %289
  %v291 = vsel %vm143, %v277, 0.0
  %292 = vadd.xlane.f32.xlu0 %v291
  %v293 = vpop.xlane.xlu0 %292
  %v294 = vsel %vm143, %v280, 0.0
  %295 = vadd.xlane.f32.xlu0 %v294
  %v296 = vpop.xlane.xlu0 %295
  %v297 = vrcp.pop 32.0
  %v298 = vmul.f32 %v287, %v297
  %v299 = vmul.f32 %v290, %v297
  %v300 = vmul.f32 %v293, %v297
  %v301 = vmul.f32 %v296, %v297
  %v302 = vsub.f32 %v269, %v298
  %v303 = vsub.f32 %v272, %v299
  %v304 = vsub.f32 %v277, %v300
  %v305 = vsub.f32 %v280, %v301
  %v306 = vmul.f32 %v302, %v302
  %v307 = vmul.f32 %v303, %v303
  %v308 = vmul.f32 %v304, %v304
  %v309 = vmul.f32 %v305, %v305
  %v310 = vsel %vm143, %v306, 0.0
  %311 = vadd.xlane.f32.xlu0 %v310
  %v312 = vpop.xlane.xlu0 %311
  %v313 = vsel %vm143, %v307, 0.0
  %314 = vadd.xlane.f32.xlu0 %v313
  %v315 = vpop.xlane.xlu0 %314
  %v316 = vsel %vm143, %v308, 0.0
  %317 = vadd.xlane.f32.xlu0 %v316
  %v318 = vpop.xlane.xlu0 %317
  %v319 = vsel %vm143, %v309, 0.0
  %320 = vadd.xlane.f32.xlu0 %v319
  %v321 = vpop.xlane.xlu0 %320
  %v322 = vmul.f32 %v312, %v297
  %v323 = vmul.f32 %v315, %v297
  %v324 = vmul.f32 %v318, %v297
  %v325 = vmul.f32 %v321, %v297
  %v326 = vadd.f32 %v322, 1e-05
  %v327 = vadd.f32 %v323, 1e-05
  %v328 = vadd.f32 %v324, 1e-05
  %v329 = vadd.f32 %v325, 1e-05
  %v330 = vrsqrt.pop %v326
  %v331 = vrsqrt.pop %v327
  %v332 = vrsqrt.pop %v328
  %v333 = vrsqrt.pop %v329
  %v334 = vmul.f32 %v302, %v330
  %v335 = vmul.f32 %v303, %v331
  %v336 = vmul.f32 %v304, %v332
  %v337 = vmul.f32 %v305, %v333
  %v339 = vlaneseq
  %v340 = vshrl.u32 %v339, 7
  %v341 = vsub.s32 0, %v340
  %v342 = vrot.slane %v283, %v341
  %v344 = vmul.f32 %v334, %v342
  %v345 = vmul.f32 %v335, %v342
  %v346 = vmul.f32 %v336, %v342
  %v347 = vmul.f32 %v337, %v342
  %v349 = vlaneseq
  %v350 = vshrl.u32 %v349, 7
  %v351 = vsub.s32 0, %v350
  %v352 = vrot.slane %v284, %v351
  %v354 = vadd.f32 %v344, %v352
  %v355 = vadd.f32 %v345, %v352
  %v356 = vadd.f32 %v346, %v352
  %v357 = vadd.f32 %v347, %v352
  %358 = vst.msk [vmem:[%s9] sm:$0xff] %vm143, %v354
  %359 = vst.msk [vmem:[%s9 + $0x8] sm:$0xff] %vm143, %v355
  %360 = vst.msk [vmem:[%s9 + $0x10] sm:$0xff] %vm143, %v356
  %361 = vst.msk [vmem:[%s9 + $0x18] sm:$0xff] %vm143, %v357
  // Predicated region
  $region38: #{predict_positions.10} parent=0 // pred_check
    _
  $region39: #{predict_positions.10} parent=0 // pred_check_branch
    %363 = sbr.rel (0) target = $region41
  $region40: #{predict_positions.10} parent=0 // pred_region
    _
  $region41: #{predict_positions.10} parent=0 // pred_fallthru
    _
  // Predicated region
  $region42: #{predict_positions.10} parent=0 // pred_check
    _
  $region43: #{predict_positions.10} parent=0 // pred_check_branch
    %365 = sbr.rel (0) target = $region45
  $region44: #{predict_positions.10} parent=0 // pred_region
    _
  $region45: #{predict_positions.10} parent=0 // pred_fallthru
    _

// kernel: predict_positions.7
$region0: #{predict_positions.7}
  #allocation0 [shape = 'u32[]', space=smem, size = 0x4, offset = 0x4, fixed_abs, tag = 'smem constant byte address 0x4 - core index']
  #allocation1 [shape = 'u32[144,128]{1,0:T(1,128)}', space=vmem, size = 0x12000, scoped, tag = 'internal scratch']
  #allocation2 [shape = 'f32[32,1]{1,0:T(8,128)}', space=vmem, size = 0x4000, scoped, tag = 'scratch operand']
  #allocation3 [shape = 'f32[32,1]{1,0:T(8,128)}', space=vmem, size = 0x4000, scoped, tag = 'scratch operand']
  %s0 = inlined_call_operand.vmem [shape: f32[32,2], index: 0, kind: input, shape index: {}]
  %s1 = inlined_call_operand.vmem [shape: f32[2,512], index: 1, kind: input, shape index: {}]
  %s2 = inlined_call_operand.vmem [shape: s32[32,1], index: 2, kind: input, shape index: {}]
  %s3 = inlined_call_operand.vmem [shape: s32[1,512], index: 3, kind: input, shape index: {}]
  %s4 = inlined_call_operand.vmem [shape: s32[32,1], index: 4, kind: output, shape index: {0}]
  %s5 = inlined_call_operand.vmem [shape: s32[32,1], index: 5, kind: output, shape index: {1}]
  %6 = xla_tuple %s4, %s5
  %s7 = sld [smem:[#allocation0]]
  $region38: #{predict_positions.7} parent=0
    _
  %s9 = ssub.s32 1, %s7
  %s10 = scalar_select 0, %s9, %s7
  // Predicated region
  $region2: #{predict_positions.7} parent=0 // pred_check
    _
  $region3: #{predict_positions.7} parent=0 // pred_check_branch
    %12 = sbr.rel (0) target = $region5
  $region4: #{predict_positions.7} parent=0 // pred_region
    _
  $region5: #{predict_positions.7} parent=0 // pred_fallthru
    _
  // Predicated region
  $region6: #{predict_positions.7} parent=0 // pred_check
    _
  $region7: #{predict_positions.7} parent=0 // pred_check_branch
    %14 = sbr.rel (0) target = $region9
  $region8: #{predict_positions.7} parent=0 // pred_region
    _
  $region9: #{predict_positions.7} parent=0 // pred_fallthru
    _
  // Predicated region
  $region10: #{predict_positions.7} parent=0 // pred_check
    _
  $region11: #{predict_positions.7} parent=0 // pred_check_branch
    %16 = sbr.rel (0) target = $region13
  $region12: #{predict_positions.7} parent=0 // pred_region
    _
  $region13: #{predict_positions.7} parent=0 // pred_fallthru
    _
  // Predicated region
  $region14: #{predict_positions.7} parent=0 // pred_check
    _
  $region15: #{predict_positions.7} parent=0 // pred_check_branch
    %18 = sbr.rel (0) target = $region17
  $region16: #{predict_positions.7} parent=0 // pred_region
    _
  $region17: #{predict_positions.7} parent=0 // pred_fallthru
    _
  %p19 = scmp.eq.s32.totalorder 0, 0
  // Predicated region
  $region18: #{predict_positions.7} parent=0 // pred_check
    %p20 = pneg %p19
  $region19: #{predict_positions.7} parent=0 // pred_check_branch
    %22 = sbr.rel (%p20) target = $region21
  $region20: #{predict_positions.7} parent=0 // pred_region
    %vm23 = vcmask 7168
    %24 = vst.msk [vmem:[#allocation2] sm:$0xff] %vm23, 1e+30
    %25 = vst.msk [vmem:[#allocation2 + $0x8] sm:$0xff] %vm23, 1e+30
    %26 = vst.msk [vmem:[#allocation2 + $0x10] sm:$0xff] %vm23, 1e+30
    %27 = vst.msk [vmem:[#allocation2 + $0x18] sm:$0xff] %vm23, 1e+30
    %28 = vst.msk [vmem:[#allocation3] sm:$0xff] %vm23, 1e+30
    %29 = vst.msk [vmem:[#allocation3 + $0x8] sm:$0xff] %vm23, 1e+30
    %30 = vst.msk [vmem:[#allocation3 + $0x10] sm:$0xff] %vm23, 1e+30
    %31 = vst.msk [vmem:[#allocation3 + $0x18] sm:$0xff] %vm23, 1e+30
    %32 = vst.msk [vmem:[%s4] sm:$0xff] %vm23, 0
    %33 = vst.msk [vmem:[%s4 + $0x8] sm:$0xff] %vm23, 0
    %34 = vst.msk [vmem:[%s4 + $0x10] sm:$0xff] %vm23, 0
    %35 = vst.msk [vmem:[%s4 + $0x18] sm:$0xff] %vm23, 0
    %36 = vst.msk [vmem:[%s5] sm:$0xff] %vm23, 0
    %37 = vst.msk [vmem:[%s5 + $0x8] sm:$0xff] %vm23, 0
    %38 = vst.msk [vmem:[%s5 + $0x10] sm:$0xff] %vm23, 0
    %39 = vst.msk [vmem:[%s5 + $0x18] sm:$0xff] %vm23, 0
  $region21: #{predict_positions.7} parent=0 // pred_fallthru
    _
  %v40 = vld [vmem:[%s0] sm:$0xff]
  %v41 = vld [vmem:[%s0 + $0x8] sm:$0xff]
  %v42 = vld [vmem:[%s0 + $0x10] sm:$0xff]
  %v43 = vld [vmem:[%s0 + $0x18] sm:$0xff]
  %v44 = vld [vmem:[%s2] sm:$0xff]
  %v45 = vld [vmem:[%s2 + $0x8] sm:$0xff]
  %v46 = vld [vmem:[%s2 + $0x10] sm:$0xff]
  %v47 = vld [vmem:[%s2 + $0x18] sm:$0xff]
  %v48 = vld [vmem:[#allocation2] sm:$0xff]
  %v49 = vld [vmem:[#allocation2 + $0x8] sm:$0xff]
  %v50 = vld [vmem:[#allocation2 + $0x10] sm:$0xff]
  %v51 = vld [vmem:[#allocation2 + $0x18] sm:$0xff]
  %v52 = vld [vmem:[%s4] sm:$0xff]
  %v53 = vld [vmem:[%s4 + $0x8] sm:$0xff]
  %v54 = vld [vmem:[%s4 + $0x10] sm:$0xff]
  %v55 = vld [vmem:[%s4 + $0x18] sm:$0xff]
  %v56 = vld [vmem:[#allocation3] sm:$0xff]
  %v57 = vld [vmem:[#allocation3 + $0x8] sm:$0xff]
  %v58 = vld [vmem:[#allocation3 + $0x10] sm:$0xff]
  %v59 = vld [vmem:[#allocation3 + $0x18] sm:$0xff]
  %v60 = vld [vmem:[%s5] sm:$0xff]
  %v61 = vld [vmem:[%s5 + $0x8] sm:$0xff]
  %v62 = vld [vmem:[%s5 + $0x10] sm:$0xff]
  %v63 = vld [vmem:[%s5 + $0x18] sm:$0xff]
  %s64 = smul.u32 0, 512
  %v65 = vld [vmem:[%s1] sm:$0x3]
  %v66 = vld [vmem:[%s3] sm:$0x1]
  %68 = vset.pattern.permute.xlu0 0
  %69 = vperm.xlu0 %68, %v40
  %v70 = vpop.permute.xlu0 %69
  %73 = vset.pattern.permute.xlu0 0
  %74 = vperm.xlu0 %73, %v41
  %v75 = vpop.permute.xlu0 %74
  %78 = vset.pattern.permute.xlu0 0
  %79 = vperm.xlu0 %78, %v42
  %v80 = vpop.permute.xlu0 %79
  %83 = vset.pattern.permute.xlu0 0
  %84 = vperm.xlu0 %83, %v43
  %v85 = vpop.permute.xlu0 %84
  %v87 = vlaneseq
  %v88 = vshrl.u32 %v87, 7
  %v89 = vsub.s32 0, %v88
  %v90 = vrot.slane %v65, %v89
  %v91 = vsub.f32 %v70, %v90
  %v92 = vsub.f32 %v75, %v90
  %v93 = vsub.f32 %v80, %v90
  %v94 = vsub.f32 %v85, %v90
  %v95 = vmul.f32 %v91, %v91
  %v96 = vmul.f32 %v92, %v92
  %v97 = vmul.f32 %v93, %v93
  %v98 = vmul.f32 %v94, %v94
  %v99 = vadd.f32 %v95, 0.0
  %v100 = vadd.f32 %v96, 0.0
  %v101 = vadd.f32 %v97, 0.0
  %v102 = vadd.f32 %v98, 0.0
  %103 = vset.pattern.permute.xlu0 1
  %104 = vperm.xlu0 %103, %v40
  %v105 = vpop.permute.xlu0 %104
  %107 = vset.pattern.permute.xlu0 1
  %108 = vperm.xlu0 %107, %v41
  %v109 = vpop.permute.xlu0 %108
  %111 = vset.pattern.permute.xlu0 1
  %112 = vperm.xlu0 %111, %v42
  %v113 = vpop.permute.xlu0 %112
  %115 = vset.pattern.permute.xlu0 1
  %116 = vperm.xlu0 %115, %v43
  %v117 = vpop.permute.xlu0 %116
  %v119 = vlaneseq
  %v120 = vshrl.u32 %v119, 7
  %v121 = vsub.s32 1, %v120
  %v122 = vrot.slane %v65, %v121
  %v123 = vsub.f32 %v105, %v122
  %v124 = vsub.f32 %v109, %v122
  %v125 = vsub.f32 %v113, %v122
  %v126 = vsub.f32 %v117, %v122
  %v127 = vmul.f32 %v123, %v123
  %v128 = vmul.f32 %v124, %v124
  %v129 = vmul.f32 %v125, %v125
  %v130 = vmul.f32 %v126, %v126
  %v131 = vadd.f32 %v99, %v127
  %v132 = vadd.f32 %v100, %v128
  %v133 = vadd.f32 %v101, %v129
  %v134 = vadd.f32 %v102, %v130
  %135 = vset.pattern.permute.xlu0 0
  %136 = vperm.xlu0 %135, %v44
  %v137 = vpop.permute.xlu0 %136
  %138 = vset.pattern.permute.xlu0 0
  %139 = vperm.xlu0 %138, %v45
  %v140 = vpop.permute.xlu0 %139
  %141 = vset.pattern.permute.xlu0 0
  %142 = vperm.xlu0 %141, %v46
  %v143 = vpop.permute.xlu0 %142
  %144 = vset.pattern.permute.xlu0 0
  %145 = vperm.xlu0 %144, %v47
  %v146 = vpop.permute.xlu0 %145
  %v147 = vlaneseq
  %v148 = vshrl.u32 %v147, 7
  %v149 = vsub.s32 0, %v148
  %v150 = vrot.slane %v66, %v149
  %vm151 = vcmp.eq.s32.totalorder %v137, %v150
  %vm152 = vcmp.eq.s32.totalorder %v140, %v150
  %vm153 = vcmp.eq.s32.totalorder %v143, %v150
  %vm154 = vcmp.eq.s32.totalorder %v146, %v150
  %v155 = vsel %vm151, %v131, 1e+30
  %v156 = vsel %vm152, %v132, 1e+30
  %v157 = vsel %vm153, %v133, 1e+30
  %v158 = vsel %vm154, %v134, 1e+30
  %v159 = vlaneseq
  %v160 = vand.u32 %v159, 127
  %v161 = vstv %s64
  %v162 = vadd.s32 %v160, %v161
  %163 = vmin.xlane.f32.xlu0 %v155
  %v164 = vpop.xlane.xlu0 %163
  %165 = vmin.xlane.f32.xlu0 %v156
  %v166 = vpop.xlane.xlu0 %165
  %167 = vmin.xlane.f32.xlu0 %v157
  %v168 = vpop.xlane.xlu0 %167
  %169 = vmin.xlane.f32.xlu0 %v158
  %v170 = vpop.xlane.xlu0 %169
  %vm171 = vcmp.le.f32.partialorder %v155, %v164
  %vm172 = vcmp.le.f32.partialorder %v156, %v166
  %vm173 = vcmp.le.f32.partialorder %v157, %v168
  %vm174 = vcmp.le.f32.partialorder %v158, %v170
  %v175 = vsel %vm171, %v162, 2147483647
  %v176 = vsel %vm172, %v162, 2147483647
  %v177 = vsel %vm173, %v162, 2147483647
  %v178 = vsel %vm174, %v162, 2147483647
  %v179 = vand.u32 %v175, 65535
  %v180 = vshra.s32 %v175, 16
  %v181 = vcvt.s32.f32 %v179
  %v182 = vcvt.s32.f32 %v180
  %183 = vmin.xlane.f32.xlu0 %v182
  %v184 = vpop.xlane.xlu0 %183
  %vm185 = vcmp.eq.f32.partialorder %v182, %v184
  %v186 = vsel %vm185, %v181, inf
  %187 = vmin.xlane.f32.xlu0 %v186
  %v188 = vpop.xlane.xlu0 %187
  %v189 = vcvt.f32.s32 %v188
  %v190 = vcvt.f32.s32 %v184
  %v191 = vshll.u32 %v190, 16
  %v192 = vadd.s32 %v191, %v189
  %v193 = vand.u32 %v176, 65535
  %v194 = vshra.s32 %v176, 16
  %v195 = vcvt.s32.f32 %v193
  %v196 = vcvt.s32.f32 %v194
  %197 = vmin.xlane.f32.xlu0 %v196
  %v198 = vpop.xlane.xlu0 %197
  %vm199 = vcmp.eq.f32.partialorder %v196, %v198
  %v200 = vsel %vm199, %v195, inf
  %201 = vmin.xlane.f32.xlu0 %v200
  %v202 = vpop.xlane.xlu0 %201
  %v203 = vcvt.f32.s32 %v202
  %v204 = vcvt.f32.s32 %v198
  %v205 = vshll.u32 %v204, 16
  %v206 = vadd.s32 %v205, %v203
  %v207 = vand.u32 %v177, 65535
  %v208 = vshra.s32 %v177, 16
  %v209 = vcvt.s32.f32 %v207
  %v210 = vcvt.s32.f32 %v208
  %211 = vmin.xlane.f32.xlu0 %v210
  %v212 = vpop.xlane.xlu0 %211
  %vm213 = vcmp.eq.f32.partialorder %v210, %v212
  %v214 = vsel %vm213, %v209, inf
  %215 = vmin.xlane.f32.xlu0 %v214
  %v216 = vpop.xlane.xlu0 %215
  %v217 = vcvt.f32.s32 %v216
  %v218 = vcvt.f32.s32 %v212
  %v219 = vshll.u32 %v218, 16
  %v220 = vadd.s32 %v219, %v217
  %v221 = vand.u32 %v178, 65535
  %v222 = vshra.s32 %v178, 16
  %v223 = vcvt.s32.f32 %v221
  %v224 = vcvt.s32.f32 %v222
  %225 = vmin.xlane.f32.xlu0 %v224
  %v226 = vpop.xlane.xlu0 %225
  %vm227 = vcmp.eq.f32.partialorder %v224, %v226
  %v228 = vsel %vm227, %v223, inf
  %229 = vmin.xlane.f32.xlu0 %v228
  %v230 = vpop.xlane.xlu0 %229
  %v231 = vcvt.f32.s32 %v230
  %v232 = vcvt.f32.s32 %v226
  %v233 = vshll.u32 %v232, 16
  %v234 = vadd.s32 %v233, %v231
  %vm235 = vcmp.eq.s32.totalorder %v162, %v192
  %vm236 = vcmp.eq.s32.totalorder %v162, %v206
  %vm237 = vcmp.eq.s32.totalorder %v162, %v220
  %vm238 = vcmp.eq.s32.totalorder %v162, %v234
  %v239 = vsel %vm235, 1e+30, %v155
  %v240 = vsel %vm236, 1e+30, %v156
  %v241 = vsel %vm237, 1e+30, %v157
  %v242 = vsel %vm238, 1e+30, %v158
  %243 = vmin.xlane.f32.xlu0 %v239
  %v244 = vpop.xlane.xlu0 %243
  %245 = vmin.xlane.f32.xlu0 %v240
  %v246 = vpop.xlane.xlu0 %245
  %247 = vmin.xlane.f32.xlu0 %v241
  %v248 = vpop.xlane.xlu0 %247
  %249 = vmin.xlane.f32.xlu0 %v242
  %v250 = vpop.xlane.xlu0 %249
  %vm251 = vcmp.le.f32.partialorder %v239, %v244
  %vm252 = vcmp.le.f32.partialorder %v240, %v246
  %vm253 = vcmp.le.f32.partialorder %v241, %v248
  %vm254 = vcmp.le.f32.partialorder %v242, %v250
  %v255 = vsel %vm251, %v162, 2147483647
  %v256 = vsel %vm252, %v162, 2147483647
  %v257 = vsel %vm253, %v162, 2147483647
  %v258 = vsel %vm254, %v162, 2147483647
  %v259 = vand.u32 %v255, 65535
  %v260 = vshra.s32 %v255, 16
  %v261 = vcvt.s32.f32 %v259
  %v262 = vcvt.s32.f32 %v260
  %263 = vmin.xlane.f32.xlu0 %v262
  %v264 = vpop.xlane.xlu0 %263
  %vm265 = vcmp.eq.f32.partialorder %v262, %v264
  %v266 = vsel %vm265, %v261, inf
  %267 = vmin.xlane.f32.xlu0 %v266
  %v268 = vpop.xlane.xlu0 %267
  %v269 = vcvt.f32.s32 %v268
  %v270 = vcvt.f32.s32 %v264
  %v271 = vshll.u32 %v270, 16
  %v272 = vadd.s32 %v271, %v269
  %v273 = vand.u32 %v256, 65535
  %v274 = vshra.s32 %v256, 16
  %v275 = vcvt.s32.f32 %v273
  %v276 = vcvt.s32.f32 %v274
  %277 = vmin.xlane.f32.xlu0 %v276
  %v278 = vpop.xlane.xlu0 %277
  %vm279 = vcmp.eq.f32.partialorder %v276, %v278
  %v280 = vsel %vm279, %v275, inf
  %281 = vmin.xlane.f32.xlu0 %v280
  %v282 = vpop.xlane.xlu0 %281
  %v283 = vcvt.f32.s32 %v282
  %v284 = vcvt.f32.s32 %v278
  %v285 = vshll.u32 %v284, 16
  %v286 = vadd.s32 %v285, %v283
  %v287 = vand.u32 %v257, 65535
  %v288 = vshra.s32 %v257, 16
  %v289 = vcvt.s32.f32 %v287
  %v290 = vcvt.s32.f32 %v288
  %291 = vmin.xlane.f32.xlu0 %v290
  %v292 = vpop.xlane.xlu0 %291
  %vm293 = vcmp.eq.f32.partialorder %v290, %v292
  %v294 = vsel %vm293, %v289, inf
  %295 = vmin.xlane.f32.xlu0 %v294
  %v296 = vpop.xlane.xlu0 %295
  %v297 = vcvt.f32.s32 %v296
  %v298 = vcvt.f32.s32 %v292
  %v299 = vshll.u32 %v298, 16
  %v300 = vadd.s32 %v299, %v297
  %v301 = vand.u32 %v258, 65535
  %v302 = vshra.s32 %v258, 16
  %v303 = vcvt.s32.f32 %v301
  %v304 = vcvt.s32.f32 %v302
  %305 = vmin.xlane.f32.xlu0 %v304
  %v306 = vpop.xlane.xlu0 %305
  %vm307 = vcmp.eq.f32.partialorder %v304, %v306
  %v308 = vsel %vm307, %v303, inf
  %309 = vmin.xlane.f32.xlu0 %v308
  %v310 = vpop.xlane.xlu0 %309
  %v311 = vcvt.f32.s32 %v310
  %v312 = vcvt.f32.s32 %v306
  %v313 = vshll.u32 %v312, 16
  %v314 = vadd.s32 %v313, %v311
  %vm315 = vcmp.lt.f32.partialorder %v164, %v48
  %vm316 = vcmp.lt.f32.partialorder %v166, %v49
  %vm317 = vcmp.lt.f32.partialorder %v168, %v50
  %vm318 = vcmp.lt.f32.partialorder %v170, %v51
  %vm319 = vmxor %vm315, 1
  %vm320 = vmxor %vm316, 1
  %vm321 = vmxor %vm317, 1
  %vm322 = vmxor %vm318, 1
  %vm323 = vcmp.lt.f32.partialorder %v164, %v56
  %vm324 = vcmp.lt.f32.partialorder %v166, %v57
  %vm325 = vcmp.lt.f32.partialorder %v168, %v58
  %vm326 = vcmp.lt.f32.partialorder %v170, %v59
  %vm327 = vmand %vm319, %vm323
  %vm328 = vmand %vm320, %vm324
  %vm329 = vmand %vm321, %vm325
  %vm330 = vmand %vm322, %vm326
  %v331 = vsel %vm327, %v164, %v56
  %v332 = vsel %vm328, %v166, %v57
  %v333 = vsel %vm329, %v168, %v58
  %v334 = vsel %vm330, %v170, %v59
  %v335 = vsel %vm315, %v48, %v331
  %v336 = vsel %vm316, %v49, %v332
  %v337 = vsel %vm317, %v50, %v333
  %v338 = vsel %vm318, %v51, %v334
  %v339 = vsel %vm327, %v192, %v60
  %v340 = vsel %vm328, %v206, %v61
  %v341 = vsel %vm329, %v220, %v62
  %v342 = vsel %vm330, %v234, %v63
  %v343 = vsel %vm315, %v52, %v339
  %v344 = vsel %vm316, %v53, %v340
  %v345 = vsel %vm317, %v54, %v341
  %v346 = vsel %vm318, %v55, %v342
  %v347 = vsel %vm315, %v164, %v48
  %v348 = vsel %vm316, %v166, %v49
  %v349 = vsel %vm317, %v168, %v50
  %v350 = vsel %vm318, %v170, %v51
  %v351 = vsel %vm315, %v192, %v52
  %v352 = vsel %vm316, %v206, %v53
  %v353 = vsel %vm317, %v220, %v54
  %v354 = vsel %vm318, %v234, %v55
  %vm355 = vcmp.lt.f32.partialorder %v244, %v347
  %vm356 = vcmp.lt.f32.partialorder %v246, %v348
  %vm357 = vcmp.lt.f32.partialorder %v248, %v349
  %vm358 = vcmp.lt.f32.partialorder %v250, %v350
  %vm359 = vmxor %vm355, 1
  %vm360 = vmxor %vm356, 1
  %vm361 = vmxor %vm357, 1
  %vm362 = vmxor %vm358, 1
  %vm363 = vcmp.lt.f32.partialorder %v244, %v335
  %vm364 = vcmp.lt.f32.partialorder %v246, %v336
  %vm365 = vcmp.lt.f32.partialorder %v248, %v337
  %vm366 = vcmp.lt.f32.partialorder %v250, %v338
  %vm367 = vmand %vm359, %vm363
  %vm368 = vmand %vm360, %vm364
  %vm369 = vmand %vm361, %vm365
  %vm370 = vmand %vm362, %vm366
  %v371 = vsel %vm367, %v244, %v335
  %v372 = vsel %vm368, %v246, %v336
  %v373 = vsel %vm369, %v248, %v337
  %v374 = vsel %vm370, %v250, %v338
  %v375 = vsel %vm355, %v347, %v371
  %v376 = vsel %vm356, %v348, %v372
  %v377 = vsel %vm357, %v349, %v373
  %v378 = vsel %vm358, %v350, %v374
  %v379 = vsel %vm367, %v272, %v343
  %v380 = vsel %vm368, %v286, %v344
  %v381 = vsel %vm369, %v300, %v345
  %v382 = vsel %vm370, %v314, %v346
  %v383 = vsel %vm355, %v351, %v379
  %v384 = vsel %vm356, %v352, %v380
  %v385 = vsel %vm357, %v353, %v381
  %v386 = vsel %vm358, %v354, %v382
  %v387 = vsel %vm355, %v244, %v347
  %v388 = vsel %vm356, %v246, %v348
  %v389 = vsel %vm357, %v248, %v349
  %v390 = vsel %vm358, %v250, %v350
  %v391 = vsel %vm355, %v272, %v351
  %v392 = vsel %vm356, %v286, %v352
  %v393 = vsel %vm357, %v300, %v353
  %v394 = vsel %vm358, %v314, %v354
  %v395 = vld [vmem:[%s1 + $0x2] sm:$0x3]
  %v396 = vld [vmem:[%s3 + $0x1] sm:$0x1]
  %v397 = vlaneseq
  %v398 = vshrl.u32 %v397, 7
  %v399 = vsub.s32 0, %v398
  %v400 = vrot.slane %v395, %v399
  %v401 = vsub.f32 %v70, %v400
  %v402 = vsub.f32 %v75, %v400
  %v403 = vsub.f32 %v80, %v400
  %v404 = vsub.f32 %v85, %v400
  %v405 = vmul.f32 %v401, %v401
  %v406 = vmul.f32 %v402, %v402
  %v407 = vmul.f32 %v403, %v403
  %v408 = vmul.f32 %v404, %v404
  %v409 = vadd.f32 %v405, 0.0
  %v410 = vadd.f32 %v406, 0.0
  %v411 = vadd.f32 %v407, 0.0
  %v412 = vadd.f32 %v408, 0.0
  %v413 = vlaneseq
  %v414 = vshrl.u32 %v413, 7
  %v415 = vsub.s32 1, %v414
  %v416 = vrot.slane %v395, %v415
  %v417 = vsub.f32 %v105, %v416
  %v418 = vsub.f32 %v109, %v416
  %v419 = vsub.f32 %v113, %v416
  %v420 = vsub.f32 %v117, %v416
  %v421 = vmul.f32 %v417, %v417
  %v422 = vmul.f32 %v418, %v418
  %v423 = vmul.f32 %v419, %v419
  %v424 = vmul.f32 %v420, %v420
  %v425 = vadd.f32 %v409, %v421
  %v426 = vadd.f32 %v410, %v422
  %v427 = vadd.f32 %v411, %v423
  %v428 = vadd.f32 %v412, %v424
  %v429 = vlaneseq
  %v430 = vshrl.u32 %v429, 7
  %v431 = vsub.s32 0, %v430
  %v432 = vrot.slane %v396, %v431
  %vm433 = vcmp.eq.s32.totalorder %v137, %v432
  %vm434 = vcmp.eq.s32.totalorder %v140, %v432
  %vm435 = vcmp.eq.s32.totalorder %v143, %v432
  %vm436 = vcmp.eq.s32.totalorder %v146, %v432
  %v437 = vsel %vm433, %v425, 1e+30
  %v438 = vsel %vm434, %v426, 1e+30
  %v439 = vsel %vm435, %v427, 1e+30
  %v440 = vsel %vm436, %v428, 1e+30
  %s441 = sadd.s32 %s64, 128
  %v442 = vstv %s441
  %v443 = vadd.s32 %v160, %v442
  %444 = vmin.xlane.f32.xlu0 %v437
  %v445 = vpop.xlane.xlu0 %444
  %446 = vmin.xlane.f32.xlu0 %v438
  %v447 = vpop.xlane.xlu0 %446
  %448 = vmin.xlane.f32.xlu0 %v439
  %v449 = vpop.xlane.xlu0 %448
  %450 = vmin.xlane.f32.xlu0 %v440
  %v451 = vpop.xlane.xlu0 %450
  %vm452 = vcmp.le.f32.partialorder %v437, %v445
  %vm453 = vcmp.le.f32.partialorder %v438, %v447
  %vm454 = vcmp.le.f32.partialorder %v439, %v449
  %vm455 = vcmp.le.f32.partialorder %v440, %v451
  %v456 = vsel %vm452, %v443, 2147483647
  %v457 = vsel %vm453, %v443, 2147483647
  %v458 = vsel %vm454, %v443, 2147483647
  %v459 = vsel %vm455, %v443, 2147483647
  %v460 = vand.u32 %v456, 65535
  %v461 = vshra.s32 %v456, 16
  %v462 = vcvt.s32.f32 %v460
  %v463 = vcvt.s32.f32 %v461
  %464 = vmin.xlane.f32.xlu0 %v463
  %v465 = vpop.xlane.xlu0 %464
  %vm466 = vcmp.eq.f32.partialorder %v463, %v465
  %v467 = vsel %vm466, %v462, inf
  %468 = vmin.xlane.f32.xlu0 %v467
  %v469 = vpop.xlane.xlu0 %468
  %v470 = vcvt.f32.s32 %v469
  %v471 = vcvt.f32.s32 %v465
  %v472 = vshll.u32 %v471, 16
  %v473 = vadd.s32 %v472, %v470
  %v474 = vand.u32 %v457, 65535
  %v475 = vshra.s32 %v457, 16
  %v476 = vcvt.s32.f32 %v474
  %v477 = vcvt.s32.f32 %v475
  %478 = vmin.xlane.f32.xlu0 %v477
  %v479 = vpop.xlane.xlu0 %478
  %vm480 = vcmp.eq.f32.partialorder %v477, %v479
  %v481 = vsel %vm480, %v476, inf
  %482 = vmin.xlane.f32.xlu0 %v481
  %v483 = vpop.xlane.xlu0 %482
  %v484 = vcvt.f32.s32 %v483
  %v485 = vcvt.f32.s32 %v479
  %v486 = vshll.u32 %v485, 16
  %v487 = vadd.s32 %v486, %v484
  %v488 = vand.u32 %v458, 65535
  %v489 = vshra.s32 %v458, 16
  %v490 = vcvt.s32.f32 %v488
  %v491 = vcvt.s32.f32 %v489
  %492 = vmin.xlane.f32.xlu0 %v491
  %v493 = vpop.xlane.xlu0 %492
  %vm494 = vcmp.eq.f32.partialorder %v491, %v493
  %v495 = vsel %vm494, %v490, inf
  %496 = vmin.xlane.f32.xlu0 %v495
  %v497 = vpop.xlane.xlu0 %496
  %v498 = vcvt.f32.s32 %v497
  %v499 = vcvt.f32.s32 %v493
  %v500 = vshll.u32 %v499, 16
  %v501 = vadd.s32 %v500, %v498
  %v502 = vand.u32 %v459, 65535
  %v503 = vshra.s32 %v459, 16
  %v504 = vcvt.s32.f32 %v502
  %v505 = vcvt.s32.f32 %v503
  %506 = vmin.xlane.f32.xlu0 %v505
  %v507 = vpop.xlane.xlu0 %506
  %vm508 = vcmp.eq.f32.partialorder %v505, %v507
  %v509 = vsel %vm508, %v504, inf
  %510 = vmin.xlane.f32.xlu0 %v509
  %v511 = vpop.xlane.xlu0 %510
  %v512 = vcvt.f32.s32 %v511
  %v513 = vcvt.f32.s32 %v507
  %v514 = vshll.u32 %v513, 16
  %v515 = vadd.s32 %v514, %v512
  %vm516 = vcmp.eq.s32.totalorder %v443, %v473
  %vm517 = vcmp.eq.s32.totalorder %v443, %v487
  %vm518 = vcmp.eq.s32.totalorder %v443, %v501
  %vm519 = vcmp.eq.s32.totalorder %v443, %v515
  %v520 = vsel %vm516, 1e+30, %v437
  %v521 = vsel %vm517, 1e+30, %v438
  %v522 = vsel %vm518, 1e+30, %v439
  %v523 = vsel %vm519, 1e+30, %v440
  %524 = vmin.xlane.f32.xlu0 %v520
  %v525 = vpop.xlane.xlu0 %524
  %526 = vmin.xlane.f32.xlu0 %v521
  %v527 = vpop.xlane.xlu0 %526
  %528 = vmin.xlane.f32.xlu0 %v522
  %v529 = vpop.xlane.xlu0 %528
  %530 = vmin.xlane.f32.xlu0 %v523
  %v531 = vpop.xlane.xlu0 %530
  %vm532 = vcmp.le.f32.partialorder %v520, %v525
  %vm533 = vcmp.le.f32.partialorder %v521, %v527
  %vm534 = vcmp.le.f32.partialorder %v522, %v529
  %vm535 = vcmp.le.f32.partialorder %v523, %v531
  %v536 = vsel %vm532, %v443, 2147483647
  %v537 = vsel %vm533, %v443, 2147483647
  %v538 = vsel %vm534, %v443, 2147483647
  %v539 = vsel %vm535, %v443, 2147483647
  %v540 = vand.u32 %v536, 65535
  %v541 = vshra.s32 %v536, 16
  %v542 = vcvt.s32.f32 %v540
  %v543 = vcvt.s32.f32 %v541
  %544 = vmin.xlane.f32.xlu0 %v543
  %v545 = vpop.xlane.xlu0 %544
  %vm546 = vcmp.eq.f32.partialorder %v543, %v545
  %v547 = vsel %vm546, %v542, inf
  %548 = vmin.xlane.f32.xlu0 %v547
  %v549 = vpop.xlane.xlu0 %548
  %v550 = vcvt.f32.s32 %v549
  %v551 = vcvt.f32.s32 %v545
  %v552 = vshll.u32 %v551, 16
  %v553 = vadd.s32 %v552, %v550
  %v554 = vand.u32 %v537, 65535
  %v555 = vshra.s32 %v537, 16
  %v556 = vcvt.s32.f32 %v554
  %v557 = vcvt.s32.f32 %v555
  %558 = vmin.xlane.f32.xlu0 %v557
  %v559 = vpop.xlane.xlu0 %558
  %vm560 = vcmp.eq.f32.partialorder %v557, %v559
  %v561 = vsel %vm560, %v556, inf
  %562 = vmin.xlane.f32.xlu0 %v561
  %v563 = vpop.xlane.xlu0 %562
  %v564 = vcvt.f32.s32 %v563
  %v565 = vcvt.f32.s32 %v559
  %v566 = vshll.u32 %v565, 16
  %v567 = vadd.s32 %v566, %v564
  %v568 = vand.u32 %v538, 65535
  %v569 = vshra.s32 %v538, 16
  %v570 = vcvt.s32.f32 %v568
  %v571 = vcvt.s32.f32 %v569
  %572 = vmin.xlane.f32.xlu0 %v571
  %v573 = vpop.xlane.xlu0 %572
  %vm574 = vcmp.eq.f32.partialorder %v571, %v573
  %v575 = vsel %vm574, %v570, inf
  %576 = vmin.xlane.f32.xlu0 %v575
  %v577 = vpop.xlane.xlu0 %576
  %v578 = vcvt.f32.s32 %v577
  %v579 = vcvt.f32.s32 %v573
  %v580 = vshll.u32 %v579, 16
  %v581 = vadd.s32 %v580, %v578
  %v582 = vand.u32 %v539, 65535
  %v583 = vshra.s32 %v539, 16
  %v584 = vcvt.s32.f32 %v582
  %v585 = vcvt.s32.f32 %v583
  %586 = vmin.xlane.f32.xlu0 %v585
  %v587 = vpop.xlane.xlu0 %586
  %vm588 = vcmp.eq.f32.partialorder %v585, %v587
  %v589 = vsel %vm588, %v584, inf
  %590 = vmin.xlane.f32.xlu0 %v589
  %v591 = vpop.xlane.xlu0 %590
  %v592 = vcvt.f32.s32 %v591
  %v593 = vcvt.f32.s32 %v587
  %v594 = vshll.u32 %v593, 16
  %v595 = vadd.s32 %v594, %v592
  %vm596 = vcmp.lt.f32.partialorder %v445, %v387
  %vm597 = vcmp.lt.f32.partialorder %v447, %v388
  %vm598 = vcmp.lt.f32.partialorder %v449, %v389
  %vm599 = vcmp.lt.f32.partialorder %v451, %v390
  %vm600 = vmxor %vm596, 1
  %vm601 = vmxor %vm597, 1
  %vm602 = vmxor %vm598, 1
  %vm603 = vmxor %vm599, 1
  %vm604 = vcmp.lt.f32.partialorder %v445, %v375
  %vm605 = vcmp.lt.f32.partialorder %v447, %v376
  %vm606 = vcmp.lt.f32.partialorder %v449, %v377
  %vm607 = vcmp.lt.f32.partialorder %v451, %v378
  %vm608 = vmand %vm600, %vm604
  %vm609 = vmand %vm601, %vm605
  %vm610 = vmand %vm602, %vm606
  %vm611 = vmand %vm603, %vm607
  %v612 = vsel %vm608, %v445, %v375
  %v613 = vsel %vm609, %v447, %v376
  %v614 = vsel %vm610, %v449, %v377
  %v615 = vsel %vm611, %v451, %v378
  %v616 = vsel %vm596, %v387, %v612
  %v617 = vsel %vm597, %v388, %v613
  %v618 = vsel %vm598, %v389, %v614
  %v619 = vsel %vm599, %v390, %v615
  %v620 = vsel %vm608, %v473, %v383
  %v621 = vsel %vm609, %v487, %v384
  %v622 = vsel %vm610, %v501, %v385
  %v623 = vsel %vm611, %v515, %v386
  %v624 = vsel %vm596, %v391, %v620
  %v625 = vsel %vm597, %v392, %v621
  %v626 = vsel %vm598, %v393, %v622
  %v627 = vsel %vm599, %v394, %v623
  %v628 = vsel %vm596, %v445, %v387
  %v629 = vsel %vm597, %v447, %v388
  %v630 = vsel %vm598, %v449, %v389
  %v631 = vsel %vm599, %v451, %v390
  %v632 = vsel %vm596, %v473, %v391
  %v633 = vsel %vm597, %v487, %v392
  %v634 = vsel %vm598, %v501, %v393
  %v635 = vsel %vm599, %v515, %v394
  %vm636 = vcmp.lt.f32.partialorder %v525, %v628
  %vm637 = vcmp.lt.f32.partialorder %v527, %v629
  %vm638 = vcmp.lt.f32.partialorder %v529, %v630
  %vm639 = vcmp.lt.f32.partialorder %v531, %v631
  %vm640 = vmxor %vm636, 1
  %vm641 = vmxor %vm637, 1
  %vm642 = vmxor %vm638, 1
  %vm643 = vmxor %vm639, 1
  %vm644 = vcmp.lt.f32.partialorder %v525, %v616
  %vm645 = vcmp.lt.f32.partialorder %v527, %v617
  %vm646 = vcmp.lt.f32.partialorder %v529, %v618
  %vm647 = vcmp.lt.f32.partialorder %v531, %v619
  %vm648 = vmand %vm640, %vm644
  %vm649 = vmand %vm641, %vm645
  %vm650 = vmand %vm642, %vm646
  %vm651 = vmand %vm643, %vm647
  %v652 = vsel %vm648, %v525, %v616
  %v653 = vsel %vm649, %v527, %v617
  %v654 = vsel %vm650, %v529, %v618
  %v655 = vsel %vm651, %v531, %v619
  %v656 = vsel %vm636, %v628, %v652
  %v657 = vsel %vm637, %v629, %v653
  %v658 = vsel %vm638, %v630, %v654
  %v659 = vsel %vm639, %v631, %v655
  %v660 = vsel %vm648, %v553, %v624
  %v661 = vsel %vm649, %v567, %v625
  %v662 = vsel %vm650, %v581, %v626
  %v663 = vsel %vm651, %v595, %v627
  %v664 = vsel %vm636, %v632, %v660
  %v665 = vsel %vm637, %v633, %v661
  %v666 = vsel %vm638, %v634, %v662
  %v667 = vsel %vm639, %v635, %v663
  %v668 = vsel %vm636, %v525, %v628
  %v669 = vsel %vm637, %v527, %v629
  %v670 = vsel %vm638, %v529, %v630
  %v671 = vsel %vm639, %v531, %v631
  %v672 = vsel %vm636, %v553, %v632
  %v673 = vsel %vm637, %v567, %v633
  %v674 = vsel %vm638, %v581, %v634
  %v675 = vsel %vm639, %v595, %v635
  %v676 = vld [vmem:[%s1 + $0x4] sm:$0x3]
  %v677 = vld [vmem:[%s3 + $0x2] sm:$0x1]
  %v678 = vlaneseq
  %v679 = vshrl.u32 %v678, 7
  %v680 = vsub.s32 0, %v679
  %v681 = vrot.slane %v676, %v680
  %v682 = vsub.f32 %v70, %v681
  %v683 = vsub.f32 %v75, %v681
  %v684 = vsub.f32 %v80, %v681
  %v685 = vsub.f32 %v85, %v681
  %v686 = vmul.f32 %v682, %v682
  %v687 = vmul.f32 %v683, %v683
  %v688 = vmul.f32 %v684, %v684
  %v689 = vmul.f32 %v685, %v685
  %v690 = vadd.f32 %v686, 0.0
  %v691 = vadd.f32 %v687, 0.0
  %v692 = vadd.f32 %v688, 0.0
  %v693 = vadd.f32 %v689, 0.0
  %v694 = vlaneseq
  %v695 = vshrl.u32 %v694, 7
  %v696 = vsub.s32 1, %v695
  %v697 = vrot.slane %v676, %v696
  %v698 = vsub.f32 %v105, %v697
  %v699 = vsub.f32 %v109, %v697
  %v700 = vsub.f32 %v113, %v697
  %v701 = vsub.f32 %v117, %v697
  %v702 = vmul.f32 %v698, %v698
  %v703 = vmul.f32 %v699, %v699
  %v704 = vmul.f32 %v700, %v700
  %v705 = vmul.f32 %v701, %v701
  %v706 = vadd.f32 %v690, %v702
  %v707 = vadd.f32 %v691, %v703
  %v708 = vadd.f32 %v692, %v704
  %v709 = vadd.f32 %v693, %v705
  %v710 = vlaneseq
  %v711 = vshrl.u32 %v710, 7
  %v712 = vsub.s32 0, %v711
  %v713 = vrot.slane %v677, %v712
  %vm714 = vcmp.eq.s32.totalorder %v137, %v713
  %vm715 = vcmp.eq.s32.totalorder %v140, %v713
  %vm716 = vcmp.eq.s32.totalorder %v143, %v713
  %vm717 = vcmp.eq.s32.totalorder %v146, %v713
  %v718 = vsel %vm714, %v706, 1e+30
  %v719 = vsel %vm715, %v707, 1e+30
  %v720 = vsel %vm716, %v708, 1e+30
  %v721 = vsel %vm717, %v709, 1e+30
  %s722 = sadd.s32 %s64, 256
  %v723 = vstv %s722
  %v724 = vadd.s32 %v160, %v723
  %725 = vmin.xlane.f32.xlu0 %v718
  %v726 = vpop.xlane.xlu0 %725
  %727 = vmin.xlane.f32.xlu0 %v719
  %v728 = vpop.xlane.xlu0 %727
  %729 = vmin.xlane.f32.xlu0 %v720
  %v730 = vpop.xlane.xlu0 %729
  %731 = vmin.xlane.f32.xlu0 %v721
  %v732 = vpop.xlane.xlu0 %731
  %vm733 = vcmp.le.f32.partialorder %v718, %v726
  %vm734 = vcmp.le.f32.partialorder %v719, %v728
  %vm735 = vcmp.le.f32.partialorder %v720, %v730
  %vm736 = vcmp.le.f32.partialorder %v721, %v732
  %v737 = vsel %vm733, %v724, 2147483647
  %v738 = vsel %vm734, %v724, 2147483647
  %v739 = vsel %vm735, %v724, 2147483647
  %v740 = vsel %vm736, %v724, 2147483647
  %v741 = vand.u32 %v737, 65535
  %v742 = vshra.s32 %v737, 16
  %v743 = vcvt.s32.f32 %v741
  %v744 = vcvt.s32.f32 %v742
  %745 = vmin.xlane.f32.xlu0 %v744
  %v746 = vpop.xlane.xlu0 %745
  %vm747 = vcmp.eq.f32.partialorder %v744, %v746
  %v748 = vsel %vm747, %v743, inf
  %749 = vmin.xlane.f32.xlu0 %v748
  %v750 = vpop.xlane.xlu0 %749
  %v751 = vcvt.f32.s32 %v750
  %v752 = vcvt.f32.s32 %v746
  %v753 = vshll.u32 %v752, 16
  %v754 = vadd.s32 %v753, %v751
  %v755 = vand.u32 %v738, 65535
  %v756 = vshra.s32 %v738, 16
  %v757 = vcvt.s32.f32 %v755
  %v758 = vcvt.s32.f32 %v756
  %759 = vmin.xlane.f32.xlu0 %v758
  %v760 = vpop.xlane.xlu0 %759
  %vm761 = vcmp.eq.f32.partialorder %v758, %v760
  %v762 = vsel %vm761, %v757, inf
  %763 = vmin.xlane.f32.xlu0 %v762
  %v764 = vpop.xlane.xlu0 %763
  %v765 = vcvt.f32.s32 %v764
  %v766 = vcvt.f32.s32 %v760
  %v767 = vshll.u32 %v766, 16
  %v768 = vadd.s32 %v767, %v765
  %v769 = vand.u32 %v739, 65535
  %v770 = vshra.s32 %v739, 16
  %v771 = vcvt.s32.f32 %v769
  %v772 = vcvt.s32.f32 %v770
  %773 = vmin.xlane.f32.xlu0 %v772
  %v774 = vpop.xlane.xlu0 %773
  %vm775 = vcmp.eq.f32.partialorder %v772, %v774
  %v776 = vsel %vm775, %v771, inf
  %777 = vmin.xlane.f32.xlu0 %v776
  %v778 = vpop.xlane.xlu0 %777
  %v779 = vcvt.f32.s32 %v778
  %v780 = vcvt.f32.s32 %v774
  %v781 = vshll.u32 %v780, 16
  %v782 = vadd.s32 %v781, %v779
  %v783 = vand.u32 %v740, 65535
  %v784 = vshra.s32 %v740, 16
  %v785 = vcvt.s32.f32 %v783
  %v786 = vcvt.s32.f32 %v784
  %787 = vmin.xlane.f32.xlu0 %v786
  %v788 = vpop.xlane.xlu0 %787
  %vm789 = vcmp.eq.f32.partialorder %v786, %v788
  %v790 = vsel %vm789, %v785, inf
  %791 = vmin.xlane.f32.xlu0 %v790
  %v792 = vpop.xlane.xlu0 %791
  %v793 = vcvt.f32.s32 %v792
  %v794 = vcvt.f32.s32 %v788
  %v795 = vshll.u32 %v794, 16
  %v796 = vadd.s32 %v795, %v793
  %vm797 = vcmp.eq.s32.totalorder %v724, %v754
  %vm798 = vcmp.eq.s32.totalorder %v724, %v768
  %vm799 = vcmp.eq.s32.totalorder %v724, %v782
  %vm800 = vcmp.eq.s32.totalorder %v724, %v796
  %v801 = vsel %vm797, 1e+30, %v718
  %v802 = vsel %vm798, 1e+30, %v719
  %v803 = vsel %vm799, 1e+30, %v720
  %v804 = vsel %vm800, 1e+30, %v721
  %805 = vmin.xlane.f32.xlu0 %v801
  %v806 = vpop.xlane.xlu0 %805
  %807 = vmin.xlane.f32.xlu0 %v802
  %v808 = vpop.xlane.xlu0 %807
  %809 = vmin.xlane.f32.xlu0 %v803
  %v810 = vpop.xlane.xlu0 %809
  %811 = vmin.xlane.f32.xlu0 %v804
  %v812 = vpop.xlane.xlu0 %811
  %vm813 = vcmp.le.f32.partialorder %v801, %v806
  %vm814 = vcmp.le.f32.partialorder %v802, %v808
  %vm815 = vcmp.le.f32.partialorder %v803, %v810
  %vm816 = vcmp.le.f32.partialorder %v804, %v812
  %v817 = vsel %vm813, %v724, 2147483647
  %v818 = vsel %vm814, %v724, 2147483647
  %v819 = vsel %vm815, %v724, 2147483647
  %v820 = vsel %vm816, %v724, 2147483647
  %v821 = vand.u32 %v817, 65535
  %v822 = vshra.s32 %v817, 16
  %v823 = vcvt.s32.f32 %v821
  %v824 = vcvt.s32.f32 %v822
  %825 = vmin.xlane.f32.xlu0 %v824
  %v826 = vpop.xlane.xlu0 %825
  %vm827 = vcmp.eq.f32.partialorder %v824, %v826
  %v828 = vsel %vm827, %v823, inf
  %829 = vmin.xlane.f32.xlu0 %v828
  %v830 = vpop.xlane.xlu0 %829
  %v831 = vcvt.f32.s32 %v830
  %v832 = vcvt.f32.s32 %v826
  %v833 = vshll.u32 %v832, 16
  %v834 = vadd.s32 %v833, %v831
  %v835 = vand.u32 %v818, 65535
  %v836 = vshra.s32 %v818, 16
  %v837 = vcvt.s32.f32 %v835
  %v838 = vcvt.s32.f32 %v836
  %839 = vmin.xlane.f32.xlu0 %v838
  %v840 = vpop.xlane.xlu0 %839
  %vm841 = vcmp.eq.f32.partialorder %v838, %v840
  %v842 = vsel %vm841, %v837, inf
  %843 = vmin.xlane.f32.xlu0 %v842
  %v844 = vpop.xlane.xlu0 %843
  %v845 = vcvt.f32.s32 %v844
  %v846 = vcvt.f32.s32 %v840
  %v847 = vshll.u32 %v846, 16
  %v848 = vadd.s32 %v847, %v845
  %v849 = vand.u32 %v819, 65535
  %v850 = vshra.s32 %v819, 16
  %v851 = vcvt.s32.f32 %v849
  %v852 = vcvt.s32.f32 %v850
  %853 = vmin.xlane.f32.xlu0 %v852
  %v854 = vpop.xlane.xlu0 %853
  %vm855 = vcmp.eq.f32.partialorder %v852, %v854
  %v856 = vsel %vm855, %v851, inf
  %857 = vmin.xlane.f32.xlu0 %v856
  %v858 = vpop.xlane.xlu0 %857
  %v859 = vcvt.f32.s32 %v858
  %v860 = vcvt.f32.s32 %v854
  %v861 = vshll.u32 %v860, 16
  %v862 = vadd.s32 %v861, %v859
  %v863 = vand.u32 %v820, 65535
  %v864 = vshra.s32 %v820, 16
  %v865 = vcvt.s32.f32 %v863
  %v866 = vcvt.s32.f32 %v864
  %867 = vmin.xlane.f32.xlu0 %v866
  %v868 = vpop.xlane.xlu0 %867
  %vm869 = vcmp.eq.f32.partialorder %v866, %v868
  %v870 = vsel %vm869, %v865, inf
  %871 = vmin.xlane.f32.xlu0 %v870
  %v872 = vpop.xlane.xlu0 %871
  %v873 = vcvt.f32.s32 %v872
  %v874 = vcvt.f32.s32 %v868
  %v875 = vshll.u32 %v874, 16
  %v876 = vadd.s32 %v875, %v873
  %vm877 = vcmp.lt.f32.partialorder %v726, %v668
  %vm878 = vcmp.lt.f32.partialorder %v728, %v669
  %vm879 = vcmp.lt.f32.partialorder %v730, %v670
  %vm880 = vcmp.lt.f32.partialorder %v732, %v671
  %vm881 = vmxor %vm877, 1
  %vm882 = vmxor %vm878, 1
  %vm883 = vmxor %vm879, 1
  %vm884 = vmxor %vm880, 1
  %vm885 = vcmp.lt.f32.partialorder %v726, %v656
  %vm886 = vcmp.lt.f32.partialorder %v728, %v657
  %vm887 = vcmp.lt.f32.partialorder %v730, %v658
  %vm888 = vcmp.lt.f32.partialorder %v732, %v659
  %vm889 = vmand %vm881, %vm885
  %vm890 = vmand %vm882, %vm886
  %vm891 = vmand %vm883, %vm887
  %vm892 = vmand %vm884, %vm888
  %v893 = vsel %vm889, %v726, %v656
  %v894 = vsel %vm890, %v728, %v657
  %v895 = vsel %vm891, %v730, %v658
  %v896 = vsel %vm892, %v732, %v659
  %v897 = vsel %vm877, %v668, %v893
  %v898 = vsel %vm878, %v669, %v894
  %v899 = vsel %vm879, %v670, %v895
  %v900 = vsel %vm880, %v671, %v896
  %v901 = vsel %vm889, %v754, %v664
  %v902 = vsel %vm890, %v768, %v665
  %v903 = vsel %vm891, %v782, %v666
  %v904 = vsel %vm892, %v796, %v667
  %v905 = vsel %vm877, %v672, %v901
  %v906 = vsel %vm878, %v673, %v902
  %v907 = vsel %vm879, %v674, %v903
  %v908 = vsel %vm880, %v675, %v904
  %v909 = vsel %vm877, %v726, %v668
  %v910 = vsel %vm878, %v728, %v669
  %v911 = vsel %vm879, %v730, %v670
  %v912 = vsel %vm880, %v732, %v671
  %v913 = vsel %vm877, %v754, %v672
  %v914 = vsel %vm878, %v768, %v673
  %v915 = vsel %vm879, %v782, %v674
  %v916 = vsel %vm880, %v796, %v675
  %vm917 = vcmp.lt.f32.partialorder %v806, %v909
  %vm918 = vcmp.lt.f32.partialorder %v808, %v910
  %vm919 = vcmp.lt.f32.partialorder %v810, %v911
  %vm920 = vcmp.lt.f32.partialorder %v812, %v912
  %vm921 = vmxor %vm917, 1
  %vm922 = vmxor %vm918, 1
  %vm923 = vmxor %vm919, 1
  %vm924 = vmxor %vm920, 1
  %vm925 = vcmp.lt.f32.partialorder %v806, %v897
  %vm926 = vcmp.lt.f32.partialorder %v808, %v898
  %vm927 = vcmp.lt.f32.partialorder %v810, %v899
  %vm928 = vcmp.lt.f32.partialorder %v812, %v900
  %vm929 = vmand %vm921, %vm925
  %vm930 = vmand %vm922, %vm926
  %vm931 = vmand %vm923, %vm927
  %vm932 = vmand %vm924, %vm928
  %v933 = vsel %vm929, %v806, %v897
  %v934 = vsel %vm930, %v808, %v898
  %v935 = vsel %vm931, %v810, %v899
  %v936 = vsel %vm932, %v812, %v900
  %v937 = vsel %vm917, %v909, %v933
  %v938 = vsel %vm918, %v910, %v934
  %v939 = vsel %vm919, %v911, %v935
  %v940 = vsel %vm920, %v912, %v936
  %v941 = vsel %vm929, %v834, %v905
  %v942 = vsel %vm930, %v848, %v906
  %v943 = vsel %vm931, %v862, %v907
  %v944 = vsel %vm932, %v876, %v908
  %v945 = vsel %vm917, %v913, %v941
  %v946 = vsel %vm918, %v914, %v942
  %v947 = vsel %vm919, %v915, %v943
  %v948 = vsel %vm920, %v916, %v944
  %v949 = vsel %vm917, %v806, %v909
  %v950 = vsel %vm918, %v808, %v910
  %v951 = vsel %vm919, %v810, %v911
  %v952 = vsel %vm920, %v812, %v912
  %v953 = vsel %vm917, %v834, %v913
  %v954 = vsel %vm918, %v848, %v914
  %v955 = vsel %vm919, %v862, %v915
  %v956 = vsel %vm920, %v876, %v916
  %v957 = vld [vmem:[%s1 + $0x6] sm:$0x3]
  %v958 = vld [vmem:[%s3 + $0x3] sm:$0x1]
  %v959 = vlaneseq
  %v960 = vshrl.u32 %v959, 7
  %v961 = vsub.s32 0, %v960
  %v962 = vrot.slane %v957, %v961
  %v963 = vsub.f32 %v70, %v962
  %v964 = vsub.f32 %v75, %v962
  %v965 = vsub.f32 %v80, %v962
  %v966 = vsub.f32 %v85, %v962
  %v967 = vmul.f32 %v963, %v963
  %v968 = vmul.f32 %v964, %v964
  %v969 = vmul.f32 %v965, %v965
  %v970 = vmul.f32 %v966, %v966
  %v971 = vadd.f32 %v967, 0.0
  %v972 = vadd.f32 %v968, 0.0
  %v973 = vadd.f32 %v969, 0.0
  %v974 = vadd.f32 %v970, 0.0
  %v975 = vlaneseq
  %v976 = vshrl.u32 %v975, 7
  %v977 = vsub.s32 1, %v976
  %v978 = vrot.slane %v957, %v977
  %v979 = vsub.f32 %v105, %v978
  %v980 = vsub.f32 %v109, %v978
  %v981 = vsub.f32 %v113, %v978
  %v982 = vsub.f32 %v117, %v978
  %v983 = vmul.f32 %v979, %v979
  %v984 = vmul.f32 %v980, %v980
  %v985 = vmul.f32 %v981, %v981
  %v986 = vmul.f32 %v982, %v982
  %v987 = vadd.f32 %v971, %v983
  %v988 = vadd.f32 %v972, %v984
  %v989 = vadd.f32 %v973, %v985
  %v990 = vadd.f32 %v974, %v986
  %v991 = vlaneseq
  %v992 = vshrl.u32 %v991, 7
  %v993 = vsub.s32 0, %v992
  %v994 = vrot.slane %v958, %v993
  %vm995 = vcmp.eq.s32.totalorder %v137, %v994
  %vm996 = vcmp.eq.s32.totalorder %v140, %v994
  %vm997 = vcmp.eq.s32.totalorder %v143, %v994
  %vm998 = vcmp.eq.s32.totalorder %v146, %v994
  %v999 = vsel %vm995, %v987, 1e+30
  %v1000 = vsel %vm996, %v988, 1e+30
  %v1001 = vsel %vm997, %v989, 1e+30
  %v1002 = vsel %vm998, %v990, 1e+30
  %s1003 = sadd.s32 %s64, 384
  %v1004 = vstv %s1003
  %v1005 = vadd.s32 %v160, %v1004
  %1006 = vmin.xlane.f32.xlu0 %v999
  %v1007 = vpop.xlane.xlu0 %1006
  %1008 = vmin.xlane.f32.xlu0 %v1000
  %v1009 = vpop.xlane.xlu0 %1008
  %1010 = vmin.xlane.f32.xlu0 %v1001
  %v1011 = vpop.xlane.xlu0 %1010
  %1012 = vmin.xlane.f32.xlu0 %v1002
  %v1013 = vpop.xlane.xlu0 %1012
  %vm1014 = vcmp.le.f32.partialorder %v999, %v1007
  %vm1015 = vcmp.le.f32.partialorder %v1000, %v1009
  %vm1016 = vcmp.le.f32.partialorder %v1001, %v1011
  %vm1017 = vcmp.le.f32.partialorder %v1002, %v1013
  %v1018 = vsel %vm1014, %v1005, 2147483647
  %v1019 = vsel %vm1015, %v1005, 2147483647
  %v1020 = vsel %vm1016, %v1005, 2147483647
  %v1021 = vsel %vm1017, %v1005, 2147483647
  %v1022 = vand.u32 %v1018, 65535
  %v1023 = vshra.s32 %v1018, 16
  %v1024 = vcvt.s32.f32 %v1022
  %v1025 = vcvt.s32.f32 %v1023
  %1026 = vmin.xlane.f32.xlu0 %v1025
  %v1027 = vpop.xlane.xlu0 %1026
  %vm1028 = vcmp.eq.f32.partialorder %v1025, %v1027
  %v1029 = vsel %vm1028, %v1024, inf
  %1030 = vmin.xlane.f32.xlu0 %v1029
  %v1031 = vpop.xlane.xlu0 %1030
  %v1032 = vcvt.f32.s32 %v1031
  %v1033 = vcvt.f32.s32 %v1027
  %v1034 = vshll.u32 %v1033, 16
  %v1035 = vadd.s32 %v1034, %v1032
  %v1036 = vand.u32 %v1019, 65535
  %v1037 = vshra.s32 %v1019, 16
  %v1038 = vcvt.s32.f32 %v1036
  %v1039 = vcvt.s32.f32 %v1037
  %1040 = vmin.xlane.f32.xlu0 %v1039
  %v1041 = vpop.xlane.xlu0 %1040
  %vm1042 = vcmp.eq.f32.partialorder %v1039, %v1041
  %v1043 = vsel %vm1042, %v1038, inf
  %1044 = vmin.xlane.f32.xlu0 %v1043
  %v1045 = vpop.xlane.xlu0 %1044
  %v1046 = vcvt.f32.s32 %v1045
  %v1047 = vcvt.f32.s32 %v1041
  %v1048 = vshll.u32 %v1047, 16
  %v1049 = vadd.s32 %v1048, %v1046
  %v1050 = vand.u32 %v1020, 65535
  %v1051 = vshra.s32 %v1020, 16
  %v1052 = vcvt.s32.f32 %v1050
  %v1053 = vcvt.s32.f32 %v1051
  %1054 = vmin.xlane.f32.xlu0 %v1053
  %v1055 = vpop.xlane.xlu0 %1054
  %vm1056 = vcmp.eq.f32.partialorder %v1053, %v1055
  %v1057 = vsel %vm1056, %v1052, inf
  %1058 = vmin.xlane.f32.xlu0 %v1057
  %v1059 = vpop.xlane.xlu0 %1058
  %v1060 = vcvt.f32.s32 %v1059
  %v1061 = vcvt.f32.s32 %v1055
  %v1062 = vshll.u32 %v1061, 16
  %v1063 = vadd.s32 %v1062, %v1060
  %v1064 = vand.u32 %v1021, 65535
  %v1065 = vshra.s32 %v1021, 16
  %v1066 = vcvt.s32.f32 %v1064
  %v1067 = vcvt.s32.f32 %v1065
  %1068 = vmin.xlane.f32.xlu0 %v1067
  %v1069 = vpop.xlane.xlu0 %1068
  %vm1070 = vcmp.eq.f32.partialorder %v1067, %v1069
  %v1071 = vsel %vm1070, %v1066, inf
  %1072 = vmin.xlane.f32.xlu0 %v1071
  %v1073 = vpop.xlane.xlu0 %1072
  %v1074 = vcvt.f32.s32 %v1073
  %v1075 = vcvt.f32.s32 %v1069
  %v1076 = vshll.u32 %v1075, 16
  %v1077 = vadd.s32 %v1076, %v1074
  %vm1078 = vcmp.eq.s32.totalorder %v1005, %v1035
  %vm1079 = vcmp.eq.s32.totalorder %v1005, %v1049
  %vm1080 = vcmp.eq.s32.totalorder %v1005, %v1063
  %vm1081 = vcmp.eq.s32.totalorder %v1005, %v1077
  %v1082 = vsel %vm1078, 1e+30, %v999
  %v1083 = vsel %vm1079, 1e+30, %v1000
  %v1084 = vsel %vm1080, 1e+30, %v1001
  %v1085 = vsel %vm1081, 1e+30, %v1002
  %1086 = vmin.xlane.f32.xlu0 %v1082
  %v1087 = vpop.xlane.xlu0 %1086
  %1088 = vmin.xlane.f32.xlu0 %v1083
  %v1089 = vpop.xlane.xlu0 %1088
  %1090 = vmin.xlane.f32.xlu0 %v1084
  %v1091 = vpop.xlane.xlu0 %1090
  %1092 = vmin.xlane.f32.xlu0 %v1085
  %v1093 = vpop.xlane.xlu0 %1092
  %vm1094 = vcmp.le.f32.partialorder %v1082, %v1087
  %vm1095 = vcmp.le.f32.partialorder %v1083, %v1089
  %vm1096 = vcmp.le.f32.partialorder %v1084, %v1091
  %vm1097 = vcmp.le.f32.partialorder %v1085, %v1093
  %v1098 = vsel %vm1094, %v1005, 2147483647
  %v1099 = vsel %vm1095, %v1005, 2147483647
  %v1100 = vsel %vm1096, %v1005, 2147483647
  %v1101 = vsel %vm1097, %v1005, 2147483647
  %v1102 = vand.u32 %v1098, 65535
  %v1103 = vshra.s32 %v1098, 16
  %v1104 = vcvt.s32.f32 %v1102
  %v1105 = vcvt.s32.f32 %v1103
  %1106 = vmin.xlane.f32.xlu0 %v1105
  %v1107 = vpop.xlane.xlu0 %1106
  %vm1108 = vcmp.eq.f32.partialorder %v1105, %v1107
  %v1109 = vsel %vm1108, %v1104, inf
  %1110 = vmin.xlane.f32.xlu0 %v1109
  %v1111 = vpop.xlane.xlu0 %1110
  %v1112 = vcvt.f32.s32 %v1111
  %v1113 = vcvt.f32.s32 %v1107
  %v1114 = vshll.u32 %v1113, 16
  %v1115 = vadd.s32 %v1114, %v1112
  %v1116 = vand.u32 %v1099, 65535
  %v1117 = vshra.s32 %v1099, 16
  %v1118 = vcvt.s32.f32 %v1116
  %v1119 = vcvt.s32.f32 %v1117
  %1120 = vmin.xlane.f32.xlu0 %v1119
  %v1121 = vpop.xlane.xlu0 %1120
  %vm1122 = vcmp.eq.f32.partialorder %v1119, %v1121
  %v1123 = vsel %vm1122, %v1118, inf
  %1124 = vmin.xlane.f32.xlu0 %v1123
  %v1125 = vpop.xlane.xlu0 %1124
  %v1126 = vcvt.f32.s32 %v1125
  %v1127 = vcvt.f32.s32 %v1121
  %v1128 = vshll.u32 %v1127, 16
  %v1129 = vadd.s32 %v1128, %v1126
  %v1130 = vand.u32 %v1100, 65535
  %v1131 = vshra.s32 %v1100, 16
  %v1132 = vcvt.s32.f32 %v1130
  %v1133 = vcvt.s32.f32 %v1131
  %1134 = vmin.xlane.f32.xlu0 %v1133
  %v1135 = vpop.xlane.xlu0 %1134
  %vm1136 = vcmp.eq.f32.partialorder %v1133, %v1135
  %v1137 = vsel %vm1136, %v1132, inf
  %1138 = vmin.xlane.f32.xlu0 %v1137
  %v1139 = vpop.xlane.xlu0 %1138
  %v1140 = vcvt.f32.s32 %v1139
  %v1141 = vcvt.f32.s32 %v1135
  %v1142 = vshll.u32 %v1141, 16
  %v1143 = vadd.s32 %v1142, %v1140
  %v1144 = vand.u32 %v1101, 65535
  %v1145 = vshra.s32 %v1101, 16
  %v1146 = vcvt.s32.f32 %v1144
  %v1147 = vcvt.s32.f32 %v1145
  %1148 = vmin.xlane.f32.xlu0 %v1147
  %v1149 = vpop.xlane.xlu0 %1148
  %vm1150 = vcmp.eq.f32.partialorder %v1147, %v1149
  %v1151 = vsel %vm1150, %v1146, inf
  %1152 = vmin.xlane.f32.xlu0 %v1151
  %v1153 = vpop.xlane.xlu0 %1152
  %v1154 = vcvt.f32.s32 %v1153
  %v1155 = vcvt.f32.s32 %v1149
  %v1156 = vshll.u32 %v1155, 16
  %v1157 = vadd.s32 %v1156, %v1154
  %vm1158 = vcmp.lt.f32.partialorder %v1007, %v949
  %vm1159 = vcmp.lt.f32.partialorder %v1009, %v950
  %vm1160 = vcmp.lt.f32.partialorder %v1011, %v951
  %vm1161 = vcmp.lt.f32.partialorder %v1013, %v952
  %vm1162 = vmxor %vm1158, 1
  %vm1163 = vmxor %vm1159, 1
  %vm1164 = vmxor %vm1160, 1
  %vm1165 = vmxor %vm1161, 1
  %vm1166 = vcmp.lt.f32.partialorder %v1007, %v937
  %vm1167 = vcmp.lt.f32.partialorder %v1009, %v938
  %vm1168 = vcmp.lt.f32.partialorder %v1011, %v939
  %vm1169 = vcmp.lt.f32.partialorder %v1013, %v940
  %vm1170 = vmand %vm1162, %vm1166
  %vm1171 = vmand %vm1163, %vm1167
  %vm1172 = vmand %vm1164, %vm1168
  %vm1173 = vmand %vm1165, %vm1169
  %v1174 = vsel %vm1170, %v1007, %v937
  %v1175 = vsel %vm1171, %v1009, %v938
  %v1176 = vsel %vm1172, %v1011, %v939
  %v1177 = vsel %vm1173, %v1013, %v940
  %v1178 = vsel %vm1158, %v949, %v1174
  %v1179 = vsel %vm1159, %v950, %v1175
  %v1180 = vsel %vm1160, %v951, %v1176
  %v1181 = vsel %vm1161, %v952, %v1177
  %v1182 = vsel %vm1170, %v1035, %v945
  %v1183 = vsel %vm1171, %v1049, %v946
  %v1184 = vsel %vm1172, %v1063, %v947
  %v1185 = vsel %vm1173, %v1077, %v948
  %v1186 = vsel %vm1158, %v953, %v1182
  %v1187 = vsel %vm1159, %v954, %v1183
  %v1188 = vsel %vm1160, %v955, %v1184
  %v1189 = vsel %vm1161, %v956, %v1185
  %v1190 = vsel %vm1158, %v1007, %v949
  %v1191 = vsel %vm1159, %v1009, %v950
  %v1192 = vsel %vm1160, %v1011, %v951
  %v1193 = vsel %vm1161, %v1013, %v952
  %v1194 = vsel %vm1158, %v1035, %v953
  %v1195 = vsel %vm1159, %v1049, %v954
  %v1196 = vsel %vm1160, %v1063, %v955
  %v1197 = vsel %vm1161, %v1077, %v956
  %vm1198 = vcmp.lt.f32.partialorder %v1087, %v1190
  %vm1199 = vcmp.lt.f32.partialorder %v1089, %v1191
  %vm1200 = vcmp.lt.f32.partialorder %v1091, %v1192
  %vm1201 = vcmp.lt.f32.partialorder %v1093, %v1193
  %vm1202 = vmxor %vm1198, 1
  %vm1203 = vmxor %vm1199, 1
  %vm1204 = vmxor %vm1200, 1
  %vm1205 = vmxor %vm1201, 1
  %vm1206 = vcmp.lt.f32.partialorder %v1087, %v1178
  %vm1207 = vcmp.lt.f32.partialorder %v1089, %v1179
  %vm1208 = vcmp.lt.f32.partialorder %v1091, %v1180
  %vm1209 = vcmp.lt.f32.partialorder %v1093, %v1181
  %vm1210 = vmand %vm1202, %vm1206
  %vm1211 = vmand %vm1203, %vm1207
  %vm1212 = vmand %vm1204, %vm1208
  %vm1213 = vmand %vm1205, %vm1209
  %v1214 = vsel %vm1210, %v1087, %v1178
  %v1215 = vsel %vm1211, %v1089, %v1179
  %v1216 = vsel %vm1212, %v1091, %v1180
  %v1217 = vsel %vm1213, %v1093, %v1181
  %v1218 = vsel %vm1198, %v1190, %v1214
  %v1219 = vsel %vm1199, %v1191, %v1215
  %v1220 = vsel %vm1200, %v1192, %v1216
  %v1221 = vsel %vm1201, %v1193, %v1217
  %v1222 = vsel %vm1210, %v1115, %v1186
  %v1223 = vsel %vm1211, %v1129, %v1187
  %v1224 = vsel %vm1212, %v1143, %v1188
  %v1225 = vsel %vm1213, %v1157, %v1189
  %v1226 = vsel %vm1198, %v1194, %v1222
  %v1227 = vsel %vm1199, %v1195, %v1223
  %v1228 = vsel %vm1200, %v1196, %v1224
  %v1229 = vsel %vm1201, %v1197, %v1225
  %v1230 = vsel %vm1198, %v1087, %v1190
  %v1231 = vsel %vm1199, %v1089, %v1191
  %v1232 = vsel %vm1200, %v1091, %v1192
  %v1233 = vsel %vm1201, %v1093, %v1193
  %v1234 = vsel %vm1198, %v1115, %v1194
  %v1235 = vsel %vm1199, %v1129, %v1195
  %v1236 = vsel %vm1200, %v1143, %v1196
  %v1237 = vsel %vm1201, %v1157, %v1197
  %vm1238 = vcmask 7168
  %1239 = vst.msk [vmem:[#allocation2] sm:$0xff] %vm1238, %v1230
  %1240 = vst.msk [vmem:[#allocation2 + $0x8] sm:$0xff] %vm1238, %v1231
  %1241 = vst.msk [vmem:[#allocation2 + $0x10] sm:$0xff] %vm1238, %v1232
  %1242 = vst.msk [vmem:[#allocation2 + $0x18] sm:$0xff] %vm1238, %v1233
  %1243 = vst.msk [vmem:[%s4] sm:$0xff] %vm1238, %v1234
  %1244 = vst.msk [vmem:[%s4 + $0x8] sm:$0xff] %vm1238, %v1235
  %1245 = vst.msk [vmem:[%s4 + $0x10] sm:$0xff] %vm1238, %v1236
  %1246 = vst.msk [vmem:[%s4 + $0x18] sm:$0xff] %vm1238, %v1237
  %1247 = vst.msk [vmem:[#allocation3] sm:$0xff] %vm1238, %v1218
  %1248 = vst.msk [vmem:[#allocation3 + $0x8] sm:$0xff] %vm1238, %v1219
  %1249 = vst.msk [vmem:[#allocation3 + $0x10] sm:$0xff] %vm1238, %v1220
  %1250 = vst.msk [vmem:[#allocation3 + $0x18] sm:$0xff] %vm1238, %v1221
  %1251 = vst.msk [vmem:[%s5] sm:$0xff] %vm1238, %v1226
  %1252 = vst.msk [vmem:[%s5 + $0x8] sm:$0xff] %vm1238, %v1227
  %1253 = vst.msk [vmem:[%s5 + $0x10] sm:$0xff] %vm1238, %v1228
  %1254 = vst.msk [vmem:[%s5 + $0x18] sm:$0xff] %vm1238, %v1229
  // Predicated region
  $region22: #{predict_positions.7} parent=0 // pred_check
    _
  $region23: #{predict_positions.7} parent=0 // pred_check_branch
    %1256 = sbr.rel (0) target = $region25
  $region24: #{predict_positions.7} parent=0 // pred_region
    _
  $region25: #{predict_positions.7} parent=0 // pred_fallthru
    _
  // Predicated region
  $region26: #{predict_positions.7} parent=0 // pred_check
    _
  $region27: #{predict_positions.7} parent=0 // pred_check_branch
    %1258 = sbr.rel (0) target = $region29
  $region28: #{predict_positions.7} parent=0 // pred_region
    _
  $region29: #{predict_positions.7} parent=0 // pred_fallthru
    _
  // Predicated region
  $region30: #{predict_positions.7} parent=0 // pred_check
    _
  $region31: #{predict_positions.7} parent=0 // pred_check_branch
    %1260 = sbr.rel (0) target = $region33
  $region32: #{predict_positions.7} parent=0 // pred_region
    _
  $region33: #{predict_positions.7} parent=0 // pred_fallthru
    _
  // Predicated region
  $region34: #{predict_positions.7} parent=0 // pred_check
    _
  $region35: #{predict_positions.7} parent=0 // pred_check_branch
    %1262 = sbr.rel (0) target = $region37
  $region36: #{predict_positions.7} parent=0 // pred_region
    _
  $region37: #{predict_positions.7} parent=0 // pred_fallthru
    _

// kernel: predict_positions.8
$region0: #{predict_positions.8}
  #allocation0 [shape = 'u32[]', space=smem, size = 0x4, offset = 0x4, fixed_abs, tag = 'smem constant byte address 0x4 - core index']
  #allocation1 [shape = 'u32[144,128]{1,0:T(1,128)}', space=vmem, size = 0x12000, scoped, tag = 'internal scratch']
  %s0 = inlined_call_operand.vmem [shape: f32[32,14], index: 0, kind: input, shape index: {}]
  %s1 = inlined_call_operand.vmem [shape: bf16[14,32], index: 1, kind: input, shape index: {}]
  %s2 = inlined_call_operand.vmem [shape: f32[1,32], index: 2, kind: input, shape index: {}, may-alias: {2,4,6,8}]
  %s3 = inlined_call_operand.vmem [shape: bf16[32,32], index: 3, kind: input, shape index: {}]
  %s4 = inlined_call_operand.vmem [shape: f32[1,32], index: 4, kind: input, shape index: {}, may-alias: {2,4,6,8}]
  %s5 = inlined_call_operand.vmem [shape: bf16[32,32], index: 5, kind: input, shape index: {}]
  %s6 = inlined_call_operand.vmem [shape: f32[1,32], index: 6, kind: input, shape index: {}, may-alias: {2,4,6,8}]
  %s7 = inlined_call_operand.vmem [shape: f32[1,32], index: 7, kind: input, shape index: {}]
  %s8 = inlined_call_operand.vmem [shape: f32[1,32], index: 8, kind: input, shape index: {}, may-alias: {2,4,6,8}]
  %s9 = inlined_call_operand.vmem [shape: f32[32,32], index: 9, kind: output, shape index: {}]
  %s10 = sld [smem:[#allocation0]]
  $region46: #{predict_positions.8} parent=0
    _
  %s12 = ssub.s32 1, %s10
  %s13 = scalar_select 0, %s12, %s10
  // Predicated region
  $region2: #{predict_positions.8} parent=0 // pred_check
    _
  $region3: #{predict_positions.8} parent=0 // pred_check_branch
    %15 = sbr.rel (0) target = $region5
  $region4: #{predict_positions.8} parent=0 // pred_region
    _
  $region5: #{predict_positions.8} parent=0 // pred_fallthru
    _
  // Predicated region
  $region6: #{predict_positions.8} parent=0 // pred_check
    _
  $region7: #{predict_positions.8} parent=0 // pred_check_branch
    %17 = sbr.rel (0) target = $region9
  $region8: #{predict_positions.8} parent=0 // pred_region
    _
  $region9: #{predict_positions.8} parent=0 // pred_fallthru
    _
  // Predicated region
  $region10: #{predict_positions.8} parent=0 // pred_check
    _
  $region11: #{predict_positions.8} parent=0 // pred_check_branch
    %19 = sbr.rel (0) target = $region13
  $region12: #{predict_positions.8} parent=0 // pred_region
    _
  $region13: #{predict_positions.8} parent=0 // pred_fallthru
    _
  // Predicated region
  $region14: #{predict_positions.8} parent=0 // pred_check
    _
  $region15: #{predict_positions.8} parent=0 // pred_check_branch
    %21 = sbr.rel (0) target = $region17
  $region16: #{predict_positions.8} parent=0 // pred_region
    _
  $region17: #{predict_positions.8} parent=0 // pred_fallthru
    _
  // Predicated region
  $region18: #{predict_positions.8} parent=0 // pred_check
    _
  $region19: #{predict_positions.8} parent=0 // pred_check_branch
    %23 = sbr.rel (0) target = $region21
  $region20: #{predict_positions.8} parent=0 // pred_region
    _
  $region21: #{predict_positions.8} parent=0 // pred_fallthru
    _
  // Predicated region
  $region22: #{predict_positions.8} parent=0 // pred_check
    _
  $region23: #{predict_positions.8} parent=0 // pred_check_branch
    %25 = sbr.rel (0) target = $region25
  $region24: #{predict_positions.8} parent=0 // pred_region
    _
  $region25: #{predict_positions.8} parent=0 // pred_fallthru
    _
  // Predicated region
  $region26: #{predict_positions.8} parent=0 // pred_check
    _
  $region27: #{predict_positions.8} parent=0 // pred_check_branch
    %27 = sbr.rel (0) target = $region29
  $region28: #{predict_positions.8} parent=0 // pred_region
    _
  $region29: #{predict_positions.8} parent=0 // pred_fallthru
    _
  // Predicated region
  $region30: #{predict_positions.8} parent=0 // pred_check
    _
  $region31: #{predict_positions.8} parent=0 // pred_check_branch
    %29 = sbr.rel (0) target = $region33
  $region32: #{predict_positions.8} parent=0 // pred_region
    _
  $region33: #{predict_positions.8} parent=0 // pred_fallthru
    _
  // Predicated region
  $region34: #{predict_positions.8} parent=0 // pred_check
    _
  $region35: #{predict_positions.8} parent=0 // pred_check_branch
    %31 = sbr.rel (0) target = $region37
  $region36: #{predict_positions.8} parent=0 // pred_region
    _
  $region37: #{predict_positions.8} parent=0 // pred_fallthru
    _
  %v33 = vld [vmem:[%s0] sm:$0xff]
  %v34 = vld [vmem:[%s0 + $0x8] sm:$0xff]
  %v35 = vld [vmem:[%s0 + $0x10] sm:$0xff]
  %v36 = vld [vmem:[%s0 + $0x18] sm:$0xff]
  %v37 = vpack.c.bf16 %v34, %v33
  %v38 = vpack.c.bf16 %v36, %v35
  %v39 = vld [vmem:[%s2] sm:$0x1]
  %v40 = vld [vmem:[%s1] sm:$0xf]
  %v41 = vld [vmem:[%s1 + $0x4] sm:$0x7]
  %v44 = vunpack.c.l.b16 %v40
  %v45 = vunpack.c.l.b16 %v41
  %v46 = vpack.c.b16 %v45, %v44
  %vm47 = vcmask 113664
  %v49 = vsel %vm47, %v37, 0
  %v52 = vsel %vm47, %v38, 0
  %vm54 = vcmask 1046528
  %v56 = vsel %vm54, %v46, 0
  %58 = vmatprep.subr.bf16.mxu0 0
  %59 = vmatpush1.bf16.msra.mxu0 %v56
  %60 = vmatprep.subr.bf16.mxu0 0
  %61 = vmatpush1.bf16.msra.mxu0 0
  %62 = vmatprep.subr.bf16.mxu0 0
  %63 = vmatpush1.bf16.msra.mxu0 0
  %64 = vmatprep.subr.bf16.mxu0 0
  %65 = vmatpush1.bf16.msra.mxu0 0
  %66 = vmatprep.subr.bf16.mxu0 0
  %67 = vmatpush1.bf16.msra.mxu0 0
  %68 = vmatprep.subr.bf16.mxu0 0
  %69 = vmatpush1.bf16.msra.mxu0 0
  %70 = vmatprep.subr.bf16.mxu0 0
  %71 = vmatpush1.bf16.msra.mxu0 0
  %72 = vmatprep.subr.bf16.mxu0 0
  %73 = vmatpush1.bf16.msra.mxu0 0
  %74 = vmatprep.subr.bf16.mxu0 0
  %75 = vmatpush1.bf16.msra.mxu0 0
  %76 = vmatprep.subr.bf16.mxu0 0
  %77 = vmatpush1.bf16.msra.mxu0 0
  %78 = vmatprep.subr.bf16.mxu0 0
  %79 = vmatpush1.bf16.msra.mxu0 0
  %80 = vmatprep.subr.bf16.mxu0 0
  %81 = vmatpush1.bf16.msra.mxu0 0
  %82 = vmatprep.subr.bf16.mxu0 0
  %83 = vmatpush1.bf16.msra.mxu0 0
  %84 = vmatprep.subr.bf16.mxu0 0
  %85 = vmatpush1.bf16.msra.mxu0 0
  %86 = vmatprep.subr.bf16.mxu0 0
  %87 = vmatpush1.bf16.msra.mxu0 0
  %88 = vmatprep.subr.bf16.mxu0 0
  %89 = vmatpush1.bf16.msra.mxu0 0
  %90 = vmatprep.mubr.bf16.mxu0 0
  %91 = vmatmul.mubr.bf16.gmra.mrb[0].mxu0 %v49
  %v92 = vpop.f32.mrb[0].mxu0
  %v93 = vadd.f32 0.0, %v92
  %v94 = vpop.f32.mrb[0].mxu0
  %v95 = vpop.f32.mrb[0].mxu0
  %v96 = vadd.f32 0.0, %v95
  %v97 = vpop.f32.mrb[0].mxu0
  %98 = vmatprep.mubr.bf16.mxu0 0
  %99 = vmatmul.mubr.bf16.gmra.mrb[0].mxu0 %v52
  %v100 = vpop.f32.mrb[0].mxu0
  %v101 = vadd.f32 0.0, %v100
  %v102 = vpop.f32.mrb[0].mxu0
  %v103 = vpop.f32.mrb[0].mxu0
  %v104 = vadd.f32 0.0, %v103
  %v105 = vpop.f32.mrb[0].mxu0
  %106 = vdwg.mxu0
  %v108 = vlaneseq
  %v109 = vshrl.u32 %v108, 7
  %v110 = vsub.s32 0, %v109
  %v111 = vrot.slane %v39, %v110
  %v113 = vadd.f32 %v111, %v93
  %v114 = vadd.f32 %v111, %v96
  %v115 = vadd.f32 %v111, %v101
  %v116 = vadd.f32 %v111, %v104
  %v117 = vmax.f32 %v113, 0.0
  %v118 = vmax.f32 %v114, 0.0
  %v119 = vmax.f32 %v115, 0.0
  %v120 = vmax.f32 %v116, 0.0
  %v121 = vpack.c.bf16 %v118, %v117
  %v122 = vpack.c.bf16 %v120, %v119
  %v123 = vld [vmem:[%s3] sm:$0xf]
  %v124 = vld [vmem:[%s3 + $0x4] sm:$0xf]
  %v125 = vld [vmem:[%s3 + $0x8] sm:$0xf]
  %v126 = vld [vmem:[%s3 + $0xc] sm:$0xf]
  %v127 = vld [vmem:[%s4] sm:$0x1]
  %v129 = vlaneseq
  %v130 = vshrl.u32 %v129, 7
  %v131 = vsub.s32 0, %v130
  %v132 = vrot.slane %v127, %v131
  %v138 = vunpack.c.l.b16 %v123
  %v139 = vunpack.c.l.b16 %v124
  %v140 = vunpack.c.l.b16 %v125
  %v141 = vunpack.c.l.b16 %v126
  %v142 = vpack.c.b16 %v139, %v138
  %v143 = vpack.c.b16 %v141, %v140
  %vm146 = vcmask 261120
  %v148 = vsel %vm146, %v121, 0
  %v151 = vsel %vm146, %v122, 0
  %153 = vmatprep.subr.bf16.mxu0 0
  %154 = vmatpush1.bf16.msra.mxu0 %v142
  %155 = vmatprep.subr.bf16.mxu0 0
  %156 = vmatpush1.bf16.msra.mxu0 %v143
  %157 = vmatprep.subr.bf16.mxu0 0
  %158 = vmatpush1.bf16.msra.mxu0 0
  %159 = vmatprep.subr.bf16.mxu0 0
  %160 = vmatpush1.bf16.msra.mxu0 0
  %161 = vmatprep.subr.bf16.mxu0 0
  %162 = vmatpush1.bf16.msra.mxu0 0
  %163 = vmatprep.subr.bf16.mxu0 0
  %164 = vmatpush1.bf16.msra.mxu0 0
  %165 = vmatprep.subr.bf16.mxu0 0
  %166 = vmatpush1.bf16.msra.mxu0 0
  %167 = vmatprep.subr.bf16.mxu0 0
  %168 = vmatpush1.bf16.msra.mxu0 0
  %169 = vmatprep.subr.bf16.mxu0 0
  %170 = vmatpush1.bf16.msra.mxu0 0
  %171 = vmatprep.subr.bf16.mxu0 0
  %172 = vmatpush1.bf16.msra.mxu0 0
  %173 = vmatprep.subr.bf16.mxu0 0
  %174 = vmatpush1.bf16.msra.mxu0 0
  %175 = vmatprep.subr.bf16.mxu0 0
  %176 = vmatpush1.bf16.msra.mxu0 0
  %177 = vmatprep.subr.bf16.mxu0 0
  %178 = vmatpush1.bf16.msra.mxu0 0
  %179 = vmatprep.subr.bf16.mxu0 0
  %180 = vmatpush1.bf16.msra.mxu0 0
  %181 = vmatprep.subr.bf16.mxu0 0
  %182 = vmatpush1.bf16.msra.mxu0 0
  %183 = vmatprep.subr.bf16.mxu0 0
  %184 = vmatpush1.bf16.msra.mxu0 0
  %185 = vmatprep.mubr.bf16.mxu0 0
  %186 = vmatmul.mubr.bf16.gmra.mrb[0].mxu0 %v148
  %v187 = vpop.f32.mrb[0].mxu0
  %v188 = vadd.f32 %v132, %v187
  %v189 = vpop.f32.mrb[0].mxu0
  %v190 = vpop.f32.mrb[0].mxu0
  %v191 = vadd.f32 %v132, %v190
  %v192 = vpop.f32.mrb[0].mxu0
  %193 = vmatprep.mubr.bf16.mxu0 0
  %194 = vmatmul.mubr.bf16.gmra.mrb[0].mxu0 %v151
  %v195 = vpop.f32.mrb[0].mxu0
  %v196 = vadd.f32 %v132, %v195
  %v197 = vpop.f32.mrb[0].mxu0
  %v198 = vpop.f32.mrb[0].mxu0
  %v199 = vadd.f32 %v132, %v198
  %v200 = vpop.f32.mrb[0].mxu0
  %201 = vdwg.mxu0
  %v202 = vmax.f32 %v188, 0.0
  %v203 = vmax.f32 %v191, 0.0
  %v204 = vmax.f32 %v196, 0.0
  %v205 = vmax.f32 %v199, 0.0
  %v206 = vpack.c.bf16 %v203, %v202
  %v207 = vpack.c.bf16 %v205, %v204
  %v208 = vld [vmem:[%s5] sm:$0xf]
  %v209 = vld [vmem:[%s5 + $0x4] sm:$0xf]
  %v210 = vld [vmem:[%s5 + $0x8] sm:$0xf]
  %v211 = vld [vmem:[%s5 + $0xc] sm:$0xf]
  %v212 = vld [vmem:[%s6] sm:$0x1]
  %v214 = vlaneseq
  %v215 = vshrl.u32 %v214, 7
  %v216 = vsub.s32 0, %v215
  %v217 = vrot.slane %v212, %v216
  %v223 = vunpack.c.l.b16 %v208
  %v224 = vunpack.c.l.b16 %v209
  %v225 = vunpack.c.l.b16 %v210
  %v226 = vunpack.c.l.b16 %v211
  %v227 = vpack.c.b16 %v224, %v223
  %v228 = vpack.c.b16 %v226, %v225
  %v232 = vsel %vm146, %v206, 0
  %v235 = vsel %vm146, %v207, 0
  %237 = vmatprep.subr.bf16.mxu0 0
  %238 = vmatpush1.bf16.msra.mxu0 %v227
  %239 = vmatprep.subr.bf16.mxu0 0
  %240 = vmatpush1.bf16.msra.mxu0 %v228
  %241 = vmatprep.subr.bf16.mxu0 0
  %242 = vmatpush1.bf16.msra.mxu0 0
  %243 = vmatprep.subr.bf16.mxu0 0
  %244 = vmatpush1.bf16.msra.mxu0 0
  %245 = vmatprep.subr.bf16.mxu0 0
  %246 = vmatpush1.bf16.msra.mxu0 0
  %247 = vmatprep.subr.bf16.mxu0 0
  %248 = vmatpush1.bf16.msra.mxu0 0
  %249 = vmatprep.subr.bf16.mxu0 0
  %250 = vmatpush1.bf16.msra.mxu0 0
  %251 = vmatprep.subr.bf16.mxu0 0
  %252 = vmatpush1.bf16.msra.mxu0 0
  %253 = vmatprep.subr.bf16.mxu0 0
  %254 = vmatpush1.bf16.msra.mxu0 0
  %255 = vmatprep.subr.bf16.mxu0 0
  %256 = vmatpush1.bf16.msra.mxu0 0
  %257 = vmatprep.subr.bf16.mxu0 0
  %258 = vmatpush1.bf16.msra.mxu0 0
  %259 = vmatprep.subr.bf16.mxu0 0
  %260 = vmatpush1.bf16.msra.mxu0 0
  %261 = vmatprep.subr.bf16.mxu0 0
  %262 = vmatpush1.bf16.msra.mxu0 0
  %263 = vmatprep.subr.bf16.mxu0 0
  %264 = vmatpush1.bf16.msra.mxu0 0
  %265 = vmatprep.subr.bf16.mxu0 0
  %266 = vmatpush1.bf16.msra.mxu0 0
  %267 = vmatprep.subr.bf16.mxu0 0
  %268 = vmatpush1.bf16.msra.mxu0 0
  %269 = vmatprep.mubr.bf16.mxu0 0
  %270 = vmatmul.mubr.bf16.gmra.mrb[0].mxu0 %v232
  %v271 = vpop.f32.mrb[0].mxu0
  %v272 = vadd.f32 %v217, %v271
  %v273 = vpop.f32.mrb[0].mxu0
  %v274 = vpop.f32.mrb[0].mxu0
  %v275 = vadd.f32 %v217, %v274
  %v276 = vpop.f32.mrb[0].mxu0
  %277 = vmatprep.mubr.bf16.mxu0 0
  %278 = vmatmul.mubr.bf16.gmra.mrb[0].mxu0 %v235
  %v279 = vpop.f32.mrb[0].mxu0
  %v280 = vadd.f32 %v217, %v279
  %v281 = vpop.f32.mrb[0].mxu0
  %v282 = vpop.f32.mrb[0].mxu0
  %v283 = vadd.f32 %v217, %v282
  %v284 = vpop.f32.mrb[0].mxu0
  %285 = vdwg.mxu0
  %v286 = vld [vmem:[%s7] sm:$0x1]
  %v287 = vld [vmem:[%s8] sm:$0x1]
  %v288 = vsel %vm146, %v272, 0.0
  %289 = vadd.xlane.f32.xlu0 %v288
  %v290 = vpop.xlane.xlu0 %289
  %v291 = vsel %vm146, %v275, 0.0
  %292 = vadd.xlane.f32.xlu0 %v291
  %v293 = vpop.xlane.xlu0 %292
  %v294 = vsel %vm146, %v280, 0.0
  %295 = vadd.xlane.f32.xlu0 %v294
  %v296 = vpop.xlane.xlu0 %295
  %v297 = vsel %vm146, %v283, 0.0
  %298 = vadd.xlane.f32.xlu0 %v297
  %v299 = vpop.xlane.xlu0 %298
  %v300 = vrcp.pop 32.0
  %v301 = vmul.f32 %v290, %v300
  %v302 = vmul.f32 %v293, %v300
  %v303 = vmul.f32 %v296, %v300
  %v304 = vmul.f32 %v299, %v300
  %v305 = vsub.f32 %v272, %v301
  %v306 = vsub.f32 %v275, %v302
  %v307 = vsub.f32 %v280, %v303
  %v308 = vsub.f32 %v283, %v304
  %v309 = vmul.f32 %v305, %v305
  %v310 = vmul.f32 %v306, %v306
  %v311 = vmul.f32 %v307, %v307
  %v312 = vmul.f32 %v308, %v308
  %v313 = vsel %vm146, %v309, 0.0
  %314 = vadd.xlane.f32.xlu0 %v313
  %v315 = vpop.xlane.xlu0 %314
  %v316 = vsel %vm146, %v310, 0.0
  %317 = vadd.xlane.f32.xlu0 %v316
  %v318 = vpop.xlane.xlu0 %317
  %v319 = vsel %vm146, %v311, 0.0
  %320 = vadd.xlane.f32.xlu0 %v319
  %v321 = vpop.xlane.xlu0 %320
  %v322 = vsel %vm146, %v312, 0.0
  %323 = vadd.xlane.f32.xlu0 %v322
  %v324 = vpop.xlane.xlu0 %323
  %v325 = vmul.f32 %v315, %v300
  %v326 = vmul.f32 %v318, %v300
  %v327 = vmul.f32 %v321, %v300
  %v328 = vmul.f32 %v324, %v300
  %v329 = vadd.f32 %v325, 1e-05
  %v330 = vadd.f32 %v326, 1e-05
  %v331 = vadd.f32 %v327, 1e-05
  %v332 = vadd.f32 %v328, 1e-05
  %v333 = vrsqrt.pop %v329
  %v334 = vrsqrt.pop %v330
  %v335 = vrsqrt.pop %v331
  %v336 = vrsqrt.pop %v332
  %v337 = vmul.f32 %v305, %v333
  %v338 = vmul.f32 %v306, %v334
  %v339 = vmul.f32 %v307, %v335
  %v340 = vmul.f32 %v308, %v336
  %v342 = vlaneseq
  %v343 = vshrl.u32 %v342, 7
  %v344 = vsub.s32 0, %v343
  %v345 = vrot.slane %v286, %v344
  %v347 = vmul.f32 %v337, %v345
  %v348 = vmul.f32 %v338, %v345
  %v349 = vmul.f32 %v339, %v345
  %v350 = vmul.f32 %v340, %v345
  %v352 = vlaneseq
  %v353 = vshrl.u32 %v352, 7
  %v354 = vsub.s32 0, %v353
  %v355 = vrot.slane %v287, %v354
  %v357 = vadd.f32 %v347, %v355
  %v358 = vadd.f32 %v348, %v355
  %v359 = vadd.f32 %v349, %v355
  %v360 = vadd.f32 %v350, %v355
  %361 = vst.msk [vmem:[%s9] sm:$0xff] %vm146, %v357
  %362 = vst.msk [vmem:[%s9 + $0x8] sm:$0xff] %vm146, %v358
  %363 = vst.msk [vmem:[%s9 + $0x10] sm:$0xff] %vm146, %v359
  %364 = vst.msk [vmem:[%s9 + $0x18] sm:$0xff] %vm146, %v360
  // Predicated region
  $region38: #{predict_positions.8} parent=0 // pred_check
    _
  $region39: #{predict_positions.8} parent=0 // pred_check_branch
    %366 = sbr.rel (0) target = $region41
  $region40: #{predict_positions.8} parent=0 // pred_region
    _
  $region41: #{predict_positions.8} parent=0 // pred_fallthru
    _
  // Predicated region
  $region42: #{predict_positions.8} parent=0 // pred_check
    _
  $region43: #{predict_positions.8} parent=0 // pred_check_branch
    %368 = sbr.rel (0) target = $region45
  $region44: #{predict_positions.8} parent=0 // pred_region
    _
  $region45: #{predict_positions.8} parent=0 // pred_fallthru
    _

// kernel: predict_positions.11
$region0: #{predict_positions.11}
  #allocation0 [shape = 'u32[]', space=smem, size = 0x4, offset = 0x4, fixed_abs, tag = 'smem constant byte address 0x4 - core index']
  #allocation1 [shape = 'u32[144,128]{1,0:T(1,128)}', space=vmem, size = 0x12000, scoped, tag = 'internal scratch']
  %s0 = inlined_call_operand.vmem [shape: f32[32,32], index: 0, kind: input, shape index: {}]
  %s1 = inlined_call_operand.vmem [shape: f32[32,32], index: 1, kind: input, shape index: {}]
  %s2 = inlined_call_operand.vmem [shape: f32[32,32], index: 2, kind: input, shape index: {}]
  %s3 = inlined_call_operand.vmem [shape: f32[32,32], index: 3, kind: input, shape index: {}]
  %s4 = inlined_call_operand.vmem [shape: f32[32,32], index: 4, kind: input, shape index: {}]
  %s5 = inlined_call_operand.vmem [shape: bf16[96,32], index: 5, kind: input, shape index: {}]
  %s6 = inlined_call_operand.vmem [shape: f32[1,32], index: 6, kind: input, shape index: {}, may-alias: {6,8,10,12,14,16,18,20}]
  %s7 = inlined_call_operand.vmem [shape: bf16[32,32], index: 7, kind: input, shape index: {}]
  %s8 = inlined_call_operand.vmem [shape: f32[1,32], index: 8, kind: input, shape index: {}, may-alias: {6,8,10,12,14,16,18,20}]
  %s9 = inlined_call_operand.vmem [shape: bf16[32,32], index: 9, kind: input, shape index: {}]
  %s10 = inlined_call_operand.vmem [shape: f32[1,32], index: 10, kind: input, shape index: {}, may-alias: {6,8,10,12,14,16,18,20}]
  %s11 = inlined_call_operand.vmem [shape: f32[1,32], index: 11, kind: input, shape index: {}, may-alias: {11,19}]
  %s12 = inlined_call_operand.vmem [shape: f32[1,32], index: 12, kind: input, shape index: {}, may-alias: {6,8,10,12,14,16,18,20}]
  %s13 = inlined_call_operand.vmem [shape: bf16[64,32], index: 13, kind: input, shape index: {}]
  %s14 = inlined_call_operand.vmem [shape: f32[1,32], index: 14, kind: input, shape index: {}, may-alias: {6,8,10,12,14,16,18,20}]
  %s15 = inlined_call_operand.vmem [shape: bf16[32,32], index: 15, kind: input, shape index: {}]
  %s16 = inlined_call_operand.vmem [shape: f32[1,32], index: 16, kind: input, shape index: {}, may-alias: {6,8,10,12,14,16,18,20}]
  %s17 = inlined_call_operand.vmem [shape: bf16[32,32], index: 17, kind: input, shape index: {}]
  %s18 = inlined_call_operand.vmem [shape: f32[1,32], index: 18, kind: input, shape index: {}, may-alias: {6,8,10,12,14,16,18,20}]
  %s19 = inlined_call_operand.vmem [shape: f32[1,32], index: 19, kind: input, shape index: {}, may-alias: {11,19}]
  %s20 = inlined_call_operand.vmem [shape: f32[1,32], index: 20, kind: input, shape index: {}, may-alias: {6,8,10,12,14,16,18,20}]
  %s21 = inlined_call_operand.vmem [shape: f32[32,32], index: 21, kind: output, shape index: {0}]
  %s22 = inlined_call_operand.vmem [shape: f32[32,32], index: 22, kind: output, shape index: {1}]
  %s23 = inlined_call_operand.vmem [shape: f32[32,32], index: 23, kind: output, shape index: {2}]
  %24 = xla_tuple %s21, %s22, %s23
  %s25 = sld [smem:[#allocation0]]
  $region110: #{predict_positions.11} parent=0
    _
  %s27 = ssub.s32 1, %s25
  %s28 = scalar_select 0, %s27, %s25
  // Predicated region
  $region2: #{predict_positions.11} parent=0 // pred_check
    _
  $region3: #{predict_positions.11} parent=0 // pred_check_branch
    %30 = sbr.rel (0) target = $region5
  $region4: #{predict_positions.11} parent=0 // pred_region
    _
  $region5: #{predict_positions.11} parent=0 // pred_fallthru
    _
  // Predicated region
  $region6: #{predict_positions.11} parent=0 // pred_check
    _
  $region7: #{predict_positions.11} parent=0 // pred_check_branch
    %32 = sbr.rel (0) target = $region9
  $region8: #{predict_positions.11} parent=0 // pred_region
    _
  $region9: #{predict_positions.11} parent=0 // pred_fallthru
    _
  // Predicated region
  $region10: #{predict_positions.11} parent=0 // pred_check
    _
  $region11: #{predict_positions.11} parent=0 // pred_check_branch
    %34 = sbr.rel (0) target = $region13
  $region12: #{predict_positions.11} parent=0 // pred_region
    _
  $region13: #{predict_positions.11} parent=0 // pred_fallthru
    _
  // Predicated region
  $region14: #{predict_positions.11} parent=0 // pred_check
    _
  $region15: #{predict_positions.11} parent=0 // pred_check_branch
    %36 = sbr.rel (0) target = $region17
  $region16: #{predict_positions.11} parent=0 // pred_region
    _
  $region17: #{predict_positions.11} parent=0 // pred_fallthru
    _
  // Predicated region
  $region18: #{predict_positions.11} parent=0 // pred_check
    _
  $region19: #{predict_positions.11} parent=0 // pred_check_branch
    %38 = sbr.rel (0) target = $region21
  $region20: #{predict_positions.11} parent=0 // pred_region
    _
  $region21: #{predict_positions.11} parent=0 // pred_fallthru
    _
  // Predicated region
  $region22: #{predict_positions.11} parent=0 // pred_check
    _
  $region23: #{predict_positions.11} parent=0 // pred_check_branch
    %40 = sbr.rel (0) target = $region25
  $region24: #{predict_positions.11} parent=0 // pred_region
    _
  $region25: #{predict_positions.11} parent=0 // pred_fallthru
    _
  // Predicated region
  $region26: #{predict_positions.11} parent=0 // pred_check
    _
  $region27: #{predict_positions.11} parent=0 // pred_check_branch
    %42 = sbr.rel (0) target = $region29
  $region28: #{predict_positions.11} parent=0 // pred_region
    _
  $region29: #{predict_positions.11} parent=0 // pred_fallthru
    _
  // Predicated region
  $region30: #{predict_positions.11} parent=0 // pred_check
    _
  $region31: #{predict_positions.11} parent=0 // pred_check_branch
    %44 = sbr.rel (0) target = $region33
  $region32: #{predict_positions.11} parent=0 // pred_region
    _
  $region33: #{predict_positions.11} parent=0 // pred_fallthru
    _
  // Predicated region
  $region34: #{predict_positions.11} parent=0 // pred_check
    _
  $region35: #{predict_positions.11} parent=0 // pred_check_branch
    %46 = sbr.rel (0) target = $region37
  $region36: #{predict_positions.11} parent=0 // pred_region
    _
  $region37: #{predict_positions.11} parent=0 // pred_fallthru
    _
  // Predicated region
  $region38: #{predict_positions.11} parent=0 // pred_check
    _
  $region39: #{predict_positions.11} parent=0 // pred_check_branch
    %48 = sbr.rel (0) target = $region41
  $region40: #{predict_positions.11} parent=0 // pred_region
    _
  $region41: #{predict_positions.11} parent=0 // pred_fallthru
    _
  // Predicated region
  $region42: #{predict_positions.11} parent=0 // pred_check
    _
  $region43: #{predict_positions.11} parent=0 // pred_check_branch
    %50 = sbr.rel (0) target = $region45
  $region44: #{predict_positions.11} parent=0 // pred_region
    _
  $region45: #{predict_positions.11} parent=0 // pred_fallthru
    _
  // Predicated region
  $region46: #{predict_positions.11} parent=0 // pred_check
    _
  $region47: #{predict_positions.11} parent=0 // pred_check_branch
    %52 = sbr.rel (0) target = $region49
  $region48: #{predict_positions.11} parent=0 // pred_region
    _
  $region49: #{predict_positions.11} parent=0 // pred_fallthru
    _
  // Predicated region
  $region50: #{predict_positions.11} parent=0 // pred_check
    _
  $region51: #{predict_positions.11} parent=0 // pred_check_branch
    %54 = sbr.rel (0) target = $region53
  $region52: #{predict_positions.11} parent=0 // pred_region
    _
  $region53: #{predict_positions.11} parent=0 // pred_fallthru
    _
  // Predicated region
  $region54: #{predict_positions.11} parent=0 // pred_check
    _
  $region55: #{predict_positions.11} parent=0 // pred_check_branch
    %56 = sbr.rel (0) target = $region57
  $region56: #{predict_positions.11} parent=0 // pred_region
    _
  $region57: #{predict_positions.11} parent=0 // pred_fallthru
    _
  // Predicated region
  $region58: #{predict_positions.11} parent=0 // pred_check
    _
  $region59: #{predict_positions.11} parent=0 // pred_check_branch
    %58 = sbr.rel (0) target = $region61
  $region60: #{predict_positions.11} parent=0 // pred_region
    _
  $region61: #{predict_positions.11} parent=0 // pred_fallthru
    _
  // Predicated region
  $region62: #{predict_positions.11} parent=0 // pred_check
    _
  $region63: #{predict_positions.11} parent=0 // pred_check_branch
    %60 = sbr.rel (0) target = $region65
  $region64: #{predict_positions.11} parent=0 // pred_region
    _
  $region65: #{predict_positions.11} parent=0 // pred_fallthru
    _
  // Predicated region
  $region66: #{predict_positions.11} parent=0 // pred_check
    _
  $region67: #{predict_positions.11} parent=0 // pred_check_branch
    %62 = sbr.rel (0) target = $region69
  $region68: #{predict_positions.11} parent=0 // pred_region
    _
  $region69: #{predict_positions.11} parent=0 // pred_fallthru
    _
  // Predicated region
  $region70: #{predict_positions.11} parent=0 // pred_check
    _
  $region71: #{predict_positions.11} parent=0 // pred_check_branch
    %64 = sbr.rel (0) target = $region73
  $region72: #{predict_positions.11} parent=0 // pred_region
    _
  $region73: #{predict_positions.11} parent=0 // pred_fallthru
    _
  // Predicated region
  $region74: #{predict_positions.11} parent=0 // pred_check
    _
  $region75: #{predict_positions.11} parent=0 // pred_check_branch
    %66 = sbr.rel (0) target = $region77
  $region76: #{predict_positions.11} parent=0 // pred_region
    _
  $region77: #{predict_positions.11} parent=0 // pred_fallthru
    _
  // Predicated region
  $region78: #{predict_positions.11} parent=0 // pred_check
    _
  $region79: #{predict_positions.11} parent=0 // pred_check_branch
    %68 = sbr.rel (0) target = $region81
  $region80: #{predict_positions.11} parent=0 // pred_region
    _
  $region81: #{predict_positions.11} parent=0 // pred_fallthru
    _
  // Predicated region
  $region82: #{predict_positions.11} parent=0 // pred_check
    _
  $region83: #{predict_positions.11} parent=0 // pred_check_branch
    %70 = sbr.rel (0) target = $region85
  $region84: #{predict_positions.11} parent=0 // pred_region
    _
  $region85: #{predict_positions.11} parent=0 // pred_fallthru
    _
  %v72 = vld [vmem:[%s0] sm:$0xff]
  %v73 = vld [vmem:[%s0 + $0x8] sm:$0xff]
  %v74 = vld [vmem:[%s0 + $0x10] sm:$0xff]
  %v75 = vld [vmem:[%s0 + $0x18] sm:$0xff]
  %v76 = vpack.c.bf16 %v73, %v72
  %v77 = vpack.c.bf16 %v75, %v74
  %v78 = vld [vmem:[%s1] sm:$0xff]
  %v79 = vld [vmem:[%s1 + $0x8] sm:$0xff]
  %v80 = vld [vmem:[%s1 + $0x10] sm:$0xff]
  %v81 = vld [vmem:[%s1 + $0x18] sm:$0xff]
  %v82 = vpack.c.bf16 %v79, %v78
  %v83 = vpack.c.bf16 %v81, %v80
  %v84 = vld [vmem:[%s2] sm:$0xff]
  %v85 = vld [vmem:[%s2 + $0x8] sm:$0xff]
  %v86 = vld [vmem:[%s2 + $0x10] sm:$0xff]
  %v87 = vld [vmem:[%s2 + $0x18] sm:$0xff]
  %v88 = vpack.c.bf16 %v85, %v84
  %v89 = vpack.c.bf16 %v87, %v86
  %v90 = vld [vmem:[%s3] sm:$0xff]
  %v91 = vld [vmem:[%s3 + $0x8] sm:$0xff]
  %v92 = vld [vmem:[%s3 + $0x10] sm:$0xff]
  %v93 = vld [vmem:[%s3 + $0x18] sm:$0xff]
  %v94 = vld [vmem:[%s4] sm:$0xff]
  %v95 = vld [vmem:[%s4 + $0x8] sm:$0xff]
  %v96 = vld [vmem:[%s4 + $0x10] sm:$0xff]
  %v97 = vld [vmem:[%s4 + $0x18] sm:$0xff]
  %v98 = vpack.c.bf16 %v91, %v90
  %v99 = vpack.c.bf16 %v93, %v92
  %v100 = vld [vmem:[%s6] sm:$0x1]
  %v101 = vld [vmem:[%s5] sm:$0xf]
  %v102 = vld [vmem:[%s5 + $0x4] sm:$0xf]
  %v103 = vld [vmem:[%s5 + $0x8] sm:$0xf]
  %v104 = vld [vmem:[%s5 + $0xc] sm:$0xf]
  %v109 = vunpack.c.l.b16 %v101
  %v110 = vunpack.c.l.b16 %v102
  %v111 = vunpack.c.l.b16 %v103
  %v112 = vunpack.c.l.b16 %v104
  %v113 = vpack.c.b16 %v110, %v109
  %v114 = vpack.c.b16 %v112, %v111
  %vm117 = vcmask 261120
  %v119 = vsel %vm117, %v76, 0
  %v122 = vsel %vm117, %v77, 0
  %124 = vmatprep.subr.bf16.mxu0 0
  %125 = vmatpush1.bf16.msra.mxu0 %v113
  %126 = vmatprep.subr.bf16.mxu0 0
  %127 = vmatpush1.bf16.msra.mxu0 %v114
  %128 = vmatprep.subr.bf16.mxu0 0
  %129 = vmatpush1.bf16.msra.mxu0 0
  %130 = vmatprep.subr.bf16.mxu0 0
  %131 = vmatpush1.bf16.msra.mxu0 0
  %132 = vmatprep.subr.bf16.mxu0 0
  %133 = vmatpush1.bf16.msra.mxu0 0
  %134 = vmatprep.subr.bf16.mxu0 0
  %135 = vmatpush1.bf16.msra.mxu0 0
  %136 = vmatprep.subr.bf16.mxu0 0
  %137 = vmatpush1.bf16.msra.mxu0 0
  %138 = vmatprep.subr.bf16.mxu0 0
  %139 = vmatpush1.bf16.msra.mxu0 0
  %140 = vmatprep.subr.bf16.mxu0 0
  %141 = vmatpush1.bf16.msra.mxu0 0
  %142 = vmatprep.subr.bf16.mxu0 0
  %143 = vmatpush1.bf16.msra.mxu0 0
  %144 = vmatprep.subr.bf16.mxu0 0
  %145 = vmatpush1.bf16.msra.mxu0 0
  %146 = vmatprep.subr.bf16.mxu0 0
  %147 = vmatpush1.bf16.msra.mxu0 0
  %148 = vmatprep.subr.bf16.mxu0 0
  %149 = vmatpush1.bf16.msra.mxu0 0
  %150 = vmatprep.subr.bf16.mxu0 0
  %151 = vmatpush1.bf16.msra.mxu0 0
  %152 = vmatprep.subr.bf16.mxu0 0
  %153 = vmatpush1.bf16.msra.mxu0 0
  %154 = vmatprep.subr.bf16.mxu0 0
  %155 = vmatpush1.bf16.msra.mxu0 0
  %156 = vmatprep.mubr.bf16.mxu0 0
  %157 = vmatmul.mubr.bf16.gmra.mrb[0].mxu0 %v119
  %v158 = vpop.f32.mrb[0].mxu0
  %v159 = vadd.f32 0.0, %v158
  %v160 = vpop.f32.mrb[0].mxu0
  %v161 = vpop.f32.mrb[0].mxu0
  %v162 = vadd.f32 0.0, %v161
  %v163 = vpop.f32.mrb[0].mxu0
  %164 = vmatprep.mubr.bf16.mxu0 0
  %165 = vmatmul.mubr.bf16.gmra.mrb[0].mxu0 %v122
  %v166 = vpop.f32.mrb[0].mxu0
  %v167 = vadd.f32 0.0, %v166
  %v168 = vpop.f32.mrb[0].mxu0
  %v169 = vpop.f32.mrb[0].mxu0
  %v170 = vadd.f32 0.0, %v169
  %v171 = vpop.f32.mrb[0].mxu0
  %172 = vdwg.mxu0
  %v174 = vlaneseq
  %v175 = vshrl.u32 %v174, 7
  %v176 = vsub.s32 0, %v175
  %v177 = vrot.slane %v100, %v176
  %v179 = vadd.f32 %v177, %v159
  %v180 = vadd.f32 %v177, %v162
  %v181 = vadd.f32 %v177, %v167
  %v182 = vadd.f32 %v177, %v170
  %v183 = vld [vmem:[%s5 + $0x10] sm:$0xf]
  %v184 = vld [vmem:[%s5 + $0x14] sm:$0xf]
  %v185 = vld [vmem:[%s5 + $0x18] sm:$0xf]
  %v186 = vld [vmem:[%s5 + $0x1c] sm:$0xf]
  %v191 = vunpack.c.l.b16 %v183
  %v192 = vunpack.c.l.b16 %v184
  %v193 = vunpack.c.l.b16 %v185
  %v194 = vunpack.c.l.b16 %v186
  %v195 = vpack.c.b16 %v192, %v191
  %v196 = vpack.c.b16 %v194, %v193
  %v200 = vsel %vm117, %v82, 0
  %v203 = vsel %vm117, %v83, 0
  %205 = vmatprep.subr.bf16.mxu0 0
  %206 = vmatpush1.bf16.msra.mxu0 %v195
  %207 = vmatprep.subr.bf16.mxu0 0
  %208 = vmatpush1.bf16.msra.mxu0 %v196
  %209 = vmatprep.subr.bf16.mxu0 0
  %210 = vmatpush1.bf16.msra.mxu0 0
  %211 = vmatprep.subr.bf16.mxu0 0
  %212 = vmatpush1.bf16.msra.mxu0 0
  %213 = vmatprep.subr.bf16.mxu0 0
  %214 = vmatpush1.bf16.msra.mxu0 0
  %215 = vmatprep.subr.bf16.mxu0 0
  %216 = vmatpush1.bf16.msra.mxu0 0
  %217 = vmatprep.subr.bf16.mxu0 0
  %218 = vmatpush1.bf16.msra.mxu0 0
  %219 = vmatprep.subr.bf16.mxu0 0
  %220 = vmatpush1.bf16.msra.mxu0 0
  %221 = vmatprep.subr.bf16.mxu0 0
  %222 = vmatpush1.bf16.msra.mxu0 0
  %223 = vmatprep.subr.bf16.mxu0 0
  %224 = vmatpush1.bf16.msra.mxu0 0
  %225 = vmatprep.subr.bf16.mxu0 0
  %226 = vmatpush1.bf16.msra.mxu0 0
  %227 = vmatprep.subr.bf16.mxu0 0
  %228 = vmatpush1.bf16.msra.mxu0 0
  %229 = vmatprep.subr.bf16.mxu0 0
  %230 = vmatpush1.bf16.msra.mxu0 0
  %231 = vmatprep.subr.bf16.mxu0 0
  %232 = vmatpush1.bf16.msra.mxu0 0
  %233 = vmatprep.subr.bf16.mxu0 0
  %234 = vmatpush1.bf16.msra.mxu0 0
  %235 = vmatprep.subr.bf16.mxu0 0
  %236 = vmatpush1.bf16.msra.mxu0 0
  %237 = vmatprep.mubr.bf16.mxu0 0
  %238 = vmatmul.mubr.bf16.gmra.mrb[0].mxu0 %v200
  %v239 = vpop.f32.mrb[0].mxu0
  %v240 = vadd.f32 0.0, %v239
  %v241 = vpop.f32.mrb[0].mxu0
  %v242 = vpop.f32.mrb[0].mxu0
  %v243 = vadd.f32 0.0, %v242
  %v244 = vpop.f32.mrb[0].mxu0
  %245 = vmatprep.mubr.bf16.mxu0 0
  %246 = vmatmul.mubr.bf16.gmra.mrb[0].mxu0 %v203
  %v247 = vpop.f32.mrb[0].mxu0
  %v248 = vadd.f32 0.0, %v247
  %v249 = vpop.f32.mrb[0].mxu0
  %v250 = vpop.f32.mrb[0].mxu0
  %v251 = vadd.f32 0.0, %v250
  %v252 = vpop.f32.mrb[0].mxu0
  %253 = vdwg.mxu0
  %v254 = vadd.f32 %v179, %v240
  %v255 = vadd.f32 %v180, %v243
  %v256 = vadd.f32 %v181, %v248
  %v257 = vadd.f32 %v182, %v251
  %v258 = vld [vmem:[%s5 + $0x20] sm:$0xf]
  %v259 = vld [vmem:[%s5 + $0x24] sm:$0xf]
  %v260 = vld [vmem:[%s5 + $0x28] sm:$0xf]
  %v261 = vld [vmem:[%s5 + $0x2c] sm:$0xf]
  %v266 = vunpack.c.l.b16 %v258
  %v267 = vunpack.c.l.b16 %v259
  %v268 = vunpack.c.l.b16 %v260
  %v269 = vunpack.c.l.b16 %v261
  %v270 = vpack.c.b16 %v267, %v266
  %v271 = vpack.c.b16 %v269, %v268
  %v275 = vsel %vm117, %v98, 0
  %v278 = vsel %vm117, %v99, 0
  %280 = vmatprep.subr.bf16.mxu0 0
  %281 = vmatpush1.bf16.msra.mxu0 %v270
  %282 = vmatprep.subr.bf16.mxu0 0
  %283 = vmatpush1.bf16.msra.mxu0 %v271
  %284 = vmatprep.subr.bf16.mxu0 0
  %285 = vmatpush1.bf16.msra.mxu0 0
  %286 = vmatprep.subr.bf16.mxu0 0
  %287 = vmatpush1.bf16.msra.mxu0 0
  %288 = vmatprep.subr.bf16.mxu0 0
  %289 = vmatpush1.bf16.msra.mxu0 0
  %290 = vmatprep.subr.bf16.mxu0 0
  %291 = vmatpush1.bf16.msra.mxu0 0
  %292 = vmatprep.subr.bf16.mxu0 0
  %293 = vmatpush1.bf16.msra.mxu0 0
  %294 = vmatprep.subr.bf16.mxu0 0
  %295 = vmatpush1.bf16.msra.mxu0 0
  %296 = vmatprep.subr.bf16.mxu0 0
  %297 = vmatpush1.bf16.msra.mxu0 0
  %298 = vmatprep.subr.bf16.mxu0 0
  %299 = vmatpush1.bf16.msra.mxu0 0
  %300 = vmatprep.subr.bf16.mxu0 0
  %301 = vmatpush1.bf16.msra.mxu0 0
  %302 = vmatprep.subr.bf16.mxu0 0
  %303 = vmatpush1.bf16.msra.mxu0 0
  %304 = vmatprep.subr.bf16.mxu0 0
  %305 = vmatpush1.bf16.msra.mxu0 0
  %306 = vmatprep.subr.bf16.mxu0 0
  %307 = vmatpush1.bf16.msra.mxu0 0
  %308 = vmatprep.subr.bf16.mxu0 0
  %309 = vmatpush1.bf16.msra.mxu0 0
  %310 = vmatprep.subr.bf16.mxu0 0
  %311 = vmatpush1.bf16.msra.mxu0 0
  %312 = vmatprep.mubr.bf16.mxu0 0
  %313 = vmatmul.mubr.bf16.gmra.mrb[0].mxu0 %v275
  %v314 = vpop.f32.mrb[0].mxu0
  %v315 = vadd.f32 0.0, %v314
  %v316 = vpop.f32.mrb[0].mxu0
  %v317 = vpop.f32.mrb[0].mxu0
  %v318 = vadd.f32 0.0, %v317
  %v319 = vpop.f32.mrb[0].mxu0
  %320 = vmatprep.mubr.bf16.mxu0 0
  %321 = vmatmul.mubr.bf16.gmra.mrb[0].mxu0 %v278
  %v322 = vpop.f32.mrb[0].mxu0
  %v323 = vadd.f32 0.0, %v322
  %v324 = vpop.f32.mrb[0].mxu0
  %v325 = vpop.f32.mrb[0].mxu0
  %v326 = vadd.f32 0.0, %v325
  %v327 = vpop.f32.mrb[0].mxu0
  %328 = vdwg.mxu0
  %v329 = vadd.f32 %v254, %v315
  %v330 = vadd.f32 %v255, %v318
  %v331 = vadd.f32 %v256, %v323
  %v332 = vadd.f32 %v257, %v326
  %v333 = vmax.f32 %v329, 0.0
  %v334 = vmax.f32 %v330, 0.0
  %v335 = vmax.f32 %v331, 0.0
  %v336 = vmax.f32 %v332, 0.0
  %v337 = vpack.c.bf16 %v334, %v333
  %v338 = vpack.c.bf16 %v336, %v335
  %v339 = vld [vmem:[%s7] sm:$0xf]
  %v340 = vld [vmem:[%s7 + $0x4] sm:$0xf]
  %v341 = vld [vmem:[%s7 + $0x8] sm:$0xf]
  %v342 = vld [vmem:[%s7 + $0xc] sm:$0xf]
  %v343 = vld [vmem:[%s8] sm:$0x1]
  %v345 = vlaneseq
  %v346 = vshrl.u32 %v345, 7
  %v347 = vsub.s32 0, %v346
  %v348 = vrot.slane %v343, %v347
  %v354 = vunpack.c.l.b16 %v339
  %v355 = vunpack.c.l.b16 %v340
  %v356 = vunpack.c.l.b16 %v341
  %v357 = vunpack.c.l.b16 %v342
  %v358 = vpack.c.b16 %v355, %v354
  %v359 = vpack.c.b16 %v357, %v356
  %v363 = vsel %vm117, %v337, 0
  %v366 = vsel %vm117, %v338, 0
  %368 = vmatprep.subr.bf16.mxu0 0
  %369 = vmatpush1.bf16.msra.mxu0 %v358
  %370 = vmatprep.subr.bf16.mxu0 0
  %371 = vmatpush1.bf16.msra.mxu0 %v359
  %372 = vmatprep.subr.bf16.mxu0 0
  %373 = vmatpush1.bf16.msra.mxu0 0
  %374 = vmatprep.subr.bf16.mxu0 0
  %375 = vmatpush1.bf16.msra.mxu0 0
  %376 = vmatprep.subr.bf16.mxu0 0
  %377 = vmatpush1.bf16.msra.mxu0 0
  %378 = vmatprep.subr.bf16.mxu0 0
  %379 = vmatpush1.bf16.msra.mxu0 0
  %380 = vmatprep.subr.bf16.mxu0 0
  %381 = vmatpush1.bf16.msra.mxu0 0
  %382 = vmatprep.subr.bf16.mxu0 0
  %383 = vmatpush1.bf16.msra.mxu0 0
  %384 = vmatprep.subr.bf16.mxu0 0
  %385 = vmatpush1.bf16.msra.mxu0 0
  %386 = vmatprep.subr.bf16.mxu0 0
  %387 = vmatpush1.bf16.msra.mxu0 0
  %388 = vmatprep.subr.bf16.mxu0 0
  %389 = vmatpush1.bf16.msra.mxu0 0
  %390 = vmatprep.subr.bf16.mxu0 0
  %391 = vmatpush1.bf16.msra.mxu0 0
  %392 = vmatprep.subr.bf16.mxu0 0
  %393 = vmatpush1.bf16.msra.mxu0 0
  %394 = vmatprep.subr.bf16.mxu0 0
  %395 = vmatpush1.bf16.msra.mxu0 0
  %396 = vmatprep.subr.bf16.mxu0 0
  %397 = vmatpush1.bf16.msra.mxu0 0
  %398 = vmatprep.subr.bf16.mxu0 0
  %399 = vmatpush1.bf16.msra.mxu0 0
  %400 = vmatprep.mubr.bf16.mxu0 0
  %401 = vmatmul.mubr.bf16.gmra.mrb[0].mxu0 %v363
  %v402 = vpop.f32.mrb[0].mxu0
  %v403 = vadd.f32 %v348, %v402
  %v404 = vpop.f32.mrb[0].mxu0
  %v405 = vpop.f32.mrb[0].mxu0
  %v406 = vadd.f32 %v348, %v405
  %v407 = vpop.f32.mrb[0].mxu0
  %408 = vmatprep.mubr.bf16.mxu0 0
  %409 = vmatmul.mubr.bf16.gmra.mrb[0].mxu0 %v366
  %v410 = vpop.f32.mrb[0].mxu0
  %v411 = vadd.f32 %v348, %v410
  %v412 = vpop.f32.mrb[0].mxu0
  %v413 = vpop.f32.mrb[0].mxu0
  %v414 = vadd.f32 %v348, %v413
  %v415 = vpop.f32.mrb[0].mxu0
  %416 = vdwg.mxu0
  %v417 = vmax.f32 %v403, 0.0
  %v418 = vmax.f32 %v406, 0.0
  %v419 = vmax.f32 %v411, 0.0
  %v420 = vmax.f32 %v414, 0.0
  %v421 = vpack.c.bf16 %v418, %v417
  %v422 = vpack.c.bf16 %v420, %v419
  %v423 = vld [vmem:[%s9] sm:$0xf]
  %v424 = vld [vmem:[%s9 + $0x4] sm:$0xf]
  %v425 = vld [vmem:[%s9 + $0x8] sm:$0xf]
  %v426 = vld [vmem:[%s9 + $0xc] sm:$0xf]
  %v427 = vld [vmem:[%s10] sm:$0x1]
  %v429 = vlaneseq
  %v430 = vshrl.u32 %v429, 7
  %v431 = vsub.s32 0, %v430
  %v432 = vrot.slane %v427, %v431
  %v438 = vunpack.c.l.b16 %v423
  %v439 = vunpack.c.l.b16 %v424
  %v440 = vunpack.c.l.b16 %v425
  %v441 = vunpack.c.l.b16 %v426
  %v442 = vpack.c.b16 %v439, %v438
  %v443 = vpack.c.b16 %v441, %v440
  %v447 = vsel %vm117, %v421, 0
  %v450 = vsel %vm117, %v422, 0
  %452 = vmatprep.subr.bf16.mxu0 0
  %453 = vmatpush1.bf16.msra.mxu0 %v442
  %454 = vmatprep.subr.bf16.mxu0 0
  %455 = vmatpush1.bf16.msra.mxu0 %v443
  %456 = vmatprep.subr.bf16.mxu0 0
  %457 = vmatpush1.bf16.msra.mxu0 0
  %458 = vmatprep.subr.bf16.mxu0 0
  %459 = vmatpush1.bf16.msra.mxu0 0
  %460 = vmatprep.subr.bf16.mxu0 0
  %461 = vmatpush1.bf16.msra.mxu0 0
  %462 = vmatprep.subr.bf16.mxu0 0
  %463 = vmatpush1.bf16.msra.mxu0 0
  %464 = vmatprep.subr.bf16.mxu0 0
  %465 = vmatpush1.bf16.msra.mxu0 0
  %466 = vmatprep.subr.bf16.mxu0 0
  %467 = vmatpush1.bf16.msra.mxu0 0
  %468 = vmatprep.subr.bf16.mxu0 0
  %469 = vmatpush1.bf16.msra.mxu0 0
  %470 = vmatprep.subr.bf16.mxu0 0
  %471 = vmatpush1.bf16.msra.mxu0 0
  %472 = vmatprep.subr.bf16.mxu0 0
  %473 = vmatpush1.bf16.msra.mxu0 0
  %474 = vmatprep.subr.bf16.mxu0 0
  %475 = vmatpush1.bf16.msra.mxu0 0
  %476 = vmatprep.subr.bf16.mxu0 0
  %477 = vmatpush1.bf16.msra.mxu0 0
  %478 = vmatprep.subr.bf16.mxu0 0
  %479 = vmatpush1.bf16.msra.mxu0 0
  %480 = vmatprep.subr.bf16.mxu0 0
  %481 = vmatpush1.bf16.msra.mxu0 0
  %482 = vmatprep.subr.bf16.mxu0 0
  %483 = vmatpush1.bf16.msra.mxu0 0
  %484 = vmatprep.mubr.bf16.mxu0 0
  %485 = vmatmul.mubr.bf16.gmra.mrb[0].mxu0 %v447
  %v486 = vpop.f32.mrb[0].mxu0
  %v487 = vadd.f32 %v432, %v486
  %v488 = vpop.f32.mrb[0].mxu0
  %v489 = vpop.f32.mrb[0].mxu0
  %v490 = vadd.f32 %v432, %v489
  %v491 = vpop.f32.mrb[0].mxu0
  %492 = vmatprep.mubr.bf16.mxu0 0
  %493 = vmatmul.mubr.bf16.gmra.mrb[0].mxu0 %v450
  %v494 = vpop.f32.mrb[0].mxu0
  %v495 = vadd.f32 %v432, %v494
  %v496 = vpop.f32.mrb[0].mxu0
  %v497 = vpop.f32.mrb[0].mxu0
  %v498 = vadd.f32 %v432, %v497
  %v499 = vpop.f32.mrb[0].mxu0
  %500 = vdwg.mxu0
  %v501 = vld [vmem:[%s11] sm:$0x1]
  %v502 = vld [vmem:[%s12] sm:$0x1]
  %v503 = vsel %vm117, %v487, 0.0
  %504 = vadd.xlane.f32.xlu0 %v503
  %v505 = vpop.xlane.xlu0 %504
  %v506 = vsel %vm117, %v490, 0.0
  %507 = vadd.xlane.f32.xlu0 %v506
  %v508 = vpop.xlane.xlu0 %507
  %v509 = vsel %vm117, %v495, 0.0
  %510 = vadd.xlane.f32.xlu0 %v509
  %v511 = vpop.xlane.xlu0 %510
  %v512 = vsel %vm117, %v498, 0.0
  %513 = vadd.xlane.f32.xlu0 %v512
  %v514 = vpop.xlane.xlu0 %513
  %v515 = vrcp.pop 32.0
  %v516 = vmul.f32 %v505, %v515
  %v517 = vmul.f32 %v508, %v515
  %v518 = vmul.f32 %v511, %v515
  %v519 = vmul.f32 %v514, %v515
  %v520 = vsub.f32 %v487, %v516
  %v521 = vsub.f32 %v490, %v517
  %v522 = vsub.f32 %v495, %v518
  %v523 = vsub.f32 %v498, %v519
  %v524 = vmul.f32 %v520, %v520
  %v525 = vmul.f32 %v521, %v521
  %v526 = vmul.f32 %v522, %v522
  %v527 = vmul.f32 %v523, %v523
  %v528 = vsel %vm117, %v524, 0.0
  %529 = vadd.xlane.f32.xlu0 %v528
  %v530 = vpop.xlane.xlu0 %529
  %v531 = vsel %vm117, %v525, 0.0
  %532 = vadd.xlane.f32.xlu0 %v531
  %v533 = vpop.xlane.xlu0 %532
  %v534 = vsel %vm117, %v526, 0.0
  %535 = vadd.xlane.f32.xlu0 %v534
  %v536 = vpop.xlane.xlu0 %535
  %v537 = vsel %vm117, %v527, 0.0
  %538 = vadd.xlane.f32.xlu0 %v537
  %v539 = vpop.xlane.xlu0 %538
  %v540 = vmul.f32 %v530, %v515
  %v541 = vmul.f32 %v533, %v515
  %v542 = vmul.f32 %v536, %v515
  %v543 = vmul.f32 %v539, %v515
  %v544 = vadd.f32 %v540, 1e-05
  %v545 = vadd.f32 %v541, 1e-05
  %v546 = vadd.f32 %v542, 1e-05
  %v547 = vadd.f32 %v543, 1e-05
  %v548 = vrsqrt.pop %v544
  %v549 = vrsqrt.pop %v545
  %v550 = vrsqrt.pop %v546
  %v551 = vrsqrt.pop %v547
  %v552 = vmul.f32 %v520, %v548
  %v553 = vmul.f32 %v521, %v549
  %v554 = vmul.f32 %v522, %v550
  %v555 = vmul.f32 %v523, %v551
  %v557 = vlaneseq
  %v558 = vshrl.u32 %v557, 7
  %v559 = vsub.s32 0, %v558
  %v560 = vrot.slane %v501, %v559
  %v562 = vmul.f32 %v552, %v560
  %v563 = vmul.f32 %v553, %v560
  %v564 = vmul.f32 %v554, %v560
  %v565 = vmul.f32 %v555, %v560
  %v567 = vlaneseq
  %v568 = vshrl.u32 %v567, 7
  %v569 = vsub.s32 0, %v568
  %v570 = vrot.slane %v502, %v569
  %v572 = vadd.f32 %v562, %v570
  %v573 = vadd.f32 %v563, %v570
  %v574 = vadd.f32 %v564, %v570
  %v575 = vadd.f32 %v565, %v570
  %v576 = vpack.c.bf16 %v95, %v94
  %v577 = vpack.c.bf16 %v97, %v96
  %v579 = vsel %vm117, %v88, 0
  %v582 = vsel %vm117, %v89, 0
  %584 = vmatprep.subr.bf16.mxu0 0
  %585 = vmatpush1.bf16.msra.mxu0 %v195
  %586 = vmatprep.subr.bf16.mxu0 0
  %587 = vmatpush1.bf16.msra.mxu0 %v196
  %588 = vmatprep.subr.bf16.mxu0 0
  %589 = vmatpush1.bf16.msra.mxu0 0
  %590 = vmatprep.subr.bf16.mxu0 0
  %591 = vmatpush1.bf16.msra.mxu0 0
  %592 = vmatprep.subr.bf16.mxu0 0
  %593 = vmatpush1.bf16.msra.mxu0 0
  %594 = vmatprep.subr.bf16.mxu0 0
  %595 = vmatpush1.bf16.msra.mxu0 0
  %596 = vmatprep.subr.bf16.mxu0 0
  %597 = vmatpush1.bf16.msra.mxu0 0
  %598 = vmatprep.subr.bf16.mxu0 0
  %599 = vmatpush1.bf16.msra.mxu0 0
  %600 = vmatprep.subr.bf16.mxu0 0
  %601 = vmatpush1.bf16.msra.mxu0 0
  %602 = vmatprep.subr.bf16.mxu0 0
  %603 = vmatpush1.bf16.msra.mxu0 0
  %604 = vmatprep.subr.bf16.mxu0 0
  %605 = vmatpush1.bf16.msra.mxu0 0
  %606 = vmatprep.subr.bf16.mxu0 0
  %607 = vmatpush1.bf16.msra.mxu0 0
  %608 = vmatprep.subr.bf16.mxu0 0
  %609 = vmatpush1.bf16.msra.mxu0 0
  %610 = vmatprep.subr.bf16.mxu0 0
  %611 = vmatpush1.bf16.msra.mxu0 0
  %612 = vmatprep.subr.bf16.mxu0 0
  %613 = vmatpush1.bf16.msra.mxu0 0
  %614 = vmatprep.subr.bf16.mxu0 0
  %615 = vmatpush1.bf16.msra.mxu0 0
  %616 = vmatprep.mubr.bf16.mxu0 0
  %617 = vmatmul.mubr.bf16.gmra.mrb[0].mxu0 %v579
  %v618 = vpop.f32.mrb[0].mxu0
  %v619 = vadd.f32 0.0, %v618
  %v620 = vpop.f32.mrb[0].mxu0
  %v621 = vpop.f32.mrb[0].mxu0
  %v622 = vadd.f32 0.0, %v621
  %v623 = vpop.f32.mrb[0].mxu0
  %624 = vmatprep.mubr.bf16.mxu0 0
  %625 = vmatmul.mubr.bf16.gmra.mrb[0].mxu0 %v582
  %v626 = vpop.f32.mrb[0].mxu0
  %v627 = vadd.f32 0.0, %v626
  %v628 = vpop.f32.mrb[0].mxu0
  %v629 = vpop.f32.mrb[0].mxu0
  %v630 = vadd.f32 0.0, %v629
  %v631 = vpop.f32.mrb[0].mxu0
  %632 = vdwg.mxu0
  %v633 = vadd.f32 %v179, %v619
  %v634 = vadd.f32 %v180, %v622
  %v635 = vadd.f32 %v181, %v627
  %v636 = vadd.f32 %v182, %v630
  %v638 = vsel %vm117, %v576, 0
  %v641 = vsel %vm117, %v577, 0
  %643 = vmatprep.subr.bf16.mxu0 0
  %644 = vmatpush1.bf16.msra.mxu0 %v270
  %645 = vmatprep.subr.bf16.mxu0 0
  %646 = vmatpush1.bf16.msra.mxu0 %v271
  %647 = vmatprep.subr.bf16.mxu0 0
  %648 = vmatpush1.bf16.msra.mxu0 0
  %649 = vmatprep.subr.bf16.mxu0 0
  %650 = vmatpush1.bf16.msra.mxu0 0
  %651 = vmatprep.subr.bf16.mxu0 0
  %652 = vmatpush1.bf16.msra.mxu0 0
  %653 = vmatprep.subr.bf16.mxu0 0
  %654 = vmatpush1.bf16.msra.mxu0 0
  %655 = vmatprep.subr.bf16.mxu0 0
  %656 = vmatpush1.bf16.msra.mxu0 0
  %657 = vmatprep.subr.bf16.mxu0 0
  %658 = vmatpush1.bf16.msra.mxu0 0
  %659 = vmatprep.subr.bf16.mxu0 0
  %660 = vmatpush1.bf16.msra.mxu0 0
  %661 = vmatprep.subr.bf16.mxu0 0
  %662 = vmatpush1.bf16.msra.mxu0 0
  %663 = vmatprep.subr.bf16.mxu0 0
  %664 = vmatpush1.bf16.msra.mxu0 0
  %665 = vmatprep.subr.bf16.mxu0 0
  %666 = vmatpush1.bf16.msra.mxu0 0
  %667 = vmatprep.subr.bf16.mxu0 0
  %668 = vmatpush1.bf16.msra.mxu0 0
  %669 = vmatprep.subr.bf16.mxu0 0
  %670 = vmatpush1.bf16.msra.mxu0 0
  %671 = vmatprep.subr.bf16.mxu0 0
  %672 = vmatpush1.bf16.msra.mxu0 0
  %673 = vmatprep.subr.bf16.mxu0 0
  %674 = vmatpush1.bf16.msra.mxu0 0
  %675 = vmatprep.mubr.bf16.mxu0 0
  %676 = vmatmul.mubr.bf16.gmra.mrb[0].mxu0 %v638
  %v677 = vpop.f32.mrb[0].mxu0
  %v678 = vadd.f32 0.0, %v677
  %v679 = vpop.f32.mrb[0].mxu0
  %v680 = vpop.f32.mrb[0].mxu0
  %v681 = vadd.f32 0.0, %v680
  %v682 = vpop.f32.mrb[0].mxu0
  %683 = vmatprep.mubr.bf16.mxu0 0
  %684 = vmatmul.mubr.bf16.gmra.mrb[0].mxu0 %v641
  %v685 = vpop.f32.mrb[0].mxu0
  %v686 = vadd.f32 0.0, %v685
  %v687 = vpop.f32.mrb[0].mxu0
  %v688 = vpop.f32.mrb[0].mxu0
  %v689 = vadd.f32 0.0, %v688
  %v690 = vpop.f32.mrb[0].mxu0
  %691 = vdwg.mxu0
  %v692 = vadd.f32 %v633, %v678
  %v693 = vadd.f32 %v634, %v681
  %v694 = vadd.f32 %v635, %v686
  %v695 = vadd.f32 %v636, %v689
  %v696 = vmax.f32 %v692, 0.0
  %v697 = vmax.f32 %v693, 0.0
  %v698 = vmax.f32 %v694, 0.0
  %v699 = vmax.f32 %v695, 0.0
  %v700 = vpack.c.bf16 %v697, %v696
  %v701 = vpack.c.bf16 %v699, %v698
  %v703 = vsel %vm117, %v700, 0
  %v706 = vsel %vm117, %v701, 0
  %708 = vmatprep.subr.bf16.mxu0 0
  %709 = vmatpush1.bf16.msra.mxu0 %v358
  %710 = vmatprep.subr.bf16.mxu0 0
  %711 = vmatpush1.bf16.msra.mxu0 %v359
  %712 = vmatprep.subr.bf16.mxu0 0
  %713 = vmatpush1.bf16.msra.mxu0 0
  %714 = vmatprep.subr.bf16.mxu0 0
  %715 = vmatpush1.bf16.msra.mxu0 0
  %716 = vmatprep.subr.bf16.mxu0 0
  %717 = vmatpush1.bf16.msra.mxu0 0
  %718 = vmatprep.subr.bf16.mxu0 0
  %719 = vmatpush1.bf16.msra.mxu0 0
  %720 = vmatprep.subr.bf16.mxu0 0
  %721 = vmatpush1.bf16.msra.mxu0 0
  %722 = vmatprep.subr.bf16.mxu0 0
  %723 = vmatpush1.bf16.msra.mxu0 0
  %724 = vmatprep.subr.bf16.mxu0 0
  %725 = vmatpush1.bf16.msra.mxu0 0
  %726 = vmatprep.subr.bf16.mxu0 0
  %727 = vmatpush1.bf16.msra.mxu0 0
  %728 = vmatprep.subr.bf16.mxu0 0
  %729 = vmatpush1.bf16.msra.mxu0 0
  %730 = vmatprep.subr.bf16.mxu0 0
  %731 = vmatpush1.bf16.msra.mxu0 0
  %732 = vmatprep.subr.bf16.mxu0 0
  %733 = vmatpush1.bf16.msra.mxu0 0
  %734 = vmatprep.subr.bf16.mxu0 0
  %735 = vmatpush1.bf16.msra.mxu0 0
  %736 = vmatprep.subr.bf16.mxu0 0
  %737 = vmatpush1.bf16.msra.mxu0 0
  %738 = vmatprep.subr.bf16.mxu0 0
  %739 = vmatpush1.bf16.msra.mxu0 0
  %740 = vmatprep.mubr.bf16.mxu0 0
  %741 = vmatmul.mubr.bf16.gmra.mrb[0].mxu0 %v703
  %v742 = vpop.f32.mrb[0].mxu0
  %v743 = vadd.f32 %v348, %v742
  %v744 = vpop.f32.mrb[0].mxu0
  %v745 = vpop.f32.mrb[0].mxu0
  %v746 = vadd.f32 %v348, %v745
  %v747 = vpop.f32.mrb[0].mxu0
  %748 = vmatprep.mubr.bf16.mxu0 0
  %749 = vmatmul.mubr.bf16.gmra.mrb[0].mxu0 %v706
  %v750 = vpop.f32.mrb[0].mxu0
  %v751 = vadd.f32 %v348, %v750
  %v752 = vpop.f32.mrb[0].mxu0
  %v753 = vpop.f32.mrb[0].mxu0
  %v754 = vadd.f32 %v348, %v753
  %v755 = vpop.f32.mrb[0].mxu0
  %756 = vdwg.mxu0
  %v757 = vmax.f32 %v743, 0.0
  %v758 = vmax.f32 %v746, 0.0
  %v759 = vmax.f32 %v751, 0.0
  %v760 = vmax.f32 %v754, 0.0
  %v761 = vpack.c.bf16 %v758, %v757
  %v762 = vpack.c.bf16 %v760, %v759
  %v764 = vsel %vm117, %v761, 0
  %v767 = vsel %vm117, %v762, 0
  %769 = vmatprep.subr.bf16.mxu0 0
  %770 = vmatpush1.bf16.msra.mxu0 %v442
  %771 = vmatprep.subr.bf16.mxu0 0
  %772 = vmatpush1.bf16.msra.mxu0 %v443
  %773 = vmatprep.subr.bf16.mxu0 0
  %774 = vmatpush1.bf16.msra.mxu0 0
  %775 = vmatprep.subr.bf16.mxu0 0
  %776 = vmatpush1.bf16.msra.mxu0 0
  %777 = vmatprep.subr.bf16.mxu0 0
  %778 = vmatpush1.bf16.msra.mxu0 0
  %779 = vmatprep.subr.bf16.mxu0 0
  %780 = vmatpush1.bf16.msra.mxu0 0
  %781 = vmatprep.subr.bf16.mxu0 0
  %782 = vmatpush1.bf16.msra.mxu0 0
  %783 = vmatprep.subr.bf16.mxu0 0
  %784 = vmatpush1.bf16.msra.mxu0 0
  %785 = vmatprep.subr.bf16.mxu0 0
  %786 = vmatpush1.bf16.msra.mxu0 0
  %787 = vmatprep.subr.bf16.mxu0 0
  %788 = vmatpush1.bf16.msra.mxu0 0
  %789 = vmatprep.subr.bf16.mxu0 0
  %790 = vmatpush1.bf16.msra.mxu0 0
  %791 = vmatprep.subr.bf16.mxu0 0
  %792 = vmatpush1.bf16.msra.mxu0 0
  %793 = vmatprep.subr.bf16.mxu0 0
  %794 = vmatpush1.bf16.msra.mxu0 0
  %795 = vmatprep.subr.bf16.mxu0 0
  %796 = vmatpush1.bf16.msra.mxu0 0
  %797 = vmatprep.subr.bf16.mxu0 0
  %798 = vmatpush1.bf16.msra.mxu0 0
  %799 = vmatprep.subr.bf16.mxu0 0
  %800 = vmatpush1.bf16.msra.mxu0 0
  %801 = vmatprep.mubr.bf16.mxu0 0
  %802 = vmatmul.mubr.bf16.gmra.mrb[0].mxu0 %v764
  %v803 = vpop.f32.mrb[0].mxu0
  %v804 = vadd.f32 %v432, %v803
  %v805 = vpop.f32.mrb[0].mxu0
  %v806 = vpop.f32.mrb[0].mxu0
  %v807 = vadd.f32 %v432, %v806
  %v808 = vpop.f32.mrb[0].mxu0
  %809 = vmatprep.mubr.bf16.mxu0 0
  %810 = vmatmul.mubr.bf16.gmra.mrb[0].mxu0 %v767
  %v811 = vpop.f32.mrb[0].mxu0
  %v812 = vadd.f32 %v432, %v811
  %v813 = vpop.f32.mrb[0].mxu0
  %v814 = vpop.f32.mrb[0].mxu0
  %v815 = vadd.f32 %v432, %v814
  %v816 = vpop.f32.mrb[0].mxu0
  %817 = vdwg.mxu0
  %v818 = vsel %vm117, %v804, 0.0
  %819 = vadd.xlane.f32.xlu0 %v818
  %v820 = vpop.xlane.xlu0 %819
  %v821 = vsel %vm117, %v807, 0.0
  %822 = vadd.xlane.f32.xlu0 %v821
  %v823 = vpop.xlane.xlu0 %822
  %v824 = vsel %vm117, %v812, 0.0
  %825 = vadd.xlane.f32.xlu0 %v824
  %v826 = vpop.xlane.xlu0 %825
  %v827 = vsel %vm117, %v815, 0.0
  %828 = vadd.xlane.f32.xlu0 %v827
  %v829 = vpop.xlane.xlu0 %828
  %v830 = vmul.f32 %v820, %v515
  %v831 = vmul.f32 %v823, %v515
  %v832 = vmul.f32 %v826, %v515
  %v833 = vmul.f32 %v829, %v515
  %v834 = vsub.f32 %v804, %v830
  %v835 = vsub.f32 %v807, %v831
  %v836 = vsub.f32 %v812, %v832
  %v837 = vsub.f32 %v815, %v833
  %v838 = vmul.f32 %v834, %v834
  %v839 = vmul.f32 %v835, %v835
  %v840 = vmul.f32 %v836, %v836
  %v841 = vmul.f32 %v837, %v837
  %v842 = vsel %vm117, %v838, 0.0
  %843 = vadd.xlane.f32.xlu0 %v842
  %v844 = vpop.xlane.xlu0 %843
  %v845 = vsel %vm117, %v839, 0.0
  %846 = vadd.xlane.f32.xlu0 %v845
  %v847 = vpop.xlane.xlu0 %846
  %v848 = vsel %vm117, %v840, 0.0
  %849 = vadd.xlane.f32.xlu0 %v848
  %v850 = vpop.xlane.xlu0 %849
  %v851 = vsel %vm117, %v841, 0.0
  %852 = vadd.xlane.f32.xlu0 %v851
  %v853 = vpop.xlane.xlu0 %852
  %v854 = vmul.f32 %v844, %v515
  %v855 = vmul.f32 %v847, %v515
  %v856 = vmul.f32 %v850, %v515
  %v857 = vmul.f32 %v853, %v515
  %v858 = vadd.f32 %v854, 1e-05
  %v859 = vadd.f32 %v855, 1e-05
  %v860 = vadd.f32 %v856, 1e-05
  %v861 = vadd.f32 %v857, 1e-05
  %v862 = vrsqrt.pop %v858
  %v863 = vrsqrt.pop %v859
  %v864 = vrsqrt.pop %v860
  %v865 = vrsqrt.pop %v861
  %v866 = vmul.f32 %v834, %v862
  %v867 = vmul.f32 %v835, %v863
  %v868 = vmul.f32 %v836, %v864
  %v869 = vmul.f32 %v837, %v865
  %v870 = vmul.f32 %v866, %v560
  %v871 = vmul.f32 %v867, %v560
  %v872 = vmul.f32 %v868, %v560
  %v873 = vmul.f32 %v869, %v560
  %v874 = vadd.f32 %v870, %v570
  %v875 = vadd.f32 %v871, %v570
  %v876 = vadd.f32 %v872, %v570
  %v877 = vadd.f32 %v873, %v570
  %v878 = vadd.f32 %v572, %v90
  %v879 = vadd.f32 %v573, %v91
  %v880 = vadd.f32 %v574, %v92
  %v881 = vadd.f32 %v575, %v93
  %882 = vst.msk [vmem:[%s22] sm:$0xff] %vm117, %v878
  %883 = vst.msk [vmem:[%s22 + $0x8] sm:$0xff] %vm117, %v879
  %884 = vst.msk [vmem:[%s22 + $0x10] sm:$0xff] %vm117, %v880
  %885 = vst.msk [vmem:[%s22 + $0x18] sm:$0xff] %vm117, %v881
  %v886 = vadd.f32 %v874, %v94
  %v887 = vadd.f32 %v875, %v95
  %v888 = vadd.f32 %v876, %v96
  %v889 = vadd.f32 %v877, %v97
  %890 = vst.msk [vmem:[%s23] sm:$0xff] %vm117, %v886
  %891 = vst.msk [vmem:[%s23 + $0x8] sm:$0xff] %vm117, %v887
  %892 = vst.msk [vmem:[%s23 + $0x10] sm:$0xff] %vm117, %v888
  %893 = vst.msk [vmem:[%s23 + $0x18] sm:$0xff] %vm117, %v889
  %v894 = vadd.f32 %v572, %v874
  %v895 = vadd.f32 %v573, %v875
  %v896 = vadd.f32 %v574, %v876
  %v897 = vadd.f32 %v575, %v877
  %v898 = vpack.c.bf16 %v895, %v894
  %v899 = vpack.c.bf16 %v897, %v896
  %v900 = vld [vmem:[%s14] sm:$0x1]
  %v901 = vld [vmem:[%s13] sm:$0xf]
  %v902 = vld [vmem:[%s13 + $0x4] sm:$0xf]
  %v903 = vld [vmem:[%s13 + $0x8] sm:$0xf]
  %v904 = vld [vmem:[%s13 + $0xc] sm:$0xf]
  %v909 = vunpack.c.l.b16 %v901
  %v910 = vunpack.c.l.b16 %v902
  %v911 = vunpack.c.l.b16 %v903
  %v912 = vunpack.c.l.b16 %v904
  %v913 = vpack.c.b16 %v910, %v909
  %v914 = vpack.c.b16 %v912, %v911
  %v918 = vsel %vm117, %v898, 0
  %v921 = vsel %vm117, %v899, 0
  %923 = vmatprep.subr.bf16.mxu0 0
  %924 = vmatpush1.bf16.msra.mxu0 %v913
  %925 = vmatprep.subr.bf16.mxu0 0
  %926 = vmatpush1.bf16.msra.mxu0 %v914
  %927 = vmatprep.subr.bf16.mxu0 0
  %928 = vmatpush1.bf16.msra.mxu0 0
  %929 = vmatprep.subr.bf16.mxu0 0
  %930 = vmatpush1.bf16.msra.mxu0 0
  %931 = vmatprep.subr.bf16.mxu0 0
  %932 = vmatpush1.bf16.msra.mxu0 0
  %933 = vmatprep.subr.bf16.mxu0 0
  %934 = vmatpush1.bf16.msra.mxu0 0
  %935 = vmatprep.subr.bf16.mxu0 0
  %936 = vmatpush1.bf16.msra.mxu0 0
  %937 = vmatprep.subr.bf16.mxu0 0
  %938 = vmatpush1.bf16.msra.mxu0 0
  %939 = vmatprep.subr.bf16.mxu0 0
  %940 = vmatpush1.bf16.msra.mxu0 0
  %941 = vmatprep.subr.bf16.mxu0 0
  %942 = vmatpush1.bf16.msra.mxu0 0
  %943 = vmatprep.subr.bf16.mxu0 0
  %944 = vmatpush1.bf16.msra.mxu0 0
  %945 = vmatprep.subr.bf16.mxu0 0
  %946 = vmatpush1.bf16.msra.mxu0 0
  %947 = vmatprep.subr.bf16.mxu0 0
  %948 = vmatpush1.bf16.msra.mxu0 0
  %949 = vmatprep.subr.bf16.mxu0 0
  %950 = vmatpush1.bf16.msra.mxu0 0
  %951 = vmatprep.subr.bf16.mxu0 0
  %952 = vmatpush1.bf16.msra.mxu0 0
  %953 = vmatprep.subr.bf16.mxu0 0
  %954 = vmatpush1.bf16.msra.mxu0 0
  %955 = vmatprep.mubr.bf16.mxu0 0
  %956 = vmatmul.mubr.bf16.gmra.mrb[0].mxu0 %v918
  %v957 = vpop.f32.mrb[0].mxu0
  %v958 = vadd.f32 0.0, %v957
  %v959 = vpop.f32.mrb[0].mxu0
  %v960 = vpop.f32.mrb[0].mxu0
  %v961 = vadd.f32 0.0, %v960
  %v962 = vpop.f32.mrb[0].mxu0
  %963 = vmatprep.mubr.bf16.mxu0 0
  %964 = vmatmul.mubr.bf16.gmra.mrb[0].mxu0 %v921
  %v965 = vpop.f32.mrb[0].mxu0
  %v966 = vadd.f32 0.0, %v965
  %v967 = vpop.f32.mrb[0].mxu0
  %v968 = vpop.f32.mrb[0].mxu0
  %v969 = vadd.f32 0.0, %v968
  %v970 = vpop.f32.mrb[0].mxu0
  %971 = vdwg.mxu0
  %v973 = vlaneseq
  %v974 = vshrl.u32 %v973, 7
  %v975 = vsub.s32 0, %v974
  %v976 = vrot.slane %v900, %v975
  %v978 = vadd.f32 %v976, %v958
  %v979 = vadd.f32 %v976, %v961
  %v980 = vadd.f32 %v976, %v966
  %v981 = vadd.f32 %v976, %v969
  %v982 = vld [vmem:[%s13 + $0x10] sm:$0xf]
  %v983 = vld [vmem:[%s13 + $0x14] sm:$0xf]
  %v984 = vld [vmem:[%s13 + $0x18] sm:$0xf]
  %v985 = vld [vmem:[%s13 + $0x1c] sm:$0xf]
  %v990 = vunpack.c.l.b16 %v982
  %v991 = vunpack.c.l.b16 %v983
  %v992 = vunpack.c.l.b16 %v984
  %v993 = vunpack.c.l.b16 %v985
  %v994 = vpack.c.b16 %v991, %v990
  %v995 = vpack.c.b16 %v993, %v992
  %998 = vmatprep.subr.bf16.mxu0 0
  %999 = vmatpush1.bf16.msra.mxu0 %v994
  %1000 = vmatprep.subr.bf16.mxu0 0
  %1001 = vmatpush1.bf16.msra.mxu0 %v995
  %1002 = vmatprep.subr.bf16.mxu0 0
  %1003 = vmatpush1.bf16.msra.mxu0 0
  %1004 = vmatprep.subr.bf16.mxu0 0
  %1005 = vmatpush1.bf16.msra.mxu0 0
  %1006 = vmatprep.subr.bf16.mxu0 0
  %1007 = vmatpush1.bf16.msra.mxu0 0
  %1008 = vmatprep.subr.bf16.mxu0 0
  %1009 = vmatpush1.bf16.msra.mxu0 0
  %1010 = vmatprep.subr.bf16.mxu0 0
  %1011 = vmatpush1.bf16.msra.mxu0 0
  %1012 = vmatprep.subr.bf16.mxu0 0
  %1013 = vmatpush1.bf16.msra.mxu0 0
  %1014 = vmatprep.subr.bf16.mxu0 0
  %1015 = vmatpush1.bf16.msra.mxu0 0
  %1016 = vmatprep.subr.bf16.mxu0 0
  %1017 = vmatpush1.bf16.msra.mxu0 0
  %1018 = vmatprep.subr.bf16.mxu0 0
  %1019 = vmatpush1.bf16.msra.mxu0 0
  %1020 = vmatprep.subr.bf16.mxu0 0
  %1021 = vmatpush1.bf16.msra.mxu0 0
  %1022 = vmatprep.subr.bf16.mxu0 0
  %1023 = vmatpush1.bf16.msra.mxu0 0
  %1024 = vmatprep.subr.bf16.mxu0 0
  %1025 = vmatpush1.bf16.msra.mxu0 0
  %1026 = vmatprep.subr.bf16.mxu0 0
  %1027 = vmatpush1.bf16.msra.mxu0 0
  %1028 = vmatprep.subr.bf16.mxu0 0
  %1029 = vmatpush1.bf16.msra.mxu0 0
  %1030 = vmatprep.mubr.bf16.mxu0 0
  %1031 = vmatmul.mubr.bf16.gmra.mrb[0].mxu0 %v119
  %v1032 = vpop.f32.mrb[0].mxu0
  %v1033 = vadd.f32 0.0, %v1032
  %v1034 = vpop.f32.mrb[0].mxu0
  %v1035 = vpop.f32.mrb[0].mxu0
  %v1036 = vadd.f32 0.0, %v1035
  %v1037 = vpop.f32.mrb[0].mxu0
  %1038 = vmatprep.mubr.bf16.mxu0 0
  %1039 = vmatmul.mubr.bf16.gmra.mrb[0].mxu0 %v122
  %v1040 = vpop.f32.mrb[0].mxu0
  %v1041 = vadd.f32 0.0, %v1040
  %v1042 = vpop.f32.mrb[0].mxu0
  %v1043 = vpop.f32.mrb[0].mxu0
  %v1044 = vadd.f32 0.0, %v1043
  %v1045 = vpop.f32.mrb[0].mxu0
  %1046 = vdwg.mxu0
  %v1047 = vadd.f32 %v978, %v1033
  %v1048 = vadd.f32 %v979, %v1036
  %v1049 = vadd.f32 %v980, %v1041
  %v1050 = vadd.f32 %v981, %v1044
  %v1051 = vmax.f32 %v1047, 0.0
  %v1052 = vmax.f32 %v1048, 0.0
  %v1053 = vmax.f32 %v1049, 0.0
  %v1054 = vmax.f32 %v1050, 0.0
  %v1055 = vpack.c.bf16 %v1052, %v1051
  %v1056 = vpack.c.bf16 %v1054, %v1053
  %v1057 = vld [vmem:[%s15] sm:$0xf]
  %v1058 = vld [vmem:[%s15 + $0x4] sm:$0xf]
  %v1059 = vld [vmem:[%s15 + $0x8] sm:$0xf]
  %v1060 = vld [vmem:[%s15 + $0xc] sm:$0xf]
  %v1061 = vld [vmem:[%s16] sm:$0x1]
  %v1063 = vlaneseq
  %v1064 = vshrl.u32 %v1063, 7
  %v1065 = vsub.s32 0, %v1064
  %v1066 = vrot.slane %v1061, %v1065
  %v1072 = vunpack.c.l.b16 %v1057
  %v1073 = vunpack.c.l.b16 %v1058
  %v1074 = vunpack.c.l.b16 %v1059
  %v1075 = vunpack.c.l.b16 %v1060
  %v1076 = vpack.c.b16 %v1073, %v1072
  %v1077 = vpack.c.b16 %v1075, %v1074
  %v1081 = vsel %vm117, %v1055, 0
  %v1084 = vsel %vm117, %v1056, 0
  %1086 = vmatprep.subr.bf16.mxu0 0
  %1087 = vmatpush1.bf16.msra.mxu0 %v1076
  %1088 = vmatprep.subr.bf16.mxu0 0
  %1089 = vmatpush1.bf16.msra.mxu0 %v1077
  %1090 = vmatprep.subr.bf16.mxu0 0
  %1091 = vmatpush1.bf16.msra.mxu0 0
  %1092 = vmatprep.subr.bf16.mxu0 0
  %1093 = vmatpush1.bf16.msra.mxu0 0
  %1094 = vmatprep.subr.bf16.mxu0 0
  %1095 = vmatpush1.bf16.msra.mxu0 0
  %1096 = vmatprep.subr.bf16.mxu0 0
  %1097 = vmatpush1.bf16.msra.mxu0 0
  %1098 = vmatprep.subr.bf16.mxu0 0
  %1099 = vmatpush1.bf16.msra.mxu0 0
  %1100 = vmatprep.subr.bf16.mxu0 0
  %1101 = vmatpush1.bf16.msra.mxu0 0
  %1102 = vmatprep.subr.bf16.mxu0 0
  %1103 = vmatpush1.bf16.msra.mxu0 0
  %1104 = vmatprep.subr.bf16.mxu0 0
  %1105 = vmatpush1.bf16.msra.mxu0 0
  %1106 = vmatprep.subr.bf16.mxu0 0
  %1107 = vmatpush1.bf16.msra.mxu0 0
  %1108 = vmatprep.subr.bf16.mxu0 0
  %1109 = vmatpush1.bf16.msra.mxu0 0
  %1110 = vmatprep.subr.bf16.mxu0 0
  %1111 = vmatpush1.bf16.msra.mxu0 0
  %1112 = vmatprep.subr.bf16.mxu0 0
  %1113 = vmatpush1.bf16.msra.mxu0 0
  %1114 = vmatprep.subr.bf16.mxu0 0
  %1115 = vmatpush1.bf16.msra.mxu0 0
  %1116 = vmatprep.subr.bf16.mxu0 0
  %1117 = vmatpush1.bf16.msra.mxu0 0
  %1118 = vmatprep.mubr.bf16.mxu0 0
  %1119 = vmatmul.mubr.bf16.gmra.mrb[0].mxu0 %v1081
  %v1120 = vpop.f32.mrb[0].mxu0
  %v1121 = vadd.f32 %v1066, %v1120
  %v1122 = vpop.f32.mrb[0].mxu0
  %v1123 = vpop.f32.mrb[0].mxu0
  %v1124 = vadd.f32 %v1066, %v1123
  %v1125 = vpop.f32.mrb[0].mxu0
  %1126 = vmatprep.mubr.bf16.mxu0 0
  %1127 = vmatmul.mubr.bf16.gmra.mrb[0].mxu0 %v1084
  %v1128 = vpop.f32.mrb[0].mxu0
  %v1129 = vadd.f32 %v1066, %v1128
  %v1130 = vpop.f32.mrb[0].mxu0
  %v1131 = vpop.f32.mrb[0].mxu0
  %v1132 = vadd.f32 %v1066, %v1131
  %v1133 = vpop.f32.mrb[0].mxu0
  %1134 = vdwg.mxu0
  %v1135 = vmax.f32 %v1121, 0.0
  %v1136 = vmax.f32 %v1124, 0.0
  %v1137 = vmax.f32 %v1129, 0.0
  %v1138 = vmax.f32 %v1132, 0.0
  %v1139 = vpack.c.bf16 %v1136, %v1135
  %v1140 = vpack.c.bf16 %v1138, %v1137
  %v1141 = vld [vmem:[%s17] sm:$0xf]
  %v1142 = vld [vmem:[%s17 + $0x4] sm:$0xf]
  %v1143 = vld [vmem:[%s17 + $0x8] sm:$0xf]
  %v1144 = vld [vmem:[%s17 + $0xc] sm:$0xf]
  %v1145 = vld [vmem:[%s18] sm:$0x1]
  %v1147 = vlaneseq
  %v1148 = vshrl.u32 %v1147, 7
  %v1149 = vsub.s32 0, %v1148
  %v1150 = vrot.slane %v1145, %v1149
  %v1156 = vunpack.c.l.b16 %v1141
  %v1157 = vunpack.c.l.b16 %v1142
  %v1158 = vunpack.c.l.b16 %v1143
  %v1159 = vunpack.c.l.b16 %v1144
  %v1160 = vpack.c.b16 %v1157, %v1156
  %v1161 = vpack.c.b16 %v1159, %v1158
  %v1165 = vsel %vm117, %v1139, 0
  %v1168 = vsel %vm117, %v1140, 0
  %1170 = vmatprep.subr.bf16.mxu0 0
  %1171 = vmatpush1.bf16.msra.mxu0 %v1160
  %1172 = vmatprep.subr.bf16.mxu0 0
  %1173 = vmatpush1.bf16.msra.mxu0 %v1161
  %1174 = vmatprep.subr.bf16.mxu0 0
  %1175 = vmatpush1.bf16.msra.mxu0 0
  %1176 = vmatprep.subr.bf16.mxu0 0
  %1177 = vmatpush1.bf16.msra.mxu0 0
  %1178 = vmatprep.subr.bf16.mxu0 0
  %1179 = vmatpush1.bf16.msra.mxu0 0
  %1180 = vmatprep.subr.bf16.mxu0 0
  %1181 = vmatpush1.bf16.msra.mxu0 0
  %1182 = vmatprep.subr.bf16.mxu0 0
  %1183 = vmatpush1.bf16.msra.mxu0 0
  %1184 = vmatprep.subr.bf16.mxu0 0
  %1185 = vmatpush1.bf16.msra.mxu0 0
  %1186 = vmatprep.subr.bf16.mxu0 0
  %1187 = vmatpush1.bf16.msra.mxu0 0
  %1188 = vmatprep.subr.bf16.mxu0 0
  %1189 = vmatpush1.bf16.msra.mxu0 0
  %1190 = vmatprep.subr.bf16.mxu0 0
  %1191 = vmatpush1.bf16.msra.mxu0 0
  %1192 = vmatprep.subr.bf16.mxu0 0
  %1193 = vmatpush1.bf16.msra.mxu0 0
  %1194 = vmatprep.subr.bf16.mxu0 0
  %1195 = vmatpush1.bf16.msra.mxu0 0
  %1196 = vmatprep.subr.bf16.mxu0 0
  %1197 = vmatpush1.bf16.msra.mxu0 0
  %1198 = vmatprep.subr.bf16.mxu0 0
  %1199 = vmatpush1.bf16.msra.mxu0 0
  %1200 = vmatprep.subr.bf16.mxu0 0
  %1201 = vmatpush1.bf16.msra.mxu0 0
  %1202 = vmatprep.mubr.bf16.mxu0 0
  %1203 = vmatmul.mubr.bf16.gmra.mrb[0].mxu0 %v1165
  %v1204 = vpop.f32.mrb[0].mxu0
  %v1205 = vadd.f32 %v1150, %v1204
  %v1206 = vpop.f32.mrb[0].mxu0
  %v1207 = vpop.f32.mrb[0].mxu0
  %v1208 = vadd.f32 %v1150, %v1207
  %v1209 = vpop.f32.mrb[0].mxu0
  %1210 = vmatprep.mubr.bf16.mxu0 0
  %1211 = vmatmul.mubr.bf16.gmra.mrb[0].mxu0 %v1168
  %v1212 = vpop.f32.mrb[0].mxu0
  %v1213 = vadd.f32 %v1150, %v1212
  %v1214 = vpop.f32.mrb[0].mxu0
  %v1215 = vpop.f32.mrb[0].mxu0
  %v1216 = vadd.f32 %v1150, %v1215
  %v1217 = vpop.f32.mrb[0].mxu0
  %1218 = vdwg.mxu0
  %v1219 = vld [vmem:[%s19] sm:$0x1]
  %v1220 = vld [vmem:[%s20] sm:$0x1]
  %v1221 = vsel %vm117, %v1205, 0.0
  %1222 = vadd.xlane.f32.xlu0 %v1221
  %v1223 = vpop.xlane.xlu0 %1222
  %v1224 = vsel %vm117, %v1208, 0.0
  %1225 = vadd.xlane.f32.xlu0 %v1224
  %v1226 = vpop.xlane.xlu0 %1225
  %v1227 = vsel %vm117, %v1213, 0.0
  %1228 = vadd.xlane.f32.xlu0 %v1227
  %v1229 = vpop.xlane.xlu0 %1228
  %v1230 = vsel %vm117, %v1216, 0.0
  %1231 = vadd.xlane.f32.xlu0 %v1230
  %v1232 = vpop.xlane.xlu0 %1231
  %v1233 = vmul.f32 %v1223, %v515
  %v1234 = vmul.f32 %v1226, %v515
  %v1235 = vmul.f32 %v1229, %v515
  %v1236 = vmul.f32 %v1232, %v515
  %v1237 = vsub.f32 %v1205, %v1233
  %v1238 = vsub.f32 %v1208, %v1234
  %v1239 = vsub.f32 %v1213, %v1235
  %v1240 = vsub.f32 %v1216, %v1236
  %v1241 = vmul.f32 %v1237, %v1237
  %v1242 = vmul.f32 %v1238, %v1238
  %v1243 = vmul.f32 %v1239, %v1239
  %v1244 = vmul.f32 %v1240, %v1240
  %v1245 = vsel %vm117, %v1241, 0.0
  %1246 = vadd.xlane.f32.xlu0 %v1245
  %v1247 = vpop.xlane.xlu0 %1246
  %v1248 = vsel %vm117, %v1242, 0.0
  %1249 = vadd.xlane.f32.xlu0 %v1248
  %v1250 = vpop.xlane.xlu0 %1249
  %v1251 = vsel %vm117, %v1243, 0.0
  %1252 = vadd.xlane.f32.xlu0 %v1251
  %v1253 = vpop.xlane.xlu0 %1252
  %v1254 = vsel %vm117, %v1244, 0.0
  %1255 = vadd.xlane.f32.xlu0 %v1254
  %v1256 = vpop.xlane.xlu0 %1255
  %v1257 = vmul.f32 %v1247, %v515
  %v1258 = vmul.f32 %v1250, %v515
  %v1259 = vmul.f32 %v1253, %v515
  %v1260 = vmul.f32 %v1256, %v515
  %v1261 = vadd.f32 %v1257, 1e-05
  %v1262 = vadd.f32 %v1258, 1e-05
  %v1263 = vadd.f32 %v1259, 1e-05
  %v1264 = vadd.f32 %v1260, 1e-05
  %v1265 = vrsqrt.pop %v1261
  %v1266 = vrsqrt.pop %v1262
  %v1267 = vrsqrt.pop %v1263
  %v1268 = vrsqrt.pop %v1264
  %v1269 = vmul.f32 %v1237, %v1265
  %v1270 = vmul.f32 %v1238, %v1266
  %v1271 = vmul.f32 %v1239, %v1267
  %v1272 = vmul.f32 %v1240, %v1268
  %v1274 = vlaneseq
  %v1275 = vshrl.u32 %v1274, 7
  %v1276 = vsub.s32 0, %v1275
  %v1277 = vrot.slane %v1219, %v1276
  %v1279 = vmul.f32 %v1269, %v1277
  %v1280 = vmul.f32 %v1270, %v1277
  %v1281 = vmul.f32 %v1271, %v1277
  %v1282 = vmul.f32 %v1272, %v1277
  %v1284 = vlaneseq
  %v1285 = vshrl.u32 %v1284, 7
  %v1286 = vsub.s32 0, %v1285
  %v1287 = vrot.slane %v1220, %v1286
  %v1289 = vadd.f32 %v1279, %v1287
  %v1290 = vadd.f32 %v1280, %v1287
  %v1291 = vadd.f32 %v1281, %v1287
  %v1292 = vadd.f32 %v1282, %v1287
  %v1293 = vadd.f32 %v1289, %v72
  %v1294 = vadd.f32 %v1290, %v73
  %v1295 = vadd.f32 %v1291, %v74
  %v1296 = vadd.f32 %v1292, %v75
  %1297 = vst.msk [vmem:[%s21] sm:$0xff] %vm117, %v1293
  %1298 = vst.msk [vmem:[%s21 + $0x8] sm:$0xff] %vm117, %v1294
  %1299 = vst.msk [vmem:[%s21 + $0x10] sm:$0xff] %vm117, %v1295
  %1300 = vst.msk [vmem:[%s21 + $0x18] sm:$0xff] %vm117, %v1296
  // Predicated region
  $region86: #{predict_positions.11} parent=0 // pred_check
    _
  $region87: #{predict_positions.11} parent=0 // pred_check_branch
    %1302 = sbr.rel (0) target = $region89
  $region88: #{predict_positions.11} parent=0 // pred_region
    _
  $region89: #{predict_positions.11} parent=0 // pred_fallthru
    _
  // Predicated region
  $region90: #{predict_positions.11} parent=0 // pred_check
    _
  $region91: #{predict_positions.11} parent=0 // pred_check_branch
    %1304 = sbr.rel (0) target = $region93
  $region92: #{predict_positions.11} parent=0 // pred_region
    _
  $region93: #{predict_positions.11} parent=0 // pred_fallthru
    _
  // Predicated region
  $region94: #{predict_positions.11} parent=0 // pred_check
    _
  $region95: #{predict_positions.11} parent=0 // pred_check_branch
    %1306 = sbr.rel (0) target = $region97
  $region96: #{predict_positions.11} parent=0 // pred_region
    _
  $region97: #{predict_positions.11} parent=0 // pred_fallthru
    _
  // Predicated region
  $region98: #{predict_positions.11} parent=0 // pred_check
    _
  $region99: #{predict_positions.11} parent=0 // pred_check_branch
    %1308 = sbr.rel (0) target = $region101
  $region100: #{predict_positions.11} parent=0 // pred_region
    _
  $region101: #{predict_positions.11} parent=0 // pred_fallthru
    _
  // Predicated region
  $region102: #{predict_positions.11} parent=0 // pred_check
    _
  $region103: #{predict_positions.11} parent=0 // pred_check_branch
    %1310 = sbr.rel (0) target = $region105
  $region104: #{predict_positions.11} parent=0 // pred_region
    _
  $region105: #{predict_positions.11} parent=0 // pred_fallthru
    _
  // Predicated region
  $region106: #{predict_positions.11} parent=0 // pred_check
    _
  $region107: #{predict_positions.11} parent=0 // pred_check_branch
    %1312 = sbr.rel (0) target = $region109
  $region108: #{predict_positions.11} parent=0 // pred_region
    _
  $region109: #{predict_positions.11} parent=0 // pred_fallthru
    _

// kernel: predict_positions.13
$region0: #{predict_positions.13}
  #allocation0 [shape = 'u32[]', space=smem, size = 0x4, offset = 0x4, fixed_abs, tag = 'smem constant byte address 0x4 - core index']
  #allocation1 [shape = 'u32[144,128]{1,0:T(1,128)}', space=vmem, size = 0x12000, scoped, tag = 'internal scratch']
  %s0 = inlined_call_operand.vmem [shape: f32[32,32], index: 0, kind: input, shape index: {}]
  %s1 = inlined_call_operand.vmem [shape: bf16[32,32], index: 1, kind: input, shape index: {}]
  %s2 = inlined_call_operand.vmem [shape: f32[1,32], index: 2, kind: input, shape index: {}, may-alias: {2,4}]
  %s3 = inlined_call_operand.vmem [shape: bf16[32,32], index: 3, kind: input, shape index: {}]
  %s4 = inlined_call_operand.vmem [shape: f32[1,32], index: 4, kind: input, shape index: {}, may-alias: {2,4}]
  %s5 = inlined_call_operand.vmem [shape: bf16[32,2], index: 5, kind: input, shape index: {}]
  %s6 = inlined_call_operand.vmem [shape: f32[1,2], index: 6, kind: input, shape index: {}]
  %s7 = inlined_call_operand.vmem [shape: f32[32,2], index: 7, kind: output, shape index: {}]
  %s8 = sld [smem:[#allocation0]]
  $region38: #{predict_positions.13} parent=0
    _
  %s10 = ssub.s32 1, %s8
  %s11 = scalar_select 0, %s10, %s8
  // Predicated region
  $region2: #{predict_positions.13} parent=0 // pred_check
    _
  $region3: #{predict_positions.13} parent=0 // pred_check_branch
    %13 = sbr.rel (0) target = $region5
  $region4: #{predict_positions.13} parent=0 // pred_region
    _
  $region5: #{predict_positions.13} parent=0 // pred_fallthru
    _
  // Predicated region
  $region6: #{predict_positions.13} parent=0 // pred_check
    _
  $region7: #{predict_positions.13} parent=0 // pred_check_branch
    %15 = sbr.rel (0) target = $region9
  $region8: #{predict_positions.13} parent=0 // pred_region
    _
  $region9: #{predict_positions.13} parent=0 // pred_fallthru
    _
  // Predicated region
  $region10: #{predict_positions.13} parent=0 // pred_check
    _
  $region11: #{predict_positions.13} parent=0 // pred_check_branch
    %17 = sbr.rel (0) target = $region13
  $region12: #{predict_positions.13} parent=0 // pred_region
    _
  $region13: #{predict_positions.13} parent=0 // pred_fallthru
    _
  // Predicated region
  $region14: #{predict_positions.13} parent=0 // pred_check
    _
  $region15: #{predict_positions.13} parent=0 // pred_check_branch
    %19 = sbr.rel (0) target = $region17
  $region16: #{predict_positions.13} parent=0 // pred_region
    _
  $region17: #{predict_positions.13} parent=0 // pred_fallthru
    _
  // Predicated region
  $region18: #{predict_positions.13} parent=0 // pred_check
    _
  $region19: #{predict_positions.13} parent=0 // pred_check_branch
    %21 = sbr.rel (0) target = $region21
  $region20: #{predict_positions.13} parent=0 // pred_region
    _
  $region21: #{predict_positions.13} parent=0 // pred_fallthru
    _
  // Predicated region
  $region22: #{predict_positions.13} parent=0 // pred_check
    _
  $region23: #{predict_positions.13} parent=0 // pred_check_branch
    %23 = sbr.rel (0) target = $region25
  $region24: #{predict_positions.13} parent=0 // pred_region
    _
  $region25: #{predict_positions.13} parent=0 // pred_fallthru
    _
  // Predicated region
  $region26: #{predict_positions.13} parent=0 // pred_check
    _
  $region27: #{predict_positions.13} parent=0 // pred_check_branch
    %25 = sbr.rel (0) target = $region29
  $region28: #{predict_positions.13} parent=0 // pred_region
    _
  $region29: #{predict_positions.13} parent=0 // pred_fallthru
    _
  %v27 = vld [vmem:[%s0] sm:$0xff]
  %v28 = vld [vmem:[%s0 + $0x8] sm:$0xff]
  %v29 = vld [vmem:[%s0 + $0x10] sm:$0xff]
  %v30 = vld [vmem:[%s0 + $0x18] sm:$0xff]
  %v31 = vpack.c.bf16 %v28, %v27
  %v32 = vpack.c.bf16 %v30, %v29
  %v33 = vld [vmem:[%s2] sm:$0x1]
  %v34 = vld [vmem:[%s1] sm:$0xf]
  %v35 = vld [vmem:[%s1 + $0x4] sm:$0xf]
  %v36 = vld [vmem:[%s1 + $0x8] sm:$0xf]
  %v37 = vld [vmem:[%s1 + $0xc] sm:$0xf]
  %v42 = vunpack.c.l.b16 %v34
  %v43 = vunpack.c.l.b16 %v35
  %v44 = vunpack.c.l.b16 %v36
  %v45 = vunpack.c.l.b16 %v37
  %v46 = vpack.c.b16 %v43, %v42
  %v47 = vpack.c.b16 %v45, %v44
  %vm50 = vcmask 261120
  %v52 = vsel %vm50, %v31, 0
  %v55 = vsel %vm50, %v32, 0
  %57 = vmatprep.subr.bf16.mxu0 0
  %58 = vmatpush1.bf16.msra.mxu0 %v46
  %59 = vmatprep.subr.bf16.mxu0 0
  %60 = vmatpush1.bf16.msra.mxu0 %v47
  %61 = vmatprep.subr.bf16.mxu0 0
  %62 = vmatpush1.bf16.msra.mxu0 0
  %63 = vmatprep.subr.bf16.mxu0 0
  %64 = vmatpush1.bf16.msra.mxu0 0
  %65 = vmatprep.subr.bf16.mxu0 0
  %66 = vmatpush1.bf16.msra.mxu0 0
  %67 = vmatprep.subr.bf16.mxu0 0
  %68 = vmatpush1.bf16.msra.mxu0 0
  %69 = vmatprep.subr.bf16.mxu0 0
  %70 = vmatpush1.bf16.msra.mxu0 0
  %71 = vmatprep.subr.bf16.mxu0 0
  %72 = vmatpush1.bf16.msra.mxu0 0
  %73 = vmatprep.subr.bf16.mxu0 0
  %74 = vmatpush1.bf16.msra.mxu0 0
  %75 = vmatprep.subr.bf16.mxu0 0
  %76 = vmatpush1.bf16.msra.mxu0 0
  %77 = vmatprep.subr.bf16.mxu0 0
  %78 = vmatpush1.bf16.msra.mxu0 0
  %79 = vmatprep.subr.bf16.mxu0 0
  %80 = vmatpush1.bf16.msra.mxu0 0
  %81 = vmatprep.subr.bf16.mxu0 0
  %82 = vmatpush1.bf16.msra.mxu0 0
  %83 = vmatprep.subr.bf16.mxu0 0
  %84 = vmatpush1.bf16.msra.mxu0 0
  %85 = vmatprep.subr.bf16.mxu0 0
  %86 = vmatpush1.bf16.msra.mxu0 0
  %87 = vmatprep.subr.bf16.mxu0 0
  %88 = vmatpush1.bf16.msra.mxu0 0
  %89 = vmatprep.mubr.bf16.mxu0 0
  %90 = vmatmul.mubr.bf16.gmra.mrb[0].mxu0 %v52
  %v91 = vpop.f32.mrb[0].mxu0
  %v92 = vadd.f32 0.0, %v91
  %v93 = vpop.f32.mrb[0].mxu0
  %v94 = vpop.f32.mrb[0].mxu0
  %v95 = vadd.f32 0.0, %v94
  %v96 = vpop.f32.mrb[0].mxu0
  %97 = vmatprep.mubr.bf16.mxu0 0
  %98 = vmatmul.mubr.bf16.gmra.mrb[0].mxu0 %v55
  %v99 = vpop.f32.mrb[0].mxu0
  %v100 = vadd.f32 0.0, %v99
  %v101 = vpop.f32.mrb[0].mxu0
  %v102 = vpop.f32.mrb[0].mxu0
  %v103 = vadd.f32 0.0, %v102
  %v104 = vpop.f32.mrb[0].mxu0
  %105 = vdwg.mxu0
  %v107 = vlaneseq
  %v108 = vshrl.u32 %v107, 7
  %v109 = vsub.s32 0, %v108
  %v110 = vrot.slane %v33, %v109
  %v112 = vadd.f32 %v110, %v92
  %v113 = vadd.f32 %v110, %v95
  %v114 = vadd.f32 %v110, %v100
  %v115 = vadd.f32 %v110, %v103
  %v116 = vmax.f32 %v112, 0.0
  %v117 = vmax.f32 %v113, 0.0
  %v118 = vmax.f32 %v114, 0.0
  %v119 = vmax.f32 %v115, 0.0
  %v120 = vpack.c.bf16 %v117, %v116
  %v121 = vpack.c.bf16 %v119, %v118
  %v122 = vld [vmem:[%s3] sm:$0xf]
  %v123 = vld [vmem:[%s3 + $0x4] sm:$0xf]
  %v124 = vld [vmem:[%s3 + $0x8] sm:$0xf]
  %v125 = vld [vmem:[%s3 + $0xc] sm:$0xf]
  %v126 = vld [vmem:[%s4] sm:$0x1]
  %v128 = vlaneseq
  %v129 = vshrl.u32 %v128, 7
  %v130 = vsub.s32 0, %v129
  %v131 = vrot.slane %v126, %v130
  %v137 = vunpack.c.l.b16 %v122
  %v138 = vunpack.c.l.b16 %v123
  %v139 = vunpack.c.l.b16 %v124
  %v140 = vunpack.c.l.b16 %v125
  %v141 = vpack.c.b16 %v138, %v137
  %v142 = vpack.c.b16 %v140, %v139
  %v146 = vsel %vm50, %v120, 0
  %v149 = vsel %vm50, %v121, 0
  %151 = vmatprep.subr.bf16.mxu0 0
  %152 = vmatpush1.bf16.msra.mxu0 %v141
  %153 = vmatprep.subr.bf16.mxu0 0
  %154 = vmatpush1.bf16.msra.mxu0 %v142
  %155 = vmatprep.subr.bf16.mxu0 0
  %156 = vmatpush1.bf16.msra.mxu0 0
  %157 = vmatprep.subr.bf16.mxu0 0
  %158 = vmatpush1.bf16.msra.mxu0 0
  %159 = vmatprep.subr.bf16.mxu0 0
  %160 = vmatpush1.bf16.msra.mxu0 0
  %161 = vmatprep.subr.bf16.mxu0 0
  %162 = vmatpush1.bf16.msra.mxu0 0
  %163 = vmatprep.subr.bf16.mxu0 0
  %164 = vmatpush1.bf16.msra.mxu0 0
  %165 = vmatprep.subr.bf16.mxu0 0
  %166 = vmatpush1.bf16.msra.mxu0 0
  %167 = vmatprep.subr.bf16.mxu0 0
  %168 = vmatpush1.bf16.msra.mxu0 0
  %169 = vmatprep.subr.bf16.mxu0 0
  %170 = vmatpush1.bf16.msra.mxu0 0
  %171 = vmatprep.subr.bf16.mxu0 0
  %172 = vmatpush1.bf16.msra.mxu0 0
  %173 = vmatprep.subr.bf16.mxu0 0
  %174 = vmatpush1.bf16.msra.mxu0 0
  %175 = vmatprep.subr.bf16.mxu0 0
  %176 = vmatpush1.bf16.msra.mxu0 0
  %177 = vmatprep.subr.bf16.mxu0 0
  %178 = vmatpush1.bf16.msra.mxu0 0
  %179 = vmatprep.subr.bf16.mxu0 0
  %180 = vmatpush1.bf16.msra.mxu0 0
  %181 = vmatprep.subr.bf16.mxu0 0
  %182 = vmatpush1.bf16.msra.mxu0 0
  %183 = vmatprep.mubr.bf16.mxu0 0
  %184 = vmatmul.mubr.bf16.gmra.mrb[0].mxu0 %v146
  %v185 = vpop.f32.mrb[0].mxu0
  %v186 = vadd.f32 %v131, %v185
  %v187 = vpop.f32.mrb[0].mxu0
  %v188 = vpop.f32.mrb[0].mxu0
  %v189 = vadd.f32 %v131, %v188
  %v190 = vpop.f32.mrb[0].mxu0
  %191 = vmatprep.mubr.bf16.mxu0 0
  %192 = vmatmul.mubr.bf16.gmra.mrb[0].mxu0 %v149
  %v193 = vpop.f32.mrb[0].mxu0
  %v194 = vadd.f32 %v131, %v193
  %v195 = vpop.f32.mrb[0].mxu0
  %v196 = vpop.f32.mrb[0].mxu0
  %v197 = vadd.f32 %v131, %v196
  %v198 = vpop.f32.mrb[0].mxu0
  %199 = vdwg.mxu0
  %v200 = vmax.f32 %v186, 0.0
  %v201 = vmax.f32 %v189, 0.0
  %v202 = vmax.f32 %v194, 0.0
  %v203 = vmax.f32 %v197, 0.0
  %v204 = vpack.c.bf16 %v201, %v200
  %v205 = vpack.c.bf16 %v203, %v202
  %v206 = vld [vmem:[%s5] sm:$0xf]
  %v207 = vld [vmem:[%s5 + $0x4] sm:$0xf]
  %v208 = vld [vmem:[%s5 + $0x8] sm:$0xf]
  %v209 = vld [vmem:[%s5 + $0xc] sm:$0xf]
  %v210 = vld [vmem:[%s6] sm:$0x1]
  %v212 = vlaneseq
  %v213 = vshrl.u32 %v212, 7
  %v214 = vsub.s32 0, %v213
  %v215 = vrot.slane %v210, %v214
  %v221 = vunpack.c.l.b16 %v206
  %v222 = vunpack.c.l.b16 %v207
  %v223 = vunpack.c.l.b16 %v208
  %v224 = vunpack.c.l.b16 %v209
  %v225 = vpack.c.b16 %v222, %v221
  %v226 = vpack.c.b16 %v224, %v223
  %v230 = vsel %vm50, %v204, 0
  %v233 = vsel %vm50, %v205, 0
  %235 = vmatprep.subr.bf16.mxu0 0
  %236 = vmatpush1.bf16.msra.mxu0 %v225
  %237 = vmatprep.subr.bf16.mxu0 0
  %238 = vmatpush1.bf16.msra.mxu0 %v226
  %239 = vmatprep.subr.bf16.mxu0 0
  %240 = vmatpush1.bf16.msra.mxu0 0
  %241 = vmatprep.subr.bf16.mxu0 0
  %242 = vmatpush1.bf16.msra.mxu0 0
  %243 = vmatprep.subr.bf16.mxu0 0
  %244 = vmatpush1.bf16.msra.mxu0 0
  %245 = vmatprep.subr.bf16.mxu0 0
  %246 = vmatpush1.bf16.msra.mxu0 0
  %247 = vmatprep.subr.bf16.mxu0 0
  %248 = vmatpush1.bf16.msra.mxu0 0
  %249 = vmatprep.subr.bf16.mxu0 0
  %250 = vmatpush1.bf16.msra.mxu0 0
  %251 = vmatprep.subr.bf16.mxu0 0
  %252 = vmatpush1.bf16.msra.mxu0 0
  %253 = vmatprep.subr.bf16.mxu0 0
  %254 = vmatpush1.bf16.msra.mxu0 0
  %255 = vmatprep.subr.bf16.mxu0 0
  %256 = vmatpush1.bf16.msra.mxu0 0
  %257 = vmatprep.subr.bf16.mxu0 0
  %258 = vmatpush1.bf16.msra.mxu0 0
  %259 = vmatprep.subr.bf16.mxu0 0
  %260 = vmatpush1.bf16.msra.mxu0 0
  %261 = vmatprep.subr.bf16.mxu0 0
  %262 = vmatpush1.bf16.msra.mxu0 0
  %263 = vmatprep.subr.bf16.mxu0 0
  %264 = vmatpush1.bf16.msra.mxu0 0
  %265 = vmatprep.subr.bf16.mxu0 0
  %266 = vmatpush1.bf16.msra.mxu0 0
  %267 = vmatprep.mubr.bf16.mxu0 0
  %268 = vmatmul.mubr.bf16.gmra.mrb[0].mxu0 %v230
  %v269 = vpop.f32.mrb[0].mxu0
  %v270 = vadd.f32 %v215, %v269
  %v271 = vpop.f32.mrb[0].mxu0
  %v272 = vpop.f32.mrb[0].mxu0
  %v273 = vadd.f32 %v215, %v272
  %v274 = vpop.f32.mrb[0].mxu0
  %275 = vmatprep.mubr.bf16.mxu0 0
  %276 = vmatmul.mubr.bf16.gmra.mrb[0].mxu0 %v233
  %v277 = vpop.f32.mrb[0].mxu0
  %v278 = vadd.f32 %v215, %v277
  %v279 = vpop.f32.mrb[0].mxu0
  %v280 = vpop.f32.mrb[0].mxu0
  %v281 = vadd.f32 %v215, %v280
  %v282 = vpop.f32.mrb[0].mxu0
  %283 = vdwg.mxu0
  %vm284 = vcmask 15360
  %285 = vst.msk [vmem:[%s7] sm:$0xff] %vm284, %v270
  %286 = vst.msk [vmem:[%s7 + $0x8] sm:$0xff] %vm284, %v273
  %287 = vst.msk [vmem:[%s7 + $0x10] sm:$0xff] %vm284, %v278
  %288 = vst.msk [vmem:[%s7 + $0x18] sm:$0xff] %vm284, %v281
  // Predicated region
  $region30: #{predict_positions.13} parent=0 // pred_check
    _
  $region31: #{predict_positions.13} parent=0 // pred_check_branch
    %290 = sbr.rel (0) target = $region33
  $region32: #{predict_positions.13} parent=0 // pred_region
    _
  $region33: #{predict_positions.13} parent=0 // pred_fallthru
    _
  // Predicated region
  $region34: #{predict_positions.13} parent=0 // pred_check
    _
  $region35: #{predict_positions.13} parent=0 // pred_check_branch
    %292 = sbr.rel (0) target = $region37
  $region36: #{predict_positions.13} parent=0 // pred_region
    _
  $region37: #{predict_positions.13} parent=0 // pred_fallthru
    _

// kernel: predict_positions.12
$region0: #{predict_positions.12}
  #allocation0 [shape = 'u32[]', space=smem, size = 0x4, offset = 0x4, fixed_abs, tag = 'smem constant byte address 0x4 - core index']
  #allocation1 [shape = 'u32[144,128]{1,0:T(1,128)}', space=vmem, size = 0x12000, scoped, tag = 'internal scratch']
  %s0 = inlined_call_operand.vmem [shape: f32[32,32], index: 0, kind: input, shape index: {}]
  %s1 = inlined_call_operand.vmem [shape: f32[32,32], index: 1, kind: input, shape index: {}]
  %s2 = inlined_call_operand.vmem [shape: f32[32,32], index: 2, kind: input, shape index: {}]
  %s3 = inlined_call_operand.vmem [shape: f32[32,32], index: 3, kind: input, shape index: {}]
  %s4 = inlined_call_operand.vmem [shape: f32[32,32], index: 4, kind: input, shape index: {}]
  %s5 = inlined_call_operand.vmem [shape: bf16[96,32], index: 5, kind: input, shape index: {}]
  %s6 = inlined_call_operand.vmem [shape: f32[1,32], index: 6, kind: input, shape index: {}, may-alias: {6,8,10,12,14,16,18,20}]
  %s7 = inlined_call_operand.vmem [shape: bf16[32,32], index: 7, kind: input, shape index: {}]
  %s8 = inlined_call_operand.vmem [shape: f32[1,32], index: 8, kind: input, shape index: {}, may-alias: {6,8,10,12,14,16,18,20}]
  %s9 = inlined_call_operand.vmem [shape: bf16[32,32], index: 9, kind: input, shape index: {}]
  %s10 = inlined_call_operand.vmem [shape: f32[1,32], index: 10, kind: input, shape index: {}, may-alias: {6,8,10,12,14,16,18,20}]
  %s11 = inlined_call_operand.vmem [shape: f32[1,32], index: 11, kind: input, shape index: {}, may-alias: {11,19}]
  %s12 = inlined_call_operand.vmem [shape: f32[1,32], index: 12, kind: input, shape index: {}, may-alias: {6,8,10,12,14,16,18,20}]
  %s13 = inlined_call_operand.vmem [shape: bf16[64,32], index: 13, kind: input, shape index: {}]
  %s14 = inlined_call_operand.vmem [shape: f32[1,32], index: 14, kind: input, shape index: {}, may-alias: {6,8,10,12,14,16,18,20}]
  %s15 = inlined_call_operand.vmem [shape: bf16[32,32], index: 15, kind: input, shape index: {}]
  %s16 = inlined_call_operand.vmem [shape: f32[1,32], index: 16, kind: input, shape index: {}, may-alias: {6,8,10,12,14,16,18,20}]
  %s17 = inlined_call_operand.vmem [shape: bf16[32,32], index: 17, kind: input, shape index: {}]
  %s18 = inlined_call_operand.vmem [shape: f32[1,32], index: 18, kind: input, shape index: {}, may-alias: {6,8,10,12,14,16,18,20}]
  %s19 = inlined_call_operand.vmem [shape: f32[1,32], index: 19, kind: input, shape index: {}, may-alias: {11,19}]
  %s20 = inlined_call_operand.vmem [shape: f32[1,32], index: 20, kind: input, shape index: {}, may-alias: {6,8,10,12,14,16,18,20}]
  %s21 = inlined_call_operand.vmem [shape: f32[32,32], index: 21, kind: output, shape index: {0}]
  %s22 = inlined_call_operand.hbm [shape: f32[32,32], index: 22, kind: output, shape index: {1}]
  %s23 = inlined_call_operand.hbm [shape: f32[32,32], index: 23, kind: output, shape index: {2}]
  %24 = xla_tuple %s21, %s22, %s23
  %s25 = sld [smem:[#allocation0]]
  $region110: #{predict_positions.12} parent=0
    _
  %s27 = ssub.s32 1, %s25
  %s28 = scalar_select 0, %s27, %s25
  $region1: #{predict_positions.12} parent=0
    #allocation2 [shape = 'u8[16384]{0}', space=vmem, size = 0x4000, scoped, tag = 'output window, operand 1, single buffered']
    #allocation3 [shape = 's32[1]{0}', space=sflag, size = 0x4, scoped, tag = 'scoped memory for predict_positions.12']
    #allocation4 [shape = 'u8[16384]{0}', space=vmem, size = 0x4000, scoped, tag = 'output window, operand 2, single buffered']
    #allocation5 [shape = 's32[1]{0}', space=sflag, size = 0x4, scoped, tag = 'scoped memory for predict_positions.12']
    %29 = vsyncpa [#allocation3], 0
    %30 = vsyncpa [#allocation5], 0
    // Predicated region
    $region2: #{predict_positions.12} parent=1 // pred_check
      _
    $region3: #{predict_positions.12} parent=1 // pred_check_branch
      %32 = sbr.rel (0) target = $region5
    $region4: #{predict_positions.12} parent=1 // pred_region
      _
    $region5: #{predict_positions.12} parent=1 // pred_fallthru
      _
    // Predicated region
    $region6: #{predict_positions.12} parent=1 // pred_check
      _
    $region7: #{predict_positions.12} parent=1 // pred_check_branch
      %34 = sbr.rel (0) target = $region9
    $region8: #{predict_positions.12} parent=1 // pred_region
      _
    $region9: #{predict_positions.12} parent=1 // pred_fallthru
      _
    // Predicated region
    $region10: #{predict_positions.12} parent=1 // pred_check
      _
    $region11: #{predict_positions.12} parent=1 // pred_check_branch
      %36 = sbr.rel (0) target = $region13
    $region12: #{predict_positions.12} parent=1 // pred_region
      _
    $region13: #{predict_positions.12} parent=1 // pred_fallthru
      _
    // Predicated region
    $region14: #{predict_positions.12} parent=1 // pred_check
      _
    $region15: #{predict_positions.12} parent=1 // pred_check_branch
      %38 = sbr.rel (0) target = $region17
    $region16: #{predict_positions.12} parent=1 // pred_region
      _
    $region17: #{predict_positions.12} parent=1 // pred_fallthru
      _
    // Predicated region
    $region18: #{predict_positions.12} parent=1 // pred_check
      _
    $region19: #{predict_positions.12} parent=1 // pred_check_branch
      %40 = sbr.rel (0) target = $region21
    $region20: #{predict_positions.12} parent=1 // pred_region
      _
    $region21: #{predict_positions.12} parent=1 // pred_fallthru
      _
    // Predicated region
    $region22: #{predict_positions.12} parent=1 // pred_check
      _
    $region23: #{predict_positions.12} parent=1 // pred_check_branch
      %42 = sbr.rel (0) target = $region25
    $region24: #{predict_positions.12} parent=1 // pred_region
      _
    $region25: #{predict_positions.12} parent=1 // pred_fallthru
      _
    // Predicated region
    $region26: #{predict_positions.12} parent=1 // pred_check
      _
    $region27: #{predict_positions.12} parent=1 // pred_check_branch
      %44 = sbr.rel (0) target = $region29
    $region28: #{predict_positions.12} parent=1 // pred_region
      _
    $region29: #{predict_positions.12} parent=1 // pred_fallthru
      _
    // Predicated region
    $region30: #{predict_positions.12} parent=1 // pred_check
      _
    $region31: #{predict_positions.12} parent=1 // pred_check_branch
      %46 = sbr.rel (0) target = $region33
    $region32: #{predict_positions.12} parent=1 // pred_region
      _
    $region33: #{predict_positions.12} parent=1 // pred_fallthru
      _
    // Predicated region
    $region34: #{predict_positions.12} parent=1 // pred_check
      _
    $region35: #{predict_positions.12} parent=1 // pred_check_branch
      %48 = sbr.rel (0) target = $region37
    $region36: #{predict_positions.12} parent=1 // pred_region
      _
    $region37: #{predict_positions.12} parent=1 // pred_fallthru
      _
    // Predicated region
    $region38: #{predict_positions.12} parent=1 // pred_check
      _
    $region39: #{predict_positions.12} parent=1 // pred_check_branch
      %50 = sbr.rel (0) target = $region41
    $region40: #{predict_positions.12} parent=1 // pred_region
      _
    $region41: #{predict_positions.12} parent=1 // pred_fallthru
      _
    // Predicated region
    $region42: #{predict_positions.12} parent=1 // pred_check
      _
    $region43: #{predict_positions.12} parent=1 // pred_check_branch
      %52 = sbr.rel (0) target = $region45
    $region44: #{predict_positions.12} parent=1 // pred_region
      _
    $region45: #{predict_positions.12} parent=1 // pred_fallthru
      _
    // Predicated region
    $region46: #{predict_positions.12} parent=1 // pred_check
      _
    $region47: #{predict_positions.12} parent=1 // pred_check_branch
      %54 = sbr.rel (0) target = $region49
    $region48: #{predict_positions.12} parent=1 // pred_region
      _
    $region49: #{predict_positions.12} parent=1 // pred_fallthru
      _
    // Predicated region
    $region50: #{predict_positions.12} parent=1 // pred_check
      _
    $region51: #{predict_positions.12} parent=1 // pred_check_branch
      %56 = sbr.rel (0) target = $region53
    $region52: #{predict_positions.12} parent=1 // pred_region
      _
    $region53: #{predict_positions.12} parent=1 // pred_fallthru
      _
    // Predicated region
    $region54: #{predict_positions.12} parent=1 // pred_check
      _
    $region55: #{predict_positions.12} parent=1 // pred_check_branch
      %58 = sbr.rel (0) target = $region57
    $region56: #{predict_positions.12} parent=1 // pred_region
      _
    $region57: #{predict_positions.12} parent=1 // pred_fallthru
      _
    // Predicated region
    $region58: #{predict_positions.12} parent=1 // pred_check
      _
    $region59: #{predict_positions.12} parent=1 // pred_check_branch
      %60 = sbr.rel (0) target = $region61
    $region60: #{predict_positions.12} parent=1 // pred_region
      _
    $region61: #{predict_positions.12} parent=1 // pred_fallthru
      _
    // Predicated region
    $region62: #{predict_positions.12} parent=1 // pred_check
      _
    $region63: #{predict_positions.12} parent=1 // pred_check_branch
      %62 = sbr.rel (0) target = $region65
    $region64: #{predict_positions.12} parent=1 // pred_region
      _
    $region65: #{predict_positions.12} parent=1 // pred_fallthru
      _
    // Predicated region
    $region66: #{predict_positions.12} parent=1 // pred_check
      _
    $region67: #{predict_positions.12} parent=1 // pred_check_branch
      %64 = sbr.rel (0) target = $region69
    $region68: #{predict_positions.12} parent=1 // pred_region
      _
    $region69: #{predict_positions.12} parent=1 // pred_fallthru
      _
    // Predicated region
    $region70: #{predict_positions.12} parent=1 // pred_check
      _
    $region71: #{predict_positions.12} parent=1 // pred_check_branch
      %66 = sbr.rel (0) target = $region73
    $region72: #{predict_positions.12} parent=1 // pred_region
      _
    $region73: #{predict_positions.12} parent=1 // pred_fallthru
      _
    // Predicated region
    $region74: #{predict_positions.12} parent=1 // pred_check
      _
    $region75: #{predict_positions.12} parent=1 // pred_check_branch
      %68 = sbr.rel (0) target = $region77
    $region76: #{predict_positions.12} parent=1 // pred_region
      _
    $region77: #{predict_positions.12} parent=1 // pred_fallthru
      _
    // Predicated region
    $region78: #{predict_positions.12} parent=1 // pred_check
      _
    $region79: #{predict_positions.12} parent=1 // pred_check_branch
      %70 = sbr.rel (0) target = $region81
    $region80: #{predict_positions.12} parent=1 // pred_region
      _
    $region81: #{predict_positions.12} parent=1 // pred_fallthru
      _
    // Predicated region
    $region82: #{predict_positions.12} parent=1 // pred_check
      _
    $region83: #{predict_positions.12} parent=1 // pred_check_branch
      %72 = sbr.rel (0) target = $region85
    $region84: #{predict_positions.12} parent=1 // pred_region
      _
    $region85: #{predict_positions.12} parent=1 // pred_fallthru
      _
    %v74 = vld [vmem:[%s0] sm:$0xff]
    %v75 = vld [vmem:[%s0 + $0x8] sm:$0xff]
    %v76 = vld [vmem:[%s0 + $0x10] sm:$0xff]
    %v77 = vld [vmem:[%s0 + $0x18] sm:$0xff]
    %v78 = vpack.c.bf16 %v75, %v74
    %v79 = vpack.c.bf16 %v77, %v76
    %v80 = vld [vmem:[%s1] sm:$0xff]
    %v81 = vld [vmem:[%s1 + $0x8] sm:$0xff]
    %v82 = vld [vmem:[%s1 + $0x10] sm:$0xff]
    %v83 = vld [vmem:[%s1 + $0x18] sm:$0xff]
    %v84 = vpack.c.bf16 %v81, %v80
    %v85 = vpack.c.bf16 %v83, %v82
    %v86 = vld [vmem:[%s2] sm:$0xff]
    %v87 = vld [vmem:[%s2 + $0x8] sm:$0xff]
    %v88 = vld [vmem:[%s2 + $0x10] sm:$0xff]
    %v89 = vld [vmem:[%s2 + $0x18] sm:$0xff]
    %v90 = vpack.c.bf16 %v87, %v86
    %v91 = vpack.c.bf16 %v89, %v88
    %v92 = vld [vmem:[%s3] sm:$0xff]
    %v93 = vld [vmem:[%s3 + $0x8] sm:$0xff]
    %v94 = vld [vmem:[%s3 + $0x10] sm:$0xff]
    %v95 = vld [vmem:[%s3 + $0x18] sm:$0xff]
    %v96 = vld [vmem:[%s4] sm:$0xff]
    %v97 = vld [vmem:[%s4 + $0x8] sm:$0xff]
    %v98 = vld [vmem:[%s4 + $0x10] sm:$0xff]
    %v99 = vld [vmem:[%s4 + $0x18] sm:$0xff]
    %v100 = vpack.c.bf16 %v93, %v92
    %v101 = vpack.c.bf16 %v95, %v94
    %v102 = vld [vmem:[%s6] sm:$0x1]
    %v103 = vld [vmem:[%s5] sm:$0xf]
    %v104 = vld [vmem:[%s5 + $0x4] sm:$0xf]
    %v105 = vld [vmem:[%s5 + $0x8] sm:$0xf]
    %v106 = vld [vmem:[%s5 + $0xc] sm:$0xf]
    %v111 = vunpack.c.l.b16 %v103
    %v112 = vunpack.c.l.b16 %v104
    %v113 = vunpack.c.l.b16 %v105
    %v114 = vunpack.c.l.b16 %v106
    %v115 = vpack.c.b16 %v112, %v111
    %v116 = vpack.c.b16 %v114, %v113
    %vm119 = vcmask 261120
    %v121 = vsel %vm119, %v78, 0
    %v124 = vsel %vm119, %v79, 0
    %126 = vmatprep.subr.bf16.mxu0 0
    %127 = vmatpush1.bf16.msra.mxu0 %v115
    %128 = vmatprep.subr.bf16.mxu0 0
    %129 = vmatpush1.bf16.msra.mxu0 %v116
    %130 = vmatprep.subr.bf16.mxu0 0
    %131 = vmatpush1.bf16.msra.mxu0 0
    %132 = vmatprep.subr.bf16.mxu0 0
    %133 = vmatpush1.bf16.msra.mxu0 0
    %134 = vmatprep.subr.bf16.mxu0 0
    %135 = vmatpush1.bf16.msra.mxu0 0
    %136 = vmatprep.subr.bf16.mxu0 0
    %137 = vmatpush1.bf16.msra.mxu0 0
    %138 = vmatprep.subr.bf16.mxu0 0
    %139 = vmatpush1.bf16.msra.mxu0 0
    %140 = vmatprep.subr.bf16.mxu0 0
    %141 = vmatpush1.bf16.msra.mxu0 0
    %142 = vmatprep.subr.bf16.mxu0 0
    %143 = vmatpush1.bf16.msra.mxu0 0
    %144 = vmatprep.subr.bf16.mxu0 0
    %145 = vmatpush1.bf16.msra.mxu0 0
    %146 = vmatprep.subr.bf16.mxu0 0
    %147 = vmatpush1.bf16.msra.mxu0 0
    %148 = vmatprep.subr.bf16.mxu0 0
    %149 = vmatpush1.bf16.msra.mxu0 0
    %150 = vmatprep.subr.bf16.mxu0 0
    %151 = vmatpush1.bf16.msra.mxu0 0
    %152 = vmatprep.subr.bf16.mxu0 0
    %153 = vmatpush1.bf16.msra.mxu0 0
    %154 = vmatprep.subr.bf16.mxu0 0
    %155 = vmatpush1.bf16.msra.mxu0 0
    %156 = vmatprep.subr.bf16.mxu0 0
    %157 = vmatpush1.bf16.msra.mxu0 0
    %158 = vmatprep.mubr.bf16.mxu0 0
    %159 = vmatmul.mubr.bf16.gmra.mrb[0].mxu0 %v121
    %v160 = vpop.f32.mrb[0].mxu0
    %v161 = vadd.f32 0.0, %v160
    %v162 = vpop.f32.mrb[0].mxu0
    %v163 = vpop.f32.mrb[0].mxu0
    %v164 = vadd.f32 0.0, %v163
    %v165 = vpop.f32.mrb[0].mxu0
    %166 = vmatprep.mubr.bf16.mxu0 0
    %167 = vmatmul.mubr.bf16.gmra.mrb[0].mxu0 %v124
    %v168 = vpop.f32.mrb[0].mxu0
    %v169 = vadd.f32 0.0, %v168
    %v170 = vpop.f32.mrb[0].mxu0
    %v171 = vpop.f32.mrb[0].mxu0
    %v172 = vadd.f32 0.0, %v171
    %v173 = vpop.f32.mrb[0].mxu0
    %174 = vdwg.mxu0
    %v176 = vlaneseq
    %v177 = vshrl.u32 %v176, 7
    %v178 = vsub.s32 0, %v177
    %v179 = vrot.slane %v102, %v178
    %v181 = vadd.f32 %v179, %v161
    %v182 = vadd.f32 %v179, %v164
    %v183 = vadd.f32 %v179, %v169
    %v184 = vadd.f32 %v179, %v172
    %v185 = vld [vmem:[%s5 + $0x10] sm:$0xf]
    %v186 = vld [vmem:[%s5 + $0x14] sm:$0xf]
    %v187 = vld [vmem:[%s5 + $0x18] sm:$0xf]
    %v188 = vld [vmem:[%s5 + $0x1c] sm:$0xf]
    %v193 = vunpack.c.l.b16 %v185
    %v194 = vunpack.c.l.b16 %v186
    %v195 = vunpack.c.l.b16 %v187
    %v196 = vunpack.c.l.b16 %v188
    %v197 = vpack.c.b16 %v194, %v193
    %v198 = vpack.c.b16 %v196, %v195
    %v202 = vsel %vm119, %v84, 0
    %v205 = vsel %vm119, %v85, 0
    %207 = vmatprep.subr.bf16.mxu0 0
    %208 = vmatpush1.bf16.msra.mxu0 %v197
    %209 = vmatprep.subr.bf16.mxu0 0
    %210 = vmatpush1.bf16.msra.mxu0 %v198
    %211 = vmatprep.subr.bf16.mxu0 0
    %212 = vmatpush1.bf16.msra.mxu0 0
    %213 = vmatprep.subr.bf16.mxu0 0
    %214 = vmatpush1.bf16.msra.mxu0 0
    %215 = vmatprep.subr.bf16.mxu0 0
    %216 = vmatpush1.bf16.msra.mxu0 0
    %217 = vmatprep.subr.bf16.mxu0 0
    %218 = vmatpush1.bf16.msra.mxu0 0
    %219 = vmatprep.subr.bf16.mxu0 0
    %220 = vmatpush1.bf16.msra.mxu0 0
    %221 = vmatprep.subr.bf16.mxu0 0
    %222 = vmatpush1.bf16.msra.mxu0 0
    %223 = vmatprep.subr.bf16.mxu0 0
    %224 = vmatpush1.bf16.msra.mxu0 0
    %225 = vmatprep.subr.bf16.mxu0 0
    %226 = vmatpush1.bf16.msra.mxu0 0
    %227 = vmatprep.subr.bf16.mxu0 0
    %228 = vmatpush1.bf16.msra.mxu0 0
    %229 = vmatprep.subr.bf16.mxu0 0
    %230 = vmatpush1.bf16.msra.mxu0 0
    %231 = vmatprep.subr.bf16.mxu0 0
    %232 = vmatpush1.bf16.msra.mxu0 0
    %233 = vmatprep.subr.bf16.mxu0 0
    %234 = vmatpush1.bf16.msra.mxu0 0
    %235 = vmatprep.subr.bf16.mxu0 0
    %236 = vmatpush1.bf16.msra.mxu0 0
    %237 = vmatprep.subr.bf16.mxu0 0
    %238 = vmatpush1.bf16.msra.mxu0 0
    %239 = vmatprep.mubr.bf16.mxu0 0
    %240 = vmatmul.mubr.bf16.gmra.mrb[0].mxu0 %v202
    %v241 = vpop.f32.mrb[0].mxu0
    %v242 = vadd.f32 0.0, %v241
    %v243 = vpop.f32.mrb[0].mxu0
    %v244 = vpop.f32.mrb[0].mxu0
    %v245 = vadd.f32 0.0, %v244
    %v246 = vpop.f32.mrb[0].mxu0
    %247 = vmatprep.mubr.bf16.mxu0 0
    %248 = vmatmul.mubr.bf16.gmra.mrb[0].mxu0 %v205
    %v249 = vpop.f32.mrb[0].mxu0
    %v250 = vadd.f32 0.0, %v249
    %v251 = vpop.f32.mrb[0].mxu0
    %v252 = vpop.f32.mrb[0].mxu0
    %v253 = vadd.f32 0.0, %v252
    %v254 = vpop.f32.mrb[0].mxu0
    %255 = vdwg.mxu0
    %v256 = vadd.f32 %v181, %v242
    %v257 = vadd.f32 %v182, %v245
    %v258 = vadd.f32 %v183, %v250
    %v259 = vadd.f32 %v184, %v253
    %v260 = vld [vmem:[%s5 + $0x20] sm:$0xf]
    %v261 = vld [vmem:[%s5 + $0x24] sm:$0xf]
    %v262 = vld [vmem:[%s5 + $0x28] sm:$0xf]
    %v263 = vld [vmem:[%s5 + $0x2c] sm:$0xf]
    %v268 = vunpack.c.l.b16 %v260
    %v269 = vunpack.c.l.b16 %v261
    %v270 = vunpack.c.l.b16 %v262
    %v271 = vunpack.c.l.b16 %v263
    %v272 = vpack.c.b16 %v269, %v268
    %v273 = vpack.c.b16 %v271, %v270
    %v277 = vsel %vm119, %v100, 0
    %v280 = vsel %vm119, %v101, 0
    %282 = vmatprep.subr.bf16.mxu0 0
    %283 = vmatpush1.bf16.msra.mxu0 %v272
    %284 = vmatprep.subr.bf16.mxu0 0
    %285 = vmatpush1.bf16.msra.mxu0 %v273
    %286 = vmatprep.subr.bf16.mxu0 0
    %287 = vmatpush1.bf16.msra.mxu0 0
    %288 = vmatprep.subr.bf16.mxu0 0
    %289 = vmatpush1.bf16.msra.mxu0 0
    %290 = vmatprep.subr.bf16.mxu0 0
    %291 = vmatpush1.bf16.msra.mxu0 0
    %292 = vmatprep.subr.bf16.mxu0 0
    %293 = vmatpush1.bf16.msra.mxu0 0
    %294 = vmatprep.subr.bf16.mxu0 0
    %295 = vmatpush1.bf16.msra.mxu0 0
    %296 = vmatprep.subr.bf16.mxu0 0
    %297 = vmatpush1.bf16.msra.mxu0 0
    %298 = vmatprep.subr.bf16.mxu0 0
    %299 = vmatpush1.bf16.msra.mxu0 0
    %300 = vmatprep.subr.bf16.mxu0 0
    %301 = vmatpush1.bf16.msra.mxu0 0
    %302 = vmatprep.subr.bf16.mxu0 0
    %303 = vmatpush1.bf16.msra.mxu0 0
    %304 = vmatprep.subr.bf16.mxu0 0
    %305 = vmatpush1.bf16.msra.mxu0 0
    %306 = vmatprep.subr.bf16.mxu0 0
    %307 = vmatpush1.bf16.msra.mxu0 0
    %308 = vmatprep.subr.bf16.mxu0 0
    %309 = vmatpush1.bf16.msra.mxu0 0
    %310 = vmatprep.subr.bf16.mxu0 0
    %311 = vmatpush1.bf16.msra.mxu0 0
    %312 = vmatprep.subr.bf16.mxu0 0
    %313 = vmatpush1.bf16.msra.mxu0 0
    %314 = vmatprep.mubr.bf16.mxu0 0
    %315 = vmatmul.mubr.bf16.gmra.mrb[0].mxu0 %v277
    %v316 = vpop.f32.mrb[0].mxu0
    %v317 = vadd.f32 0.0, %v316
    %v318 = vpop.f32.mrb[0].mxu0
    %v319 = vpop.f32.mrb[0].mxu0
    %v320 = vadd.f32 0.0, %v319
    %v321 = vpop.f32.mrb[0].mxu0
    %322 = vmatprep.mubr.bf16.mxu0 0
    %323 = vmatmul.mubr.bf16.gmra.mrb[0].mxu0 %v280
    %v324 = vpop.f32.mrb[0].mxu0
    %v325 = vadd.f32 0.0, %v324
    %v326 = vpop.f32.mrb[0].mxu0
    %v327 = vpop.f32.mrb[0].mxu0
    %v328 = vadd.f32 0.0, %v327
    %v329 = vpop.f32.mrb[0].mxu0
    %330 = vdwg.mxu0
    %v331 = vadd.f32 %v256, %v317
    %v332 = vadd.f32 %v257, %v320
    %v333 = vadd.f32 %v258, %v325
    %v334 = vadd.f32 %v259, %v328
    %v335 = vmax.f32 %v331, 0.0
    %v336 = vmax.f32 %v332, 0.0
    %v337 = vmax.f32 %v333, 0.0
    %v338 = vmax.f32 %v334, 0.0
    %v339 = vpack.c.bf16 %v336, %v335
    %v340 = vpack.c.bf16 %v338, %v337
    %v341 = vld [vmem:[%s7] sm:$0xf]
    %v342 = vld [vmem:[%s7 + $0x4] sm:$0xf]
    %v343 = vld [vmem:[%s7 + $0x8] sm:$0xf]
    %v344 = vld [vmem:[%s7 + $0xc] sm:$0xf]
    %v345 = vld [vmem:[%s8] sm:$0x1]
    %v347 = vlaneseq
    %v348 = vshrl.u32 %v347, 7
    %v349 = vsub.s32 0, %v348
    %v350 = vrot.slane %v345, %v349
    %v356 = vunpack.c.l.b16 %v341
    %v357 = vunpack.c.l.b16 %v342
    %v358 = vunpack.c.l.b16 %v343
    %v359 = vunpack.c.l.b16 %v344
    %v360 = vpack.c.b16 %v357, %v356
    %v361 = vpack.c.b16 %v359, %v358
    %v365 = vsel %vm119, %v339, 0
    %v368 = vsel %vm119, %v340, 0
    %370 = vmatprep.subr.bf16.mxu0 0
    %371 = vmatpush1.bf16.msra.mxu0 %v360
    %372 = vmatprep.subr.bf16.mxu0 0
    %373 = vmatpush1.bf16.msra.mxu0 %v361
    %374 = vmatprep.subr.bf16.mxu0 0
    %375 = vmatpush1.bf16.msra.mxu0 0
    %376 = vmatprep.subr.bf16.mxu0 0
    %377 = vmatpush1.bf16.msra.mxu0 0
    %378 = vmatprep.subr.bf16.mxu0 0
    %379 = vmatpush1.bf16.msra.mxu0 0
    %380 = vmatprep.subr.bf16.mxu0 0
    %381 = vmatpush1.bf16.msra.mxu0 0
    %382 = vmatprep.subr.bf16.mxu0 0
    %383 = vmatpush1.bf16.msra.mxu0 0
    %384 = vmatprep.subr.bf16.mxu0 0
    %385 = vmatpush1.bf16.msra.mxu0 0
    %386 = vmatprep.subr.bf16.mxu0 0
    %387 = vmatpush1.bf16.msra.mxu0 0
    %388 = vmatprep.subr.bf16.mxu0 0
    %389 = vmatpush1.bf16.msra.mxu0 0
    %390 = vmatprep.subr.bf16.mxu0 0
    %391 = vmatpush1.bf16.msra.mxu0 0
    %392 = vmatprep.subr.bf16.mxu0 0
    %393 = vmatpush1.bf16.msra.mxu0 0
    %394 = vmatprep.subr.bf16.mxu0 0
    %395 = vmatpush1.bf16.msra.mxu0 0
    %396 = vmatprep.subr.bf16.mxu0 0
    %397 = vmatpush1.bf16.msra.mxu0 0
    %398 = vmatprep.subr.bf16.mxu0 0
    %399 = vmatpush1.bf16.msra.mxu0 0
    %400 = vmatprep.subr.bf16.mxu0 0
    %401 = vmatpush1.bf16.msra.mxu0 0
    %402 = vmatprep.mubr.bf16.mxu0 0
    %403 = vmatmul.mubr.bf16.gmra.mrb[0].mxu0 %v365
    %v404 = vpop.f32.mrb[0].mxu0
    %v405 = vadd.f32 %v350, %v404
    %v406 = vpop.f32.mrb[0].mxu0
    %v407 = vpop.f32.mrb[0].mxu0
    %v408 = vadd.f32 %v350, %v407
    %v409 = vpop.f32.mrb[0].mxu0
    %410 = vmatprep.mubr.bf16.mxu0 0
    %411 = vmatmul.mubr.bf16.gmra.mrb[0].mxu0 %v368
    %v412 = vpop.f32.mrb[0].mxu0
    %v413 = vadd.f32 %v350, %v412
    %v414 = vpop.f32.mrb[0].mxu0
    %v415 = vpop.f32.mrb[0].mxu0
    %v416 = vadd.f32 %v350, %v415
    %v417 = vpop.f32.mrb[0].mxu0
    %418 = vdwg.mxu0
    %v419 = vmax.f32 %v405, 0.0
    %v420 = vmax.f32 %v408, 0.0
    %v421 = vmax.f32 %v413, 0.0
    %v422 = vmax.f32 %v416, 0.0
    %v423 = vpack.c.bf16 %v420, %v419
    %v424 = vpack.c.bf16 %v422, %v421
    %v425 = vld [vmem:[%s9] sm:$0xf]
    %v426 = vld [vmem:[%s9 + $0x4] sm:$0xf]
    %v427 = vld [vmem:[%s9 + $0x8] sm:$0xf]
    %v428 = vld [vmem:[%s9 + $0xc] sm:$0xf]
    %v429 = vld [vmem:[%s10] sm:$0x1]
    %v431 = vlaneseq
    %v432 = vshrl.u32 %v431, 7
    %v433 = vsub.s32 0, %v432
    %v434 = vrot.slane %v429, %v433
    %v440 = vunpack.c.l.b16 %v425
    %v441 = vunpack.c.l.b16 %v426
    %v442 = vunpack.c.l.b16 %v427
    %v443 = vunpack.c.l.b16 %v428
    %v444 = vpack.c.b16 %v441, %v440
    %v445 = vpack.c.b16 %v443, %v442
    %v449 = vsel %vm119, %v423, 0
    %v452 = vsel %vm119, %v424, 0
    %454 = vmatprep.subr.bf16.mxu0 0
    %455 = vmatpush1.bf16.msra.mxu0 %v444
    %456 = vmatprep.subr.bf16.mxu0 0
    %457 = vmatpush1.bf16.msra.mxu0 %v445
    %458 = vmatprep.subr.bf16.mxu0 0
    %459 = vmatpush1.bf16.msra.mxu0 0
    %460 = vmatprep.subr.bf16.mxu0 0
    %461 = vmatpush1.bf16.msra.mxu0 0
    %462 = vmatprep.subr.bf16.mxu0 0
    %463 = vmatpush1.bf16.msra.mxu0 0
    %464 = vmatprep.subr.bf16.mxu0 0
    %465 = vmatpush1.bf16.msra.mxu0 0
    %466 = vmatprep.subr.bf16.mxu0 0
    %467 = vmatpush1.bf16.msra.mxu0 0
    %468 = vmatprep.subr.bf16.mxu0 0
    %469 = vmatpush1.bf16.msra.mxu0 0
    %470 = vmatprep.subr.bf16.mxu0 0
    %471 = vmatpush1.bf16.msra.mxu0 0
    %472 = vmatprep.subr.bf16.mxu0 0
    %473 = vmatpush1.bf16.msra.mxu0 0
    %474 = vmatprep.subr.bf16.mxu0 0
    %475 = vmatpush1.bf16.msra.mxu0 0
    %476 = vmatprep.subr.bf16.mxu0 0
    %477 = vmatpush1.bf16.msra.mxu0 0
    %478 = vmatprep.subr.bf16.mxu0 0
    %479 = vmatpush1.bf16.msra.mxu0 0
    %480 = vmatprep.subr.bf16.mxu0 0
    %481 = vmatpush1.bf16.msra.mxu0 0
    %482 = vmatprep.subr.bf16.mxu0 0
    %483 = vmatpush1.bf16.msra.mxu0 0
    %484 = vmatprep.subr.bf16.mxu0 0
    %485 = vmatpush1.bf16.msra.mxu0 0
    %486 = vmatprep.mubr.bf16.mxu0 0
    %487 = vmatmul.mubr.bf16.gmra.mrb[0].mxu0 %v449
    %v488 = vpop.f32.mrb[0].mxu0
    %v489 = vadd.f32 %v434, %v488
    %v490 = vpop.f32.mrb[0].mxu0
    %v491 = vpop.f32.mrb[0].mxu0
    %v492 = vadd.f32 %v434, %v491
    %v493 = vpop.f32.mrb[0].mxu0
    %494 = vmatprep.mubr.bf16.mxu0 0
    %495 = vmatmul.mubr.bf16.gmra.mrb[0].mxu0 %v452
    %v496 = vpop.f32.mrb[0].mxu0
    %v497 = vadd.f32 %v434, %v496
    %v498 = vpop.f32.mrb[0].mxu0
    %v499 = vpop.f32.mrb[0].mxu0
    %v500 = vadd.f32 %v434, %v499
    %v501 = vpop.f32.mrb[0].mxu0
    %502 = vdwg.mxu0
    %v503 = vld [vmem:[%s11] sm:$0x1]
    %v504 = vld [vmem:[%s12] sm:$0x1]
    %v505 = vsel %vm119, %v489, 0.0
    %506 = vadd.xlane.f32.xlu0 %v505
    %v507 = vpop.xlane.xlu0 %506
    %v508 = vsel %vm119, %v492, 0.0
    %509 = vadd.xlane.f32.xlu0 %v508
    %v510 = vpop.xlane.xlu0 %509
    %v511 = vsel %vm119, %v497, 0.0
    %512 = vadd.xlane.f32.xlu0 %v511
    %v513 = vpop.xlane.xlu0 %512
    %v514 = vsel %vm119, %v500, 0.0
    %515 = vadd.xlane.f32.xlu0 %v514
    %v516 = vpop.xlane.xlu0 %515
    %v517 = vrcp.pop 32.0
    %v518 = vmul.f32 %v507, %v517
    %v519 = vmul.f32 %v510, %v517
    %v520 = vmul.f32 %v513, %v517
    %v521 = vmul.f32 %v516, %v517
    %v522 = vsub.f32 %v489, %v518
    %v523 = vsub.f32 %v492, %v519
    %v524 = vsub.f32 %v497, %v520
    %v525 = vsub.f32 %v500, %v521
    %v526 = vmul.f32 %v522, %v522
    %v527 = vmul.f32 %v523, %v523
    %v528 = vmul.f32 %v524, %v524
    %v529 = vmul.f32 %v525, %v525
    %v530 = vsel %vm119, %v526, 0.0
    %531 = vadd.xlane.f32.xlu0 %v530
    %v532 = vpop.xlane.xlu0 %531
    %v533 = vsel %vm119, %v527, 0.0
    %534 = vadd.xlane.f32.xlu0 %v533
    %v535 = vpop.xlane.xlu0 %534
    %v536 = vsel %vm119, %v528, 0.0
    %537 = vadd.xlane.f32.xlu0 %v536
    %v538 = vpop.xlane.xlu0 %537
    %v539 = vsel %vm119, %v529, 0.0
    %540 = vadd.xlane.f32.xlu0 %v539
    %v541 = vpop.xlane.xlu0 %540
    %v542 = vmul.f32 %v532, %v517
    %v543 = vmul.f32 %v535, %v517
    %v544 = vmul.f32 %v538, %v517
    %v545 = vmul.f32 %v541, %v517
    %v546 = vadd.f32 %v542, 1e-05
    %v547 = vadd.f32 %v543, 1e-05
    %v548 = vadd.f32 %v544, 1e-05
    %v549 = vadd.f32 %v545, 1e-05
    %v550 = vrsqrt.pop %v546
    %v551 = vrsqrt.pop %v547
    %v552 = vrsqrt.pop %v548
    %v553 = vrsqrt.pop %v549
    %v554 = vmul.f32 %v522, %v550
    %v555 = vmul.f32 %v523, %v551
    %v556 = vmul.f32 %v524, %v552
    %v557 = vmul.f32 %v525, %v553
    %v559 = vlaneseq
    %v560 = vshrl.u32 %v559, 7
    %v561 = vsub.s32 0, %v560
    %v562 = vrot.slane %v503, %v561
    %v564 = vmul.f32 %v554, %v562
    %v565 = vmul.f32 %v555, %v562
    %v566 = vmul.f32 %v556, %v562
    %v567 = vmul.f32 %v557, %v562
    %v569 = vlaneseq
    %v570 = vshrl.u32 %v569, 7
    %v571 = vsub.s32 0, %v570
    %v572 = vrot.slane %v504, %v571
    %v574 = vadd.f32 %v564, %v572
    %v575 = vadd.f32 %v565, %v572
    %v576 = vadd.f32 %v566, %v572
    %v577 = vadd.f32 %v567, %v572
    %v578 = vpack.c.bf16 %v97, %v96
    %v579 = vpack.c.bf16 %v99, %v98
    %v581 = vsel %vm119, %v90, 0
    %v584 = vsel %vm119, %v91, 0
    %586 = vmatprep.subr.bf16.mxu0 0
    %587 = vmatpush1.bf16.msra.mxu0 %v197
    %588 = vmatprep.subr.bf16.mxu0 0
    %589 = vmatpush1.bf16.msra.mxu0 %v198
    %590 = vmatprep.subr.bf16.mxu0 0
    %591 = vmatpush1.bf16.msra.mxu0 0
    %592 = vmatprep.subr.bf16.mxu0 0
    %593 = vmatpush1.bf16.msra.mxu0 0
    %594 = vmatprep.subr.bf16.mxu0 0
    %595 = vmatpush1.bf16.msra.mxu0 0
    %596 = vmatprep.subr.bf16.mxu0 0
    %597 = vmatpush1.bf16.msra.mxu0 0
    %598 = vmatprep.subr.bf16.mxu0 0
    %599 = vmatpush1.bf16.msra.mxu0 0
    %600 = vmatprep.subr.bf16.mxu0 0
    %601 = vmatpush1.bf16.msra.mxu0 0
    %602 = vmatprep.subr.bf16.mxu0 0
    %603 = vmatpush1.bf16.msra.mxu0 0
    %604 = vmatprep.subr.bf16.mxu0 0
    %605 = vmatpush1.bf16.msra.mxu0 0
    %606 = vmatprep.subr.bf16.mxu0 0
    %607 = vmatpush1.bf16.msra.mxu0 0
    %608 = vmatprep.subr.bf16.mxu0 0
    %609 = vmatpush1.bf16.msra.mxu0 0
    %610 = vmatprep.subr.bf16.mxu0 0
    %611 = vmatpush1.bf16.msra.mxu0 0
    %612 = vmatprep.subr.bf16.mxu0 0
    %613 = vmatpush1.bf16.msra.mxu0 0
    %614 = vmatprep.subr.bf16.mxu0 0
    %615 = vmatpush1.bf16.msra.mxu0 0
    %616 = vmatprep.subr.bf16.mxu0 0
    %617 = vmatpush1.bf16.msra.mxu0 0
    %618 = vmatprep.mubr.bf16.mxu0 0
    %619 = vmatmul.mubr.bf16.gmra.mrb[0].mxu0 %v581
    %v620 = vpop.f32.mrb[0].mxu0
    %v621 = vadd.f32 0.0, %v620
    %v622 = vpop.f32.mrb[0].mxu0
    %v623 = vpop.f32.mrb[0].mxu0
    %v624 = vadd.f32 0.0, %v623
    %v625 = vpop.f32.mrb[0].mxu0
    %626 = vmatprep.mubr.bf16.mxu0 0
    %627 = vmatmul.mubr.bf16.gmra.mrb[0].mxu0 %v584
    %v628 = vpop.f32.mrb[0].mxu0
    %v629 = vadd.f32 0.0, %v628
    %v630 = vpop.f32.mrb[0].mxu0
    %v631 = vpop.f32.mrb[0].mxu0
    %v632 = vadd.f32 0.0, %v631
    %v633 = vpop.f32.mrb[0].mxu0
    %634 = vdwg.mxu0
    %v635 = vadd.f32 %v181, %v621
    %v636 = vadd.f32 %v182, %v624
    %v637 = vadd.f32 %v183, %v629
    %v638 = vadd.f32 %v184, %v632
    %v640 = vsel %vm119, %v578, 0
    %v643 = vsel %vm119, %v579, 0
    %645 = vmatprep.subr.bf16.mxu0 0
    %646 = vmatpush1.bf16.msra.mxu0 %v272
    %647 = vmatprep.subr.bf16.mxu0 0
    %648 = vmatpush1.bf16.msra.mxu0 %v273
    %649 = vmatprep.subr.bf16.mxu0 0
    %650 = vmatpush1.bf16.msra.mxu0 0
    %651 = vmatprep.subr.bf16.mxu0 0
    %652 = vmatpush1.bf16.msra.mxu0 0
    %653 = vmatprep.subr.bf16.mxu0 0
    %654 = vmatpush1.bf16.msra.mxu0 0
    %655 = vmatprep.subr.bf16.mxu0 0
    %656 = vmatpush1.bf16.msra.mxu0 0
    %657 = vmatprep.subr.bf16.mxu0 0
    %658 = vmatpush1.bf16.msra.mxu0 0
    %659 = vmatprep.subr.bf16.mxu0 0
    %660 = vmatpush1.bf16.msra.mxu0 0
    %661 = vmatprep.subr.bf16.mxu0 0
    %662 = vmatpush1.bf16.msra.mxu0 0
    %663 = vmatprep.subr.bf16.mxu0 0
    %664 = vmatpush1.bf16.msra.mxu0 0
    %665 = vmatprep.subr.bf16.mxu0 0
    %666 = vmatpush1.bf16.msra.mxu0 0
    %667 = vmatprep.subr.bf16.mxu0 0
    %668 = vmatpush1.bf16.msra.mxu0 0
    %669 = vmatprep.subr.bf16.mxu0 0
    %670 = vmatpush1.bf16.msra.mxu0 0
    %671 = vmatprep.subr.bf16.mxu0 0
    %672 = vmatpush1.bf16.msra.mxu0 0
    %673 = vmatprep.subr.bf16.mxu0 0
    %674 = vmatpush1.bf16.msra.mxu0 0
    %675 = vmatprep.subr.bf16.mxu0 0
    %676 = vmatpush1.bf16.msra.mxu0 0
    %677 = vmatprep.mubr.bf16.mxu0 0
    %678 = vmatmul.mubr.bf16.gmra.mrb[0].mxu0 %v640
    %v679 = vpop.f32.mrb[0].mxu0
    %v680 = vadd.f32 0.0, %v679
    %v681 = vpop.f32.mrb[0].mxu0
    %v682 = vpop.f32.mrb[0].mxu0
    %v683 = vadd.f32 0.0, %v682
    %v684 = vpop.f32.mrb[0].mxu0
    %685 = vmatprep.mubr.bf16.mxu0 0
    %686 = vmatmul.mubr.bf16.gmra.mrb[0].mxu0 %v643
    %v687 = vpop.f32.mrb[0].mxu0
    %v688 = vadd.f32 0.0, %v687
    %v689 = vpop.f32.mrb[0].mxu0
    %v690 = vpop.f32.mrb[0].mxu0
    %v691 = vadd.f32 0.0, %v690
    %v692 = vpop.f32.mrb[0].mxu0
    %693 = vdwg.mxu0
    %v694 = vadd.f32 %v635, %v680
    %v695 = vadd.f32 %v636, %v683
    %v696 = vadd.f32 %v637, %v688
    %v697 = vadd.f32 %v638, %v691
    %v698 = vmax.f32 %v694, 0.0
    %v699 = vmax.f32 %v695, 0.0
    %v700 = vmax.f32 %v696, 0.0
    %v701 = vmax.f32 %v697, 0.0
    %v702 = vpack.c.bf16 %v699, %v698
    %v703 = vpack.c.bf16 %v701, %v700
    %v705 = vsel %vm119, %v702, 0
    %v708 = vsel %vm119, %v703, 0
    %710 = vmatprep.subr.bf16.mxu0 0
    %711 = vmatpush1.bf16.msra.mxu0 %v360
    %712 = vmatprep.subr.bf16.mxu0 0
    %713 = vmatpush1.bf16.msra.mxu0 %v361
    %714 = vmatprep.subr.bf16.mxu0 0
    %715 = vmatpush1.bf16.msra.mxu0 0
    %716 = vmatprep.subr.bf16.mxu0 0
    %717 = vmatpush1.bf16.msra.mxu0 0
    %718 = vmatprep.subr.bf16.mxu0 0
    %719 = vmatpush1.bf16.msra.mxu0 0
    %720 = vmatprep.subr.bf16.mxu0 0
    %721 = vmatpush1.bf16.msra.mxu0 0
    %722 = vmatprep.subr.bf16.mxu0 0
    %723 = vmatpush1.bf16.msra.mxu0 0
    %724 = vmatprep.subr.bf16.mxu0 0
    %725 = vmatpush1.bf16.msra.mxu0 0
    %726 = vmatprep.subr.bf16.mxu0 0
    %727 = vmatpush1.bf16.msra.mxu0 0
    %728 = vmatprep.subr.bf16.mxu0 0
    %729 = vmatpush1.bf16.msra.mxu0 0
    %730 = vmatprep.subr.bf16.mxu0 0
    %731 = vmatpush1.bf16.msra.mxu0 0
    %732 = vmatprep.subr.bf16.mxu0 0
    %733 = vmatpush1.bf16.msra.mxu0 0
    %734 = vmatprep.subr.bf16.mxu0 0
    %735 = vmatpush1.bf16.msra.mxu0 0
    %736 = vmatprep.subr.bf16.mxu0 0
    %737 = vmatpush1.bf16.msra.mxu0 0
    %738 = vmatprep.subr.bf16.mxu0 0
    %739 = vmatpush1.bf16.msra.mxu0 0
    %740 = vmatprep.subr.bf16.mxu0 0
    %741 = vmatpush1.bf16.msra.mxu0 0
    %742 = vmatprep.mubr.bf16.mxu0 0
    %743 = vmatmul.mubr.bf16.gmra.mrb[0].mxu0 %v705
    %v744 = vpop.f32.mrb[0].mxu0
    %v745 = vadd.f32 %v350, %v744
    %v746 = vpop.f32.mrb[0].mxu0
    %v747 = vpop.f32.mrb[0].mxu0
    %v748 = vadd.f32 %v350, %v747
    %v749 = vpop.f32.mrb[0].mxu0
    %750 = vmatprep.mubr.bf16.mxu0 0
    %751 = vmatmul.mubr.bf16.gmra.mrb[0].mxu0 %v708
    %v752 = vpop.f32.mrb[0].mxu0
    %v753 = vadd.f32 %v350, %v752
    %v754 = vpop.f32.mrb[0].mxu0
    %v755 = vpop.f32.mrb[0].mxu0
    %v756 = vadd.f32 %v350, %v755
    %v757 = vpop.f32.mrb[0].mxu0
    %758 = vdwg.mxu0
    %v759 = vmax.f32 %v745, 0.0
    %v760 = vmax.f32 %v748, 0.0
    %v761 = vmax.f32 %v753, 0.0
    %v762 = vmax.f32 %v756, 0.0
    %v763 = vpack.c.bf16 %v760, %v759
    %v764 = vpack.c.bf16 %v762, %v761
    %v766 = vsel %vm119, %v763, 0
    %v769 = vsel %vm119, %v764, 0
    %771 = vmatprep.subr.bf16.mxu0 0
    %772 = vmatpush1.bf16.msra.mxu0 %v444
    %773 = vmatprep.subr.bf16.mxu0 0
    %774 = vmatpush1.bf16.msra.mxu0 %v445
    %775 = vmatprep.subr.bf16.mxu0 0
    %776 = vmatpush1.bf16.msra.mxu0 0
    %777 = vmatprep.subr.bf16.mxu0 0
    %778 = vmatpush1.bf16.msra.mxu0 0
    %779 = vmatprep.subr.bf16.mxu0 0
    %780 = vmatpush1.bf16.msra.mxu0 0
    %781 = vmatprep.subr.bf16.mxu0 0
    %782 = vmatpush1.bf16.msra.mxu0 0
    %783 = vmatprep.subr.bf16.mxu0 0
    %784 = vmatpush1.bf16.msra.mxu0 0
    %785 = vmatprep.subr.bf16.mxu0 0
    %786 = vmatpush1.bf16.msra.mxu0 0
    %787 = vmatprep.subr.bf16.mxu0 0
    %788 = vmatpush1.bf16.msra.mxu0 0
    %789 = vmatprep.subr.bf16.mxu0 0
    %790 = vmatpush1.bf16.msra.mxu0 0
    %791 = vmatprep.subr.bf16.mxu0 0
    %792 = vmatpush1.bf16.msra.mxu0 0
    %793 = vmatprep.subr.bf16.mxu0 0
    %794 = vmatpush1.bf16.msra.mxu0 0
    %795 = vmatprep.subr.bf16.mxu0 0
    %796 = vmatpush1.bf16.msra.mxu0 0
    %797 = vmatprep.subr.bf16.mxu0 0
    %798 = vmatpush1.bf16.msra.mxu0 0
    %799 = vmatprep.subr.bf16.mxu0 0
    %800 = vmatpush1.bf16.msra.mxu0 0
    %801 = vmatprep.subr.bf16.mxu0 0
    %802 = vmatpush1.bf16.msra.mxu0 0
    %803 = vmatprep.mubr.bf16.mxu0 0
    %804 = vmatmul.mubr.bf16.gmra.mrb[0].mxu0 %v766
    %v805 = vpop.f32.mrb[0].mxu0
    %v806 = vadd.f32 %v434, %v805
    %v807 = vpop.f32.mrb[0].mxu0
    %v808 = vpop.f32.mrb[0].mxu0
    %v809 = vadd.f32 %v434, %v808
    %v810 = vpop.f32.mrb[0].mxu0
    %811 = vmatprep.mubr.bf16.mxu0 0
    %812 = vmatmul.mubr.bf16.gmra.mrb[0].mxu0 %v769
    %v813 = vpop.f32.mrb[0].mxu0
    %v814 = vadd.f32 %v434, %v813
    %v815 = vpop.f32.mrb[0].mxu0
    %v816 = vpop.f32.mrb[0].mxu0
    %v817 = vadd.f32 %v434, %v816
    %v818 = vpop.f32.mrb[0].mxu0
    %819 = vdwg.mxu0
    %v820 = vsel %vm119, %v806, 0.0
    %821 = vadd.xlane.f32.xlu0 %v820
    %v822 = vpop.xlane.xlu0 %821
    %v823 = vsel %vm119, %v809, 0.0
    %824 = vadd.xlane.f32.xlu0 %v823
    %v825 = vpop.xlane.xlu0 %824
    %v826 = vsel %vm119, %v814, 0.0
    %827 = vadd.xlane.f32.xlu0 %v826
    %v828 = vpop.xlane.xlu0 %827
    %v829 = vsel %vm119, %v817, 0.0
    %830 = vadd.xlane.f32.xlu0 %v829
    %v831 = vpop.xlane.xlu0 %830
    %v832 = vmul.f32 %v822, %v517
    %v833 = vmul.f32 %v825, %v517
    %v834 = vmul.f32 %v828, %v517
    %v835 = vmul.f32 %v831, %v517
    %v836 = vsub.f32 %v806, %v832
    %v837 = vsub.f32 %v809, %v833
    %v838 = vsub.f32 %v814, %v834
    %v839 = vsub.f32 %v817, %v835
    %v840 = vmul.f32 %v836, %v836
    %v841 = vmul.f32 %v837, %v837
    %v842 = vmul.f32 %v838, %v838
    %v843 = vmul.f32 %v839, %v839
    %v844 = vsel %vm119, %v840, 0.0
    %845 = vadd.xlane.f32.xlu0 %v844
    %v846 = vpop.xlane.xlu0 %845
    %v847 = vsel %vm119, %v841, 0.0
    %848 = vadd.xlane.f32.xlu0 %v847
    %v849 = vpop.xlane.xlu0 %848
    %v850 = vsel %vm119, %v842, 0.0
    %851 = vadd.xlane.f32.xlu0 %v850
    %v852 = vpop.xlane.xlu0 %851
    %v853 = vsel %vm119, %v843, 0.0
    %854 = vadd.xlane.f32.xlu0 %v853
    %v855 = vpop.xlane.xlu0 %854
    %v856 = vmul.f32 %v846, %v517
    %v857 = vmul.f32 %v849, %v517
    %v858 = vmul.f32 %v852, %v517
    %v859 = vmul.f32 %v855, %v517
    %v860 = vadd.f32 %v856, 1e-05
    %v861 = vadd.f32 %v857, 1e-05
    %v862 = vadd.f32 %v858, 1e-05
    %v863 = vadd.f32 %v859, 1e-05
    %v864 = vrsqrt.pop %v860
    %v865 = vrsqrt.pop %v861
    %v866 = vrsqrt.pop %v862
    %v867 = vrsqrt.pop %v863
    %v868 = vmul.f32 %v836, %v864
    %v869 = vmul.f32 %v837, %v865
    %v870 = vmul.f32 %v838, %v866
    %v871 = vmul.f32 %v839, %v867
    %v872 = vmul.f32 %v868, %v562
    %v873 = vmul.f32 %v869, %v562
    %v874 = vmul.f32 %v870, %v562
    %v875 = vmul.f32 %v871, %v562
    %v876 = vadd.f32 %v872, %v572
    %v877 = vadd.f32 %v873, %v572
    %v878 = vadd.f32 %v874, %v572
    %v879 = vadd.f32 %v875, %v572
    %v880 = vadd.f32 %v574, %v92
    %v881 = vadd.f32 %v575, %v93
    %v882 = vadd.f32 %v576, %v94
    %v883 = vadd.f32 %v577, %v95
    %884 = vst.msk [vmem:[#allocation2] sm:$0xff] %vm119, %v880
    %885 = vst.msk [vmem:[#allocation2 + $0x8] sm:$0xff] %vm119, %v881
    %886 = vst.msk [vmem:[#allocation2 + $0x10] sm:$0xff] %vm119, %v882
    %887 = vst.msk [vmem:[#allocation2 + $0x18] sm:$0xff] %vm119, %v883
    %v888 = vadd.f32 %v876, %v96
    %v889 = vadd.f32 %v877, %v97
    %v890 = vadd.f32 %v878, %v98
    %v891 = vadd.f32 %v879, %v99
    %892 = vst.msk [vmem:[#allocation4] sm:$0xff] %vm119, %v888
    %893 = vst.msk [vmem:[#allocation4 + $0x8] sm:$0xff] %vm119, %v889
    %894 = vst.msk [vmem:[#allocation4 + $0x10] sm:$0xff] %vm119, %v890
    %895 = vst.msk [vmem:[#allocation4 + $0x18] sm:$0xff] %vm119, %v891
    %v896 = vadd.f32 %v574, %v876
    %v897 = vadd.f32 %v575, %v877
    %v898 = vadd.f32 %v576, %v878
    %v899 = vadd.f32 %v577, %v879
    %v900 = vpack.c.bf16 %v897, %v896
    %v901 = vpack.c.bf16 %v899, %v898
    %v902 = vld [vmem:[%s14] sm:$0x1]
    %v903 = vld [vmem:[%s13] sm:$0xf]
    %v904 = vld [vmem:[%s13 + $0x4] sm:$0xf]
    %v905 = vld [vmem:[%s13 + $0x8] sm:$0xf]
    %v906 = vld [vmem:[%s13 + $0xc] sm:$0xf]
    %v911 = vunpack.c.l.b16 %v903
    %v912 = vunpack.c.l.b16 %v904
    %v913 = vunpack.c.l.b16 %v905
    %v914 = vunpack.c.l.b16 %v906
    %v915 = vpack.c.b16 %v912, %v911
    %v916 = vpack.c.b16 %v914, %v913
    %v920 = vsel %vm119, %v900, 0
    %v923 = vsel %vm119, %v901, 0
    %925 = vmatprep.subr.bf16.mxu0 0
    %926 = vmatpush1.bf16.msra.mxu0 %v915
    %927 = vmatprep.subr.bf16.mxu0 0
    %928 = vmatpush1.bf16.msra.mxu0 %v916
    %929 = vmatprep.subr.bf16.mxu0 0
    %930 = vmatpush1.bf16.msra.mxu0 0
    %931 = vmatprep.subr.bf16.mxu0 0
    %932 = vmatpush1.bf16.msra.mxu0 0
    %933 = vmatprep.subr.bf16.mxu0 0
    %934 = vmatpush1.bf16.msra.mxu0 0
    %935 = vmatprep.subr.bf16.mxu0 0
    %936 = vmatpush1.bf16.msra.mxu0 0
    %937 = vmatprep.subr.bf16.mxu0 0
    %938 = vmatpush1.bf16.msra.mxu0 0
    %939 = vmatprep.subr.bf16.mxu0 0
    %940 = vmatpush1.bf16.msra.mxu0 0
    %941 = vmatprep.subr.bf16.mxu0 0
    %942 = vmatpush1.bf16.msra.mxu0 0
    %943 = vmatprep.subr.bf16.mxu0 0
    %944 = vmatpush1.bf16.msra.mxu0 0
    %945 = vmatprep.subr.bf16.mxu0 0
    %946 = vmatpush1.bf16.msra.mxu0 0
    %947 = vmatprep.subr.bf16.mxu0 0
    %948 = vmatpush1.bf16.msra.mxu0 0
    %949 = vmatprep.subr.bf16.mxu0 0
    %950 = vmatpush1.bf16.msra.mxu0 0
    %951 = vmatprep.subr.bf16.mxu0 0
    %952 = vmatpush1.bf16.msra.mxu0 0
    %953 = vmatprep.subr.bf16.mxu0 0
    %954 = vmatpush1.bf16.msra.mxu0 0
    %955 = vmatprep.subr.bf16.mxu0 0
    %956 = vmatpush1.bf16.msra.mxu0 0
    %957 = vmatprep.mubr.bf16.mxu0 0
    %958 = vmatmul.mubr.bf16.gmra.mrb[0].mxu0 %v920
    %v959 = vpop.f32.mrb[0].mxu0
    %v960 = vadd.f32 0.0, %v959
    %v961 = vpop.f32.mrb[0].mxu0
    %v962 = vpop.f32.mrb[0].mxu0
    %v963 = vadd.f32 0.0, %v962
    %v964 = vpop.f32.mrb[0].mxu0
    %965 = vmatprep.mubr.bf16.mxu0 0
    %966 = vmatmul.mubr.bf16.gmra.mrb[0].mxu0 %v923
    %v967 = vpop.f32.mrb[0].mxu0
    %v968 = vadd.f32 0.0, %v967
    %v969 = vpop.f32.mrb[0].mxu0
    %v970 = vpop.f32.mrb[0].mxu0
    %v971 = vadd.f32 0.0, %v970
    %v972 = vpop.f32.mrb[0].mxu0
    %973 = vdwg.mxu0
    %v975 = vlaneseq
    %v976 = vshrl.u32 %v975, 7
    %v977 = vsub.s32 0, %v976
    %v978 = vrot.slane %v902, %v977
    %v980 = vadd.f32 %v978, %v960
    %v981 = vadd.f32 %v978, %v963
    %v982 = vadd.f32 %v978, %v968
    %v983 = vadd.f32 %v978, %v971
    %v984 = vld [vmem:[%s13 + $0x10] sm:$0xf]
    %v985 = vld [vmem:[%s13 + $0x14] sm:$0xf]
    %v986 = vld [vmem:[%s13 + $0x18] sm:$0xf]
    %v987 = vld [vmem:[%s13 + $0x1c] sm:$0xf]
    %v992 = vunpack.c.l.b16 %v984
    %v993 = vunpack.c.l.b16 %v985
    %v994 = vunpack.c.l.b16 %v986
    %v995 = vunpack.c.l.b16 %v987
    %v996 = vpack.c.b16 %v993, %v992
    %v997 = vpack.c.b16 %v995, %v994
    %1000 = vmatprep.subr.bf16.mxu0 0
    %1001 = vmatpush1.bf16.msra.mxu0 %v996
    %1002 = vmatprep.subr.bf16.mxu0 0
    %1003 = vmatpush1.bf16.msra.mxu0 %v997
    %1004 = vmatprep.subr.bf16.mxu0 0
    %1005 = vmatpush1.bf16.msra.mxu0 0
    %1006 = vmatprep.subr.bf16.mxu0 0
    %1007 = vmatpush1.bf16.msra.mxu0 0
    %1008 = vmatprep.subr.bf16.mxu0 0
    %1009 = vmatpush1.bf16.msra.mxu0 0
    %1010 = vmatprep.subr.bf16.mxu0 0
    %1011 = vmatpush1.bf16.msra.mxu0 0
    %1012 = vmatprep.subr.bf16.mxu0 0
    %1013 = vmatpush1.bf16.msra.mxu0 0
    %1014 = vmatprep.subr.bf16.mxu0 0
    %1015 = vmatpush1.bf16.msra.mxu0 0
    %1016 = vmatprep.subr.bf16.mxu0 0
    %1017 = vmatpush1.bf16.msra.mxu0 0
    %1018 = vmatprep.subr.bf16.mxu0 0
    %1019 = vmatpush1.bf16.msra.mxu0 0
    %1020 = vmatprep.subr.bf16.mxu0 0
    %1021 = vmatpush1.bf16.msra.mxu0 0
    %1022 = vmatprep.subr.bf16.mxu0 0
    %1023 = vmatpush1.bf16.msra.mxu0 0
    %1024 = vmatprep.subr.bf16.mxu0 0
    %1025 = vmatpush1.bf16.msra.mxu0 0
    %1026 = vmatprep.subr.bf16.mxu0 0
    %1027 = vmatpush1.bf16.msra.mxu0 0
    %1028 = vmatprep.subr.bf16.mxu0 0
    %1029 = vmatpush1.bf16.msra.mxu0 0
    %1030 = vmatprep.subr.bf16.mxu0 0
    %1031 = vmatpush1.bf16.msra.mxu0 0
    %1032 = vmatprep.mubr.bf16.mxu0 0
    %1033 = vmatmul.mubr.bf16.gmra.mrb[0].mxu0 %v121
    %v1034 = vpop.f32.mrb[0].mxu0
    %v1035 = vadd.f32 0.0, %v1034
    %v1036 = vpop.f32.mrb[0].mxu0
    %v1037 = vpop.f32.mrb[0].mxu0
    %v1038 = vadd.f32 0.0, %v1037
    %v1039 = vpop.f32.mrb[0].mxu0
    %1040 = vmatprep.mubr.bf16.mxu0 0
    %1041 = vmatmul.mubr.bf16.gmra.mrb[0].mxu0 %v124
    %v1042 = vpop.f32.mrb[0].mxu0
    %v1043 = vadd.f32 0.0, %v1042
    %v1044 = vpop.f32.mrb[0].mxu0
    %v1045 = vpop.f32.mrb[0].mxu0
    %v1046 = vadd.f32 0.0, %v1045
    %v1047 = vpop.f32.mrb[0].mxu0
    %1048 = vdwg.mxu0
    %v1049 = vadd.f32 %v980, %v1035
    %v1050 = vadd.f32 %v981, %v1038
    %v1051 = vadd.f32 %v982, %v1043
    %v1052 = vadd.f32 %v983, %v1046
    %v1053 = vmax.f32 %v1049, 0.0
    %v1054 = vmax.f32 %v1050, 0.0
    %v1055 = vmax.f32 %v1051, 0.0
    %v1056 = vmax.f32 %v1052, 0.0
    %v1057 = vpack.c.bf16 %v1054, %v1053
    %v1058 = vpack.c.bf16 %v1056, %v1055
    %v1059 = vld [vmem:[%s15] sm:$0xf]
    %v1060 = vld [vmem:[%s15 + $0x4] sm:$0xf]
    %v1061 = vld [vmem:[%s15 + $0x8] sm:$0xf]
    %v1062 = vld [vmem:[%s15 + $0xc] sm:$0xf]
    %v1063 = vld [vmem:[%s16] sm:$0x1]
    %v1065 = vlaneseq
    %v1066 = vshrl.u32 %v1065, 7
    %v1067 = vsub.s32 0, %v1066
    %v1068 = vrot.slane %v1063, %v1067
    %v1074 = vunpack.c.l.b16 %v1059
    %v1075 = vunpack.c.l.b16 %v1060
    %v1076 = vunpack.c.l.b16 %v1061
    %v1077 = vunpack.c.l.b16 %v1062
    %v1078 = vpack.c.b16 %v1075, %v1074
    %v1079 = vpack.c.b16 %v1077, %v1076
    %v1083 = vsel %vm119, %v1057, 0
    %v1086 = vsel %vm119, %v1058, 0
    %1088 = vmatprep.subr.bf16.mxu0 0
    %1089 = vmatpush1.bf16.msra.mxu0 %v1078
    %1090 = vmatprep.subr.bf16.mxu0 0
    %1091 = vmatpush1.bf16.msra.mxu0 %v1079
    %1092 = vmatprep.subr.bf16.mxu0 0
    %1093 = vmatpush1.bf16.msra.mxu0 0
    %1094 = vmatprep.subr.bf16.mxu0 0
    %1095 = vmatpush1.bf16.msra.mxu0 0
    %1096 = vmatprep.subr.bf16.mxu0 0
    %1097 = vmatpush1.bf16.msra.mxu0 0
    %1098 = vmatprep.subr.bf16.mxu0 0
    %1099 = vmatpush1.bf16.msra.mxu0 0
    %1100 = vmatprep.subr.bf16.mxu0 0
    %1101 = vmatpush1.bf16.msra.mxu0 0
    %1102 = vmatprep.subr.bf16.mxu0 0
    %1103 = vmatpush1.bf16.msra.mxu0 0
    %1104 = vmatprep.subr.bf16.mxu0 0
    %1105 = vmatpush1.bf16.msra.mxu0 0
    %1106 = vmatprep.subr.bf16.mxu0 0
    %1107 = vmatpush1.bf16.msra.mxu0 0
    %1108 = vmatprep.subr.bf16.mxu0 0
    %1109 = vmatpush1.bf16.msra.mxu0 0
    %1110 = vmatprep.subr.bf16.mxu0 0
    %1111 = vmatpush1.bf16.msra.mxu0 0
    %1112 = vmatprep.subr.bf16.mxu0 0
    %1113 = vmatpush1.bf16.msra.mxu0 0
    %1114 = vmatprep.subr.bf16.mxu0 0
    %1115 = vmatpush1.bf16.msra.mxu0 0
    %1116 = vmatprep.subr.bf16.mxu0 0
    %1117 = vmatpush1.bf16.msra.mxu0 0
    %1118 = vmatprep.subr.bf16.mxu0 0
    %1119 = vmatpush1.bf16.msra.mxu0 0
    %1120 = vmatprep.mubr.bf16.mxu0 0
    %1121 = vmatmul.mubr.bf16.gmra.mrb[0].mxu0 %v1083
    %v1122 = vpop.f32.mrb[0].mxu0
    %v1123 = vadd.f32 %v1068, %v1122
    %v1124 = vpop.f32.mrb[0].mxu0
    %v1125 = vpop.f32.mrb[0].mxu0
    %v1126 = vadd.f32 %v1068, %v1125
    %v1127 = vpop.f32.mrb[0].mxu0
    %1128 = vmatprep.mubr.bf16.mxu0 0
    %1129 = vmatmul.mubr.bf16.gmra.mrb[0].mxu0 %v1086
    %v1130 = vpop.f32.mrb[0].mxu0
    %v1131 = vadd.f32 %v1068, %v1130
    %v1132 = vpop.f32.mrb[0].mxu0
    %v1133 = vpop.f32.mrb[0].mxu0
    %v1134 = vadd.f32 %v1068, %v1133
    %v1135 = vpop.f32.mrb[0].mxu0
    %1136 = vdwg.mxu0
    %v1137 = vmax.f32 %v1123, 0.0
    %v1138 = vmax.f32 %v1126, 0.0
    %v1139 = vmax.f32 %v1131, 0.0
    %v1140 = vmax.f32 %v1134, 0.0
    %v1141 = vpack.c.bf16 %v1138, %v1137
    %v1142 = vpack.c.bf16 %v1140, %v1139
    %v1143 = vld [vmem:[%s17] sm:$0xf]
    %v1144 = vld [vmem:[%s17 + $0x4] sm:$0xf]
    %v1145 = vld [vmem:[%s17 + $0x8] sm:$0xf]
    %v1146 = vld [vmem:[%s17 + $0xc] sm:$0xf]
    %v1147 = vld [vmem:[%s18] sm:$0x1]
    %v1149 = vlaneseq
    %v1150 = vshrl.u32 %v1149, 7
    %v1151 = vsub.s32 0, %v1150
    %v1152 = vrot.slane %v1147, %v1151
    %v1158 = vunpack.c.l.b16 %v1143
    %v1159 = vunpack.c.l.b16 %v1144
    %v1160 = vunpack.c.l.b16 %v1145
    %v1161 = vunpack.c.l.b16 %v1146
    %v1162 = vpack.c.b16 %v1159, %v1158
    %v1163 = vpack.c.b16 %v1161, %v1160
    %v1167 = vsel %vm119, %v1141, 0
    %v1170 = vsel %vm119, %v1142, 0
    %1172 = vmatprep.subr.bf16.mxu0 0
    %1173 = vmatpush1.bf16.msra.mxu0 %v1162
    %1174 = vmatprep.subr.bf16.mxu0 0
    %1175 = vmatpush1.bf16.msra.mxu0 %v1163
    %1176 = vmatprep.subr.bf16.mxu0 0
    %1177 = vmatpush1.bf16.msra.mxu0 0
    %1178 = vmatprep.subr.bf16.mxu0 0
    %1179 = vmatpush1.bf16.msra.mxu0 0
    %1180 = vmatprep.subr.bf16.mxu0 0
    %1181 = vmatpush1.bf16.msra.mxu0 0
    %1182 = vmatprep.subr.bf16.mxu0 0
    %1183 = vmatpush1.bf16.msra.mxu0 0
    %1184 = vmatprep.subr.bf16.mxu0 0
    %1185 = vmatpush1.bf16.msra.mxu0 0
    %1186 = vmatprep.subr.bf16.mxu0 0
    %1187 = vmatpush1.bf16.msra.mxu0 0
    %1188 = vmatprep.subr.bf16.mxu0 0
    %1189 = vmatpush1.bf16.msra.mxu0 0
    %1190 = vmatprep.subr.bf16.mxu0 0
    %1191 = vmatpush1.bf16.msra.mxu0 0
    %1192 = vmatprep.subr.bf16.mxu0 0
    %1193 = vmatpush1.bf16.msra.mxu0 0
    %1194 = vmatprep.subr.bf16.mxu0 0
    %1195 = vmatpush1.bf16.msra.mxu0 0
    %1196 = vmatprep.subr.bf16.mxu0 0
    %1197 = vmatpush1.bf16.msra.mxu0 0
    %1198 = vmatprep.subr.bf16.mxu0 0
    %1199 = vmatpush1.bf16.msra.mxu0 0
    %1200 = vmatprep.subr.bf16.mxu0 0
    %1201 = vmatpush1.bf16.msra.mxu0 0
    %1202 = vmatprep.subr.bf16.mxu0 0
    %1203 = vmatpush1.bf16.msra.mxu0 0
    %1204 = vmatprep.mubr.bf16.mxu0 0
    %1205 = vmatmul.mubr.bf16.gmra.mrb[0].mxu0 %v1167
    %v1206 = vpop.f32.mrb[0].mxu0
    %v1207 = vadd.f32 %v1152, %v1206
    %v1208 = vpop.f32.mrb[0].mxu0
    %v1209 = vpop.f32.mrb[0].mxu0
    %v1210 = vadd.f32 %v1152, %v1209
    %v1211 = vpop.f32.mrb[0].mxu0
    %1212 = vmatprep.mubr.bf16.mxu0 0
    %1213 = vmatmul.mubr.bf16.gmra.mrb[0].mxu0 %v1170
    %v1214 = vpop.f32.mrb[0].mxu0
    %v1215 = vadd.f32 %v1152, %v1214
    %v1216 = vpop.f32.mrb[0].mxu0
    %v1217 = vpop.f32.mrb[0].mxu0
    %v1218 = vadd.f32 %v1152, %v1217
    %v1219 = vpop.f32.mrb[0].mxu0
    %1220 = vdwg.mxu0
    %v1221 = vld [vmem:[%s19] sm:$0x1]
    %v1222 = vld [vmem:[%s20] sm:$0x1]
    %v1223 = vsel %vm119, %v1207, 0.0
    %1224 = vadd.xlane.f32.xlu0 %v1223
    %v1225 = vpop.xlane.xlu0 %1224
    %v1226 = vsel %vm119, %v1210, 0.0
    %1227 = vadd.xlane.f32.xlu0 %v1226
    %v1228 = vpop.xlane.xlu0 %1227
    %v1229 = vsel %vm119, %v1215, 0.0
    %1230 = vadd.xlane.f32.xlu0 %v1229
    %v1231 = vpop.xlane.xlu0 %1230
    %v1232 = vsel %vm119, %v1218, 0.0
    %1233 = vadd.xlane.f32.xlu0 %v1232
    %v1234 = vpop.xlane.xlu0 %1233
    %v1235 = vmul.f32 %v1225, %v517
    %v1236 = vmul.f32 %v1228, %v517
    %v1237 = vmul.f32 %v1231, %v517
    %v1238 = vmul.f32 %v1234, %v517
    %v1239 = vsub.f32 %v1207, %v1235
    %v1240 = vsub.f32 %v1210, %v1236
    %v1241 = vsub.f32 %v1215, %v1237
    %v1242 = vsub.f32 %v1218, %v1238
    %v1243 = vmul.f32 %v1239, %v1239
    %v1244 = vmul.f32 %v1240, %v1240
    %v1245 = vmul.f32 %v1241, %v1241
    %v1246 = vmul.f32 %v1242, %v1242
    %v1247 = vsel %vm119, %v1243, 0.0
    %1248 = vadd.xlane.f32.xlu0 %v1247
    %v1249 = vpop.xlane.xlu0 %1248
    %v1250 = vsel %vm119, %v1244, 0.0
    %1251 = vadd.xlane.f32.xlu0 %v1250
    %v1252 = vpop.xlane.xlu0 %1251
    %v1253 = vsel %vm119, %v1245, 0.0
    %1254 = vadd.xlane.f32.xlu0 %v1253
    %v1255 = vpop.xlane.xlu0 %1254
    %v1256 = vsel %vm119, %v1246, 0.0
    %1257 = vadd.xlane.f32.xlu0 %v1256
    %v1258 = vpop.xlane.xlu0 %1257
    %v1259 = vmul.f32 %v1249, %v517
    %v1260 = vmul.f32 %v1252, %v517
    %v1261 = vmul.f32 %v1255, %v517
    %v1262 = vmul.f32 %v1258, %v517
    %v1263 = vadd.f32 %v1259, 1e-05
    %v1264 = vadd.f32 %v1260, 1e-05
    %v1265 = vadd.f32 %v1261, 1e-05
    %v1266 = vadd.f32 %v1262, 1e-05
    %v1267 = vrsqrt.pop %v1263
    %v1268 = vrsqrt.pop %v1264
    %v1269 = vrsqrt.pop %v1265
    %v1270 = vrsqrt.pop %v1266
    %v1271 = vmul.f32 %v1239, %v1267
    %v1272 = vmul.f32 %v1240, %v1268
    %v1273 = vmul.f32 %v1241, %v1269
    %v1274 = vmul.f32 %v1242, %v1270
    %v1276 = vlaneseq
    %v1277 = vshrl.u32 %v1276, 7
    %v1278 = vsub.s32 0, %v1277
    %v1279 = vrot.slane %v1221, %v1278
    %v1281 = vmul.f32 %v1271, %v1279
    %v1282 = vmul.f32 %v1272, %v1279
    %v1283 = vmul.f32 %v1273, %v1279
    %v1284 = vmul.f32 %v1274, %v1279
    %v1286 = vlaneseq
    %v1287 = vshrl.u32 %v1286, 7
    %v1288 = vsub.s32 0, %v1287
    %v1289 = vrot.slane %v1222, %v1288
    %v1291 = vadd.f32 %v1281, %v1289
    %v1292 = vadd.f32 %v1282, %v1289
    %v1293 = vadd.f32 %v1283, %v1289
    %v1294 = vadd.f32 %v1284, %v1289
    %v1295 = vadd.f32 %v1291, %v74
    %v1296 = vadd.f32 %v1292, %v75
    %v1297 = vadd.f32 %v1293, %v76
    %v1298 = vadd.f32 %v1294, %v77
    %1299 = vst.msk [vmem:[%s21] sm:$0xff] %vm119, %v1295
    %1300 = vst.msk [vmem:[%s21 + $0x8] sm:$0xff] %vm119, %v1296
    %1301 = vst.msk [vmem:[%s21 + $0x10] sm:$0xff] %vm119, %v1297
    %1302 = vst.msk [vmem:[%s21 + $0x18] sm:$0xff] %vm119, %v1298
    // Predicated region
    $region86: #{predict_positions.12} parent=1 // pred_check
      _
    $region87: #{predict_positions.12} parent=1 // pred_check_branch
      %1304 = sbr.rel (0) target = $region89
    $region88: #{predict_positions.12} parent=1 // pred_region
      _
    $region89: #{predict_positions.12} parent=1 // pred_fallthru
      _
    // Predicated region
    $region90: #{predict_positions.12} parent=1 // pred_check
      _
    $region91: #{predict_positions.12} parent=1 // pred_check_branch
      %1306 = sbr.rel (0) target = $region93
    $region92: #{predict_positions.12} parent=1 // pred_region
      %s1308 = ssub.s32 512, 512
      %1309 = vsyncadd [#allocation3], %s1308
      %s1310 = sshll.u32 [#allocation2], 4
      %s1311 = int_to_ptr.vmem [resolvable:$true] %s1310
      %1316 = dma.vmem_to_hbm [thread:$0]  %s1311, 512, %s22, [#allocation3], 128, 128, 8
    $region93: #{predict_positions.12} parent=1 // pred_fallthru
      _
    // Predicated region
    $region94: #{predict_positions.12} parent=1 // pred_check
      _
    $region95: #{predict_positions.12} parent=1 // pred_check_branch
      %1318 = sbr.rel (0) target = $region97
    $region96: #{predict_positions.12} parent=1 // pred_region
      %s1320 = ssub.s32 512, 512
      %1321 = vsyncadd [#allocation5], %s1320
      %s1322 = sshll.u32 [#allocation4], 4
      %s1323 = int_to_ptr.vmem [resolvable:$true] %s1322
      %1328 = dma.vmem_to_hbm [thread:$0]  %s1323, 512, %s23, [#allocation5], 128, 128, 8
    $region97: #{predict_positions.12} parent=1 // pred_fallthru
      _
    // Predicated region
    $region98: #{predict_positions.12} parent=1 // pred_check
      _
    $region99: #{predict_positions.12} parent=1 // pred_check_branch
      %1330 = sbr.rel (0) target = $region101
    $region100: #{predict_positions.12} parent=1 // pred_region
      _
    $region101: #{predict_positions.12} parent=1 // pred_fallthru
      _
    // Predicated region
    $region102: #{predict_positions.12} parent=1 // pred_check
      _
    $region103: #{predict_positions.12} parent=1 // pred_check_branch
      %1332 = sbr.rel (0) target = $region105
    $region104: #{predict_positions.12} parent=1 // pred_region
      %1333 = dma.done [#allocation3], 512
    $region105: #{predict_positions.12} parent=1 // pred_fallthru
      _
    // Predicated region
    $region106: #{predict_positions.12} parent=1 // pred_check
      _
    $region107: #{predict_positions.12} parent=1 // pred_check_branch
      %1335 = sbr.rel (0) target = $region109
    $region108: #{predict_positions.12} parent=1 // pred_region
      %1336 = dma.done [#allocation5], 512
    $region109: #{predict_positions.12} parent=1 // pred_fallthru
      _
    %1337 = vsyncpa [#allocation3], 1
    %1338 = vsyncpa [#allocation5], 1

</llo_original>
